<compile_context>
chip_gen: v6e
topology: v6e:2x2x1
jax: 0.10.0
libtpu: 0.0.40
codegen_flags: <defaults>
</compile_context>

<pallas_src>
import functools
import math

import jax
import jax.numpy as jnp
from jax.experimental import pallas as pl
from jax.experimental.pallas import tpu as pltpu


_VMEM_LIMIT = 64 * 1024 * 1024  # safe on v7x (64 MiB physical); headroom on v5e/v6e.


def _cparams(n_parallel):
    return pltpu.CompilerParams(
        dimension_semantics=("parallel",) * n_parallel,
        vmem_limit_bytes=_VMEM_LIMIT,
    )


def _const_spec(shape):
    nd = len(shape)
    return pl.BlockSpec(shape, lambda b: (0,) * nd)


# ----------------------------- Pallas kernels -----------------------------

def _prenet_pe_kernel(trg_ref, w1_ref, b1_ref, w2_ref, b2_ref, pe_ref, o_ref, *, scale):
    # TODO(synk): prenet dropout (p=0.5) is identity (eval); output_type=None only.
    t = trg_ref[0].astype(jnp.bfloat16)                               # (T, F)
    h = jnp.dot(t, w1_ref[...], preferred_element_type=jnp.float32) + b1_ref[...]
    h = jnp.maximum(h, 0.0)
    h = jnp.dot(h.astype(jnp.bfloat16), w2_ref[...],
                preferred_element_type=jnp.float32) + b2_ref[...]
    h = jnp.maximum(h, 0.0)
    o_ref[0] = (h * scale + pe_ref[...]).astype(o_ref.dtype)


def _attn_block_kernel(*refs, heads, self_attn, collect_attn, eps, scale):
    # Fused: pre-LayerNorm -> per-head QKV proj -> attention -> out proj -> residual.
    if self_attn:
        (x_ref, mask_ref, g_ref, be_ref,
         wq_ref, bq_ref, wk_ref, bk_ref, wv_ref, bv_ref, wo_ref, bo_ref) = refs[:12]
        rest = refs[12:]
        kv_ref = None
    else:
        (x_ref, kv_ref, mask_ref, g_ref, be_ref,
         wq_ref, bq_ref, wk_ref, bk_ref, wv_ref, bv_ref, wo_ref, bo_ref) = refs[:13]
        rest = refs[13:]
    if collect_attn:
        o_ref, a_ref = rest
    else:
        (o_ref,) = rest

    x = x_ref[0].astype(jnp.float32)                                  # (Tq, D)
    Tq, D = x.shape

    # pre-norm in f32
    mu = jnp.mean(x, axis=-1, keepdims=True)
    var = jnp.mean(jnp.square(x - mu), axis=-1, keepdims=True)
    xn = (x - mu) * jax.lax.rsqrt(var + eps) * g_ref[...] + be_ref[...]
    xn_b = xn.astype(jnp.bfloat16)

    kv_b = xn_b if self_attn else kv_ref[0].astype(jnp.bfloat16)      # (Tk, D)
    keep = mask_ref[0] != 0                                           # (Mq, Tk), Mq in {1, Tq}

    acc = jnp.zeros((Tq, D), jnp.float32)
    for h in range(heads):
        # Weights are pre-split per head in the wrapper: no sub-128 lane slicing
        # of activations inside the kernel.
        qh = jnp.dot(xn_b, wq_ref[h], preferred_element_type=jnp.float32) + bq_ref[h]
        kh = jnp.dot(kv_b, wk_ref[h], preferred_element_type=jnp.float32) + bk_ref[h]
        vh = jnp.dot(kv_b, wv_ref[h], preferred_element_type=jnp.float32) + bv_ref[h]
        s = jax.lax.dot_general(qh.astype(jnp.bfloat16), kh.astype(jnp.bfloat16),
                                (((1,), (1,)), ((), ())),
                                preferred_element_type=jnp.float32)   # (Tq, Tk)
        # masked_fill(mask == 0, -1e9) applied in-kernel (mask is compact 0/1 bf16).
        s = jnp.where(keep, s * scale, -1e9)
        s = s - jnp.max(s, axis=-1, keepdims=True)
        p = jnp.exp(s)
        p = p * pl.reciprocal(jnp.sum(p, axis=-1, keepdims=True), approx=True)
        if collect_attn:
            a_ref[0, h] = p.astype(a_ref.dtype)                       # bf16 writeback
        ctx = jnp.dot(p.astype(jnp.bfloat16), vh.astype(jnp.bfloat16),
                      preferred_element_type=jnp.float32)             # (Tq, dk)
        # concat(ctx_h) @ Wo == sum_h ctx_h @ Wo[h]  (no lane concat needed)
        acc = acc + jnp.dot(ctx.astype(jnp.bfloat16), wo_ref[h],
                            preferred_element_type=jnp.float32)
    out = acc + bo_ref[...]
    o_ref[0] = (x + out).astype(o_ref.dtype)


def _ffn_block_kernel(*refs, ksize, eps, final_ln):
    # Fused: pre-LN -> conv1d(k,'same') -> ReLU -> conv1d(k) -> residual [-> final LN].
    if final_ln:
        (x_ref, g_ref, be_ref, w1_ref, b1_ref, w2_ref, b2_ref, fg_ref, fb_ref,
         o_ref, xpad_ref, hpad_ref) = refs
    else:
        (x_ref, g_ref, be_ref, w1_ref, b1_ref, w2_ref, b2_ref,
         o_ref, xpad_ref, hpad_ref) = refs
        fg_ref = fb_ref = None

    x = x_ref[0].astype(jnp.float32)                                  # (T, D)
    T, D = x.shape
    dff = w1_ref.shape[2]
    pad = (ksize - 1) // 2

    mu = jnp.mean(x, axis=-1, keepdims=True)
    var = jnp.mean(jnp.square(x - mu), axis=-1, keepdims=True)
    xn = (x - mu) * jax.lax.rsqrt(var + eps) * g_ref[...] + be_ref[...]

    # conv1: 'same'-padded cross-correlation (torch Conv1d convention) as k
    # shifted matmuls over a VMEM scratch; only the `pad` edge rows are zeroed.
    # TODO(synk): prod shapes -> bf16 scratch or pltpu.roll taps + T/d_ff tiling.
    if pad > 0:
        zx = jnp.zeros((pad, D), jnp.float32)
        xpad_ref[pl.ds(0, pad), :] = zx
        xpad_ref[pl.ds(pad + T, pad), :] = zx
    xpad_ref[pl.ds(pad, T), :] = xn
    h = jnp.zeros((T, dff), jnp.float32)
    for i in range(ksize):
        tap = xpad_ref[pl.ds(i, T), :].astype(jnp.bfloat16)
        h = h + jnp.dot(tap, w1_ref[i], preferred_element_type=jnp.float32)
    h = jnp.maximum(h + b1_ref[...], 0.0)

    # conv2
    if pad > 0:
        zh = jnp.zeros((pad, dff), jnp.float32)
        hpad_ref[pl.ds(0, pad), :] = zh
        hpad_ref[pl.ds(pad + T, pad), :] = zh
    hpad_ref[pl.ds(pad, T), :] = h
    y = jnp.zeros((T, D), jnp.float32)
    for i in range(ksize):
        tap = hpad_ref[pl.ds(i, T), :].astype(jnp.bfloat16)
        y = y + jnp.dot(tap, w2_ref[i], preferred_element_type=jnp.float32)
    y = x + y + b2_ref[...]

    if final_ln:
        mu2 = jnp.mean(y, axis=-1, keepdims=True)
        var2 = jnp.mean(jnp.square(y - mu2), axis=-1, keepdims=True)
        y = (y - mu2) * jax.lax.rsqrt(var2 + eps) * fg_ref[...] + fb_ref[...]
    o_ref[0] = y.astype(o_ref.dtype)


# ----------------------------- wrappers -----------------------------

def prenet_pe(p, trg, pe, d_model):
    B, T, F = trg.shape
    D = d_model
    return pl.pallas_call(
        functools.partial(_prenet_pe_kernel, scale=math.sqrt(d_model)),
        grid=(B,),
        in_specs=[pl.BlockSpec((1, T, F), lambda b: (b, 0, 0)),
                  _const_spec(p["w1"].shape), _const_spec(p["b1"].shape),
                  _const_spec(p["w2"].shape), _const_spec(p["b2"].shape),
                  _const_spec(pe.shape)],
        out_specs=pl.BlockSpec((1, T, D), lambda b: (b, 0, 0)),
        out_shape=jax.ShapeDtypeStruct((B, T, D), jnp.bfloat16),
        compiler_params=_cparams(1),
    )(trg, p["w1"], p["b1"], p["w2"], p["b2"], pe)


def fused_attention_block(x, kv, mask, p, *, heads, self_attn, collect_attn=True, eps=1e-5):
    B, Tq, D = x.shape
    Tk = Tq if self_attn else kv.shape[1]
    dk = D // heads
    scale = 1.0 / math.sqrt(dk)

    # Pre-split projection weights per head (folded by XLA; weights are constants).
    wq = p["wq"].reshape(D, heads, dk).transpose(1, 0, 2)     # (H, D, dk)
    wk = p["wk"].reshape(D, heads, dk).transpose(1, 0, 2)
    wv = p["wv"].reshape(D, heads, dk).transpose(1, 0, 2)
    wo = p["wo"].reshape(heads, dk, D)                        # (H, dk, D)
    bq = p["bq"].reshape(heads, 1, dk)
    bk = p["bk"].reshape(heads, 1, dk)
    bv = p["bv"].reshape(heads, 1, dk)

    in_specs = [pl.BlockSpec((1, Tq, D), lambda b: (b, 0, 0))]
    inputs = [x]
    if not self_attn:
        in_specs.append(pl.BlockSpec((1, Tk, D), lambda b: (b, 0, 0)))
        inputs.append(kv)
    Mq = mask.shape[1]   # compact (B, 1, Tk) padding masks broadcast in-kernel
    in_specs.append(pl.BlockSpec((1, Mq, Tk), lambda b: (b, 0, 0)))
    inputs.append(mask)
    for arr in (p["ln_g"], p["ln_b"], wq, bq, wk, bk, wv, bv, wo, p["bo"]):
        in_specs.append(_const_spec(arr.shape))
        inputs.append(arr)

    out_specs = [pl.BlockSpec((1, Tq, D), lambda b: (b, 0, 0))]
    out_shape = [jax.ShapeDtypeStruct((B, Tq, D), x.dtype)]
    if collect_attn:
        # Attention maps emitted in bf16 (halves the dominant HBM write stream).
        out_specs.append(pl.BlockSpec((1, heads, Tq, Tk), lambda b: (b, 0, 0, 0)))
        out_shape.append(jax.ShapeDtypeStruct((B, heads, Tq, Tk), jnp.bfloat16))

    res = pl.pallas_call(
        functools.partial(_attn_block_kernel, heads=heads, self_attn=self_attn,
                          collect_attn=collect_attn, eps=eps, scale=scale),
        grid=(B,),
        in_specs=in_specs,
        out_specs=out_specs,
        out_shape=out_shape,
        compiler_params=_cparams(1),
    )(*inputs)
    if collect_attn:
        return res[0], res[1]
    return res[0], None


def fused_conv_ffn(x, p, *, ksize, final_ln=None, out_dtype=None, eps=1e-5):
    B, T, D = x.shape
    dff = p["w1"].shape[2]
    pad = (ksize - 1) // 2
    if out_dtype is None:
        out_dtype = x.dtype

    in_specs = [pl.BlockSpec((1, T, D), lambda b: (b, 0, 0)),
                _const_spec(p["ln_g"].shape), _const_spec(p["ln_b"].shape),
                _const_spec(p["w1"].shape), _const_spec(p["b1"].shape),
                _const_spec(p["w2"].shape), _const_spec(p["b2"].shape)]
    inputs = [x, p["ln_g"], p["ln_b"], p["w1"], p["b1"], p["w2"], p["b2"]]
    if final_ln is not None:
        fg, fb = final_ln
        in_specs += [_const_spec(fg.shape), _const_spec(fb.shape)]
        inputs += [fg, fb]

    return pl.pallas_call(
        functools.partial(_ffn_block_kernel, ksize=ksize, eps=eps,
                          final_ln=final_ln is not None),
        grid=(B,),
        in_specs=in_specs,
        out_specs=pl.BlockSpec((1, T, D), lambda b: (b, 0, 0)),
        out_shape=jax.ShapeDtypeStruct((B, T, D), out_dtype),
        scratch_shapes=[pltpu.VMEM((T + 2 * pad, D), jnp.float32),
                        pltpu.VMEM((T + 2 * pad, dff), jnp.float32)],
        compiler_params=_cparams(1),
    )(*inputs)


# ----------------------------- model forward -----------------------------

def positional_encoding(T, D):
    pos = jnp.arange(T, dtype=jnp.float32)[:, None]
    i = jnp.arange(0, D, 2, dtype=jnp.float32)
    div = jnp.exp(-math.log(10000.0) * i / D)
    pe = jnp.zeros((T, D), jnp.float32)
    pe = pe.at[:, 0::2].set(jnp.sin(pos * div))
    pe = pe.at[:, 1::2].set(jnp.cos(pos * div))
    return pe


def decoder_forward(params, trg, e_outputs, src_mask, trg_mask, pe,
                    *, heads, N, d_model, k_size, collect_attn=True):
    # TODO(synk): dropout is identity (eval); output_type=None, spk_emb=None,
    #             concat_after_decoder=False are the only paths implemented.
    x = prenet_pe(params["prenet"], trg, pe, d_model)        # bf16 activations
    enc = e_outputs.astype(jnp.bfloat16)
    # Compact 0/1 masks (bf16); masked_fill(mask==0, -1e9) is applied in-kernel.
    trg_mask_b = trg_mask.astype(jnp.bfloat16)
    src_mask_b = src_mask.astype(jnp.bfloat16)

    attns_1, attns_2 = [], []
    for i in range(N):
        lp = params["layers"][i]
        x, a1 = fused_attention_block(x, None, trg_mask_b, lp["self_attn"],
                                      heads=heads, self_attn=True,
                                      collect_attn=collect_attn)
        x, a2 = fused_attention_block(x, enc, src_mask_b, lp["src_attn"],
                                      heads=heads, self_attn=False,
                                      collect_attn=collect_attn)
        last = i == N - 1
        x = fused_conv_ffn(
            x, lp["ffn"], ksize=k_size,
            final_ln=(params["norm_g"], params["norm_b"]) if last else None,
            out_dtype=jnp.float32 if last else jnp.bfloat16)
        if collect_attn:
            attns_1.append(a1)
            attns_2.append(a2)
    if collect_attn:
        # NOTE: attention maps stay bf16 end-to-end (perf); cast here if exact
        # f32 parity with the PyTorch reference dtype is required.
        return x, jnp.stack(attns_1, axis=1), jnp.stack(attns_2, axis=1)
    return x, None, None


# ----------------------------- parameter init -----------------------------

def init_params(key, vocab_size, d_model, N, k_size, d_ff):
    assert k_size % 2 == 1, "ff_conv_kernel_size must be odd for 'same' padding"
    keys = iter(jax.random.split(key, 16 + 32 * N))

    def dense(din, dout):
        return (jax.random.normal(next(keys), (din, dout), jnp.float32) * 0.02
                ).astype(jnp.bfloat16)

    def conv_w(k, cin, cout):
        return (jax.random.normal(next(keys), (k, cin, cout), jnp.float32) * 0.02
                ).astype(jnp.bfloat16)

    def bias(d):
        return jnp.zeros((1, d), jnp.float32)

    def ln(d):
        return jnp.ones((1, d), jnp.float32), jnp.zeros((1, d), jnp.float32)

    def attn_params():
        g, b = ln(d_model)
        return {"ln_g": g, "ln_b": b,
                "wq": dense(d_model, d_model), "bq": bias(d_model),
                "wk": dense(d_model, d_model), "bk": bias(d_model),
                "wv": dense(d_model, d_model), "bv": bias(d_model),
                "wo": dense(d_model, d_model), "bo": bias(d_model)}

    layers = []
    for _ in range(N):
        g3, b3 = ln(d_model)
        layers.append({
            "self_attn": attn_params(),
            "src_attn": attn_params(),
            "ffn": {"ln_g": g3, "ln_b": b3,
                    "w1": conv_w(k_size, d_model, d_ff), "b1": bias(d_ff),
                    "w2": conv_w(k_size, d_ff, d_model), "b2": bias(d_model)},
        })

    return {
        "prenet": {"w1": dense(vocab_size, d_model), "b1": bias(d_model),
                   "w2": dense(d_model, d_model), "b2": bias(d_model)},
        "layers": layers,
        "norm_g": jnp.ones((1, d_model), jnp.float32),
        "norm_b": jnp.zeros((1, d_model), jnp.float32),
    }


# ----------------------------------- main -----------------------------------

if __name__ == "__main__":
    B, T1, T2 = 2, 8, 16
    vocab_size = 8          # continuous target-feature dim consumed by DecoderPreNet
    d_model, N, heads = 32, 2, 4
    k_size, d_ff = 3, 128

    key = jax.random.PRNGKey(0)
    kp, kt, ke = jax.random.split(key, 3)
    params = init_params(kp, vocab_size, d_model, N, k_size, d_ff)

    trg = jax.random.normal(kt, (B, T1, vocab_size), jnp.float32)
    e_outputs = jax.random.normal(ke, (B, T2, d_model), jnp.float32)
    trg_mask = jnp.broadcast_to(jnp.tril(jnp.ones((T1, T1), jnp.float32)), (B, T1, T1))
    src_mask = jnp.ones((B, 1, T2), jnp.float32)   # compact (B,1,Tk) padding mask

    pe = positional_encoding(T1, d_model)   # hoisted out of the jitted forward

    fwd = jax.jit(lambda t, e, sm, tm: decoder_forward(
        params, t, e, sm, tm, pe, heads=heads, N=N, d_model=d_model, k_size=k_size))

    y, attns_1, attns_2 = fwd(trg, e_outputs, src_mask, trg_mask)
    jax.block_until_ready((y, attns_1, attns_2))

    assert y.shape == (B, T1, d_model)
    assert attns_1.shape == (B, N, heads, T1, T1)
    assert attns_2.shape == (B, N, heads, T1, T2)
    assert bool(jnp.all(jnp.isfinite(y)))
    assert bool(jnp.all(jnp.isfinite(attns_1.astype(jnp.float32))))
    assert bool(jnp.all(jnp.isfinite(attns_2.astype(jnp.float32))))
    print("KERNEL_OK")
</pallas_src>

<mosaic_0001>
module attributes {stable_mosaic.version = 11 : i64} {
  func.func @_prenet_pe_kernel(%arg0: i32, %arg1: memref<1x8x8xf32, #tpu.memory_space<vmem>>, %arg2: memref<8x32xbf16, #tpu.memory_space<vmem>>, %arg3: memref<1x32xf32, #tpu.memory_space<vmem>>, %arg4: memref<32x32xbf16, #tpu.memory_space<vmem>>, %arg5: memref<1x32xf32, #tpu.memory_space<vmem>>, %arg6: memref<8x32xf32, #tpu.memory_space<vmem>>, %arg7: memref<1x8x32xbf16, #tpu.memory_space<vmem>>) attributes {dimension_semantics = [#tpu.dimension_semantics<parallel>], iteration_bounds = array<i64: 2>, scalar_prefetch = 0 : i64, scratch_operands = 0 : i64, tpu.core_type = #tpu.core_type<tc>, window_params = [{transform_indices = @transform_0, window_bounds = array<i64: 1, 8, 8>}, {pipeline_mode = #tpu.pipeline_mode<synchronous>, transform_indices = @transform_1, window_bounds = array<i64: 8, 32>}, {pipeline_mode = #tpu.pipeline_mode<synchronous>, transform_indices = @transform_2, window_bounds = array<i64: 1, 32>}, {pipeline_mode = #tpu.pipeline_mode<synchronous>, transform_indices = @transform_3, window_bounds = array<i64: 32, 32>}, {pipeline_mode = #tpu.pipeline_mode<synchronous>, transform_indices = @transform_4, window_bounds = array<i64: 1, 32>}, {pipeline_mode = #tpu.pipeline_mode<synchronous>, transform_indices = @transform_5, window_bounds = array<i64: 8, 32>}, {transform_indices = @transform_6, window_bounds = array<i64: 1, 8, 32>}]} {
    %c0 = arith.constant 0 : index
    %c0_0 = arith.constant 0 : index
    %c0_1 = arith.constant 0 : index
    %0 = vector.load %arg1[%c0, %c0_0, %c0_1] : memref<1x8x8xf32, #tpu.memory_space<vmem>>, vector<1x8x8xf32>
    %1 = vector.shape_cast %0 : vector<1x8x8xf32> to vector<8x8xf32>
    %2 = arith.truncf %1 : vector<8x8xf32> to vector<8x8xbf16>
    %c0_2 = arith.constant 0 : index
    %c0_3 = arith.constant 0 : index
    %3 = vector.load %arg2[%c0_2, %c0_3] : memref<8x32xbf16, #tpu.memory_space<vmem>>, vector<8x32xbf16>
    %cst = arith.constant dense<0.000000e+00> : vector<8x32xf32>
    %4 = tpu.matmul %2, %3, %cst {dimension_numbers = #tpu.dot_dimension_numbers<[1], [0], [0], [1], [0, 0, 1, 1], [], []>} : vector<8x8xbf16>, vector<8x32xbf16>, vector<8x32xf32> -> vector<8x32xf32>
    %c0_4 = arith.constant 0 : index
    %c0_5 = arith.constant 0 : index
    %5 = vector.load %arg3[%c0_4, %c0_5] : memref<1x32xf32, #tpu.memory_space<vmem>>, vector<1x32xf32>
    %6 = vector.broadcast %5 : vector<1x32xf32> to vector<8x32xf32>
    %7 = arith.addf %4, %6 : vector<8x32xf32>
    %cst_6 = arith.constant 0.000000e+00 : f32
    %8 = vector.broadcast %cst_6 : f32 to vector<8x32xf32>
    %9 = arith.maximumf %7, %8 : vector<8x32xf32>
    %10 = arith.truncf %9 : vector<8x32xf32> to vector<8x32xbf16>
    %c0_7 = arith.constant 0 : index
    %c0_8 = arith.constant 0 : index
    %11 = vector.load %arg4[%c0_7, %c0_8] : memref<32x32xbf16, #tpu.memory_space<vmem>>, vector<32x32xbf16>
    %cst_9 = arith.constant dense<0.000000e+00> : vector<8x32xf32>
    %12 = tpu.matmul %10, %11, %cst_9 {dimension_numbers = #tpu.dot_dimension_numbers<[1], [0], [0], [1], [0, 0, 1, 1], [], []>} : vector<8x32xbf16>, vector<32x32xbf16>, vector<8x32xf32> -> vector<8x32xf32>
    %c0_10 = arith.constant 0 : index
    %c0_11 = arith.constant 0 : index
    %13 = vector.load %arg5[%c0_10, %c0_11] : memref<1x32xf32, #tpu.memory_space<vmem>>, vector<1x32xf32>
    %14 = vector.broadcast %13 : vector<1x32xf32> to vector<8x32xf32>
    %15 = arith.addf %12, %14 : vector<8x32xf32>
    %cst_12 = arith.constant 0.000000e+00 : f32
    %16 = vector.broadcast %cst_12 : f32 to vector<8x32xf32>
    %17 = arith.maximumf %15, %16 : vector<8x32xf32>
    %cst_13 = arith.constant 5.65685415 : f32
    %18 = vector.broadcast %cst_13 : f32 to vector<8x32xf32>
    %19 = arith.mulf %17, %18 : vector<8x32xf32>
    %c0_14 = arith.constant 0 : index
    %c0_15 = arith.constant 0 : index
    %20 = vector.load %arg6[%c0_14, %c0_15] : memref<8x32xf32, #tpu.memory_space<vmem>>, vector<8x32xf32>
    %21 = arith.addf %19, %20 : vector<8x32xf32>
    %22 = arith.truncf %21 : vector<8x32xf32> to vector<8x32xbf16>
    %c0_16 = arith.constant 0 : index
    %c0_17 = arith.constant 0 : index
    %c0_18 = arith.constant 0 : index
    %23 = vector.load %arg7[%c0_16, %c0_17, %c0_18] : memref<1x8x32xbf16, #tpu.memory_space<vmem>>, vector<1x8x32xbf16>
    %24 = vector.shape_cast %23 : vector<1x8x32xbf16> to vector<8x32xbf16>
    %25 = vector.shape_cast %22 : vector<8x32xbf16> to vector<1x8x32xbf16>
    tpu.vector_store %arg7[%c0_16, %c0_17, %c0_18], %25 {strides = array<i32>} : memref<1x8x32xbf16, #tpu.memory_space<vmem>>, vector<1x8x32xbf16>,
    return
  }
  func.func @transform_0(%arg0: i32) -> (i32, i32, i32) {
    %c0_i32 = arith.constant 0 : i32
    %c0_i32_0 = arith.constant 0 : i32
    %c0_i32_1 = arith.constant 0 : i32
    return %arg0, %c0_i32, %c0_i32_0 : i32, i32, i32
  }
  func.func @transform_1(%arg0: i32) -> (i32, i32) {
    %c0_i32 = arith.constant 0 : i32
    %c0_i32_0 = arith.constant 0 : i32
    %c0_i32_1 = arith.constant 0 : i32
    return %c0_i32, %c0_i32_0 : i32, i32
  }
  func.func @transform_2(%arg0: i32) -> (i32, i32) {
    %c0_i32 = arith.constant 0 : i32
    %c0_i32_0 = arith.constant 0 : i32
    %c0_i32_1 = arith.constant 0 : i32
    return %c0_i32, %c0_i32_0 : i32, i32
  }
  func.func @transform_3(%arg0: i32) -> (i32, i32) {
    %c0_i32 = arith.constant 0 : i32
    %c0_i32_0 = arith.constant 0 : i32
    %c0_i32_1 = arith.constant 0 : i32
    return %c0_i32, %c0_i32_0 : i32, i32
  }
  func.func @transform_4(%arg0: i32) -> (i32, i32) {
    %c0_i32 = arith.constant 0 : i32
    %c0_i32_0 = arith.constant 0 : i32
    %c0_i32_1 = arith.constant 0 : i32
    return %c0_i32, %c0_i32_0 : i32, i32
  }
  func.func @transform_5(%arg0: i32) -> (i32, i32) {
    %c0_i32 = arith.constant 0 : i32
    %c0_i32_0 = arith.constant 0 : i32
    %c0_i32_1 = arith.constant 0 : i32
    return %c0_i32, %c0_i32_0 : i32, i32
  }
  func.func @transform_6(%arg0: i32) -> (i32, i32, i32) {
    %c0_i32 = arith.constant 0 : i32
    %c0_i32_0 = arith.constant 0 : i32
    %c0_i32_1 = arith.constant 0 : i32
    return %arg0, %c0_i32, %c0_i32_0 : i32, i32, i32
  }
}

module attributes {stable_mosaic.version = 11 : i64} {
  func.func @_ffn_block_kernel(%arg0: i32, %arg1: memref<1x8x32xbf16, #tpu.memory_space<vmem>>, %arg2: memref<1x32xf32, #tpu.memory_space<vmem>>, %arg3: memref<1x32xf32, #tpu.memory_space<vmem>>, %arg4: memref<3x32x128xbf16, #tpu.memory_space<vmem>>, %arg5: memref<1x128xf32, #tpu.memory_space<vmem>>, %arg6: memref<3x128x32xbf16, #tpu.memory_space<vmem>>, %arg7: memref<1x32xf32, #tpu.memory_space<vmem>>, %arg8: memref<1x8x32xbf16, #tpu.memory_space<vmem>>, %arg9: memref<10x32xf32, #tpu.memory_space<vmem>>, %arg10: memref<10x128xf32, #tpu.memory_space<vmem>>) attributes {dimension_semantics = [#tpu.dimension_semantics<parallel>], iteration_bounds = array<i64: 2>, scalar_prefetch = 0 : i64, scratch_operands = 2 : i64, tpu.core_type = #tpu.core_type<tc>, window_params = [{transform_indices = @transform_0, window_bounds = array<i64: 1, 8, 32>}, {pipeline_mode = #tpu.pipeline_mode<synchronous>, transform_indices = @transform_1, window_bounds = array<i64: 1, 32>}, {pipeline_mode = #tpu.pipeline_mode<synchronous>, transform_indices = @transform_2, window_bounds = array<i64: 1, 32>}, {pipeline_mode = #tpu.pipeline_mode<synchronous>, transform_indices = @transform_3, window_bounds = array<i64: 3, 32, 128>}, {pipeline_mode = #tpu.pipeline_mode<synchronous>, transform_indices = @transform_4, window_bounds = array<i64: 1, 128>}, {pipeline_mode = #tpu.pipeline_mode<synchronous>, transform_indices = @transform_5, window_bounds = array<i64: 3, 128, 32>}, {pipeline_mode = #tpu.pipeline_mode<synchronous>, transform_indices = @transform_6, window_bounds = array<i64: 1, 32>}, {transform_indices = @transform_7, window_bounds = array<i64: 1, 8, 32>}]} {
    %c0 = arith.constant 0 : index
    %c0_0 = arith.constant 0 : index
    %c0_1 = arith.constant 0 : index
    %0 = vector.load %arg1[%c0, %c0_0, %c0_1] : memref<1x8x32xbf16, #tpu.memory_space<vmem>>, vector<1x8x32xbf16>
    %1 = vector.shape_cast %0 : vector<1x8x32xbf16> to vector<8x32xbf16>
    %2 = arith.extf %1 : vector<8x32xbf16> to vector<8x32xf32>
    %cst = arith.constant dense<0.000000e+00> : vector<8xf32>
    %3 = vector.multi_reduction <add>, %2, %cst [1] : vector<8x32xf32> to vector<8xf32>
    %4 = vector.shape_cast %3 : vector<8xf32> to vector<8x1xf32>
    %cst_2 = arith.constant 3.200000e+01 : f32
    %5 = vector.broadcast %cst_2 : f32 to vector<8x1xf32>
    %6 = arith.divf %4, %5 : vector<8x1xf32>
    %7 = vector.broadcast %6 : vector<8x1xf32> to vector<8x32xf32>
    %8 = arith.subf %2, %7 : vector<8x32xf32>
    %9 = arith.mulf %8, %8 : vector<8x32xf32>
    %cst_3 = arith.constant dense<0.000000e+00> : vector<8xf32>
    %10 = vector.multi_reduction <add>, %9, %cst_3 [1] : vector<8x32xf32> to vector<8xf32>
    %11 = vector.shape_cast %10 : vector<8xf32> to vector<8x1xf32>
    %cst_4 = arith.constant 3.200000e+01 : f32
    %12 = vector.broadcast %cst_4 : f32 to vector<8x1xf32>
    %13 = arith.divf %11, %12 : vector<8x1xf32>
    %14 = vector.broadcast %6 : vector<8x1xf32> to vector<8x32xf32>
    %15 = arith.subf %2, %14 : vector<8x32xf32>
    %cst_5 = arith.constant 9.99999974E-6 : f32
    %16 = vector.broadcast %cst_5 : f32 to vector<8x1xf32>
    %17 = arith.addf %13, %16 : vector<8x1xf32>
    %18 = math.rsqrt %17 : vector<8x1xf32>
    %19 = vector.broadcast %18 : vector<8x1xf32> to vector<8x32xf32>
    %20 = arith.mulf %15, %19 : vector<8x32xf32>
    %c0_6 = arith.constant 0 : index
    %c0_7 = arith.constant 0 : index
    %21 = vector.load %arg2[%c0_6, %c0_7] : memref<1x32xf32, #tpu.memory_space<vmem>>, vector<1x32xf32>
    %22 = vector.broadcast %21 : vector<1x32xf32> to vector<8x32xf32>
    %23 = arith.mulf %20, %22 : vector<8x32xf32>
    %c0_8 = arith.constant 0 : index
    %c0_9 = arith.constant 0 : index
    %24 = vector.load %arg3[%c0_8, %c0_9] : memref<1x32xf32, #tpu.memory_space<vmem>>, vector<1x32xf32>
    %25 = vector.broadcast %24 : vector<1x32xf32> to vector<8x32xf32>
    %26 = arith.addf %23, %25 : vector<8x32xf32>
    %cst_10 = arith.constant 0.000000e+00 : f32
    %27 = vector.broadcast %cst_10 : f32 to vector<1x32xf32>
    %c0_11 = arith.constant 0 : index
    %c0_12 = arith.constant 0 : index
    %28 = vector.load %arg9[%c0_11, %c0_12] : memref<10x32xf32, #tpu.memory_space<vmem>>, vector<1x32xf32>
    tpu.vector_store %arg9[%c0_11, %c0_12], %27 {strides = array<i32>} : memref<10x32xf32, #tpu.memory_space<vmem>>, vector<1x32xf32>,
    %c9 = arith.constant 9 : index
    %c0_13 = arith.constant 0 : index
    %29 = vector.load %arg9[%c9, %c0_13] : memref<10x32xf32, #tpu.memory_space<vmem>>, vector<1x32xf32>
    tpu.vector_store %arg9[%c9, %c0_13], %27 {strides = array<i32>} : memref<10x32xf32, #tpu.memory_space<vmem>>, vector<1x32xf32>,
    %c1 = arith.constant 1 : index
    %c0_14 = arith.constant 0 : index
    %30 = vector.load %arg9[%c1, %c0_14] : memref<10x32xf32, #tpu.memory_space<vmem>>, vector<8x32xf32>
    tpu.vector_store %arg9[%c1, %c0_14], %26 {strides = array<i32>} : memref<10x32xf32, #tpu.memory_space<vmem>>, vector<8x32xf32>,
    %cst_15 = arith.constant 0.000000e+00 : f32
    %31 = vector.broadcast %cst_15 : f32 to vector<8x128xf32>
    %c0_16 = arith.constant 0 : index
    %c0_17 = arith.constant 0 : index
    %32 = vector.load %arg9[%c0_16, %c0_17] : memref<10x32xf32, #tpu.memory_space<vmem>>, vector<8x32xf32>
    %33 = arith.truncf %32 : vector<8x32xf32> to vector<8x32xbf16>
    %c0_18 = arith.constant 0 : index
    %c0_19 = arith.constant 0 : index
    %c0_20 = arith.constant 0 : index
    %34 = vector.load %arg4[%c0_18, %c0_19, %c0_20] : memref<3x32x128xbf16, #tpu.memory_space<vmem>>, vector<1x32x128xbf16>
    %35 = vector.shape_cast %34 : vector<1x32x128xbf16> to vector<32x128xbf16>
    %cst_21 = arith.constant dense<0.000000e+00> : vector<8x128xf32>
    %36 = tpu.matmul %33, %35, %cst_21 {dimension_numbers = #tpu.dot_dimension_numbers<[1], [0], [0], [1], [0, 0, 1, 1], [], []>} : vector<8x32xbf16>, vector<32x128xbf16>, vector<8x128xf32> -> vector<8x128xf32>
    %37 = arith.addf %31, %36 : vector<8x128xf32>
    %c1_22 = arith.constant 1 : index
    %c0_23 = arith.constant 0 : index
    %38 = vector.load %arg9[%c1_22, %c0_23] : memref<10x32xf32, #tpu.memory_space<vmem>>, vector<8x32xf32>
    %39 = arith.truncf %38 : vector<8x32xf32> to vector<8x32xbf16>
    %c1_24 = arith.constant 1 : index
    %c0_25 = arith.constant 0 : index
    %c0_26 = arith.constant 0 : index
    %40 = vector.load %arg4[%c1_24, %c0_25, %c0_26] : memref<3x32x128xbf16, #tpu.memory_space<vmem>>, vector<1x32x128xbf16>
    %41 = vector.shape_cast %40 : vector<1x32x128xbf16> to vector<32x128xbf16>
    %cst_27 = arith.constant dense<0.000000e+00> : vector<8x128xf32>
    %42 = tpu.matmul %39, %41, %cst_27 {dimension_numbers = #tpu.dot_dimension_numbers<[1], [0], [0], [1], [0, 0, 1, 1], [], []>} : vector<8x32xbf16>, vector<32x128xbf16>, vector<8x128xf32> -> vector<8x128xf32>
    %43 = arith.addf %37, %42 : vector<8x128xf32>
    %c2 = arith.constant 2 : index
    %c0_28 = arith.constant 0 : index
    %44 = vector.load %arg9[%c2, %c0_28] : memref<10x32xf32, #tpu.memory_space<vmem>>, vector<8x32xf32>
    %45 = arith.truncf %44 : vector<8x32xf32> to vector<8x32xbf16>
    %c2_29 = arith.constant 2 : index
    %c0_30 = arith.constant 0 : index
    %c0_31 = arith.constant 0 : index
    %46 = vector.load %arg4[%c2_29, %c0_30, %c0_31] : memref<3x32x128xbf16, #tpu.memory_space<vmem>>, vector<1x32x128xbf16>
    %47 = vector.shape_cast %46 : vector<1x32x128xbf16> to vector<32x128xbf16>
    %cst_32 = arith.constant dense<0.000000e+00> : vector<8x128xf32>
    %48 = tpu.matmul %45, %47, %cst_32 {dimension_numbers = #tpu.dot_dimension_numbers<[1], [0], [0], [1], [0, 0, 1, 1], [], []>} : vector<8x32xbf16>, vector<32x128xbf16>, vector<8x128xf32> -> vector<8x128xf32>
    %49 = arith.addf %43, %48 : vector<8x128xf32>
    %c0_33 = arith.constant 0 : index
    %c0_34 = arith.constant 0 : index
    %50 = vector.load %arg5[%c0_33, %c0_34] : memref<1x128xf32, #tpu.memory_space<vmem>>, vector<1x128xf32>
    %51 = vector.broadcast %50 : vector<1x128xf32> to vector<8x128xf32>
    %52 = arith.addf %49, %51 : vector<8x128xf32>
    %cst_35 = arith.constant 0.000000e+00 : f32
    %53 = vector.broadcast %cst_35 : f32 to vector<8x128xf32>
    %54 = arith.maximumf %52, %53 : vector<8x128xf32>
    %cst_36 = arith.constant 0.000000e+00 : f32
    %55 = vector.broadcast %cst_36 : f32 to vector<1x128xf32>
    %c0_37 = arith.constant 0 : index
    %c0_38 = arith.constant 0 : index
    %56 = vector.load %arg10[%c0_37, %c0_38] : memref<10x128xf32, #tpu.memory_space<vmem>>, vector<1x128xf32>
    tpu.vector_store %arg10[%c0_37, %c0_38], %55 {strides = array<i32>} : memref<10x128xf32, #tpu.memory_space<vmem>>, vector<1x128xf32>,
    %c9_39 = arith.constant 9 : index
    %c0_40 = arith.constant 0 : index
    %57 = vector.load %arg10[%c9_39, %c0_40] : memref<10x128xf32, #tpu.memory_space<vmem>>, vector<1x128xf32>
    tpu.vector_store %arg10[%c9_39, %c0_40], %55 {strides = array<i32>} : memref<10x128xf32, #tpu.memory_space<vmem>>, vector<1x128xf32>,
    %c1_41 = arith.constant 1 : index
    %c0_42 = arith.constant 0 : index
    %58 = vector.load %arg10[%c1_41, %c0_42] : memref<10x128xf32, #tpu.memory_space<vmem>>, vector<8x128xf32>
    tpu.vector_store %arg10[%c1_41, %c0_42], %54 {strides = array<i32>} : memref<10x128xf32, #tpu.memory_space<vmem>>, vector<8x128xf32>,
    %cst_43 = arith.constant 0.000000e+00 : f32
    %59 = vector.broadcast %cst_43 : f32 to vector<8x32xf32>
    %c0_44 = arith.constant 0 : index
    %c0_45 = arith.constant 0 : index
    %60 = vector.load %arg10[%c0_44, %c0_45] : memref<10x128xf32, #tpu.memory_space<vmem>>, vector<8x128xf32>
    %61 = arith.truncf %60 : vector<8x128xf32> to vector<8x128xbf16>
    %c0_46 = arith.constant 0 : index
    %c0_47 = arith.constant 0 : index
    %c0_48 = arith.constant 0 : index
    %62 = vector.load %arg6[%c0_46, %c0_47, %c0_48] : memref<3x128x32xbf16, #tpu.memory_space<vmem>>, vector<1x128x32xbf16>
    %63 = vector.shape_cast %62 : vector<1x128x32xbf16> to vector<128x32xbf16>
    %cst_49 = arith.constant dense<0.000000e+00> : vector<8x32xf32>
    %64 = tpu.matmul %61, %63, %cst_49 {dimension_numbers = #tpu.dot_dimension_numbers<[1], [0], [0], [1], [0, 0, 1, 1], [], []>} : vector<8x128xbf16>, vector<128x32xbf16>, vector<8x32xf32> -> vector<8x32xf32>
    %65 = arith.addf %59, %64 : vector<8x32xf32>
    %c1_50 = arith.constant 1 : index
    %c0_51 = arith.constant 0 : index
    %66 = vector.load %arg10[%c1_50, %c0_51] : memref<10x128xf32, #tpu.memory_space<vmem>>, vector<8x128xf32>
    %67 = arith.truncf %66 : vector<8x128xf32> to vector<8x128xbf16>
    %c1_52 = arith.constant 1 : index
    %c0_53 = arith.constant 0 : index
    %c0_54 = arith.constant 0 : index
    %68 = vector.load %arg6[%c1_52, %c0_53, %c0_54] : memref<3x128x32xbf16, #tpu.memory_space<vmem>>, vector<1x128x32xbf16>
    %69 = vector.shape_cast %68 : vector<1x128x32xbf16> to vector<128x32xbf16>
    %cst_55 = arith.constant dense<0.000000e+00> : vector<8x32xf32>
    %70 = tpu.matmul %67, %69, %cst_55 {dimension_numbers = #tpu.dot_dimension_numbers<[1], [0], [0], [1], [0, 0, 1, 1], [], []>} : vector<8x128xbf16>, vector<128x32xbf16>, vector<8x32xf32> -> vector<8x32xf32>
    %71 = arith.addf %65, %70 : vector<8x32xf32>
    %c2_56 = arith.constant 2 : index
    %c0_57 = arith.constant 0 : index
    %72 = vector.load %arg10[%c2_56, %c0_57] : memref<10x128xf32, #tpu.memory_space<vmem>>, vector<8x128xf32>
    %73 = arith.truncf %72 : vector<8x128xf32> to vector<8x128xbf16>
    %c2_58 = arith.constant 2 : index
    %c0_59 = arith.constant 0 : index
    %c0_60 = arith.constant 0 : index
    %74 = vector.load %arg6[%c2_58, %c0_59, %c0_60] : memref<3x128x32xbf16, #tpu.memory_space<vmem>>, vector<1x128x32xbf16>
    %75 = vector.shape_cast %74 : vector<1x128x32xbf16> to vector<128x32xbf16>
    %cst_61 = arith.constant dense<0.000000e+00> : vector<8x32xf32>
    %76 = tpu.matmul %73, %75, %cst_61 {dimension_numbers = #tpu.dot_dimension_numbers<[1], [0], [0], [1], [0, 0, 1, 1], [], []>} : vector<8x128xbf16>, vector<128x32xbf16>, vector<8x32xf32> -> vector<8x32xf32>
    %77 = arith.addf %71, %76 : vector<8x32xf32>
    %78 = arith.addf %2, %77 : vector<8x32xf32>
    %c0_62 = arith.constant 0 : index
    %c0_63 = arith.constant 0 : index
    %79 = vector.load %arg7[%c0_62, %c0_63] : memref<1x32xf32, #tpu.memory_space<vmem>>, vector<1x32xf32>
    %80 = vector.broadcast %79 : vector<1x32xf32> to vector<8x32xf32>
    %81 = arith.addf %78, %80 : vector<8x32xf32>
    %82 = arith.truncf %81 : vector<8x32xf32> to vector<8x32xbf16>
    %c0_64 = arith.constant 0 : index
    %c0_65 = arith.constant 0 : index
    %c0_66 = arith.constant 0 : index
    %83 = vector.load %arg8[%c0_64, %c0_65, %c0_66] : memref<1x8x32xbf16, #tpu.memory_space<vmem>>, vector<1x8x32xbf16>
    %84 = vector.shape_cast %83 : vector<1x8x32xbf16> to vector<8x32xbf16>
    %85 = vector.shape_cast %82 : vector<8x32xbf16> to vector<1x8x32xbf16>
    tpu.vector_store %arg8[%c0_64, %c0_65, %c0_66], %85 {strides = array<i32>} : memref<1x8x32xbf16, #tpu.memory_space<vmem>>, vector<1x8x32xbf16>,
    return
  }
  func.func @transform_0(%arg0: i32) -> (i32, i32, i32) {
    %c0_i32 = arith.constant 0 : i32
    %c0_i32_0 = arith.constant 0 : i32
    %c0_i32_1 = arith.constant 0 : i32
    return %arg0, %c0_i32, %c0_i32_0 : i32, i32, i32
  }
  func.func @transform_1(%arg0: i32) -> (i32, i32) {
    %c0_i32 = arith.constant 0 : i32
    %c0_i32_0 = arith.constant 0 : i32
    %c0_i32_1 = arith.constant 0 : i32
    return %c0_i32, %c0_i32_0 : i32, i32
  }
  func.func @transform_2(%arg0: i32) -> (i32, i32) {
    %c0_i32 = arith.constant 0 : i32
    %c0_i32_0 = arith.constant 0 : i32
    %c0_i32_1 = arith.constant 0 : i32
    return %c0_i32, %c0_i32_0 : i32, i32
  }
  func.func @transform_3(%arg0: i32) -> (i32, i32, i32) {
    %c0_i32 = arith.constant 0 : i32
    %c0_i32_0 = arith.constant 0 : i32
    %c0_i32_1 = arith.constant 0 : i32
    %c0_i32_2 = arith.constant 0 : i32
    return %c0_i32, %c0_i32_0, %c0_i32_1 : i32, i32, i32
  }
  func.func @transform_4(%arg0: i32) -> (i32, i32) {
    %c0_i32 = arith.constant 0 : i32
    %c0_i32_0 = arith.constant 0 : i32
    %c0_i32_1 = arith.constant 0 : i32
    return %c0_i32, %c0_i32_0 : i32, i32
  }
  func.func @transform_5(%arg0: i32) -> (i32, i32, i32) {
    %c0_i32 = arith.constant 0 : i32
    %c0_i32_0 = arith.constant 0 : i32
    %c0_i32_1 = arith.constant 0 : i32
    %c0_i32_2 = arith.constant 0 : i32
    return %c0_i32, %c0_i32_0, %c0_i32_1 : i32, i32, i32
  }
  func.func @transform_6(%arg0: i32) -> (i32, i32) {
    %c0_i32 = arith.constant 0 : i32
    %c0_i32_0 = arith.constant 0 : i32
    %c0_i32_1 = arith.constant 0 : i32
    return %c0_i32, %c0_i32_0 : i32, i32
  }
  func.func @transform_7(%arg0: i32) -> (i32, i32, i32) {
    %c0_i32 = arith.constant 0 : i32
    %c0_i32_0 = arith.constant 0 : i32
    %c0_i32_1 = arith.constant 0 : i32
    return %arg0, %c0_i32, %c0_i32_0 : i32, i32, i32
  }
}

module attributes {stable_mosaic.version = 11 : i64} {
  func.func @_attn_block_kernel(%arg0: i32, %arg1: memref<1x8x32xbf16, #tpu.memory_space<vmem>>, %arg2: memref<1x16x32xbf16, #tpu.memory_space<vmem>>, %arg3: memref<1x1x16xbf16, #tpu.memory_space<vmem>>, %arg4: memref<1x32xf32, #tpu.memory_space<vmem>>, %arg5: memref<1x32xf32, #tpu.memory_space<vmem>>, %arg6: memref<4x32x8xbf16, #tpu.memory_space<vmem>>, %arg7: memref<4x1x8xf32, #tpu.memory_space<vmem>>, %arg8: memref<4x32x8xbf16, #tpu.memory_space<vmem>>, %arg9: memref<4x1x8xf32, #tpu.memory_space<vmem>>, %arg10: memref<4x32x8xbf16, #tpu.memory_space<vmem>>, %arg11: memref<4x1x8xf32, #tpu.memory_space<vmem>>, %arg12: memref<4x8x32xbf16, #tpu.memory_space<vmem>>, %arg13: memref<1x32xf32, #tpu.memory_space<vmem>>, %arg14: memref<1x8x32xbf16, #tpu.memory_space<vmem>>, %arg15: memref<1x4x8x16xbf16, #tpu.memory_space<vmem>>) attributes {dimension_semantics = [#tpu.dimension_semantics<parallel>], iteration_bounds = array<i64: 2>, scalar_prefetch = 0 : i64, scratch_operands = 0 : i64, tpu.core_type = #tpu.core_type<tc>, window_params = [{transform_indices = @transform_0, window_bounds = array<i64: 1, 8, 32>}, {transform_indices = @transform_1, window_bounds = array<i64: 1, 16, 32>}, {transform_indices = @transform_2, window_bounds = array<i64: 1, 1, 16>}, {pipeline_mode = #tpu.pipeline_mode<synchronous>, transform_indices = @transform_3, window_bounds = array<i64: 1, 32>}, {pipeline_mode = #tpu.pipeline_mode<synchronous>, transform_indices = @transform_4, window_bounds = array<i64: 1, 32>}, {pipeline_mode = #tpu.pipeline_mode<synchronous>, transform_indices = @transform_5, window_bounds = array<i64: 4, 32, 8>}, {pipeline_mode = #tpu.pipeline_mode<synchronous>, transform_indices = @transform_6, window_bounds = array<i64: 4, 1, 8>}, {pipeline_mode = #tpu.pipeline_mode<synchronous>, transform_indices = @transform_7, window_bounds = array<i64: 4, 32, 8>}, {pipeline_mode = #tpu.pipeline_mode<synchronous>, transform_indices = @transform_8, window_bounds = array<i64: 4, 1, 8>}, {pipeline_mode = #tpu.pipeline_mode<synchronous>, transform_indices = @transform_9, window_bounds = array<i64: 4, 32, 8>}, {pipeline_mode = #tpu.pipeline_mode<synchronous>, transform_indices = @transform_10, window_bounds = array<i64: 4, 1, 8>}, {pipeline_mode = #tpu.pipeline_mode<synchronous>, transform_indices = @transform_11, window_bounds = array<i64: 4, 8, 32>}, {pipeline_mode = #tpu.pipeline_mode<synchronous>, transform_indices = @transform_12, window_bounds = array<i64: 1, 32>}, {transform_indices = @transform_13, window_bounds = array<i64: 1, 8, 32>}, {transform_indices = @transform_14, window_bounds = array<i64: 1, 4, 8, 16>}]} {
    %c0 = arith.constant 0 : index
    %c0_0 = arith.constant 0 : index
    %c0_1 = arith.constant 0 : index
    %0 = vector.load %arg1[%c0, %c0_0, %c0_1] : memref<1x8x32xbf16, #tpu.memory_space<vmem>>, vector<1x8x32xbf16>
    %1 = vector.shape_cast %0 : vector<1x8x32xbf16> to vector<8x32xbf16>
    %2 = arith.extf %1 : vector<8x32xbf16> to vector<8x32xf32>
    %cst = arith.constant dense<0.000000e+00> : vector<8xf32>
    %3 = vector.multi_reduction <add>, %2, %cst [1] : vector<8x32xf32> to vector<8xf32>
    %4 = vector.shape_cast %3 : vector<8xf32> to vector<8x1xf32>
    %cst_2 = arith.constant 3.200000e+01 : f32
    %5 = vector.broadcast %cst_2 : f32 to vector<8x1xf32>
    %6 = arith.divf %4, %5 : vector<8x1xf32>
    %7 = vector.broadcast %6 : vector<8x1xf32> to vector<8x32xf32>
    %8 = arith.subf %2, %7 : vector<8x32xf32>
    %9 = arith.mulf %8, %8 : vector<8x32xf32>
    %cst_3 = arith.constant dense<0.000000e+00> : vector<8xf32>
    %10 = vector.multi_reduction <add>, %9, %cst_3 [1] : vector<8x32xf32> to vector<8xf32>
    %11 = vector.shape_cast %10 : vector<8xf32> to vector<8x1xf32>
    %cst_4 = arith.constant 3.200000e+01 : f32
    %12 = vector.broadcast %cst_4 : f32 to vector<8x1xf32>
    %13 = arith.divf %11, %12 : vector<8x1xf32>
    %14 = vector.broadcast %6 : vector<8x1xf32> to vector<8x32xf32>
    %15 = arith.subf %2, %14 : vector<8x32xf32>
    %cst_5 = arith.constant 9.99999974E-6 : f32
    %16 = vector.broadcast %cst_5 : f32 to vector<8x1xf32>
    %17 = arith.addf %13, %16 : vector<8x1xf32>
    %18 = math.rsqrt %17 : vector<8x1xf32>
    %19 = vector.broadcast %18 : vector<8x1xf32> to vector<8x32xf32>
    %20 = arith.mulf %15, %19 : vector<8x32xf32>
    %c0_6 = arith.constant 0 : index
    %c0_7 = arith.constant 0 : index
    %21 = vector.load %arg4[%c0_6, %c0_7] : memref<1x32xf32, #tpu.memory_space<vmem>>, vector<1x32xf32>
    %22 = vector.broadcast %21 : vector<1x32xf32> to vector<8x32xf32>
    %23 = arith.mulf %20, %22 : vector<8x32xf32>
    %c0_8 = arith.constant 0 : index
    %c0_9 = arith.constant 0 : index
    %24 = vector.load %arg5[%c0_8, %c0_9] : memref<1x32xf32, #tpu.memory_space<vmem>>, vector<1x32xf32>
    %25 = vector.broadcast %24 : vector<1x32xf32> to vector<8x32xf32>
    %26 = arith.addf %23, %25 : vector<8x32xf32>
    %27 = arith.truncf %26 : vector<8x32xf32> to vector<8x32xbf16>
    %c0_10 = arith.constant 0 : index
    %c0_11 = arith.constant 0 : index
    %c0_12 = arith.constant 0 : index
    %28 = vector.load %arg2[%c0_10, %c0_11, %c0_12] : memref<1x16x32xbf16, #tpu.memory_space<vmem>>, vector<1x16x32xbf16>
    %29 = vector.shape_cast %28 : vector<1x16x32xbf16> to vector<16x32xbf16>
    %c0_13 = arith.constant 0 : index
    %c0_14 = arith.constant 0 : index
    %c0_15 = arith.constant 0 : index
    %30 = vector.load %arg3[%c0_13, %c0_14, %c0_15] : memref<1x1x16xbf16, #tpu.memory_space<vmem>>, vector<1x1x16xbf16>
    %31 = vector.shape_cast %30 : vector<1x1x16xbf16> to vector<1x16xbf16>
    %cst_16 = arith.constant 0.000000e+00 : bf16
    %32 = vector.broadcast %cst_16 : bf16 to vector<1x16xbf16>
    %33 = arith.cmpf one, %31, %32 : vector<1x16xbf16>
    %cst_17 = arith.constant 0.000000e+00 : f32
    %34 = vector.broadcast %cst_17 : f32 to vector<8x32xf32>
    %c0_18 = arith.constant 0 : index
    %c0_19 = arith.constant 0 : index
    %c0_20 = arith.constant 0 : index
    %35 = vector.load %arg6[%c0_18, %c0_19, %c0_20] : memref<4x32x8xbf16, #tpu.memory_space<vmem>>, vector<1x32x8xbf16>
    %36 = vector.shape_cast %35 : vector<1x32x8xbf16> to vector<32x8xbf16>
    %cst_21 = arith.constant dense<0.000000e+00> : vector<8x8xf32>
    %37 = tpu.matmul %27, %36, %cst_21 {dimension_numbers = #tpu.dot_dimension_numbers<[1], [0], [0], [1], [0, 0, 1, 1], [], []>} : vector<8x32xbf16>, vector<32x8xbf16>, vector<8x8xf32> -> vector<8x8xf32>
    %c0_22 = arith.constant 0 : index
    %c0_23 = arith.constant 0 : index
    %c0_24 = arith.constant 0 : index
    %38 = vector.load %arg7[%c0_22, %c0_23, %c0_24] : memref<4x1x8xf32, #tpu.memory_space<vmem>>, vector<1x1x8xf32>
    %39 = vector.shape_cast %38 : vector<1x1x8xf32> to vector<1x8xf32>
    %40 = vector.broadcast %39 : vector<1x8xf32> to vector<8x8xf32>
    %41 = arith.addf %37, %40 : vector<8x8xf32>
    %c0_25 = arith.constant 0 : index
    %c0_26 = arith.constant 0 : index
    %c0_27 = arith.constant 0 : index
    %42 = vector.load %arg8[%c0_25, %c0_26, %c0_27] : memref<4x32x8xbf16, #tpu.memory_space<vmem>>, vector<1x32x8xbf16>
    %43 = vector.shape_cast %42 : vector<1x32x8xbf16> to vector<32x8xbf16>
    %cst_28 = arith.constant dense<0.000000e+00> : vector<16x8xf32>
    %44 = tpu.matmul %29, %43, %cst_28 {dimension_numbers = #tpu.dot_dimension_numbers<[1], [0], [0], [1], [0, 0, 1, 1], [], []>} : vector<16x32xbf16>, vector<32x8xbf16>, vector<16x8xf32> -> vector<16x8xf32>
    %c0_29 = arith.constant 0 : index
    %c0_30 = arith.constant 0 : index
    %c0_31 = arith.constant 0 : index
    %45 = vector.load %arg9[%c0_29, %c0_30, %c0_31] : memref<4x1x8xf32, #tpu.memory_space<vmem>>, vector<1x1x8xf32>
    %46 = vector.shape_cast %45 : vector<1x1x8xf32> to vector<1x8xf32>
    %47 = vector.broadcast %46 : vector<1x8xf32> to vector<16x8xf32>
    %48 = arith.addf %44, %47 : vector<16x8xf32>
    %c0_32 = arith.constant 0 : index
    %c0_33 = arith.constant 0 : index
    %c0_34 = arith.constant 0 : index
    %49 = vector.load %arg10[%c0_32, %c0_33, %c0_34] : memref<4x32x8xbf16, #tpu.memory_space<vmem>>, vector<1x32x8xbf16>
    %50 = vector.shape_cast %49 : vector<1x32x8xbf16> to vector<32x8xbf16>
    %cst_35 = arith.constant dense<0.000000e+00> : vector<16x8xf32>
    %51 = tpu.matmul %29, %50, %cst_35 {dimension_numbers = #tpu.dot_dimension_numbers<[1], [0], [0], [1], [0, 0, 1, 1], [], []>} : vector<16x32xbf16>, vector<32x8xbf16>, vector<16x8xf32> -> vector<16x8xf32>
    %c0_36 = arith.constant 0 : index
    %c0_37 = arith.constant 0 : index
    %c0_38 = arith.constant 0 : index
    %52 = vector.load %arg11[%c0_36, %c0_37, %c0_38] : memref<4x1x8xf32, #tpu.memory_space<vmem>>, vector<1x1x8xf32>
    %53 = vector.shape_cast %52 : vector<1x1x8xf32> to vector<1x8xf32>
    %54 = vector.broadcast %53 : vector<1x8xf32> to vector<16x8xf32>
    %55 = arith.addf %51, %54 : vector<16x8xf32>
    %56 = arith.truncf %41 : vector<8x8xf32> to vector<8x8xbf16>
    %57 = arith.truncf %48 : vector<16x8xf32> to vector<16x8xbf16>
    %cst_39 = arith.constant dense<0.000000e+00> : vector<8x16xf32>
    %58 = tpu.matmul %56, %57, %cst_39 {dimension_numbers = #tpu.dot_dimension_numbers<[1], [1], [0], [0], [0, 0, 1, 0], [], []>} : vector<8x8xbf16>, vector<16x8xbf16>, vector<8x16xf32> -> vector<8x16xf32>
    %cst_40 = arith.constant 0.353553385 : f32
    %59 = vector.broadcast %cst_40 : f32 to vector<8x16xf32>
    %60 = arith.mulf %58, %59 : vector<8x16xf32>
    %cst_41 = arith.constant -1.000000e+09 : f32
    %61 = vector.shape_cast %33 : vector<1x16xi1> to vector<1x16xi1>
    %62 = vector.broadcast %61 : vector<1x16xi1> to vector<8x16xi1>
    %63 = vector.broadcast %cst_41 : f32 to vector<8x16xf32>
    %64 = arith.select %62, %60, %63 : vector<8x16xi1>, vector<8x16xf32>
    %cst_42 = arith.constant dense<0xFF800000> : vector<8xf32>
    %65 = vector.multi_reduction <maximumf>, %64, %cst_42 [1] : vector<8x16xf32> to vector<8xf32>
    %66 = vector.shape_cast %65 : vector<8xf32> to vector<8x1xf32>
    %67 = vector.broadcast %66 : vector<8x1xf32> to vector<8x16xf32>
    %68 = arith.subf %64, %67 : vector<8x16xf32>
    %69 = math.exp %68 : vector<8x16xf32>
    %cst_43 = arith.constant dense<0.000000e+00> : vector<8xf32>
    %70 = vector.multi_reduction <add>, %69, %cst_43 [1] : vector<8x16xf32> to vector<8xf32>
    %71 = vector.shape_cast %70 : vector<8xf32> to vector<8x1xf32>
    %72 = tpu.reciprocal %71 {approx = true} : vector<8x1xf32> -> vector<8x1xf32>
    %73 = vector.broadcast %72 : vector<8x1xf32> to vector<8x16xf32>
    %74 = arith.mulf %69, %73 : vector<8x16xf32>
    %75 = arith.truncf %74 : vector<8x16xf32> to vector<8x16xbf16>
    %c0_44 = arith.constant 0 : index
    %c0_45 = arith.constant 0 : index
    %c0_46 = arith.constant 0 : index
    %c0_47 = arith.constant 0 : index
    %76 = vector.load %arg15[%c0_44, %c0_45, %c0_46, %c0_47] : memref<1x4x8x16xbf16, #tpu.memory_space<vmem>>, vector<1x1x8x16xbf16>
    %77 = vector.shape_cast %76 : vector<1x1x8x16xbf16> to vector<8x16xbf16>
    %78 = vector.shape_cast %75 : vector<8x16xbf16> to vector<1x1x8x16xbf16>
    tpu.vector_store %arg15[%c0_44, %c0_45, %c0_46, %c0_47], %78 {strides = array<i32>} : memref<1x4x8x16xbf16, #tpu.memory_space<vmem>>, vector<1x1x8x16xbf16>,
    %79 = arith.truncf %74 : vector<8x16xf32> to vector<8x16xbf16>
    %80 = arith.truncf %55 : vector<16x8xf32> to vector<16x8xbf16>
    %cst_48 = arith.constant dense<0.000000e+00> : vector<8x8xf32>
    %81 = tpu.matmul %79, %80, %cst_48 {dimension_numbers = #tpu.dot_dimension_numbers<[1], [0], [0], [1], [0, 0, 1, 1], [], []>} : vector<8x16xbf16>, vector<16x8xbf16>, vector<8x8xf32> -> vector<8x8xf32>
    %82 = arith.truncf %81 : vector<8x8xf32> to vector<8x8xbf16>
    %c0_49 = arith.constant 0 : index
    %c0_50 = arith.constant 0 : index
    %c0_51 = arith.constant 0 : index
    %83 = vector.load %arg12[%c0_49, %c0_50, %c0_51] : memref<4x8x32xbf16, #tpu.memory_space<vmem>>, vector<1x8x32xbf16>
    %84 = vector.shape_cast %83 : vector<1x8x32xbf16> to vector<8x32xbf16>
    %cst_52 = arith.constant dense<0.000000e+00> : vector<8x32xf32>
    %85 = tpu.matmul %82, %84, %cst_52 {dimension_numbers = #tpu.dot_dimension_numbers<[1], [0], [0], [1], [0, 0, 1, 1], [], []>} : vector<8x8xbf16>, vector<8x32xbf16>, vector<8x32xf32> -> vector<8x32xf32>
    %86 = arith.addf %34, %85 : vector<8x32xf32>
    %c1 = arith.constant 1 : index
    %c0_53 = arith.constant 0 : index
    %c0_54 = arith.constant 0 : index
    %87 = vector.load %arg6[%c1, %c0_53, %c0_54] : memref<4x32x8xbf16, #tpu.memory_space<vmem>>, vector<1x32x8xbf16>
    %88 = vector.shape_cast %87 : vector<1x32x8xbf16> to vector<32x8xbf16>
    %cst_55 = arith.constant dense<0.000000e+00> : vector<8x8xf32>
    %89 = tpu.matmul %27, %88, %cst_55 {dimension_numbers = #tpu.dot_dimension_numbers<[1], [0], [0], [1], [0, 0, 1, 1], [], []>} : vector<8x32xbf16>, vector<32x8xbf16>, vector<8x8xf32> -> vector<8x8xf32>
    %c1_56 = arith.constant 1 : index
    %c0_57 = arith.constant 0 : index
    %c0_58 = arith.constant 0 : index
    %90 = vector.load %arg7[%c1_56, %c0_57, %c0_58] : memref<4x1x8xf32, #tpu.memory_space<vmem>>, vector<1x1x8xf32>
    %91 = vector.shape_cast %90 : vector<1x1x8xf32> to vector<1x8xf32>
    %92 = vector.broadcast %91 : vector<1x8xf32> to vector<8x8xf32>
    %93 = arith.addf %89, %92 : vector<8x8xf32>
    %c1_59 = arith.constant 1 : index
    %c0_60 = arith.constant 0 : index
    %c0_61 = arith.constant 0 : index
    %94 = vector.load %arg8[%c1_59, %c0_60, %c0_61] : memref<4x32x8xbf16, #tpu.memory_space<vmem>>, vector<1x32x8xbf16>
    %95 = vector.shape_cast %94 : vector<1x32x8xbf16> to vector<32x8xbf16>
    %cst_62 = arith.constant dense<0.000000e+00> : vector<16x8xf32>
    %96 = tpu.matmul %29, %95, %cst_62 {dimension_numbers = #tpu.dot_dimension_numbers<[1], [0], [0], [1], [0, 0, 1, 1], [], []>} : vector<16x32xbf16>, vector<32x8xbf16>, vector<16x8xf32> -> vector<16x8xf32>
    %c1_63 = arith.constant 1 : index
    %c0_64 = arith.constant 0 : index
    %c0_65 = arith.constant 0 : index
    %97 = vector.load %arg9[%c1_63, %c0_64, %c0_65] : memref<4x1x8xf32, #tpu.memory_space<vmem>>, vector<1x1x8xf32>
    %98 = vector.shape_cast %97 : vector<1x1x8xf32> to vector<1x8xf32>
    %99 = vector.broadcast %98 : vector<1x8xf32> to vector<16x8xf32>
    %100 = arith.addf %96, %99 : vector<16x8xf32>
    %c1_66 = arith.constant 1 : index
    %c0_67 = arith.constant 0 : index
    %c0_68 = arith.constant 0 : index
    %101 = vector.load %arg10[%c1_66, %c0_67, %c0_68] : memref<4x32x8xbf16, #tpu.memory_space<vmem>>, vector<1x32x8xbf16>
    %102 = vector.shape_cast %101 : vector<1x32x8xbf16> to vector<32x8xbf16>
    %cst_69 = arith.constant dense<0.000000e+00> : vector<16x8xf32>
    %103 = tpu.matmul %29, %102, %cst_69 {dimension_numbers = #tpu.dot_dimension_numbers<[1], [0], [0], [1], [0, 0, 1, 1], [], []>} : vector<16x32xbf16>, vector<32x8xbf16>, vector<16x8xf32> -> vector<16x8xf32>
    %c1_70 = arith.constant 1 : index
    %c0_71 = arith.constant 0 : index
    %c0_72 = arith.constant 0 : index
    %104 = vector.load %arg11[%c1_70, %c0_71, %c0_72] : memref<4x1x8xf32, #tpu.memory_space<vmem>>, vector<1x1x8xf32>
    %105 = vector.shape_cast %104 : vector<1x1x8xf32> to vector<1x8xf32>
    %106 = vector.broadcast %105 : vector<1x8xf32> to vector<16x8xf32>
    %107 = arith.addf %103, %106 : vector<16x8xf32>
    %108 = arith.truncf %93 : vector<8x8xf32> to vector<8x8xbf16>
    %109 = arith.truncf %100 : vector<16x8xf32> to vector<16x8xbf16>
    %cst_73 = arith.constant dense<0.000000e+00> : vector<8x16xf32>
    %110 = tpu.matmul %108, %109, %cst_73 {dimension_numbers = #tpu.dot_dimension_numbers<[1], [1], [0], [0], [0, 0, 1, 0], [], []>} : vector<8x8xbf16>, vector<16x8xbf16>, vector<8x16xf32> -> vector<8x16xf32>
    %cst_74 = arith.constant 0.353553385 : f32
    %111 = vector.broadcast %cst_74 : f32 to vector<8x16xf32>
    %112 = arith.mulf %110, %111 : vector<8x16xf32>
    %cst_75 = arith.constant -1.000000e+09 : f32
    %113 = vector.shape_cast %33 : vector<1x16xi1> to vector<1x16xi1>
    %114 = vector.broadcast %113 : vector<1x16xi1> to vector<8x16xi1>
    %115 = vector.broadcast %cst_75 : f32 to vector<8x16xf32>
    %116 = arith.select %114, %112, %115 : vector<8x16xi1>, vector<8x16xf32>
    %cst_76 = arith.constant dense<0xFF800000> : vector<8xf32>
    %117 = vector.multi_reduction <maximumf>, %116, %cst_76 [1] : vector<8x16xf32> to vector<8xf32>
    %118 = vector.shape_cast %117 : vector<8xf32> to vector<8x1xf32>
    %119 = vector.broadcast %118 : vector<8x1xf32> to vector<8x16xf32>
    %120 = arith.subf %116, %119 : vector<8x16xf32>
    %121 = math.exp %120 : vector<8x16xf32>
    %cst_77 = arith.constant dense<0.000000e+00> : vector<8xf32>
    %122 = vector.multi_reduction <add>, %121, %cst_77 [1] : vector<8x16xf32> to vector<8xf32>
    %123 = vector.shape_cast %122 : vector<8xf32> to vector<8x1xf32>
    %124 = tpu.reciprocal %123 {approx = true} : vector<8x1xf32> -> vector<8x1xf32>
    %125 = vector.broadcast %124 : vector<8x1xf32> to vector<8x16xf32>
    %126 = arith.mulf %121, %125 : vector<8x16xf32>
    %127 = arith.truncf %126 : vector<8x16xf32> to vector<8x16xbf16>
    %c0_78 = arith.constant 0 : index
    %c1_79 = arith.constant 1 : index
    %c0_80 = arith.constant 0 : index
    %c0_81 = arith.constant 0 : index
    %128 = vector.load %arg15[%c0_78, %c1_79, %c0_80, %c0_81] : memref<1x4x8x16xbf16, #tpu.memory_space<vmem>>, vector<1x1x8x16xbf16>
    %129 = vector.shape_cast %128 : vector<1x1x8x16xbf16> to vector<8x16xbf16>
    %130 = vector.shape_cast %127 : vector<8x16xbf16> to vector<1x1x8x16xbf16>
    tpu.vector_store %arg15[%c0_78, %c1_79, %c0_80, %c0_81], %130 {strides = array<i32>} : memref<1x4x8x16xbf16, #tpu.memory_space<vmem>>, vector<1x1x8x16xbf16>,
    %131 = arith.truncf %126 : vector<8x16xf32> to vector<8x16xbf16>
    %132 = arith.truncf %107 : vector<16x8xf32> to vector<16x8xbf16>
    %cst_82 = arith.constant dense<0.000000e+00> : vector<8x8xf32>
    %133 = tpu.matmul %131, %132, %cst_82 {dimension_numbers = #tpu.dot_dimension_numbers<[1], [0], [0], [1], [0, 0, 1, 1], [], []>} : vector<8x16xbf16>, vector<16x8xbf16>, vector<8x8xf32> -> vector<8x8xf32>
    %134 = arith.truncf %133 : vector<8x8xf32> to vector<8x8xbf16>
    %c1_83 = arith.constant 1 : index
    %c0_84 = arith.constant 0 : index
    %c0_85 = arith.constant 0 : index
    %135 = vector.load %arg12[%c1_83, %c0_84, %c0_85] : memref<4x8x32xbf16, #tpu.memory_space<vmem>>, vector<1x8x32xbf16>
    %136 = vector.shape_cast %135 : vector<1x8x32xbf16> to vector<8x32xbf16>
    %cst_86 = arith.constant dense<0.000000e+00> : vector<8x32xf32>
    %137 = tpu.matmul %134, %136, %cst_86 {dimension_numbers = #tpu.dot_dimension_numbers<[1], [0], [0], [1], [0, 0, 1, 1], [], []>} : vector<8x8xbf16>, vector<8x32xbf16>, vector<8x32xf32> -> vector<8x32xf32>
    %138 = arith.addf %86, %137 : vector<8x32xf32>
    %c2 = arith.constant 2 : index
    %c0_87 = arith.constant 0 : index
    %c0_88 = arith.constant 0 : index
    %139 = vector.load %arg6[%c2, %c0_87, %c0_88] : memref<4x32x8xbf16, #tpu.memory_space<vmem>>, vector<1x32x8xbf16>
    %140 = vector.shape_cast %139 : vector<1x32x8xbf16> to vector<32x8xbf16>
    %cst_89 = arith.constant dense<0.000000e+00> : vector<8x8xf32>
    %141 = tpu.matmul %27, %140, %cst_89 {dimension_numbers = #tpu.dot_dimension_numbers<[1], [0], [0], [1], [0, 0, 1, 1], [], []>} : vector<8x32xbf16>, vector<32x8xbf16>, vector<8x8xf32> -> vector<8x8xf32>
    %c2_90 = arith.constant 2 : index
    %c0_91 = arith.constant 0 : index
    %c0_92 = arith.constant 0 : index
    %142 = vector.load %arg7[%c2_90, %c0_91, %c0_92] : memref<4x1x8xf32, #tpu.memory_space<vmem>>, vector<1x1x8xf32>
    %143 = vector.shape_cast %142 : vector<1x1x8xf32> to vector<1x8xf32>
    %144 = vector.broadcast %143 : vector<1x8xf32> to vector<8x8xf32>
    %145 = arith.addf %141, %144 : vector<8x8xf32>
    %c2_93 = arith.constant 2 : index
    %c0_94 = arith.constant 0 : index
    %c0_95 = arith.constant 0 : index
    %146 = vector.load %arg8[%c2_93, %c0_94, %c0_95] : memref<4x32x8xbf16, #tpu.memory_space<vmem>>, vector<1x32x8xbf16>
    %147 = vector.shape_cast %146 : vector<1x32x8xbf16> to vector<32x8xbf16>
    %cst_96 = arith.constant dense<0.000000e+00> : vector<16x8xf32>
    %148 = tpu.matmul %29, %147, %cst_96 {dimension_numbers = #tpu.dot_dimension_numbers<[1], [0], [0], [1], [0, 0, 1, 1], [], []>} : vector<16x32xbf16>, vector<32x8xbf16>, vector<16x8xf32> -> vector<16x8xf32>
    %c2_97 = arith.constant 2 : index
    %c0_98 = arith.constant 0 : index
    %c0_99 = arith.constant 0 : index
    %149 = vector.load %arg9[%c2_97, %c0_98, %c0_99] : memref<4x1x8xf32, #tpu.memory_space<vmem>>, vector<1x1x8xf32>
    %150 = vector.shape_cast %149 : vector<1x1x8xf32> to vector<1x8xf32>
    %151 = vector.broadcast %150 : vector<1x8xf32> to vector<16x8xf32>
    %152 = arith.addf %148, %151 : vector<16x8xf32>
    %c2_100 = arith.constant 2 : index
    %c0_101 = arith.constant 0 : index
    %c0_102 = arith.constant 0 : index
    %153 = vector.load %arg10[%c2_100, %c0_101, %c0_102] : memref<4x32x8xbf16, #tpu.memory_space<vmem>>, vector<1x32x8xbf16>
    %154 = vector.shape_cast %153 : vector<1x32x8xbf16> to vector<32x8xbf16>
    %cst_103 = arith.constant dense<0.000000e+00> : vector<16x8xf32>
    %155 = tpu.matmul %29, %154, %cst_103 {dimension_numbers = #tpu.dot_dimension_numbers<[1], [0], [0], [1], [0, 0, 1, 1], [], []>} : vector<16x32xbf16>, vector<32x8xbf16>, vector<16x8xf32> -> vector<16x8xf32>
    %c2_104 = arith.constant 2 : index
    %c0_105 = arith.constant 0 : index
    %c0_106 = arith.constant 0 : index
    %156 = vector.load %arg11[%c2_104, %c0_105, %c0_106] : memref<4x1x8xf32, #tpu.memory_space<vmem>>, vector<1x1x8xf32>
    %157 = vector.shape_cast %156 : vector<1x1x8xf32> to vector<1x8xf32>
    %158 = vector.broadcast %157 : vector<1x8xf32> to vector<16x8xf32>
    %159 = arith.addf %155, %158 : vector<16x8xf32>
    %160 = arith.truncf %145 : vector<8x8xf32> to vector<8x8xbf16>
    %161 = arith.truncf %152 : vector<16x8xf32> to vector<16x8xbf16>
    %cst_107 = arith.constant dense<0.000000e+00> : vector<8x16xf32>
    %162 = tpu.matmul %160, %161, %cst_107 {dimension_numbers = #tpu.dot_dimension_numbers<[1], [1], [0], [0], [0, 0, 1, 0], [], []>} : vector<8x8xbf16>, vector<16x8xbf16>, vector<8x16xf32> -> vector<8x16xf32>
    %cst_108 = arith.constant 0.353553385 : f32
    %163 = vector.broadcast %cst_108 : f32 to vector<8x16xf32>
    %164 = arith.mulf %162, %163 : vector<8x16xf32>
    %cst_109 = arith.constant -1.000000e+09 : f32
    %165 = vector.shape_cast %33 : vector<1x16xi1> to vector<1x16xi1>
    %166 = vector.broadcast %165 : vector<1x16xi1> to vector<8x16xi1>
    %167 = vector.broadcast %cst_109 : f32 to vector<8x16xf32>
    %168 = arith.select %166, %164, %167 : vector<8x16xi1>, vector<8x16xf32>
    %cst_110 = arith.constant dense<0xFF800000> : vector<8xf32>
    %169 = vector.multi_reduction <maximumf>, %168, %cst_110 [1] : vector<8x16xf32> to vector<8xf32>
    %170 = vector.shape_cast %169 : vector<8xf32> to vector<8x1xf32>
    %171 = vector.broadcast %170 : vector<8x1xf32> to vector<8x16xf32>
    %172 = arith.subf %168, %171 : vector<8x16xf32>
    %173 = math.exp %172 : vector<8x16xf32>
    %cst_111 = arith.constant dense<0.000000e+00> : vector<8xf32>
    %174 = vector.multi_reduction <add>, %173, %cst_111 [1] : vector<8x16xf32> to vector<8xf32>
    %175 = vector.shape_cast %174 : vector<8xf32> to vector<8x1xf32>
    %176 = tpu.reciprocal %175 {approx = true} : vector<8x1xf32> -> vector<8x1xf32>
    %177 = vector.broadcast %176 : vector<8x1xf32> to vector<8x16xf32>
    %178 = arith.mulf %173, %177 : vector<8x16xf32>
    %179 = arith.truncf %178 : vector<8x16xf32> to vector<8x16xbf16>
    %c0_112 = arith.constant 0 : index
    %c2_113 = arith.constant 2 : index
    %c0_114 = arith.constant 0 : index
    %c0_115 = arith.constant 0 : index
    %180 = vector.load %arg15[%c0_112, %c2_113, %c0_114, %c0_115] : memref<1x4x8x16xbf16, #tpu.memory_space<vmem>>, vector<1x1x8x16xbf16>
    %181 = vector.shape_cast %180 : vector<1x1x8x16xbf16> to vector<8x16xbf16>
    %182 = vector.shape_cast %179 : vector<8x16xbf16> to vector<1x1x8x16xbf16>
    tpu.vector_store %arg15[%c0_112, %c2_113, %c0_114, %c0_115], %182 {strides = array<i32>} : memref<1x4x8x16xbf16, #tpu.memory_space<vmem>>, vector<1x1x8x16xbf16>,
    %183 = arith.truncf %178 : vector<8x16xf32> to vector<8x16xbf16>
    %184 = arith.truncf %159 : vector<16x8xf32> to vector<16x8xbf16>
    %cst_116 = arith.constant dense<0.000000e+00> : vector<8x8xf32>
    %185 = tpu.matmul %183, %184, %cst_116 {dimension_numbers = #tpu.dot_dimension_numbers<[1], [0], [0], [1], [0, 0, 1, 1], [], []>} : vector<8x16xbf16>, vector<16x8xbf16>, vector<8x8xf32> -> vector<8x8xf32>
    %186 = arith.truncf %185 : vector<8x8xf32> to vector<8x8xbf16>
    %c2_117 = arith.constant 2 : index
    %c0_118 = arith.constant 0 : index
    %c0_119 = arith.constant 0 : index
    %187 = vector.load %arg12[%c2_117, %c0_118, %c0_119] : memref<4x8x32xbf16, #tpu.memory_space<vmem>>, vector<1x8x32xbf16>
    %188 = vector.shape_cast %187 : vector<1x8x32xbf16> to vector<8x32xbf16>
    %cst_120 = arith.constant dense<0.000000e+00> : vector<8x32xf32>
    %189 = tpu.matmul %186, %188, %cst_120 {dimension_numbers = #tpu.dot_dimension_numbers<[1], [0], [0], [1], [0, 0, 1, 1], [], []>} : vector<8x8xbf16>, vector<8x32xbf16>, vector<8x32xf32> -> vector<8x32xf32>
    %190 = arith.addf %138, %189 : vector<8x32xf32>
    %c3 = arith.constant 3 : index
    %c0_121 = arith.constant 0 : index
    %c0_122 = arith.constant 0 : index
    %191 = vector.load %arg6[%c3, %c0_121, %c0_122] : memref<4x32x8xbf16, #tpu.memory_space<vmem>>, vector<1x32x8xbf16>
    %192 = vector.shape_cast %191 : vector<1x32x8xbf16> to vector<32x8xbf16>
    %cst_123 = arith.constant dense<0.000000e+00> : vector<8x8xf32>
    %193 = tpu.matmul %27, %192, %cst_123 {dimension_numbers = #tpu.dot_dimension_numbers<[1], [0], [0], [1], [0, 0, 1, 1], [], []>} : vector<8x32xbf16>, vector<32x8xbf16>, vector<8x8xf32> -> vector<8x8xf32>
    %c3_124 = arith.constant 3 : index
    %c0_125 = arith.constant 0 : index
    %c0_126 = arith.constant 0 : index
    %194 = vector.load %arg7[%c3_124, %c0_125, %c0_126] : memref<4x1x8xf32, #tpu.memory_space<vmem>>, vector<1x1x8xf32>
    %195 = vector.shape_cast %194 : vector<1x1x8xf32> to vector<1x8xf32>
    %196 = vector.broadcast %195 : vector<1x8xf32> to vector<8x8xf32>
    %197 = arith.addf %193, %196 : vector<8x8xf32>
    %c3_127 = arith.constant 3 : index
    %c0_128 = arith.constant 0 : index
    %c0_129 = arith.constant 0 : index
    %198 = vector.load %arg8[%c3_127, %c0_128, %c0_129] : memref<4x32x8xbf16, #tpu.memory_space<vmem>>, vector<1x32x8xbf16>
    %199 = vector.shape_cast %198 : vector<1x32x8xbf16> to vector<32x8xbf16>
    %cst_130 = arith.constant dense<0.000000e+00> : vector<16x8xf32>
    %200 = tpu.matmul %29, %199, %cst_130 {dimension_numbers = #tpu.dot_dimension_numbers<[1], [0], [0], [1], [0, 0, 1, 1], [], []>} : vector<16x32xbf16>, vector<32x8xbf16>, vector<16x8xf32> -> vector<16x8xf32>
    %c3_131 = arith.constant 3 : index
    %c0_132 = arith.constant 0 : index
    %c0_133 = arith.constant 0 : index
    %201 = vector.load %arg9[%c3_131, %c0_132, %c0_133] : memref<4x1x8xf32, #tpu.memory_space<vmem>>, vector<1x1x8xf32>
    %202 = vector.shape_cast %201 : vector<1x1x8xf32> to vector<1x8xf32>
    %203 = vector.broadcast %202 : vector<1x8xf32> to vector<16x8xf32>
    %204 = arith.addf %200, %203 : vector<16x8xf32>
    %c3_134 = arith.constant 3 : index
    %c0_135 = arith.constant 0 : index
    %c0_136 = arith.constant 0 : index
    %205 = vector.load %arg10[%c3_134, %c0_135, %c0_136] : memref<4x32x8xbf16, #tpu.memory_space<vmem>>, vector<1x32x8xbf16>
    %206 = vector.shape_cast %205 : vector<1x32x8xbf16> to vector<32x8xbf16>
    %cst_137 = arith.constant dense<0.000000e+00> : vector<16x8xf32>
    %207 = tpu.matmul %29, %206, %cst_137 {dimension_numbers = #tpu.dot_dimension_numbers<[1], [0], [0], [1], [0, 0, 1, 1], [], []>} : vector<16x32xbf16>, vector<32x8xbf16>, vector<16x8xf32> -> vector<16x8xf32>
    %c3_138 = arith.constant 3 : index
    %c0_139 = arith.constant 0 : index
    %c0_140 = arith.constant 0 : index
    %208 = vector.load %arg11[%c3_138, %c0_139, %c0_140] : memref<4x1x8xf32, #tpu.memory_space<vmem>>, vector<1x1x8xf32>
    %209 = vector.shape_cast %208 : vector<1x1x8xf32> to vector<1x8xf32>
    %210 = vector.broadcast %209 : vector<1x8xf32> to vector<16x8xf32>
    %211 = arith.addf %207, %210 : vector<16x8xf32>
    %212 = arith.truncf %197 : vector<8x8xf32> to vector<8x8xbf16>
    %213 = arith.truncf %204 : vector<16x8xf32> to vector<16x8xbf16>
    %cst_141 = arith.constant dense<0.000000e+00> : vector<8x16xf32>
    %214 = tpu.matmul %212, %213, %cst_141 {dimension_numbers = #tpu.dot_dimension_numbers<[1], [1], [0], [0], [0, 0, 1, 0], [], []>} : vector<8x8xbf16>, vector<16x8xbf16>, vector<8x16xf32> -> vector<8x16xf32>
    %cst_142 = arith.constant 0.353553385 : f32
    %215 = vector.broadcast %cst_142 : f32 to vector<8x16xf32>
    %216 = arith.mulf %214, %215 : vector<8x16xf32>
    %cst_143 = arith.constant -1.000000e+09 : f32
    %217 = vector.shape_cast %33 : vector<1x16xi1> to vector<1x16xi1>
    %218 = vector.broadcast %217 : vector<1x16xi1> to vector<8x16xi1>
    %219 = vector.broadcast %cst_143 : f32 to vector<8x16xf32>
    %220 = arith.select %218, %216, %219 : vector<8x16xi1>, vector<8x16xf32>
    %cst_144 = arith.constant dense<0xFF800000> : vector<8xf32>
    %221 = vector.multi_reduction <maximumf>, %220, %cst_144 [1] : vector<8x16xf32> to vector<8xf32>
    %222 = vector.shape_cast %221 : vector<8xf32> to vector<8x1xf32>
    %223 = vector.broadcast %222 : vector<8x1xf32> to vector<8x16xf32>
    %224 = arith.subf %220, %223 : vector<8x16xf32>
    %225 = math.exp %224 : vector<8x16xf32>
    %cst_145 = arith.constant dense<0.000000e+00> : vector<8xf32>
    %226 = vector.multi_reduction <add>, %225, %cst_145 [1] : vector<8x16xf32> to vector<8xf32>
    %227 = vector.shape_cast %226 : vector<8xf32> to vector<8x1xf32>
    %228 = tpu.reciprocal %227 {approx = true} : vector<8x1xf32> -> vector<8x1xf32>
    %229 = vector.broadcast %228 : vector<8x1xf32> to vector<8x16xf32>
    %230 = arith.mulf %225, %229 : vector<8x16xf32>
    %231 = arith.truncf %230 : vector<8x16xf32> to vector<8x16xbf16>
    %c0_146 = arith.constant 0 : index
    %c3_147 = arith.constant 3 : index
    %c0_148 = arith.constant 0 : index
    %c0_149 = arith.constant 0 : index
    %232 = vector.load %arg15[%c0_146, %c3_147, %c0_148, %c0_149] : memref<1x4x8x16xbf16, #tpu.memory_space<vmem>>, vector<1x1x8x16xbf16>
    %233 = vector.shape_cast %232 : vector<1x1x8x16xbf16> to vector<8x16xbf16>
    %234 = vector.shape_cast %231 : vector<8x16xbf16> to vector<1x1x8x16xbf16>
    tpu.vector_store %arg15[%c0_146, %c3_147, %c0_148, %c0_149], %234 {strides = array<i32>} : memref<1x4x8x16xbf16, #tpu.memory_space<vmem>>, vector<1x1x8x16xbf16>,
    %235 = arith.truncf %230 : vector<8x16xf32> to vector<8x16xbf16>
    %236 = arith.truncf %211 : vector<16x8xf32> to vector<16x8xbf16>
    %cst_150 = arith.constant dense<0.000000e+00> : vector<8x8xf32>
    %237 = tpu.matmul %235, %236, %cst_150 {dimension_numbers = #tpu.dot_dimension_numbers<[1], [0], [0], [1], [0, 0, 1, 1], [], []>} : vector<8x16xbf16>, vector<16x8xbf16>, vector<8x8xf32> -> vector<8x8xf32>
    %238 = arith.truncf %237 : vector<8x8xf32> to vector<8x8xbf16>
    %c3_151 = arith.constant 3 : index
    %c0_152 = arith.constant 0 : index
    %c0_153 = arith.constant 0 : index
    %239 = vector.load %arg12[%c3_151, %c0_152, %c0_153] : memref<4x8x32xbf16, #tpu.memory_space<vmem>>, vector<1x8x32xbf16>
    %240 = vector.shape_cast %239 : vector<1x8x32xbf16> to vector<8x32xbf16>
    %cst_154 = arith.constant dense<0.000000e+00> : vector<8x32xf32>
    %241 = tpu.matmul %238, %240, %cst_154 {dimension_numbers = #tpu.dot_dimension_numbers<[1], [0], [0], [1], [0, 0, 1, 1], [], []>} : vector<8x8xbf16>, vector<8x32xbf16>, vector<8x32xf32> -> vector<8x32xf32>
    %242 = arith.addf %190, %241 : vector<8x32xf32>
    %c0_155 = arith.constant 0 : index
    %c0_156 = arith.constant 0 : index
    %243 = vector.load %arg13[%c0_155, %c0_156] : memref<1x32xf32, #tpu.memory_space<vmem>>, vector<1x32xf32>
    %244 = vector.broadcast %243 : vector<1x32xf32> to vector<8x32xf32>
    %245 = arith.addf %242, %244 : vector<8x32xf32>
    %246 = arith.addf %2, %245 : vector<8x32xf32>
    %247 = arith.truncf %246 : vector<8x32xf32> to vector<8x32xbf16>
    %c0_157 = arith.constant 0 : index
    %c0_158 = arith.constant 0 : index
    %c0_159 = arith.constant 0 : index
    %248 = vector.load %arg14[%c0_157, %c0_158, %c0_159] : memref<1x8x32xbf16, #tpu.memory_space<vmem>>, vector<1x8x32xbf16>
    %249 = vector.shape_cast %248 : vector<1x8x32xbf16> to vector<8x32xbf16>
    %250 = vector.shape_cast %247 : vector<8x32xbf16> to vector<1x8x32xbf16>
    tpu.vector_store %arg14[%c0_157, %c0_158, %c0_159], %250 {strides = array<i32>} : memref<1x8x32xbf16, #tpu.memory_space<vmem>>, vector<1x8x32xbf16>,
    return
  }
  func.func @transform_0(%arg0: i32) -> (i32, i32, i32) {
    %c0_i32 = arith.constant 0 : i32
    %c0_i32_0 = arith.constant 0 : i32
    %c0_i32_1 = arith.constant 0 : i32
    return %arg0, %c0_i32, %c0_i32_0 : i32, i32, i32
  }
  func.func @transform_1(%arg0: i32) -> (i32, i32, i32) {
    %c0_i32 = arith.constant 0 : i32
    %c0_i32_0 = arith.constant 0 : i32
    %c0_i32_1 = arith.constant 0 : i32
    return %arg0, %c0_i32, %c0_i32_0 : i32, i32, i32
  }
  func.func @transform_2(%arg0: i32) -> (i32, i32, i32) {
    %c0_i32 = arith.constant 0 : i32
    %c0_i32_0 = arith.constant 0 : i32
    %c0_i32_1 = arith.constant 0 : i32
    return %arg0, %c0_i32, %c0_i32_0 : i32, i32, i32
  }
  func.func @transform_3(%arg0: i32) -> (i32, i32) {
    %c0_i32 = arith.constant 0 : i32
    %c0_i32_0 = arith.constant 0 : i32
    %c0_i32_1 = arith.constant 0 : i32
    return %c0_i32, %c0_i32_0 : i32, i32
  }
  func.func @transform_4(%arg0: i32) -> (i32, i32) {
    %c0_i32 = arith.constant 0 : i32
    %c0_i32_0 = arith.constant 0 : i32
    %c0_i32_1 = arith.constant 0 : i32
    return %c0_i32, %c0_i32_0 : i32, i32
  }
  func.func @transform_5(%arg0: i32) -> (i32, i32, i32) {
    %c0_i32 = arith.constant 0 : i32
    %c0_i32_0 = arith.constant 0 : i32
    %c0_i32_1 = arith.constant 0 : i32
    %c0_i32_2 = arith.constant 0 : i32
    return %c0_i32, %c0_i32_0, %c0_i32_1 : i32, i32, i32
  }
  func.func @transform_6(%arg0: i32) -> (i32, i32, i32) {
    %c0_i32 = arith.constant 0 : i32
    %c0_i32_0 = arith.constant 0 : i32
    %c0_i32_1 = arith.constant 0 : i32
    %c0_i32_2 = arith.constant 0 : i32
    return %c0_i32, %c0_i32_0, %c0_i32_1 : i32, i32, i32
  }
  func.func @transform_7(%arg0: i32) -> (i32, i32, i32) {
    %c0_i32 = arith.constant 0 : i32
    %c0_i32_0 = arith.constant 0 : i32
    %c0_i32_1 = arith.constant 0 : i32
    %c0_i32_2 = arith.constant 0 : i32
    return %c0_i32, %c0_i32_0, %c0_i32_1 : i32, i32, i32
  }
  func.func @transform_8(%arg0: i32) -> (i32, i32, i32) {
    %c0_i32 = arith.constant 0 : i32
    %c0_i32_0 = arith.constant 0 : i32
    %c0_i32_1 = arith.constant 0 : i32
    %c0_i32_2 = arith.constant 0 : i32
    return %c0_i32, %c0_i32_0, %c0_i32_1 : i32, i32, i32
  }
  func.func @transform_9(%arg0: i32) -> (i32, i32, i32) {
    %c0_i32 = arith.constant 0 : i32
    %c0_i32_0 = arith.constant 0 : i32
    %c0_i32_1 = arith.constant 0 : i32
    %c0_i32_2 = arith.constant 0 : i32
    return %c0_i32, %c0_i32_0, %c0_i32_1 : i32, i32, i32
  }
  func.func @transform_10(%arg0: i32) -> (i32, i32, i32) {
    %c0_i32 = arith.constant 0 : i32
    %c0_i32_0 = arith.constant 0 : i32
    %c0_i32_1 = arith.constant 0 : i32
    %c0_i32_2 = arith.constant 0 : i32
    return %c0_i32, %c0_i32_0, %c0_i32_1 : i32, i32, i32
  }
  func.func @transform_11(%arg0: i32) -> (i32, i32, i32) {
    %c0_i32 = arith.constant 0 : i32
    %c0_i32_0 = arith.constant 0 : i32
    %c0_i32_1 = arith.constant 0 : i32
    %c0_i32_2 = arith.constant 0 : i32
    return %c0_i32, %c0_i32_0, %c0_i32_1 : i32, i32, i32
  }
  func.func @transform_12(%arg0: i32) -> (i32, i32) {
    %c0_i32 = arith.constant 0 : i32
    %c0_i32_0 = arith.constant 0 : i32
    %c0_i32_1 = arith.constant 0 : i32
    return %c0_i32, %c0_i32_0 : i32, i32
  }
  func.func @transform_13(%arg0: i32) -> (i32, i32, i32) {
    %c0_i32 = arith.constant 0 : i32
    %c0_i32_0 = arith.constant 0 : i32
    %c0_i32_1 = arith.constant 0 : i32
    return %arg0, %c0_i32, %c0_i32_0 : i32, i32, i32
  }
  func.func @transform_14(%arg0: i32) -> (i32, i32, i32, i32) {
    %c0_i32 = arith.constant 0 : i32
    %c0_i32_0 = arith.constant 0 : i32
    %c0_i32_1 = arith.constant 0 : i32
    %c0_i32_2 = arith.constant 0 : i32
    return %arg0, %c0_i32, %c0_i32_0, %c0_i32_1 : i32, i32, i32, i32
  }
}

module attributes {stable_mosaic.version = 11 : i64} {
  func.func @_attn_block_kernel(%arg0: i32, %arg1: memref<1x8x32xbf16, #tpu.memory_space<vmem>>, %arg2: memref<1x8x8xbf16, #tpu.memory_space<vmem>>, %arg3: memref<1x32xf32, #tpu.memory_space<vmem>>, %arg4: memref<1x32xf32, #tpu.memory_space<vmem>>, %arg5: memref<4x32x8xbf16, #tpu.memory_space<vmem>>, %arg6: memref<4x1x8xf32, #tpu.memory_space<vmem>>, %arg7: memref<4x32x8xbf16, #tpu.memory_space<vmem>>, %arg8: memref<4x1x8xf32, #tpu.memory_space<vmem>>, %arg9: memref<4x32x8xbf16, #tpu.memory_space<vmem>>, %arg10: memref<4x1x8xf32, #tpu.memory_space<vmem>>, %arg11: memref<4x8x32xbf16, #tpu.memory_space<vmem>>, %arg12: memref<1x32xf32, #tpu.memory_space<vmem>>, %arg13: memref<1x8x32xbf16, #tpu.memory_space<vmem>>, %arg14: memref<1x4x8x8xbf16, #tpu.memory_space<vmem>>) attributes {dimension_semantics = [#tpu.dimension_semantics<parallel>], iteration_bounds = array<i64: 2>, scalar_prefetch = 0 : i64, scratch_operands = 0 : i64, tpu.core_type = #tpu.core_type<tc>, window_params = [{transform_indices = @transform_0, window_bounds = array<i64: 1, 8, 32>}, {transform_indices = @transform_1, window_bounds = array<i64: 1, 8, 8>}, {pipeline_mode = #tpu.pipeline_mode<synchronous>, transform_indices = @transform_2, window_bounds = array<i64: 1, 32>}, {pipeline_mode = #tpu.pipeline_mode<synchronous>, transform_indices = @transform_3, window_bounds = array<i64: 1, 32>}, {pipeline_mode = #tpu.pipeline_mode<synchronous>, transform_indices = @transform_4, window_bounds = array<i64: 4, 32, 8>}, {pipeline_mode = #tpu.pipeline_mode<synchronous>, transform_indices = @transform_5, window_bounds = array<i64: 4, 1, 8>}, {pipeline_mode = #tpu.pipeline_mode<synchronous>, transform_indices = @transform_6, window_bounds = array<i64: 4, 32, 8>}, {pipeline_mode = #tpu.pipeline_mode<synchronous>, transform_indices = @transform_7, window_bounds = array<i64: 4, 1, 8>}, {pipeline_mode = #tpu.pipeline_mode<synchronous>, transform_indices = @transform_8, window_bounds = array<i64: 4, 32, 8>}, {pipeline_mode = #tpu.pipeline_mode<synchronous>, transform_indices = @transform_9, window_bounds = array<i64: 4, 1, 8>}, {pipeline_mode = #tpu.pipeline_mode<synchronous>, transform_indices = @transform_10, window_bounds = array<i64: 4, 8, 32>}, {pipeline_mode = #tpu.pipeline_mode<synchronous>, transform_indices = @transform_11, window_bounds = array<i64: 1, 32>}, {transform_indices = @transform_12, window_bounds = array<i64: 1, 8, 32>}, {transform_indices = @transform_13, window_bounds = array<i64: 1, 4, 8, 8>}]} {
    %c0 = arith.constant 0 : index
    %c0_0 = arith.constant 0 : index
    %c0_1 = arith.constant 0 : index
    %0 = vector.load %arg1[%c0, %c0_0, %c0_1] : memref<1x8x32xbf16, #tpu.memory_space<vmem>>, vector<1x8x32xbf16>
    %1 = vector.shape_cast %0 : vector<1x8x32xbf16> to vector<8x32xbf16>
    %2 = arith.extf %1 : vector<8x32xbf16> to vector<8x32xf32>
    %cst = arith.constant dense<0.000000e+00> : vector<8xf32>
    %3 = vector.multi_reduction <add>, %2, %cst [1] : vector<8x32xf32> to vector<8xf32>
    %4 = vector.shape_cast %3 : vector<8xf32> to vector<8x1xf32>
    %cst_2 = arith.constant 3.200000e+01 : f32
    %5 = vector.broadcast %cst_2 : f32 to vector<8x1xf32>
    %6 = arith.divf %4, %5 : vector<8x1xf32>
    %7 = vector.broadcast %6 : vector<8x1xf32> to vector<8x32xf32>
    %8 = arith.subf %2, %7 : vector<8x32xf32>
    %9 = arith.mulf %8, %8 : vector<8x32xf32>
    %cst_3 = arith.constant dense<0.000000e+00> : vector<8xf32>
    %10 = vector.multi_reduction <add>, %9, %cst_3 [1] : vector<8x32xf32> to vector<8xf32>
    %11 = vector.shape_cast %10 : vector<8xf32> to vector<8x1xf32>
    %cst_4 = arith.constant 3.200000e+01 : f32
    %12 = vector.broadcast %cst_4 : f32 to vector<8x1xf32>
    %13 = arith.divf %11, %12 : vector<8x1xf32>
    %14 = vector.broadcast %6 : vector<8x1xf32> to vector<8x32xf32>
    %15 = arith.subf %2, %14 : vector<8x32xf32>
    %cst_5 = arith.constant 9.99999974E-6 : f32
    %16 = vector.broadcast %cst_5 : f32 to vector<8x1xf32>
    %17 = arith.addf %13, %16 : vector<8x1xf32>
    %18 = math.rsqrt %17 : vector<8x1xf32>
    %19 = vector.broadcast %18 : vector<8x1xf32> to vector<8x32xf32>
    %20 = arith.mulf %15, %19 : vector<8x32xf32>
    %c0_6 = arith.constant 0 : index
    %c0_7 = arith.constant 0 : index
    %21 = vector.load %arg3[%c0_6, %c0_7] : memref<1x32xf32, #tpu.memory_space<vmem>>, vector<1x32xf32>
    %22 = vector.broadcast %21 : vector<1x32xf32> to vector<8x32xf32>
    %23 = arith.mulf %20, %22 : vector<8x32xf32>
    %c0_8 = arith.constant 0 : index
    %c0_9 = arith.constant 0 : index
    %24 = vector.load %arg4[%c0_8, %c0_9] : memref<1x32xf32, #tpu.memory_space<vmem>>, vector<1x32xf32>
    %25 = vector.broadcast %24 : vector<1x32xf32> to vector<8x32xf32>
    %26 = arith.addf %23, %25 : vector<8x32xf32>
    %27 = arith.truncf %26 : vector<8x32xf32> to vector<8x32xbf16>
    %c0_10 = arith.constant 0 : index
    %c0_11 = arith.constant 0 : index
    %c0_12 = arith.constant 0 : index
    %28 = vector.load %arg2[%c0_10, %c0_11, %c0_12] : memref<1x8x8xbf16, #tpu.memory_space<vmem>>, vector<1x8x8xbf16>
    %29 = vector.shape_cast %28 : vector<1x8x8xbf16> to vector<8x8xbf16>
    %cst_13 = arith.constant 0.000000e+00 : bf16
    %30 = vector.broadcast %cst_13 : bf16 to vector<8x8xbf16>
    %31 = arith.cmpf one, %29, %30 : vector<8x8xbf16>
    %cst_14 = arith.constant 0.000000e+00 : f32
    %32 = vector.broadcast %cst_14 : f32 to vector<8x32xf32>
    %c0_15 = arith.constant 0 : index
    %c0_16 = arith.constant 0 : index
    %c0_17 = arith.constant 0 : index
    %33 = vector.load %arg5[%c0_15, %c0_16, %c0_17] : memref<4x32x8xbf16, #tpu.memory_space<vmem>>, vector<1x32x8xbf16>
    %34 = vector.shape_cast %33 : vector<1x32x8xbf16> to vector<32x8xbf16>
    %cst_18 = arith.constant dense<0.000000e+00> : vector<8x8xf32>
    %35 = tpu.matmul %27, %34, %cst_18 {dimension_numbers = #tpu.dot_dimension_numbers<[1], [0], [0], [1], [0, 0, 1, 1], [], []>} : vector<8x32xbf16>, vector<32x8xbf16>, vector<8x8xf32> -> vector<8x8xf32>
    %c0_19 = arith.constant 0 : index
    %c0_20 = arith.constant 0 : index
    %c0_21 = arith.constant 0 : index
    %36 = vector.load %arg6[%c0_19, %c0_20, %c0_21] : memref<4x1x8xf32, #tpu.memory_space<vmem>>, vector<1x1x8xf32>
    %37 = vector.shape_cast %36 : vector<1x1x8xf32> to vector<1x8xf32>
    %38 = vector.broadcast %37 : vector<1x8xf32> to vector<8x8xf32>
    %39 = arith.addf %35, %38 : vector<8x8xf32>
    %c0_22 = arith.constant 0 : index
    %c0_23 = arith.constant 0 : index
    %c0_24 = arith.constant 0 : index
    %40 = vector.load %arg7[%c0_22, %c0_23, %c0_24] : memref<4x32x8xbf16, #tpu.memory_space<vmem>>, vector<1x32x8xbf16>
    %41 = vector.shape_cast %40 : vector<1x32x8xbf16> to vector<32x8xbf16>
    %cst_25 = arith.constant dense<0.000000e+00> : vector<8x8xf32>
    %42 = tpu.matmul %27, %41, %cst_25 {dimension_numbers = #tpu.dot_dimension_numbers<[1], [0], [0], [1], [0, 0, 1, 1], [], []>} : vector<8x32xbf16>, vector<32x8xbf16>, vector<8x8xf32> -> vector<8x8xf32>
    %c0_26 = arith.constant 0 : index
    %c0_27 = arith.constant 0 : index
    %c0_28 = arith.constant 0 : index
    %43 = vector.load %arg8[%c0_26, %c0_27, %c0_28] : memref<4x1x8xf32, #tpu.memory_space<vmem>>, vector<1x1x8xf32>
    %44 = vector.shape_cast %43 : vector<1x1x8xf32> to vector<1x8xf32>
    %45 = vector.broadcast %44 : vector<1x8xf32> to vector<8x8xf32>
    %46 = arith.addf %42, %45 : vector<8x8xf32>
    %c0_29 = arith.constant 0 : index
    %c0_30 = arith.constant 0 : index
    %c0_31 = arith.constant 0 : index
    %47 = vector.load %arg9[%c0_29, %c0_30, %c0_31] : memref<4x32x8xbf16, #tpu.memory_space<vmem>>, vector<1x32x8xbf16>
    %48 = vector.shape_cast %47 : vector<1x32x8xbf16> to vector<32x8xbf16>
    %cst_32 = arith.constant dense<0.000000e+00> : vector<8x8xf32>
    %49 = tpu.matmul %27, %48, %cst_32 {dimension_numbers = #tpu.dot_dimension_numbers<[1], [0], [0], [1], [0, 0, 1, 1], [], []>} : vector<8x32xbf16>, vector<32x8xbf16>, vector<8x8xf32> -> vector<8x8xf32>
    %c0_33 = arith.constant 0 : index
    %c0_34 = arith.constant 0 : index
    %c0_35 = arith.constant 0 : index
    %50 = vector.load %arg10[%c0_33, %c0_34, %c0_35] : memref<4x1x8xf32, #tpu.memory_space<vmem>>, vector<1x1x8xf32>
    %51 = vector.shape_cast %50 : vector<1x1x8xf32> to vector<1x8xf32>
    %52 = vector.broadcast %51 : vector<1x8xf32> to vector<8x8xf32>
    %53 = arith.addf %49, %52 : vector<8x8xf32>
    %54 = arith.truncf %39 : vector<8x8xf32> to vector<8x8xbf16>
    %55 = arith.truncf %46 : vector<8x8xf32> to vector<8x8xbf16>
    %cst_36 = arith.constant dense<0.000000e+00> : vector<8x8xf32>
    %56 = tpu.matmul %54, %55, %cst_36 {dimension_numbers = #tpu.dot_dimension_numbers<[1], [1], [0], [0], [0, 0, 1, 0], [], []>} : vector<8x8xbf16>, vector<8x8xbf16>, vector<8x8xf32> -> vector<8x8xf32>
    %cst_37 = arith.constant 0.353553385 : f32
    %57 = vector.broadcast %cst_37 : f32 to vector<8x8xf32>
    %58 = arith.mulf %56, %57 : vector<8x8xf32>
    %cst_38 = arith.constant -1.000000e+09 : f32
    %59 = vector.broadcast %cst_38 : f32 to vector<8x8xf32>
    %60 = arith.select %31, %58, %59 : vector<8x8xi1>, vector<8x8xf32>
    %cst_39 = arith.constant dense<0xFF800000> : vector<8xf32>
    %61 = vector.multi_reduction <maximumf>, %60, %cst_39 [1] : vector<8x8xf32> to vector<8xf32>
    %62 = vector.shape_cast %61 : vector<8xf32> to vector<8x1xf32>
    %63 = vector.broadcast %62 : vector<8x1xf32> to vector<8x8xf32>
    %64 = arith.subf %60, %63 : vector<8x8xf32>
    %65 = math.exp %64 : vector<8x8xf32>
    %cst_40 = arith.constant dense<0.000000e+00> : vector<8xf32>
    %66 = vector.multi_reduction <add>, %65, %cst_40 [1] : vector<8x8xf32> to vector<8xf32>
    %67 = vector.shape_cast %66 : vector<8xf32> to vector<8x1xf32>
    %68 = tpu.reciprocal %67 {approx = true} : vector<8x1xf32> -> vector<8x1xf32>
    %69 = vector.broadcast %68 : vector<8x1xf32> to vector<8x8xf32>
    %70 = arith.mulf %65, %69 : vector<8x8xf32>
    %71 = arith.truncf %70 : vector<8x8xf32> to vector<8x8xbf16>
    %c0_41 = arith.constant 0 : index
    %c0_42 = arith.constant 0 : index
    %c0_43 = arith.constant 0 : index
    %c0_44 = arith.constant 0 : index
    %72 = vector.load %arg14[%c0_41, %c0_42, %c0_43, %c0_44] : memref<1x4x8x8xbf16, #tpu.memory_space<vmem>>, vector<1x1x8x8xbf16>
    %73 = vector.shape_cast %72 : vector<1x1x8x8xbf16> to vector<8x8xbf16>
    %74 = vector.shape_cast %71 : vector<8x8xbf16> to vector<1x1x8x8xbf16>
    tpu.vector_store %arg14[%c0_41, %c0_42, %c0_43, %c0_44], %74 {strides = array<i32>} : memref<1x4x8x8xbf16, #tpu.memory_space<vmem>>, vector<1x1x8x8xbf16>,
    %75 = arith.truncf %70 : vector<8x8xf32> to vector<8x8xbf16>
    %76 = arith.truncf %53 : vector<8x8xf32> to vector<8x8xbf16>
    %cst_45 = arith.constant dense<0.000000e+00> : vector<8x8xf32>
    %77 = tpu.matmul %75, %76, %cst_45 {dimension_numbers = #tpu.dot_dimension_numbers<[1], [0], [0], [1], [0, 0, 1, 1], [], []>} : vector<8x8xbf16>, vector<8x8xbf16>, vector<8x8xf32> -> vector<8x8xf32>
    %78 = arith.truncf %77 : vector<8x8xf32> to vector<8x8xbf16>
    %c0_46 = arith.constant 0 : index
    %c0_47 = arith.constant 0 : index
    %c0_48 = arith.constant 0 : index
    %79 = vector.load %arg11[%c0_46, %c0_47, %c0_48] : memref<4x8x32xbf16, #tpu.memory_space<vmem>>, vector<1x8x32xbf16>
    %80 = vector.shape_cast %79 : vector<1x8x32xbf16> to vector<8x32xbf16>
    %cst_49 = arith.constant dense<0.000000e+00> : vector<8x32xf32>
    %81 = tpu.matmul %78, %80, %cst_49 {dimension_numbers = #tpu.dot_dimension_numbers<[1], [0], [0], [1], [0, 0, 1, 1], [], []>} : vector<8x8xbf16>, vector<8x32xbf16>, vector<8x32xf32> -> vector<8x32xf32>
    %82 = arith.addf %32, %81 : vector<8x32xf32>
    %c1 = arith.constant 1 : index
    %c0_50 = arith.constant 0 : index
    %c0_51 = arith.constant 0 : index
    %83 = vector.load %arg5[%c1, %c0_50, %c0_51] : memref<4x32x8xbf16, #tpu.memory_space<vmem>>, vector<1x32x8xbf16>
    %84 = vector.shape_cast %83 : vector<1x32x8xbf16> to vector<32x8xbf16>
    %cst_52 = arith.constant dense<0.000000e+00> : vector<8x8xf32>
    %85 = tpu.matmul %27, %84, %cst_52 {dimension_numbers = #tpu.dot_dimension_numbers<[1], [0], [0], [1], [0, 0, 1, 1], [], []>} : vector<8x32xbf16>, vector<32x8xbf16>, vector<8x8xf32> -> vector<8x8xf32>
    %c1_53 = arith.constant 1 : index
    %c0_54 = arith.constant 0 : index
    %c0_55 = arith.constant 0 : index
    %86 = vector.load %arg6[%c1_53, %c0_54, %c0_55] : memref<4x1x8xf32, #tpu.memory_space<vmem>>, vector<1x1x8xf32>
    %87 = vector.shape_cast %86 : vector<1x1x8xf32> to vector<1x8xf32>
    %88 = vector.broadcast %87 : vector<1x8xf32> to vector<8x8xf32>
    %89 = arith.addf %85, %88 : vector<8x8xf32>
    %c1_56 = arith.constant 1 : index
    %c0_57 = arith.constant 0 : index
    %c0_58 = arith.constant 0 : index
    %90 = vector.load %arg7[%c1_56, %c0_57, %c0_58] : memref<4x32x8xbf16, #tpu.memory_space<vmem>>, vector<1x32x8xbf16>
    %91 = vector.shape_cast %90 : vector<1x32x8xbf16> to vector<32x8xbf16>
    %cst_59 = arith.constant dense<0.000000e+00> : vector<8x8xf32>
    %92 = tpu.matmul %27, %91, %cst_59 {dimension_numbers = #tpu.dot_dimension_numbers<[1], [0], [0], [1], [0, 0, 1, 1], [], []>} : vector<8x32xbf16>, vector<32x8xbf16>, vector<8x8xf32> -> vector<8x8xf32>
    %c1_60 = arith.constant 1 : index
    %c0_61 = arith.constant 0 : index
    %c0_62 = arith.constant 0 : index
    %93 = vector.load %arg8[%c1_60, %c0_61, %c0_62] : memref<4x1x8xf32, #tpu.memory_space<vmem>>, vector<1x1x8xf32>
    %94 = vector.shape_cast %93 : vector<1x1x8xf32> to vector<1x8xf32>
    %95 = vector.broadcast %94 : vector<1x8xf32> to vector<8x8xf32>
    %96 = arith.addf %92, %95 : vector<8x8xf32>
    %c1_63 = arith.constant 1 : index
    %c0_64 = arith.constant 0 : index
    %c0_65 = arith.constant 0 : index
    %97 = vector.load %arg9[%c1_63, %c0_64, %c0_65] : memref<4x32x8xbf16, #tpu.memory_space<vmem>>, vector<1x32x8xbf16>
    %98 = vector.shape_cast %97 : vector<1x32x8xbf16> to vector<32x8xbf16>
    %cst_66 = arith.constant dense<0.000000e+00> : vector<8x8xf32>
    %99 = tpu.matmul %27, %98, %cst_66 {dimension_numbers = #tpu.dot_dimension_numbers<[1], [0], [0], [1], [0, 0, 1, 1], [], []>} : vector<8x32xbf16>, vector<32x8xbf16>, vector<8x8xf32> -> vector<8x8xf32>
    %c1_67 = arith.constant 1 : index
    %c0_68 = arith.constant 0 : index
    %c0_69 = arith.constant 0 : index
    %100 = vector.load %arg10[%c1_67, %c0_68, %c0_69] : memref<4x1x8xf32, #tpu.memory_space<vmem>>, vector<1x1x8xf32>
    %101 = vector.shape_cast %100 : vector<1x1x8xf32> to vector<1x8xf32>
    %102 = vector.broadcast %101 : vector<1x8xf32> to vector<8x8xf32>
    %103 = arith.addf %99, %102 : vector<8x8xf32>
    %104 = arith.truncf %89 : vector<8x8xf32> to vector<8x8xbf16>
    %105 = arith.truncf %96 : vector<8x8xf32> to vector<8x8xbf16>
    %cst_70 = arith.constant dense<0.000000e+00> : vector<8x8xf32>
    %106 = tpu.matmul %104, %105, %cst_70 {dimension_numbers = #tpu.dot_dimension_numbers<[1], [1], [0], [0], [0, 0, 1, 0], [], []>} : vector<8x8xbf16>, vector<8x8xbf16>, vector<8x8xf32> -> vector<8x8xf32>
    %cst_71 = arith.constant 0.353553385 : f32
    %107 = vector.broadcast %cst_71 : f32 to vector<8x8xf32>
    %108 = arith.mulf %106, %107 : vector<8x8xf32>
    %cst_72 = arith.constant -1.000000e+09 : f32
    %109 = vector.broadcast %cst_72 : f32 to vector<8x8xf32>
    %110 = arith.select %31, %108, %109 : vector<8x8xi1>, vector<8x8xf32>
    %cst_73 = arith.constant dense<0xFF800000> : vector<8xf32>
    %111 = vector.multi_reduction <maximumf>, %110, %cst_73 [1] : vector<8x8xf32> to vector<8xf32>
    %112 = vector.shape_cast %111 : vector<8xf32> to vector<8x1xf32>
    %113 = vector.broadcast %112 : vector<8x1xf32> to vector<8x8xf32>
    %114 = arith.subf %110, %113 : vector<8x8xf32>
    %115 = math.exp %114 : vector<8x8xf32>
    %cst_74 = arith.constant dense<0.000000e+00> : vector<8xf32>
    %116 = vector.multi_reduction <add>, %115, %cst_74 [1] : vector<8x8xf32> to vector<8xf32>
    %117 = vector.shape_cast %116 : vector<8xf32> to vector<8x1xf32>
    %118 = tpu.reciprocal %117 {approx = true} : vector<8x1xf32> -> vector<8x1xf32>
    %119 = vector.broadcast %118 : vector<8x1xf32> to vector<8x8xf32>
    %120 = arith.mulf %115, %119 : vector<8x8xf32>
    %121 = arith.truncf %120 : vector<8x8xf32> to vector<8x8xbf16>
    %c0_75 = arith.constant 0 : index
    %c1_76 = arith.constant 1 : index
    %c0_77 = arith.constant 0 : index
    %c0_78 = arith.constant 0 : index
    %122 = vector.load %arg14[%c0_75, %c1_76, %c0_77, %c0_78] : memref<1x4x8x8xbf16, #tpu.memory_space<vmem>>, vector<1x1x8x8xbf16>
    %123 = vector.shape_cast %122 : vector<1x1x8x8xbf16> to vector<8x8xbf16>
    %124 = vector.shape_cast %121 : vector<8x8xbf16> to vector<1x1x8x8xbf16>
    tpu.vector_store %arg14[%c0_75, %c1_76, %c0_77, %c0_78], %124 {strides = array<i32>} : memref<1x4x8x8xbf16, #tpu.memory_space<vmem>>, vector<1x1x8x8xbf16>,
    %125 = arith.truncf %120 : vector<8x8xf32> to vector<8x8xbf16>
    %126 = arith.truncf %103 : vector<8x8xf32> to vector<8x8xbf16>
    %cst_79 = arith.constant dense<0.000000e+00> : vector<8x8xf32>
    %127 = tpu.matmul %125, %126, %cst_79 {dimension_numbers = #tpu.dot_dimension_numbers<[1], [0], [0], [1], [0, 0, 1, 1], [], []>} : vector<8x8xbf16>, vector<8x8xbf16>, vector<8x8xf32> -> vector<8x8xf32>
    %128 = arith.truncf %127 : vector<8x8xf32> to vector<8x8xbf16>
    %c1_80 = arith.constant 1 : index
    %c0_81 = arith.constant 0 : index
    %c0_82 = arith.constant 0 : index
    %129 = vector.load %arg11[%c1_80, %c0_81, %c0_82] : memref<4x8x32xbf16, #tpu.memory_space<vmem>>, vector<1x8x32xbf16>
    %130 = vector.shape_cast %129 : vector<1x8x32xbf16> to vector<8x32xbf16>
    %cst_83 = arith.constant dense<0.000000e+00> : vector<8x32xf32>
    %131 = tpu.matmul %128, %130, %cst_83 {dimension_numbers = #tpu.dot_dimension_numbers<[1], [0], [0], [1], [0, 0, 1, 1], [], []>} : vector<8x8xbf16>, vector<8x32xbf16>, vector<8x32xf32> -> vector<8x32xf32>
    %132 = arith.addf %82, %131 : vector<8x32xf32>
    %c2 = arith.constant 2 : index
    %c0_84 = arith.constant 0 : index
    %c0_85 = arith.constant 0 : index
    %133 = vector.load %arg5[%c2, %c0_84, %c0_85] : memref<4x32x8xbf16, #tpu.memory_space<vmem>>, vector<1x32x8xbf16>
    %134 = vector.shape_cast %133 : vector<1x32x8xbf16> to vector<32x8xbf16>
    %cst_86 = arith.constant dense<0.000000e+00> : vector<8x8xf32>
    %135 = tpu.matmul %27, %134, %cst_86 {dimension_numbers = #tpu.dot_dimension_numbers<[1], [0], [0], [1], [0, 0, 1, 1], [], []>} : vector<8x32xbf16>, vector<32x8xbf16>, vector<8x8xf32> -> vector<8x8xf32>
    %c2_87 = arith.constant 2 : index
    %c0_88 = arith.constant 0 : index
    %c0_89 = arith.constant 0 : index
    %136 = vector.load %arg6[%c2_87, %c0_88, %c0_89] : memref<4x1x8xf32, #tpu.memory_space<vmem>>, vector<1x1x8xf32>
    %137 = vector.shape_cast %136 : vector<1x1x8xf32> to vector<1x8xf32>
    %138 = vector.broadcast %137 : vector<1x8xf32> to vector<8x8xf32>
    %139 = arith.addf %135, %138 : vector<8x8xf32>
    %c2_90 = arith.constant 2 : index
    %c0_91 = arith.constant 0 : index
    %c0_92 = arith.constant 0 : index
    %140 = vector.load %arg7[%c2_90, %c0_91, %c0_92] : memref<4x32x8xbf16, #tpu.memory_space<vmem>>, vector<1x32x8xbf16>
    %141 = vector.shape_cast %140 : vector<1x32x8xbf16> to vector<32x8xbf16>
    %cst_93 = arith.constant dense<0.000000e+00> : vector<8x8xf32>
    %142 = tpu.matmul %27, %141, %cst_93 {dimension_numbers = #tpu.dot_dimension_numbers<[1], [0], [0], [1], [0, 0, 1, 1], [], []>} : vector<8x32xbf16>, vector<32x8xbf16>, vector<8x8xf32> -> vector<8x8xf32>
    %c2_94 = arith.constant 2 : index
    %c0_95 = arith.constant 0 : index
    %c0_96 = arith.constant 0 : index
    %143 = vector.load %arg8[%c2_94, %c0_95, %c0_96] : memref<4x1x8xf32, #tpu.memory_space<vmem>>, vector<1x1x8xf32>
    %144 = vector.shape_cast %143 : vector<1x1x8xf32> to vector<1x8xf32>
    %145 = vector.broadcast %144 : vector<1x8xf32> to vector<8x8xf32>
    %146 = arith.addf %142, %145 : vector<8x8xf32>
    %c2_97 = arith.constant 2 : index
    %c0_98 = arith.constant 0 : index
    %c0_99 = arith.constant 0 : index
    %147 = vector.load %arg9[%c2_97, %c0_98, %c0_99] : memref<4x32x8xbf16, #tpu.memory_space<vmem>>, vector<1x32x8xbf16>
    %148 = vector.shape_cast %147 : vector<1x32x8xbf16> to vector<32x8xbf16>
    %cst_100 = arith.constant dense<0.000000e+00> : vector<8x8xf32>
    %149 = tpu.matmul %27, %148, %cst_100 {dimension_numbers = #tpu.dot_dimension_numbers<[1], [0], [0], [1], [0, 0, 1, 1], [], []>} : vector<8x32xbf16>, vector<32x8xbf16>, vector<8x8xf32> -> vector<8x8xf32>
    %c2_101 = arith.constant 2 : index
    %c0_102 = arith.constant 0 : index
    %c0_103 = arith.constant 0 : index
    %150 = vector.load %arg10[%c2_101, %c0_102, %c0_103] : memref<4x1x8xf32, #tpu.memory_space<vmem>>, vector<1x1x8xf32>
    %151 = vector.shape_cast %150 : vector<1x1x8xf32> to vector<1x8xf32>
    %152 = vector.broadcast %151 : vector<1x8xf32> to vector<8x8xf32>
    %153 = arith.addf %149, %152 : vector<8x8xf32>
    %154 = arith.truncf %139 : vector<8x8xf32> to vector<8x8xbf16>
    %155 = arith.truncf %146 : vector<8x8xf32> to vector<8x8xbf16>
    %cst_104 = arith.constant dense<0.000000e+00> : vector<8x8xf32>
    %156 = tpu.matmul %154, %155, %cst_104 {dimension_numbers = #tpu.dot_dimension_numbers<[1], [1], [0], [0], [0, 0, 1, 0], [], []>} : vector<8x8xbf16>, vector<8x8xbf16>, vector<8x8xf32> -> vector<8x8xf32>
    %cst_105 = arith.constant 0.353553385 : f32
    %157 = vector.broadcast %cst_105 : f32 to vector<8x8xf32>
    %158 = arith.mulf %156, %157 : vector<8x8xf32>
    %cst_106 = arith.constant -1.000000e+09 : f32
    %159 = vector.broadcast %cst_106 : f32 to vector<8x8xf32>
    %160 = arith.select %31, %158, %159 : vector<8x8xi1>, vector<8x8xf32>
    %cst_107 = arith.constant dense<0xFF800000> : vector<8xf32>
    %161 = vector.multi_reduction <maximumf>, %160, %cst_107 [1] : vector<8x8xf32> to vector<8xf32>
    %162 = vector.shape_cast %161 : vector<8xf32> to vector<8x1xf32>
    %163 = vector.broadcast %162 : vector<8x1xf32> to vector<8x8xf32>
    %164 = arith.subf %160, %163 : vector<8x8xf32>
    %165 = math.exp %164 : vector<8x8xf32>
    %cst_108 = arith.constant dense<0.000000e+00> : vector<8xf32>
    %166 = vector.multi_reduction <add>, %165, %cst_108 [1] : vector<8x8xf32> to vector<8xf32>
    %167 = vector.shape_cast %166 : vector<8xf32> to vector<8x1xf32>
    %168 = tpu.reciprocal %167 {approx = true} : vector<8x1xf32> -> vector<8x1xf32>
    %169 = vector.broadcast %168 : vector<8x1xf32> to vector<8x8xf32>
    %170 = arith.mulf %165, %169 : vector<8x8xf32>
    %171 = arith.truncf %170 : vector<8x8xf32> to vector<8x8xbf16>
    %c0_109 = arith.constant 0 : index
    %c2_110 = arith.constant 2 : index
    %c0_111 = arith.constant 0 : index
    %c0_112 = arith.constant 0 : index
    %172 = vector.load %arg14[%c0_109, %c2_110, %c0_111, %c0_112] : memref<1x4x8x8xbf16, #tpu.memory_space<vmem>>, vector<1x1x8x8xbf16>
    %173 = vector.shape_cast %172 : vector<1x1x8x8xbf16> to vector<8x8xbf16>
    %174 = vector.shape_cast %171 : vector<8x8xbf16> to vector<1x1x8x8xbf16>
    tpu.vector_store %arg14[%c0_109, %c2_110, %c0_111, %c0_112], %174 {strides = array<i32>} : memref<1x4x8x8xbf16, #tpu.memory_space<vmem>>, vector<1x1x8x8xbf16>,
    %175 = arith.truncf %170 : vector<8x8xf32> to vector<8x8xbf16>
    %176 = arith.truncf %153 : vector<8x8xf32> to vector<8x8xbf16>
    %cst_113 = arith.constant dense<0.000000e+00> : vector<8x8xf32>
    %177 = tpu.matmul %175, %176, %cst_113 {dimension_numbers = #tpu.dot_dimension_numbers<[1], [0], [0], [1], [0, 0, 1, 1], [], []>} : vector<8x8xbf16>, vector<8x8xbf16>, vector<8x8xf32> -> vector<8x8xf32>
    %178 = arith.truncf %177 : vector<8x8xf32> to vector<8x8xbf16>
    %c2_114 = arith.constant 2 : index
    %c0_115 = arith.constant 0 : index
    %c0_116 = arith.constant 0 : index
    %179 = vector.load %arg11[%c2_114, %c0_115, %c0_116] : memref<4x8x32xbf16, #tpu.memory_space<vmem>>, vector<1x8x32xbf16>
    %180 = vector.shape_cast %179 : vector<1x8x32xbf16> to vector<8x32xbf16>
    %cst_117 = arith.constant dense<0.000000e+00> : vector<8x32xf32>
    %181 = tpu.matmul %178, %180, %cst_117 {dimension_numbers = #tpu.dot_dimension_numbers<[1], [0], [0], [1], [0, 0, 1, 1], [], []>} : vector<8x8xbf16>, vector<8x32xbf16>, vector<8x32xf32> -> vector<8x32xf32>
    %182 = arith.addf %132, %181 : vector<8x32xf32>
    %c3 = arith.constant 3 : index
    %c0_118 = arith.constant 0 : index
    %c0_119 = arith.constant 0 : index
    %183 = vector.load %arg5[%c3, %c0_118, %c0_119] : memref<4x32x8xbf16, #tpu.memory_space<vmem>>, vector<1x32x8xbf16>
    %184 = vector.shape_cast %183 : vector<1x32x8xbf16> to vector<32x8xbf16>
    %cst_120 = arith.constant dense<0.000000e+00> : vector<8x8xf32>
    %185 = tpu.matmul %27, %184, %cst_120 {dimension_numbers = #tpu.dot_dimension_numbers<[1], [0], [0], [1], [0, 0, 1, 1], [], []>} : vector<8x32xbf16>, vector<32x8xbf16>, vector<8x8xf32> -> vector<8x8xf32>
    %c3_121 = arith.constant 3 : index
    %c0_122 = arith.constant 0 : index
    %c0_123 = arith.constant 0 : index
    %186 = vector.load %arg6[%c3_121, %c0_122, %c0_123] : memref<4x1x8xf32, #tpu.memory_space<vmem>>, vector<1x1x8xf32>
    %187 = vector.shape_cast %186 : vector<1x1x8xf32> to vector<1x8xf32>
    %188 = vector.broadcast %187 : vector<1x8xf32> to vector<8x8xf32>
    %189 = arith.addf %185, %188 : vector<8x8xf32>
    %c3_124 = arith.constant 3 : index
    %c0_125 = arith.constant 0 : index
    %c0_126 = arith.constant 0 : index
    %190 = vector.load %arg7[%c3_124, %c0_125, %c0_126] : memref<4x32x8xbf16, #tpu.memory_space<vmem>>, vector<1x32x8xbf16>
    %191 = vector.shape_cast %190 : vector<1x32x8xbf16> to vector<32x8xbf16>
    %cst_127 = arith.constant dense<0.000000e+00> : vector<8x8xf32>
    %192 = tpu.matmul %27, %191, %cst_127 {dimension_numbers = #tpu.dot_dimension_numbers<[1], [0], [0], [1], [0, 0, 1, 1], [], []>} : vector<8x32xbf16>, vector<32x8xbf16>, vector<8x8xf32> -> vector<8x8xf32>
    %c3_128 = arith.constant 3 : index
    %c0_129 = arith.constant 0 : index
    %c0_130 = arith.constant 0 : index
    %193 = vector.load %arg8[%c3_128, %c0_129, %c0_130] : memref<4x1x8xf32, #tpu.memory_space<vmem>>, vector<1x1x8xf32>
    %194 = vector.shape_cast %193 : vector<1x1x8xf32> to vector<1x8xf32>
    %195 = vector.broadcast %194 : vector<1x8xf32> to vector<8x8xf32>
    %196 = arith.addf %192, %195 : vector<8x8xf32>
    %c3_131 = arith.constant 3 : index
    %c0_132 = arith.constant 0 : index
    %c0_133 = arith.constant 0 : index
    %197 = vector.load %arg9[%c3_131, %c0_132, %c0_133] : memref<4x32x8xbf16, #tpu.memory_space<vmem>>, vector<1x32x8xbf16>
    %198 = vector.shape_cast %197 : vector<1x32x8xbf16> to vector<32x8xbf16>
    %cst_134 = arith.constant dense<0.000000e+00> : vector<8x8xf32>
    %199 = tpu.matmul %27, %198, %cst_134 {dimension_numbers = #tpu.dot_dimension_numbers<[1], [0], [0], [1], [0, 0, 1, 1], [], []>} : vector<8x32xbf16>, vector<32x8xbf16>, vector<8x8xf32> -> vector<8x8xf32>
    %c3_135 = arith.constant 3 : index
    %c0_136 = arith.constant 0 : index
    %c0_137 = arith.constant 0 : index
    %200 = vector.load %arg10[%c3_135, %c0_136, %c0_137] : memref<4x1x8xf32, #tpu.memory_space<vmem>>, vector<1x1x8xf32>
    %201 = vector.shape_cast %200 : vector<1x1x8xf32> to vector<1x8xf32>
    %202 = vector.broadcast %201 : vector<1x8xf32> to vector<8x8xf32>
    %203 = arith.addf %199, %202 : vector<8x8xf32>
    %204 = arith.truncf %189 : vector<8x8xf32> to vector<8x8xbf16>
    %205 = arith.truncf %196 : vector<8x8xf32> to vector<8x8xbf16>
    %cst_138 = arith.constant dense<0.000000e+00> : vector<8x8xf32>
    %206 = tpu.matmul %204, %205, %cst_138 {dimension_numbers = #tpu.dot_dimension_numbers<[1], [1], [0], [0], [0, 0, 1, 0], [], []>} : vector<8x8xbf16>, vector<8x8xbf16>, vector<8x8xf32> -> vector<8x8xf32>
    %cst_139 = arith.constant 0.353553385 : f32
    %207 = vector.broadcast %cst_139 : f32 to vector<8x8xf32>
    %208 = arith.mulf %206, %207 : vector<8x8xf32>
    %cst_140 = arith.constant -1.000000e+09 : f32
    %209 = vector.broadcast %cst_140 : f32 to vector<8x8xf32>
    %210 = arith.select %31, %208, %209 : vector<8x8xi1>, vector<8x8xf32>
    %cst_141 = arith.constant dense<0xFF800000> : vector<8xf32>
    %211 = vector.multi_reduction <maximumf>, %210, %cst_141 [1] : vector<8x8xf32> to vector<8xf32>
    %212 = vector.shape_cast %211 : vector<8xf32> to vector<8x1xf32>
    %213 = vector.broadcast %212 : vector<8x1xf32> to vector<8x8xf32>
    %214 = arith.subf %210, %213 : vector<8x8xf32>
    %215 = math.exp %214 : vector<8x8xf32>
    %cst_142 = arith.constant dense<0.000000e+00> : vector<8xf32>
    %216 = vector.multi_reduction <add>, %215, %cst_142 [1] : vector<8x8xf32> to vector<8xf32>
    %217 = vector.shape_cast %216 : vector<8xf32> to vector<8x1xf32>
    %218 = tpu.reciprocal %217 {approx = true} : vector<8x1xf32> -> vector<8x1xf32>
    %219 = vector.broadcast %218 : vector<8x1xf32> to vector<8x8xf32>
    %220 = arith.mulf %215, %219 : vector<8x8xf32>
    %221 = arith.truncf %220 : vector<8x8xf32> to vector<8x8xbf16>
    %c0_143 = arith.constant 0 : index
    %c3_144 = arith.constant 3 : index
    %c0_145 = arith.constant 0 : index
    %c0_146 = arith.constant 0 : index
    %222 = vector.load %arg14[%c0_143, %c3_144, %c0_145, %c0_146] : memref<1x4x8x8xbf16, #tpu.memory_space<vmem>>, vector<1x1x8x8xbf16>
    %223 = vector.shape_cast %222 : vector<1x1x8x8xbf16> to vector<8x8xbf16>
    %224 = vector.shape_cast %221 : vector<8x8xbf16> to vector<1x1x8x8xbf16>
    tpu.vector_store %arg14[%c0_143, %c3_144, %c0_145, %c0_146], %224 {strides = array<i32>} : memref<1x4x8x8xbf16, #tpu.memory_space<vmem>>, vector<1x1x8x8xbf16>,
    %225 = arith.truncf %220 : vector<8x8xf32> to vector<8x8xbf16>
    %226 = arith.truncf %203 : vector<8x8xf32> to vector<8x8xbf16>
    %cst_147 = arith.constant dense<0.000000e+00> : vector<8x8xf32>
    %227 = tpu.matmul %225, %226, %cst_147 {dimension_numbers = #tpu.dot_dimension_numbers<[1], [0], [0], [1], [0, 0, 1, 1], [], []>} : vector<8x8xbf16>, vector<8x8xbf16>, vector<8x8xf32> -> vector<8x8xf32>
    %228 = arith.truncf %227 : vector<8x8xf32> to vector<8x8xbf16>
    %c3_148 = arith.constant 3 : index
    %c0_149 = arith.constant 0 : index
    %c0_150 = arith.constant 0 : index
    %229 = vector.load %arg11[%c3_148, %c0_149, %c0_150] : memref<4x8x32xbf16, #tpu.memory_space<vmem>>, vector<1x8x32xbf16>
    %230 = vector.shape_cast %229 : vector<1x8x32xbf16> to vector<8x32xbf16>
    %cst_151 = arith.constant dense<0.000000e+00> : vector<8x32xf32>
    %231 = tpu.matmul %228, %230, %cst_151 {dimension_numbers = #tpu.dot_dimension_numbers<[1], [0], [0], [1], [0, 0, 1, 1], [], []>} : vector<8x8xbf16>, vector<8x32xbf16>, vector<8x32xf32> -> vector<8x32xf32>
    %232 = arith.addf %182, %231 : vector<8x32xf32>
    %c0_152 = arith.constant 0 : index
    %c0_153 = arith.constant 0 : index
    %233 = vector.load %arg12[%c0_152, %c0_153] : memref<1x32xf32, #tpu.memory_space<vmem>>, vector<1x32xf32>
    %234 = vector.broadcast %233 : vector<1x32xf32> to vector<8x32xf32>
    %235 = arith.addf %232, %234 : vector<8x32xf32>
    %236 = arith.addf %2, %235 : vector<8x32xf32>
    %237 = arith.truncf %236 : vector<8x32xf32> to vector<8x32xbf16>
    %c0_154 = arith.constant 0 : index
    %c0_155 = arith.constant 0 : index
    %c0_156 = arith.constant 0 : index
    %238 = vector.load %arg13[%c0_154, %c0_155, %c0_156] : memref<1x8x32xbf16, #tpu.memory_space<vmem>>, vector<1x8x32xbf16>
    %239 = vector.shape_cast %238 : vector<1x8x32xbf16> to vector<8x32xbf16>
    %240 = vector.shape_cast %237 : vector<8x32xbf16> to vector<1x8x32xbf16>
    tpu.vector_store %arg13[%c0_154, %c0_155, %c0_156], %240 {strides = array<i32>} : memref<1x8x32xbf16, #tpu.memory_space<vmem>>, vector<1x8x32xbf16>,
    return
  }
  func.func @transform_0(%arg0: i32) -> (i32, i32, i32) {
    %c0_i32 = arith.constant 0 : i32
    %c0_i32_0 = arith.constant 0 : i32
    %c0_i32_1 = arith.constant 0 : i32
    return %arg0, %c0_i32, %c0_i32_0 : i32, i32, i32
  }
  func.func @transform_1(%arg0: i32) -> (i32, i32, i32) {
    %c0_i32 = arith.constant 0 : i32
    %c0_i32_0 = arith.constant 0 : i32
    %c0_i32_1 = arith.constant 0 : i32
    return %arg0, %c0_i32, %c0_i32_0 : i32, i32, i32
  }
  func.func @transform_2(%arg0: i32) -> (i32, i32) {
    %c0_i32 = arith.constant 0 : i32
    %c0_i32_0 = arith.constant 0 : i32
    %c0_i32_1 = arith.constant 0 : i32
    return %c0_i32, %c0_i32_0 : i32, i32
  }
  func.func @transform_3(%arg0: i32) -> (i32, i32) {
    %c0_i32 = arith.constant 0 : i32
    %c0_i32_0 = arith.constant 0 : i32
    %c0_i32_1 = arith.constant 0 : i32
    return %c0_i32, %c0_i32_0 : i32, i32
  }
  func.func @transform_4(%arg0: i32) -> (i32, i32, i32) {
    %c0_i32 = arith.constant 0 : i32
    %c0_i32_0 = arith.constant 0 : i32
    %c0_i32_1 = arith.constant 0 : i32
    %c0_i32_2 = arith.constant 0 : i32
    return %c0_i32, %c0_i32_0, %c0_i32_1 : i32, i32, i32
  }
  func.func @transform_5(%arg0: i32) -> (i32, i32, i32) {
    %c0_i32 = arith.constant 0 : i32
    %c0_i32_0 = arith.constant 0 : i32
    %c0_i32_1 = arith.constant 0 : i32
    %c0_i32_2 = arith.constant 0 : i32
    return %c0_i32, %c0_i32_0, %c0_i32_1 : i32, i32, i32
  }
  func.func @transform_6(%arg0: i32) -> (i32, i32, i32) {
    %c0_i32 = arith.constant 0 : i32
    %c0_i32_0 = arith.constant 0 : i32
    %c0_i32_1 = arith.constant 0 : i32
    %c0_i32_2 = arith.constant 0 : i32
    return %c0_i32, %c0_i32_0, %c0_i32_1 : i32, i32, i32
  }
  func.func @transform_7(%arg0: i32) -> (i32, i32, i32) {
    %c0_i32 = arith.constant 0 : i32
    %c0_i32_0 = arith.constant 0 : i32
    %c0_i32_1 = arith.constant 0 : i32
    %c0_i32_2 = arith.constant 0 : i32
    return %c0_i32, %c0_i32_0, %c0_i32_1 : i32, i32, i32
  }
  func.func @transform_8(%arg0: i32) -> (i32, i32, i32) {
    %c0_i32 = arith.constant 0 : i32
    %c0_i32_0 = arith.constant 0 : i32
    %c0_i32_1 = arith.constant 0 : i32
    %c0_i32_2 = arith.constant 0 : i32
    return %c0_i32, %c0_i32_0, %c0_i32_1 : i32, i32, i32
  }
  func.func @transform_9(%arg0: i32) -> (i32, i32, i32) {
    %c0_i32 = arith.constant 0 : i32
    %c0_i32_0 = arith.constant 0 : i32
    %c0_i32_1 = arith.constant 0 : i32
    %c0_i32_2 = arith.constant 0 : i32
    return %c0_i32, %c0_i32_0, %c0_i32_1 : i32, i32, i32
  }
  func.func @transform_10(%arg0: i32) -> (i32, i32, i32) {
    %c0_i32 = arith.constant 0 : i32
    %c0_i32_0 = arith.constant 0 : i32
    %c0_i32_1 = arith.constant 0 : i32
    %c0_i32_2 = arith.constant 0 : i32
    return %c0_i32, %c0_i32_0, %c0_i32_1 : i32, i32, i32
  }
  func.func @transform_11(%arg0: i32) -> (i32, i32) {
    %c0_i32 = arith.constant 0 : i32
    %c0_i32_0 = arith.constant 0 : i32
    %c0_i32_1 = arith.constant 0 : i32
    return %c0_i32, %c0_i32_0 : i32, i32
  }
  func.func @transform_12(%arg0: i32) -> (i32, i32, i32) {
    %c0_i32 = arith.constant 0 : i32
    %c0_i32_0 = arith.constant 0 : i32
    %c0_i32_1 = arith.constant 0 : i32
    return %arg0, %c0_i32, %c0_i32_0 : i32, i32, i32
  }
  func.func @transform_13(%arg0: i32) -> (i32, i32, i32, i32) {
    %c0_i32 = arith.constant 0 : i32
    %c0_i32_0 = arith.constant 0 : i32
    %c0_i32_1 = arith.constant 0 : i32
    %c0_i32_2 = arith.constant 0 : i32
    return %arg0, %c0_i32, %c0_i32_0, %c0_i32_1 : i32, i32, i32, i32
  }
}

module attributes {stable_mosaic.version = 11 : i64} {
  func.func @_attn_block_kernel(%arg0: i32, %arg1: memref<1x8x32xbf16, #tpu.memory_space<vmem>>, %arg2: memref<1x8x8xbf16, #tpu.memory_space<vmem>>, %arg3: memref<1x32xf32, #tpu.memory_space<vmem>>, %arg4: memref<1x32xf32, #tpu.memory_space<vmem>>, %arg5: memref<4x32x8xbf16, #tpu.memory_space<vmem>>, %arg6: memref<4x1x8xf32, #tpu.memory_space<vmem>>, %arg7: memref<4x32x8xbf16, #tpu.memory_space<vmem>>, %arg8: memref<4x1x8xf32, #tpu.memory_space<vmem>>, %arg9: memref<4x32x8xbf16, #tpu.memory_space<vmem>>, %arg10: memref<4x1x8xf32, #tpu.memory_space<vmem>>, %arg11: memref<4x8x32xbf16, #tpu.memory_space<vmem>>, %arg12: memref<1x32xf32, #tpu.memory_space<vmem>>, %arg13: memref<1x8x32xbf16, #tpu.memory_space<vmem>>, %arg14: memref<1x4x8x8xbf16, #tpu.memory_space<vmem>>) attributes {dimension_semantics = [#tpu.dimension_semantics<parallel>], iteration_bounds = array<i64: 2>, scalar_prefetch = 0 : i64, scratch_operands = 0 : i64, tpu.core_type = #tpu.core_type<tc>, window_params = [{transform_indices = @transform_0, window_bounds = array<i64: 1, 8, 32>}, {transform_indices = @transform_1, window_bounds = array<i64: 1, 8, 8>}, {pipeline_mode = #tpu.pipeline_mode<synchronous>, transform_indices = @transform_2, window_bounds = array<i64: 1, 32>}, {pipeline_mode = #tpu.pipeline_mode<synchronous>, transform_indices = @transform_3, window_bounds = array<i64: 1, 32>}, {pipeline_mode = #tpu.pipeline_mode<synchronous>, transform_indices = @transform_4, window_bounds = array<i64: 4, 32, 8>}, {pipeline_mode = #tpu.pipeline_mode<synchronous>, transform_indices = @transform_5, window_bounds = array<i64: 4, 1, 8>}, {pipeline_mode = #tpu.pipeline_mode<synchronous>, transform_indices = @transform_6, window_bounds = array<i64: 4, 32, 8>}, {pipeline_mode = #tpu.pipeline_mode<synchronous>, transform_indices = @transform_7, window_bounds = array<i64: 4, 1, 8>}, {pipeline_mode = #tpu.pipeline_mode<synchronous>, transform_indices = @transform_8, window_bounds = array<i64: 4, 32, 8>}, {pipeline_mode = #tpu.pipeline_mode<synchronous>, transform_indices = @transform_9, window_bounds = array<i64: 4, 1, 8>}, {pipeline_mode = #tpu.pipeline_mode<synchronous>, transform_indices = @transform_10, window_bounds = array<i64: 4, 8, 32>}, {pipeline_mode = #tpu.pipeline_mode<synchronous>, transform_indices = @transform_11, window_bounds = array<i64: 1, 32>}, {transform_indices = @transform_12, window_bounds = array<i64: 1, 8, 32>}, {transform_indices = @transform_13, window_bounds = array<i64: 1, 4, 8, 8>}]} {
    %c0 = arith.constant 0 : index
    %c0_0 = arith.constant 0 : index
    %c0_1 = arith.constant 0 : index
    %0 = vector.load %arg1[%c0, %c0_0, %c0_1] : memref<1x8x32xbf16, #tpu.memory_space<vmem>>, vector<1x8x32xbf16>
    %1 = vector.shape_cast %0 : vector<1x8x32xbf16> to vector<8x32xbf16>
    %2 = arith.extf %1 : vector<8x32xbf16> to vector<8x32xf32>
    %cst = arith.constant dense<0.000000e+00> : vector<8xf32>
    %3 = vector.multi_reduction <add>, %2, %cst [1] : vector<8x32xf32> to vector<8xf32>
    %4 = vector.shape_cast %3 : vector<8xf32> to vector<8x1xf32>
    %cst_2 = arith.constant 3.200000e+01 : f32
    %5 = vector.broadcast %cst_2 : f32 to vector<8x1xf32>
    %6 = arith.divf %4, %5 : vector<8x1xf32>
    %7 = vector.broadcast %6 : vector<8x1xf32> to vector<8x32xf32>
    %8 = arith.subf %2, %7 : vector<8x32xf32>
    %9 = arith.mulf %8, %8 : vector<8x32xf32>
    %cst_3 = arith.constant dense<0.000000e+00> : vector<8xf32>
    %10 = vector.multi_reduction <add>, %9, %cst_3 [1] : vector<8x32xf32> to vector<8xf32>
    %11 = vector.shape_cast %10 : vector<8xf32> to vector<8x1xf32>
    %cst_4 = arith.constant 3.200000e+01 : f32
    %12 = vector.broadcast %cst_4 : f32 to vector<8x1xf32>
    %13 = arith.divf %11, %12 : vector<8x1xf32>
    %14 = vector.broadcast %6 : vector<8x1xf32> to vector<8x32xf32>
    %15 = arith.subf %2, %14 : vector<8x32xf32>
    %cst_5 = arith.constant 9.99999974E-6 : f32
    %16 = vector.broadcast %cst_5 : f32 to vector<8x1xf32>
    %17 = arith.addf %13, %16 : vector<8x1xf32>
    %18 = math.rsqrt %17 : vector<8x1xf32>
    %19 = vector.broadcast %18 : vector<8x1xf32> to vector<8x32xf32>
    %20 = arith.mulf %15, %19 : vector<8x32xf32>
    %c0_6 = arith.constant 0 : index
    %c0_7 = arith.constant 0 : index
    %21 = vector.load %arg3[%c0_6, %c0_7] : memref<1x32xf32, #tpu.memory_space<vmem>>, vector<1x32xf32>
    %22 = vector.broadcast %21 : vector<1x32xf32> to vector<8x32xf32>
    %23 = arith.mulf %20, %22 : vector<8x32xf32>
    %c0_8 = arith.constant 0 : index
    %c0_9 = arith.constant 0 : index
    %24 = vector.load %arg4[%c0_8, %c0_9] : memref<1x32xf32, #tpu.memory_space<vmem>>, vector<1x32xf32>
    %25 = vector.broadcast %24 : vector<1x32xf32> to vector<8x32xf32>
    %26 = arith.addf %23, %25 : vector<8x32xf32>
    %27 = arith.truncf %26 : vector<8x32xf32> to vector<8x32xbf16>
    %c0_10 = arith.constant 0 : index
    %c0_11 = arith.constant 0 : index
    %c0_12 = arith.constant 0 : index
    %28 = vector.load %arg2[%c0_10, %c0_11, %c0_12] : memref<1x8x8xbf16, #tpu.memory_space<vmem>>, vector<1x8x8xbf16>
    %29 = vector.shape_cast %28 : vector<1x8x8xbf16> to vector<8x8xbf16>
    %cst_13 = arith.constant 0.000000e+00 : bf16
    %30 = vector.broadcast %cst_13 : bf16 to vector<8x8xbf16>
    %31 = arith.cmpf one, %29, %30 : vector<8x8xbf16>
    %cst_14 = arith.constant 0.000000e+00 : f32
    %32 = vector.broadcast %cst_14 : f32 to vector<8x32xf32>
    %c0_15 = arith.constant 0 : index
    %c0_16 = arith.constant 0 : index
    %c0_17 = arith.constant 0 : index
    %33 = vector.load %arg5[%c0_15, %c0_16, %c0_17] : memref<4x32x8xbf16, #tpu.memory_space<vmem>>, vector<1x32x8xbf16>
    %34 = vector.shape_cast %33 : vector<1x32x8xbf16> to vector<32x8xbf16>
    %cst_18 = arith.constant dense<0.000000e+00> : vector<8x8xf32>
    %35 = tpu.matmul %27, %34, %cst_18 {dimension_numbers = #tpu.dot_dimension_numbers<[1], [0], [0], [1], [0, 0, 1, 1], [], []>} : vector<8x32xbf16>, vector<32x8xbf16>, vector<8x8xf32> -> vector<8x8xf32>
    %c0_19 = arith.constant 0 : index
    %c0_20 = arith.constant 0 : index
    %c0_21 = arith.constant 0 : index
    %36 = vector.load %arg6[%c0_19, %c0_20, %c0_21] : memref<4x1x8xf32, #tpu.memory_space<vmem>>, vector<1x1x8xf32>
    %37 = vector.shape_cast %36 : vector<1x1x8xf32> to vector<1x8xf32>
    %38 = vector.broadcast %37 : vector<1x8xf32> to vector<8x8xf32>
    %39 = arith.addf %35, %38 : vector<8x8xf32>
    %c0_22 = arith.constant 0 : index
    %c0_23 = arith.constant 0 : index
    %c0_24 = arith.constant 0 : index
    %40 = vector.load %arg7[%c0_22, %c0_23, %c0_24] : memref<4x32x8xbf16, #tpu.memory_space<vmem>>, vector<1x32x8xbf16>
    %41 = vector.shape_cast %40 : vector<1x32x8xbf16> to vector<32x8xbf16>
    %cst_25 = arith.constant dense<0.000000e+00> : vector<8x8xf32>
    %42 = tpu.matmul %27, %41, %cst_25 {dimension_numbers = #tpu.dot_dimension_numbers<[1], [0], [0], [1], [0, 0, 1, 1], [], []>} : vector<8x32xbf16>, vector<32x8xbf16>, vector<8x8xf32> -> vector<8x8xf32>
    %c0_26 = arith.constant 0 : index
    %c0_27 = arith.constant 0 : index
    %c0_28 = arith.constant 0 : index
    %43 = vector.load %arg8[%c0_26, %c0_27, %c0_28] : memref<4x1x8xf32, #tpu.memory_space<vmem>>, vector<1x1x8xf32>
    %44 = vector.shape_cast %43 : vector<1x1x8xf32> to vector<1x8xf32>
    %45 = vector.broadcast %44 : vector<1x8xf32> to vector<8x8xf32>
    %46 = arith.addf %42, %45 : vector<8x8xf32>
    %c0_29 = arith.constant 0 : index
    %c0_30 = arith.constant 0 : index
    %c0_31 = arith.constant 0 : index
    %47 = vector.load %arg9[%c0_29, %c0_30, %c0_31] : memref<4x32x8xbf16, #tpu.memory_space<vmem>>, vector<1x32x8xbf16>
    %48 = vector.shape_cast %47 : vector<1x32x8xbf16> to vector<32x8xbf16>
    %cst_32 = arith.constant dense<0.000000e+00> : vector<8x8xf32>
    %49 = tpu.matmul %27, %48, %cst_32 {dimension_numbers = #tpu.dot_dimension_numbers<[1], [0], [0], [1], [0, 0, 1, 1], [], []>} : vector<8x32xbf16>, vector<32x8xbf16>, vector<8x8xf32> -> vector<8x8xf32>
    %c0_33 = arith.constant 0 : index
    %c0_34 = arith.constant 0 : index
    %c0_35 = arith.constant 0 : index
    %50 = vector.load %arg10[%c0_33, %c0_34, %c0_35] : memref<4x1x8xf32, #tpu.memory_space<vmem>>, vector<1x1x8xf32>
    %51 = vector.shape_cast %50 : vector<1x1x8xf32> to vector<1x8xf32>
    %52 = vector.broadcast %51 : vector<1x8xf32> to vector<8x8xf32>
    %53 = arith.addf %49, %52 : vector<8x8xf32>
    %54 = arith.truncf %39 : vector<8x8xf32> to vector<8x8xbf16>
    %55 = arith.truncf %46 : vector<8x8xf32> to vector<8x8xbf16>
    %cst_36 = arith.constant dense<0.000000e+00> : vector<8x8xf32>
    %56 = tpu.matmul %54, %55, %cst_36 {dimension_numbers = #tpu.dot_dimension_numbers<[1], [1], [0], [0], [0, 0, 1, 0], [], []>} : vector<8x8xbf16>, vector<8x8xbf16>, vector<8x8xf32> -> vector<8x8xf32>
    %cst_37 = arith.constant 0.353553385 : f32
    %57 = vector.broadcast %cst_37 : f32 to vector<8x8xf32>
    %58 = arith.mulf %56, %57 : vector<8x8xf32>
    %cst_38 = arith.constant -1.000000e+09 : f32
    %59 = vector.broadcast %cst_38 : f32 to vector<8x8xf32>
    %60 = arith.select %31, %58, %59 : vector<8x8xi1>, vector<8x8xf32>
    %cst_39 = arith.constant dense<0xFF800000> : vector<8xf32>
    %61 = vector.multi_reduction <maximumf>, %60, %cst_39 [1] : vector<8x8xf32> to vector<8xf32>
    %62 = vector.shape_cast %61 : vector<8xf32> to vector<8x1xf32>
    %63 = vector.broadcast %62 : vector<8x1xf32> to vector<8x8xf32>
    %64 = arith.subf %60, %63 : vector<8x8xf32>
    %65 = math.exp %64 : vector<8x8xf32>
    %cst_40 = arith.constant dense<0.000000e+00> : vector<8xf32>
    %66 = vector.multi_reduction <add>, %65, %cst_40 [1] : vector<8x8xf32> to vector<8xf32>
    %67 = vector.shape_cast %66 : vector<8xf32> to vector<8x1xf32>
    %68 = tpu.reciprocal %67 {approx = true} : vector<8x1xf32> -> vector<8x1xf32>
    %69 = vector.broadcast %68 : vector<8x1xf32> to vector<8x8xf32>
    %70 = arith.mulf %65, %69 : vector<8x8xf32>
    %71 = arith.truncf %70 : vector<8x8xf32> to vector<8x8xbf16>
    %c0_41 = arith.constant 0 : index
    %c0_42 = arith.constant 0 : index
    %c0_43 = arith.constant 0 : index
    %c0_44 = arith.constant 0 : index
    %72 = vector.load %arg14[%c0_41, %c0_42, %c0_43, %c0_44] : memref<1x4x8x8xbf16, #tpu.memory_space<vmem>>, vector<1x1x8x8xbf16>
    %73 = vector.shape_cast %72 : vector<1x1x8x8xbf16> to vector<8x8xbf16>
    %74 = vector.shape_cast %71 : vector<8x8xbf16> to vector<1x1x8x8xbf16>
    tpu.vector_store %arg14[%c0_41, %c0_42, %c0_43, %c0_44], %74 {strides = array<i32>} : memref<1x4x8x8xbf16, #tpu.memory_space<vmem>>, vector<1x1x8x8xbf16>,
    %75 = arith.truncf %70 : vector<8x8xf32> to vector<8x8xbf16>
    %76 = arith.truncf %53 : vector<8x8xf32> to vector<8x8xbf16>
    %cst_45 = arith.constant dense<0.000000e+00> : vector<8x8xf32>
    %77 = tpu.matmul %75, %76, %cst_45 {dimension_numbers = #tpu.dot_dimension_numbers<[1], [0], [0], [1], [0, 0, 1, 1], [], []>} : vector<8x8xbf16>, vector<8x8xbf16>, vector<8x8xf32> -> vector<8x8xf32>
    %78 = arith.truncf %77 : vector<8x8xf32> to vector<8x8xbf16>
    %c0_46 = arith.constant 0 : index
    %c0_47 = arith.constant 0 : index
    %c0_48 = arith.constant 0 : index
    %79 = vector.load %arg11[%c0_46, %c0_47, %c0_48] : memref<4x8x32xbf16, #tpu.memory_space<vmem>>, vector<1x8x32xbf16>
    %80 = vector.shape_cast %79 : vector<1x8x32xbf16> to vector<8x32xbf16>
    %cst_49 = arith.constant dense<0.000000e+00> : vector<8x32xf32>
    %81 = tpu.matmul %78, %80, %cst_49 {dimension_numbers = #tpu.dot_dimension_numbers<[1], [0], [0], [1], [0, 0, 1, 1], [], []>} : vector<8x8xbf16>, vector<8x32xbf16>, vector<8x32xf32> -> vector<8x32xf32>
    %82 = arith.addf %32, %81 : vector<8x32xf32>
    %c1 = arith.constant 1 : index
    %c0_50 = arith.constant 0 : index
    %c0_51 = arith.constant 0 : index
    %83 = vector.load %arg5[%c1, %c0_50, %c0_51] : memref<4x32x8xbf16, #tpu.memory_space<vmem>>, vector<1x32x8xbf16>
    %84 = vector.shape_cast %83 : vector<1x32x8xbf16> to vector<32x8xbf16>
    %cst_52 = arith.constant dense<0.000000e+00> : vector<8x8xf32>
    %85 = tpu.matmul %27, %84, %cst_52 {dimension_numbers = #tpu.dot_dimension_numbers<[1], [0], [0], [1], [0, 0, 1, 1], [], []>} : vector<8x32xbf16>, vector<32x8xbf16>, vector<8x8xf32> -> vector<8x8xf32>
    %c1_53 = arith.constant 1 : index
    %c0_54 = arith.constant 0 : index
    %c0_55 = arith.constant 0 : index
    %86 = vector.load %arg6[%c1_53, %c0_54, %c0_55] : memref<4x1x8xf32, #tpu.memory_space<vmem>>, vector<1x1x8xf32>
    %87 = vector.shape_cast %86 : vector<1x1x8xf32> to vector<1x8xf32>
    %88 = vector.broadcast %87 : vector<1x8xf32> to vector<8x8xf32>
    %89 = arith.addf %85, %88 : vector<8x8xf32>
    %c1_56 = arith.constant 1 : index
    %c0_57 = arith.constant 0 : index
    %c0_58 = arith.constant 0 : index
    %90 = vector.load %arg7[%c1_56, %c0_57, %c0_58] : memref<4x32x8xbf16, #tpu.memory_space<vmem>>, vector<1x32x8xbf16>
    %91 = vector.shape_cast %90 : vector<1x32x8xbf16> to vector<32x8xbf16>
    %cst_59 = arith.constant dense<0.000000e+00> : vector<8x8xf32>
    %92 = tpu.matmul %27, %91, %cst_59 {dimension_numbers = #tpu.dot_dimension_numbers<[1], [0], [0], [1], [0, 0, 1, 1], [], []>} : vector<8x32xbf16>, vector<32x8xbf16>, vector<8x8xf32> -> vector<8x8xf32>
    %c1_60 = arith.constant 1 : index
    %c0_61 = arith.constant 0 : index
    %c0_62 = arith.constant 0 : index
    %93 = vector.load %arg8[%c1_60, %c0_61, %c0_62] : memref<4x1x8xf32, #tpu.memory_space<vmem>>, vector<1x1x8xf32>
    %94 = vector.shape_cast %93 : vector<1x1x8xf32> to vector<1x8xf32>
    %95 = vector.broadcast %94 : vector<1x8xf32> to vector<8x8xf32>
    %96 = arith.addf %92, %95 : vector<8x8xf32>
    %c1_63 = arith.constant 1 : index
    %c0_64 = arith.constant 0 : index
    %c0_65 = arith.constant 0 : index
    %97 = vector.load %arg9[%c1_63, %c0_64, %c0_65] : memref<4x32x8xbf16, #tpu.memory_space<vmem>>, vector<1x32x8xbf16>
    %98 = vector.shape_cast %97 : vector<1x32x8xbf16> to vector<32x8xbf16>
    %cst_66 = arith.constant dense<0.000000e+00> : vector<8x8xf32>
    %99 = tpu.matmul %27, %98, %cst_66 {dimension_numbers = #tpu.dot_dimension_numbers<[1], [0], [0], [1], [0, 0, 1, 1], [], []>} : vector<8x32xbf16>, vector<32x8xbf16>, vector<8x8xf32> -> vector<8x8xf32>
    %c1_67 = arith.constant 1 : index
    %c0_68 = arith.constant 0 : index
    %c0_69 = arith.constant 0 : index
    %100 = vector.load %arg10[%c1_67, %c0_68, %c0_69] : memref<4x1x8xf32, #tpu.memory_space<vmem>>, vector<1x1x8xf32>
    %101 = vector.shape_cast %100 : vector<1x1x8xf32> to vector<1x8xf32>
    %102 = vector.broadcast %101 : vector<1x8xf32> to vector<8x8xf32>
    %103 = arith.addf %99, %102 : vector<8x8xf32>
    %104 = arith.truncf %89 : vector<8x8xf32> to vector<8x8xbf16>
    %105 = arith.truncf %96 : vector<8x8xf32> to vector<8x8xbf16>
    %cst_70 = arith.constant dense<0.000000e+00> : vector<8x8xf32>
    %106 = tpu.matmul %104, %105, %cst_70 {dimension_numbers = #tpu.dot_dimension_numbers<[1], [1], [0], [0], [0, 0, 1, 0], [], []>} : vector<8x8xbf16>, vector<8x8xbf16>, vector<8x8xf32> -> vector<8x8xf32>
    %cst_71 = arith.constant 0.353553385 : f32
    %107 = vector.broadcast %cst_71 : f32 to vector<8x8xf32>
    %108 = arith.mulf %106, %107 : vector<8x8xf32>
    %cst_72 = arith.constant -1.000000e+09 : f32
    %109 = vector.broadcast %cst_72 : f32 to vector<8x8xf32>
    %110 = arith.select %31, %108, %109 : vector<8x8xi1>, vector<8x8xf32>
    %cst_73 = arith.constant dense<0xFF800000> : vector<8xf32>
    %111 = vector.multi_reduction <maximumf>, %110, %cst_73 [1] : vector<8x8xf32> to vector<8xf32>
    %112 = vector.shape_cast %111 : vector<8xf32> to vector<8x1xf32>
    %113 = vector.broadcast %112 : vector<8x1xf32> to vector<8x8xf32>
    %114 = arith.subf %110, %113 : vector<8x8xf32>
    %115 = math.exp %114 : vector<8x8xf32>
    %cst_74 = arith.constant dense<0.000000e+00> : vector<8xf32>
    %116 = vector.multi_reduction <add>, %115, %cst_74 [1] : vector<8x8xf32> to vector<8xf32>
    %117 = vector.shape_cast %116 : vector<8xf32> to vector<8x1xf32>
    %118 = tpu.reciprocal %117 {approx = true} : vector<8x1xf32> -> vector<8x1xf32>
    %119 = vector.broadcast %118 : vector<8x1xf32> to vector<8x8xf32>
    %120 = arith.mulf %115, %119 : vector<8x8xf32>
    %121 = arith.truncf %120 : vector<8x8xf32> to vector<8x8xbf16>
    %c0_75 = arith.constant 0 : index
    %c1_76 = arith.constant 1 : index
    %c0_77 = arith.constant 0 : index
    %c0_78 = arith.constant 0 : index
    %122 = vector.load %arg14[%c0_75, %c1_76, %c0_77, %c0_78] : memref<1x4x8x8xbf16, #tpu.memory_space<vmem>>, vector<1x1x8x8xbf16>
    %123 = vector.shape_cast %122 : vector<1x1x8x8xbf16> to vector<8x8xbf16>
    %124 = vector.shape_cast %121 : vector<8x8xbf16> to vector<1x1x8x8xbf16>
    tpu.vector_store %arg14[%c0_75, %c1_76, %c0_77, %c0_78], %124 {strides = array<i32>} : memref<1x4x8x8xbf16, #tpu.memory_space<vmem>>, vector<1x1x8x8xbf16>,
    %125 = arith.truncf %120 : vector<8x8xf32> to vector<8x8xbf16>
    %126 = arith.truncf %103 : vector<8x8xf32> to vector<8x8xbf16>
    %cst_79 = arith.constant dense<0.000000e+00> : vector<8x8xf32>
    %127 = tpu.matmul %125, %126, %cst_79 {dimension_numbers = #tpu.dot_dimension_numbers<[1], [0], [0], [1], [0, 0, 1, 1], [], []>} : vector<8x8xbf16>, vector<8x8xbf16>, vector<8x8xf32> -> vector<8x8xf32>
    %128 = arith.truncf %127 : vector<8x8xf32> to vector<8x8xbf16>
    %c1_80 = arith.constant 1 : index
    %c0_81 = arith.constant 0 : index
    %c0_82 = arith.constant 0 : index
    %129 = vector.load %arg11[%c1_80, %c0_81, %c0_82] : memref<4x8x32xbf16, #tpu.memory_space<vmem>>, vector<1x8x32xbf16>
    %130 = vector.shape_cast %129 : vector<1x8x32xbf16> to vector<8x32xbf16>
    %cst_83 = arith.constant dense<0.000000e+00> : vector<8x32xf32>
    %131 = tpu.matmul %128, %130, %cst_83 {dimension_numbers = #tpu.dot_dimension_numbers<[1], [0], [0], [1], [0, 0, 1, 1], [], []>} : vector<8x8xbf16>, vector<8x32xbf16>, vector<8x32xf32> -> vector<8x32xf32>
    %132 = arith.addf %82, %131 : vector<8x32xf32>
    %c2 = arith.constant 2 : index
    %c0_84 = arith.constant 0 : index
    %c0_85 = arith.constant 0 : index
    %133 = vector.load %arg5[%c2, %c0_84, %c0_85] : memref<4x32x8xbf16, #tpu.memory_space<vmem>>, vector<1x32x8xbf16>
    %134 = vector.shape_cast %133 : vector<1x32x8xbf16> to vector<32x8xbf16>
    %cst_86 = arith.constant dense<0.000000e+00> : vector<8x8xf32>
    %135 = tpu.matmul %27, %134, %cst_86 {dimension_numbers = #tpu.dot_dimension_numbers<[1], [0], [0], [1], [0, 0, 1, 1], [], []>} : vector<8x32xbf16>, vector<32x8xbf16>, vector<8x8xf32> -> vector<8x8xf32>
    %c2_87 = arith.constant 2 : index
    %c0_88 = arith.constant 0 : index
    %c0_89 = arith.constant 0 : index
    %136 = vector.load %arg6[%c2_87, %c0_88, %c0_89] : memref<4x1x8xf32, #tpu.memory_space<vmem>>, vector<1x1x8xf32>
    %137 = vector.shape_cast %136 : vector<1x1x8xf32> to vector<1x8xf32>
    %138 = vector.broadcast %137 : vector<1x8xf32> to vector<8x8xf32>
    %139 = arith.addf %135, %138 : vector<8x8xf32>
    %c2_90 = arith.constant 2 : index
    %c0_91 = arith.constant 0 : index
    %c0_92 = arith.constant 0 : index
    %140 = vector.load %arg7[%c2_90, %c0_91, %c0_92] : memref<4x32x8xbf16, #tpu.memory_space<vmem>>, vector<1x32x8xbf16>
    %141 = vector.shape_cast %140 : vector<1x32x8xbf16> to vector<32x8xbf16>
    %cst_93 = arith.constant dense<0.000000e+00> : vector<8x8xf32>
    %142 = tpu.matmul %27, %141, %cst_93 {dimension_numbers = #tpu.dot_dimension_numbers<[1], [0], [0], [1], [0, 0, 1, 1], [], []>} : vector<8x32xbf16>, vector<32x8xbf16>, vector<8x8xf32> -> vector<8x8xf32>
    %c2_94 = arith.constant 2 : index
    %c0_95 = arith.constant 0 : index
    %c0_96 = arith.constant 0 : index
    %143 = vector.load %arg8[%c2_94, %c0_95, %c0_96] : memref<4x1x8xf32, #tpu.memory_space<vmem>>, vector<1x1x8xf32>
    %144 = vector.shape_cast %143 : vector<1x1x8xf32> to vector<1x8xf32>
    %145 = vector.broadcast %144 : vector<1x8xf32> to vector<8x8xf32>
    %146 = arith.addf %142, %145 : vector<8x8xf32>
    %c2_97 = arith.constant 2 : index
    %c0_98 = arith.constant 0 : index
    %c0_99 = arith.constant 0 : index
    %147 = vector.load %arg9[%c2_97, %c0_98, %c0_99] : memref<4x32x8xbf16, #tpu.memory_space<vmem>>, vector<1x32x8xbf16>
    %148 = vector.shape_cast %147 : vector<1x32x8xbf16> to vector<32x8xbf16>
    %cst_100 = arith.constant dense<0.000000e+00> : vector<8x8xf32>
    %149 = tpu.matmul %27, %148, %cst_100 {dimension_numbers = #tpu.dot_dimension_numbers<[1], [0], [0], [1], [0, 0, 1, 1], [], []>} : vector<8x32xbf16>, vector<32x8xbf16>, vector<8x8xf32> -> vector<8x8xf32>
    %c2_101 = arith.constant 2 : index
    %c0_102 = arith.constant 0 : index
    %c0_103 = arith.constant 0 : index
    %150 = vector.load %arg10[%c2_101, %c0_102, %c0_103] : memref<4x1x8xf32, #tpu.memory_space<vmem>>, vector<1x1x8xf32>
    %151 = vector.shape_cast %150 : vector<1x1x8xf32> to vector<1x8xf32>
    %152 = vector.broadcast %151 : vector<1x8xf32> to vector<8x8xf32>
    %153 = arith.addf %149, %152 : vector<8x8xf32>
    %154 = arith.truncf %139 : vector<8x8xf32> to vector<8x8xbf16>
    %155 = arith.truncf %146 : vector<8x8xf32> to vector<8x8xbf16>
    %cst_104 = arith.constant dense<0.000000e+00> : vector<8x8xf32>
    %156 = tpu.matmul %154, %155, %cst_104 {dimension_numbers = #tpu.dot_dimension_numbers<[1], [1], [0], [0], [0, 0, 1, 0], [], []>} : vector<8x8xbf16>, vector<8x8xbf16>, vector<8x8xf32> -> vector<8x8xf32>
    %cst_105 = arith.constant 0.353553385 : f32
    %157 = vector.broadcast %cst_105 : f32 to vector<8x8xf32>
    %158 = arith.mulf %156, %157 : vector<8x8xf32>
    %cst_106 = arith.constant -1.000000e+09 : f32
    %159 = vector.broadcast %cst_106 : f32 to vector<8x8xf32>
    %160 = arith.select %31, %158, %159 : vector<8x8xi1>, vector<8x8xf32>
    %cst_107 = arith.constant dense<0xFF800000> : vector<8xf32>
    %161 = vector.multi_reduction <maximumf>, %160, %cst_107 [1] : vector<8x8xf32> to vector<8xf32>
    %162 = vector.shape_cast %161 : vector<8xf32> to vector<8x1xf32>
    %163 = vector.broadcast %162 : vector<8x1xf32> to vector<8x8xf32>
    %164 = arith.subf %160, %163 : vector<8x8xf32>
    %165 = math.exp %164 : vector<8x8xf32>
    %cst_108 = arith.constant dense<0.000000e+00> : vector<8xf32>
    %166 = vector.multi_reduction <add>, %165, %cst_108 [1] : vector<8x8xf32> to vector<8xf32>
    %167 = vector.shape_cast %166 : vector<8xf32> to vector<8x1xf32>
    %168 = tpu.reciprocal %167 {approx = true} : vector<8x1xf32> -> vector<8x1xf32>
    %169 = vector.broadcast %168 : vector<8x1xf32> to vector<8x8xf32>
    %170 = arith.mulf %165, %169 : vector<8x8xf32>
    %171 = arith.truncf %170 : vector<8x8xf32> to vector<8x8xbf16>
    %c0_109 = arith.constant 0 : index
    %c2_110 = arith.constant 2 : index
    %c0_111 = arith.constant 0 : index
    %c0_112 = arith.constant 0 : index
    %172 = vector.load %arg14[%c0_109, %c2_110, %c0_111, %c0_112] : memref<1x4x8x8xbf16, #tpu.memory_space<vmem>>, vector<1x1x8x8xbf16>
    %173 = vector.shape_cast %172 : vector<1x1x8x8xbf16> to vector<8x8xbf16>
    %174 = vector.shape_cast %171 : vector<8x8xbf16> to vector<1x1x8x8xbf16>
    tpu.vector_store %arg14[%c0_109, %c2_110, %c0_111, %c0_112], %174 {strides = array<i32>} : memref<1x4x8x8xbf16, #tpu.memory_space<vmem>>, vector<1x1x8x8xbf16>,
    %175 = arith.truncf %170 : vector<8x8xf32> to vector<8x8xbf16>
    %176 = arith.truncf %153 : vector<8x8xf32> to vector<8x8xbf16>
    %cst_113 = arith.constant dense<0.000000e+00> : vector<8x8xf32>
    %177 = tpu.matmul %175, %176, %cst_113 {dimension_numbers = #tpu.dot_dimension_numbers<[1], [0], [0], [1], [0, 0, 1, 1], [], []>} : vector<8x8xbf16>, vector<8x8xbf16>, vector<8x8xf32> -> vector<8x8xf32>
    %178 = arith.truncf %177 : vector<8x8xf32> to vector<8x8xbf16>
    %c2_114 = arith.constant 2 : index
    %c0_115 = arith.constant 0 : index
    %c0_116 = arith.constant 0 : index
    %179 = vector.load %arg11[%c2_114, %c0_115, %c0_116] : memref<4x8x32xbf16, #tpu.memory_space<vmem>>, vector<1x8x32xbf16>
    %180 = vector.shape_cast %179 : vector<1x8x32xbf16> to vector<8x32xbf16>
    %cst_117 = arith.constant dense<0.000000e+00> : vector<8x32xf32>
    %181 = tpu.matmul %178, %180, %cst_117 {dimension_numbers = #tpu.dot_dimension_numbers<[1], [0], [0], [1], [0, 0, 1, 1], [], []>} : vector<8x8xbf16>, vector<8x32xbf16>, vector<8x32xf32> -> vector<8x32xf32>
    %182 = arith.addf %132, %181 : vector<8x32xf32>
    %c3 = arith.constant 3 : index
    %c0_118 = arith.constant 0 : index
    %c0_119 = arith.constant 0 : index
    %183 = vector.load %arg5[%c3, %c0_118, %c0_119] : memref<4x32x8xbf16, #tpu.memory_space<vmem>>, vector<1x32x8xbf16>
    %184 = vector.shape_cast %183 : vector<1x32x8xbf16> to vector<32x8xbf16>
    %cst_120 = arith.constant dense<0.000000e+00> : vector<8x8xf32>
    %185 = tpu.matmul %27, %184, %cst_120 {dimension_numbers = #tpu.dot_dimension_numbers<[1], [0], [0], [1], [0, 0, 1, 1], [], []>} : vector<8x32xbf16>, vector<32x8xbf16>, vector<8x8xf32> -> vector<8x8xf32>
    %c3_121 = arith.constant 3 : index
    %c0_122 = arith.constant 0 : index
    %c0_123 = arith.constant 0 : index
    %186 = vector.load %arg6[%c3_121, %c0_122, %c0_123] : memref<4x1x8xf32, #tpu.memory_space<vmem>>, vector<1x1x8xf32>
    %187 = vector.shape_cast %186 : vector<1x1x8xf32> to vector<1x8xf32>
    %188 = vector.broadcast %187 : vector<1x8xf32> to vector<8x8xf32>
    %189 = arith.addf %185, %188 : vector<8x8xf32>
    %c3_124 = arith.constant 3 : index
    %c0_125 = arith.constant 0 : index
    %c0_126 = arith.constant 0 : index
    %190 = vector.load %arg7[%c3_124, %c0_125, %c0_126] : memref<4x32x8xbf16, #tpu.memory_space<vmem>>, vector<1x32x8xbf16>
    %191 = vector.shape_cast %190 : vector<1x32x8xbf16> to vector<32x8xbf16>
    %cst_127 = arith.constant dense<0.000000e+00> : vector<8x8xf32>
    %192 = tpu.matmul %27, %191, %cst_127 {dimension_numbers = #tpu.dot_dimension_numbers<[1], [0], [0], [1], [0, 0, 1, 1], [], []>} : vector<8x32xbf16>, vector<32x8xbf16>, vector<8x8xf32> -> vector<8x8xf32>
    %c3_128 = arith.constant 3 : index
    %c0_129 = arith.constant 0 : index
    %c0_130 = arith.constant 0 : index
    %193 = vector.load %arg8[%c3_128, %c0_129, %c0_130] : memref<4x1x8xf32, #tpu.memory_space<vmem>>, vector<1x1x8xf32>
    %194 = vector.shape_cast %193 : vector<1x1x8xf32> to vector<1x8xf32>
    %195 = vector.broadcast %194 : vector<1x8xf32> to vector<8x8xf32>
    %196 = arith.addf %192, %195 : vector<8x8xf32>
    %c3_131 = arith.constant 3 : index
    %c0_132 = arith.constant 0 : index
    %c0_133 = arith.constant 0 : index
    %197 = vector.load %arg9[%c3_131, %c0_132, %c0_133] : memref<4x32x8xbf16, #tpu.memory_space<vmem>>, vector<1x32x8xbf16>
    %198 = vector.shape_cast %197 : vector<1x32x8xbf16> to vector<32x8xbf16>
    %cst_134 = arith.constant dense<0.000000e+00> : vector<8x8xf32>
    %199 = tpu.matmul %27, %198, %cst_134 {dimension_numbers = #tpu.dot_dimension_numbers<[1], [0], [0], [1], [0, 0, 1, 1], [], []>} : vector<8x32xbf16>, vector<32x8xbf16>, vector<8x8xf32> -> vector<8x8xf32>
    %c3_135 = arith.constant 3 : index
    %c0_136 = arith.constant 0 : index
    %c0_137 = arith.constant 0 : index
    %200 = vector.load %arg10[%c3_135, %c0_136, %c0_137] : memref<4x1x8xf32, #tpu.memory_space<vmem>>, vector<1x1x8xf32>
    %201 = vector.shape_cast %200 : vector<1x1x8xf32> to vector<1x8xf32>
    %202 = vector.broadcast %201 : vector<1x8xf32> to vector<8x8xf32>
    %203 = arith.addf %199, %202 : vector<8x8xf32>
    %204 = arith.truncf %189 : vector<8x8xf32> to vector<8x8xbf16>
    %205 = arith.truncf %196 : vector<8x8xf32> to vector<8x8xbf16>
    %cst_138 = arith.constant dense<0.000000e+00> : vector<8x8xf32>
    %206 = tpu.matmul %204, %205, %cst_138 {dimension_numbers = #tpu.dot_dimension_numbers<[1], [1], [0], [0], [0, 0, 1, 0], [], []>} : vector<8x8xbf16>, vector<8x8xbf16>, vector<8x8xf32> -> vector<8x8xf32>
    %cst_139 = arith.constant 0.353553385 : f32
    %207 = vector.broadcast %cst_139 : f32 to vector<8x8xf32>
    %208 = arith.mulf %206, %207 : vector<8x8xf32>
    %cst_140 = arith.constant -1.000000e+09 : f32
    %209 = vector.broadcast %cst_140 : f32 to vector<8x8xf32>
    %210 = arith.select %31, %208, %209 : vector<8x8xi1>, vector<8x8xf32>
    %cst_141 = arith.constant dense<0xFF800000> : vector<8xf32>
    %211 = vector.multi_reduction <maximumf>, %210, %cst_141 [1] : vector<8x8xf32> to vector<8xf32>
    %212 = vector.shape_cast %211 : vector<8xf32> to vector<8x1xf32>
    %213 = vector.broadcast %212 : vector<8x1xf32> to vector<8x8xf32>
    %214 = arith.subf %210, %213 : vector<8x8xf32>
    %215 = math.exp %214 : vector<8x8xf32>
    %cst_142 = arith.constant dense<0.000000e+00> : vector<8xf32>
    %216 = vector.multi_reduction <add>, %215, %cst_142 [1] : vector<8x8xf32> to vector<8xf32>
    %217 = vector.shape_cast %216 : vector<8xf32> to vector<8x1xf32>
    %218 = tpu.reciprocal %217 {approx = true} : vector<8x1xf32> -> vector<8x1xf32>
    %219 = vector.broadcast %218 : vector<8x1xf32> to vector<8x8xf32>
    %220 = arith.mulf %215, %219 : vector<8x8xf32>
    %221 = arith.truncf %220 : vector<8x8xf32> to vector<8x8xbf16>
    %c0_143 = arith.constant 0 : index
    %c3_144 = arith.constant 3 : index
    %c0_145 = arith.constant 0 : index
    %c0_146 = arith.constant 0 : index
    %222 = vector.load %arg14[%c0_143, %c3_144, %c0_145, %c0_146] : memref<1x4x8x8xbf16, #tpu.memory_space<vmem>>, vector<1x1x8x8xbf16>
    %223 = vector.shape_cast %222 : vector<1x1x8x8xbf16> to vector<8x8xbf16>
    %224 = vector.shape_cast %221 : vector<8x8xbf16> to vector<1x1x8x8xbf16>
    tpu.vector_store %arg14[%c0_143, %c3_144, %c0_145, %c0_146], %224 {strides = array<i32>} : memref<1x4x8x8xbf16, #tpu.memory_space<vmem>>, vector<1x1x8x8xbf16>,
    %225 = arith.truncf %220 : vector<8x8xf32> to vector<8x8xbf16>
    %226 = arith.truncf %203 : vector<8x8xf32> to vector<8x8xbf16>
    %cst_147 = arith.constant dense<0.000000e+00> : vector<8x8xf32>
    %227 = tpu.matmul %225, %226, %cst_147 {dimension_numbers = #tpu.dot_dimension_numbers<[1], [0], [0], [1], [0, 0, 1, 1], [], []>} : vector<8x8xbf16>, vector<8x8xbf16>, vector<8x8xf32> -> vector<8x8xf32>
    %228 = arith.truncf %227 : vector<8x8xf32> to vector<8x8xbf16>
    %c3_148 = arith.constant 3 : index
    %c0_149 = arith.constant 0 : index
    %c0_150 = arith.constant 0 : index
    %229 = vector.load %arg11[%c3_148, %c0_149, %c0_150] : memref<4x8x32xbf16, #tpu.memory_space<vmem>>, vector<1x8x32xbf16>
    %230 = vector.shape_cast %229 : vector<1x8x32xbf16> to vector<8x32xbf16>
    %cst_151 = arith.constant dense<0.000000e+00> : vector<8x32xf32>
    %231 = tpu.matmul %228, %230, %cst_151 {dimension_numbers = #tpu.dot_dimension_numbers<[1], [0], [0], [1], [0, 0, 1, 1], [], []>} : vector<8x8xbf16>, vector<8x32xbf16>, vector<8x32xf32> -> vector<8x32xf32>
    %232 = arith.addf %182, %231 : vector<8x32xf32>
    %c0_152 = arith.constant 0 : index
    %c0_153 = arith.constant 0 : index
    %233 = vector.load %arg12[%c0_152, %c0_153] : memref<1x32xf32, #tpu.memory_space<vmem>>, vector<1x32xf32>
    %234 = vector.broadcast %233 : vector<1x32xf32> to vector<8x32xf32>
    %235 = arith.addf %232, %234 : vector<8x32xf32>
    %236 = arith.addf %2, %235 : vector<8x32xf32>
    %237 = arith.truncf %236 : vector<8x32xf32> to vector<8x32xbf16>
    %c0_154 = arith.constant 0 : index
    %c0_155 = arith.constant 0 : index
    %c0_156 = arith.constant 0 : index
    %238 = vector.load %arg13[%c0_154, %c0_155, %c0_156] : memref<1x8x32xbf16, #tpu.memory_space<vmem>>, vector<1x8x32xbf16>
    %239 = vector.shape_cast %238 : vector<1x8x32xbf16> to vector<8x32xbf16>
    %240 = vector.shape_cast %237 : vector<8x32xbf16> to vector<1x8x32xbf16>
    tpu.vector_store %arg13[%c0_154, %c0_155, %c0_156], %240 {strides = array<i32>} : memref<1x8x32xbf16, #tpu.memory_space<vmem>>, vector<1x8x32xbf16>,
    return
  }
  func.func @transform_0(%arg0: i32) -> (i32, i32, i32) {
    %c0_i32 = arith.constant 0 : i32
    %c0_i32_0 = arith.constant 0 : i32
    %c0_i32_1 = arith.constant 0 : i32
    return %arg0, %c0_i32, %c0_i32_0 : i32, i32, i32
  }
  func.func @transform_1(%arg0: i32) -> (i32, i32, i32) {
    %c0_i32 = arith.constant 0 : i32
    %c0_i32_0 = arith.constant 0 : i32
    %c0_i32_1 = arith.constant 0 : i32
    return %arg0, %c0_i32, %c0_i32_0 : i32, i32, i32
  }
  func.func @transform_2(%arg0: i32) -> (i32, i32) {
    %c0_i32 = arith.constant 0 : i32
    %c0_i32_0 = arith.constant 0 : i32
    %c0_i32_1 = arith.constant 0 : i32
    return %c0_i32, %c0_i32_0 : i32, i32
  }
  func.func @transform_3(%arg0: i32) -> (i32, i32) {
    %c0_i32 = arith.constant 0 : i32
    %c0_i32_0 = arith.constant 0 : i32
    %c0_i32_1 = arith.constant 0 : i32
    return %c0_i32, %c0_i32_0 : i32, i32
  }
  func.func @transform_4(%arg0: i32) -> (i32, i32, i32) {
    %c0_i32 = arith.constant 0 : i32
    %c0_i32_0 = arith.constant 0 : i32
    %c0_i32_1 = arith.constant 0 : i32
    %c0_i32_2 = arith.constant 0 : i32
    return %c0_i32, %c0_i32_0, %c0_i32_1 : i32, i32, i32
  }
  func.func @transform_5(%arg0: i32) -> (i32, i32, i32) {
    %c0_i32 = arith.constant 0 : i32
    %c0_i32_0 = arith.constant 0 : i32
    %c0_i32_1 = arith.constant 0 : i32
    %c0_i32_2 = arith.constant 0 : i32
    return %c0_i32, %c0_i32_0, %c0_i32_1 : i32, i32, i32
  }
  func.func @transform_6(%arg0: i32) -> (i32, i32, i32) {
    %c0_i32 = arith.constant 0 : i32
    %c0_i32_0 = arith.constant 0 : i32
    %c0_i32_1 = arith.constant 0 : i32
    %c0_i32_2 = arith.constant 0 : i32
    return %c0_i32, %c0_i32_0, %c0_i32_1 : i32, i32, i32
  }
  func.func @transform_7(%arg0: i32) -> (i32, i32, i32) {
    %c0_i32 = arith.constant 0 : i32
    %c0_i32_0 = arith.constant 0 : i32
    %c0_i32_1 = arith.constant 0 : i32
    %c0_i32_2 = arith.constant 0 : i32
    return %c0_i32, %c0_i32_0, %c0_i32_1 : i32, i32, i32
  }
  func.func @transform_8(%arg0: i32) -> (i32, i32, i32) {
    %c0_i32 = arith.constant 0 : i32
    %c0_i32_0 = arith.constant 0 : i32
    %c0_i32_1 = arith.constant 0 : i32
    %c0_i32_2 = arith.constant 0 : i32
    return %c0_i32, %c0_i32_0, %c0_i32_1 : i32, i32, i32
  }
  func.func @transform_9(%arg0: i32) -> (i32, i32, i32) {
    %c0_i32 = arith.constant 0 : i32
    %c0_i32_0 = arith.constant 0 : i32
    %c0_i32_1 = arith.constant 0 : i32
    %c0_i32_2 = arith.constant 0 : i32
    return %c0_i32, %c0_i32_0, %c0_i32_1 : i32, i32, i32
  }
  func.func @transform_10(%arg0: i32) -> (i32, i32, i32) {
    %c0_i32 = arith.constant 0 : i32
    %c0_i32_0 = arith.constant 0 : i32
    %c0_i32_1 = arith.constant 0 : i32
    %c0_i32_2 = arith.constant 0 : i32
    return %c0_i32, %c0_i32_0, %c0_i32_1 : i32, i32, i32
  }
  func.func @transform_11(%arg0: i32) -> (i32, i32) {
    %c0_i32 = arith.constant 0 : i32
    %c0_i32_0 = arith.constant 0 : i32
    %c0_i32_1 = arith.constant 0 : i32
    return %c0_i32, %c0_i32_0 : i32, i32
  }
  func.func @transform_12(%arg0: i32) -> (i32, i32, i32) {
    %c0_i32 = arith.constant 0 : i32
    %c0_i32_0 = arith.constant 0 : i32
    %c0_i32_1 = arith.constant 0 : i32
    return %arg0, %c0_i32, %c0_i32_0 : i32, i32, i32
  }
  func.func @transform_13(%arg0: i32) -> (i32, i32, i32, i32) {
    %c0_i32 = arith.constant 0 : i32
    %c0_i32_0 = arith.constant 0 : i32
    %c0_i32_1 = arith.constant 0 : i32
    %c0_i32_2 = arith.constant 0 : i32
    return %arg0, %c0_i32, %c0_i32_0, %c0_i32_1 : i32, i32, i32, i32
  }
}

module attributes {stable_mosaic.version = 11 : i64} {
  func.func @_ffn_block_kernel(%arg0: i32, %arg1: memref<1x8x32xbf16, #tpu.memory_space<vmem>>, %arg2: memref<1x32xf32, #tpu.memory_space<vmem>>, %arg3: memref<1x32xf32, #tpu.memory_space<vmem>>, %arg4: memref<3x32x128xbf16, #tpu.memory_space<vmem>>, %arg5: memref<1x128xf32, #tpu.memory_space<vmem>>, %arg6: memref<3x128x32xbf16, #tpu.memory_space<vmem>>, %arg7: memref<1x32xf32, #tpu.memory_space<vmem>>, %arg8: memref<1x32xf32, #tpu.memory_space<vmem>>, %arg9: memref<1x32xf32, #tpu.memory_space<vmem>>, %arg10: memref<1x8x32xf32, #tpu.memory_space<vmem>>, %arg11: memref<10x32xf32, #tpu.memory_space<vmem>>, %arg12: memref<10x128xf32, #tpu.memory_space<vmem>>) attributes {dimension_semantics = [#tpu.dimension_semantics<parallel>], iteration_bounds = array<i64: 2>, scalar_prefetch = 0 : i64, scratch_operands = 2 : i64, tpu.core_type = #tpu.core_type<tc>, window_params = [{transform_indices = @transform_0, window_bounds = array<i64: 1, 8, 32>}, {pipeline_mode = #tpu.pipeline_mode<synchronous>, transform_indices = @transform_1, window_bounds = array<i64: 1, 32>}, {pipeline_mode = #tpu.pipeline_mode<synchronous>, transform_indices = @transform_2, window_bounds = array<i64: 1, 32>}, {pipeline_mode = #tpu.pipeline_mode<synchronous>, transform_indices = @transform_3, window_bounds = array<i64: 3, 32, 128>}, {pipeline_mode = #tpu.pipeline_mode<synchronous>, transform_indices = @transform_4, window_bounds = array<i64: 1, 128>}, {pipeline_mode = #tpu.pipeline_mode<synchronous>, transform_indices = @transform_5, window_bounds = array<i64: 3, 128, 32>}, {pipeline_mode = #tpu.pipeline_mode<synchronous>, transform_indices = @transform_6, window_bounds = array<i64: 1, 32>}, {pipeline_mode = #tpu.pipeline_mode<synchronous>, transform_indices = @transform_7, window_bounds = array<i64: 1, 32>}, {pipeline_mode = #tpu.pipeline_mode<synchronous>, transform_indices = @transform_8, window_bounds = array<i64: 1, 32>}, {transform_indices = @transform_9, window_bounds = array<i64: 1, 8, 32>}]} {
    %c0 = arith.constant 0 : index
    %c0_0 = arith.constant 0 : index
    %c0_1 = arith.constant 0 : index
    %0 = vector.load %arg1[%c0, %c0_0, %c0_1] : memref<1x8x32xbf16, #tpu.memory_space<vmem>>, vector<1x8x32xbf16>
    %1 = vector.shape_cast %0 : vector<1x8x32xbf16> to vector<8x32xbf16>
    %2 = arith.extf %1 : vector<8x32xbf16> to vector<8x32xf32>
    %cst = arith.constant dense<0.000000e+00> : vector<8xf32>
    %3 = vector.multi_reduction <add>, %2, %cst [1] : vector<8x32xf32> to vector<8xf32>
    %4 = vector.shape_cast %3 : vector<8xf32> to vector<8x1xf32>
    %cst_2 = arith.constant 3.200000e+01 : f32
    %5 = vector.broadcast %cst_2 : f32 to vector<8x1xf32>
    %6 = arith.divf %4, %5 : vector<8x1xf32>
    %7 = vector.broadcast %6 : vector<8x1xf32> to vector<8x32xf32>
    %8 = arith.subf %2, %7 : vector<8x32xf32>
    %9 = arith.mulf %8, %8 : vector<8x32xf32>
    %cst_3 = arith.constant dense<0.000000e+00> : vector<8xf32>
    %10 = vector.multi_reduction <add>, %9, %cst_3 [1] : vector<8x32xf32> to vector<8xf32>
    %11 = vector.shape_cast %10 : vector<8xf32> to vector<8x1xf32>
    %cst_4 = arith.constant 3.200000e+01 : f32
    %12 = vector.broadcast %cst_4 : f32 to vector<8x1xf32>
    %13 = arith.divf %11, %12 : vector<8x1xf32>
    %14 = vector.broadcast %6 : vector<8x1xf32> to vector<8x32xf32>
    %15 = arith.subf %2, %14 : vector<8x32xf32>
    %cst_5 = arith.constant 9.99999974E-6 : f32
    %16 = vector.broadcast %cst_5 : f32 to vector<8x1xf32>
    %17 = arith.addf %13, %16 : vector<8x1xf32>
    %18 = math.rsqrt %17 : vector<8x1xf32>
    %19 = vector.broadcast %18 : vector<8x1xf32> to vector<8x32xf32>
    %20 = arith.mulf %15, %19 : vector<8x32xf32>
    %c0_6 = arith.constant 0 : index
    %c0_7 = arith.constant 0 : index
    %21 = vector.load %arg2[%c0_6, %c0_7] : memref<1x32xf32, #tpu.memory_space<vmem>>, vector<1x32xf32>
    %22 = vector.broadcast %21 : vector<1x32xf32> to vector<8x32xf32>
    %23 = arith.mulf %20, %22 : vector<8x32xf32>
    %c0_8 = arith.constant 0 : index
    %c0_9 = arith.constant 0 : index
    %24 = vector.load %arg3[%c0_8, %c0_9] : memref<1x32xf32, #tpu.memory_space<vmem>>, vector<1x32xf32>
    %25 = vector.broadcast %24 : vector<1x32xf32> to vector<8x32xf32>
    %26 = arith.addf %23, %25 : vector<8x32xf32>
    %cst_10 = arith.constant 0.000000e+00 : f32
    %27 = vector.broadcast %cst_10 : f32 to vector<1x32xf32>
    %c0_11 = arith.constant 0 : index
    %c0_12 = arith.constant 0 : index
    %28 = vector.load %arg11[%c0_11, %c0_12] : memref<10x32xf32, #tpu.memory_space<vmem>>, vector<1x32xf32>
    tpu.vector_store %arg11[%c0_11, %c0_12], %27 {strides = array<i32>} : memref<10x32xf32, #tpu.memory_space<vmem>>, vector<1x32xf32>,
    %c9 = arith.constant 9 : index
    %c0_13 = arith.constant 0 : index
    %29 = vector.load %arg11[%c9, %c0_13] : memref<10x32xf32, #tpu.memory_space<vmem>>, vector<1x32xf32>
    tpu.vector_store %arg11[%c9, %c0_13], %27 {strides = array<i32>} : memref<10x32xf32, #tpu.memory_space<vmem>>, vector<1x32xf32>,
    %c1 = arith.constant 1 : index
    %c0_14 = arith.constant 0 : index
    %30 = vector.load %arg11[%c1, %c0_14] : memref<10x32xf32, #tpu.memory_space<vmem>>, vector<8x32xf32>
    tpu.vector_store %arg11[%c1, %c0_14], %26 {strides = array<i32>} : memref<10x32xf32, #tpu.memory_space<vmem>>, vector<8x32xf32>,
    %cst_15 = arith.constant 0.000000e+00 : f32
    %31 = vector.broadcast %cst_15 : f32 to vector<8x128xf32>
    %c0_16 = arith.constant 0 : index
    %c0_17 = arith.constant 0 : index
    %32 = vector.load %arg11[%c0_16, %c0_17] : memref<10x32xf32, #tpu.memory_space<vmem>>, vector<8x32xf32>
    %33 = arith.truncf %32 : vector<8x32xf32> to vector<8x32xbf16>
    %c0_18 = arith.constant 0 : index
    %c0_19 = arith.constant 0 : index
    %c0_20 = arith.constant 0 : index
    %34 = vector.load %arg4[%c0_18, %c0_19, %c0_20] : memref<3x32x128xbf16, #tpu.memory_space<vmem>>, vector<1x32x128xbf16>
    %35 = vector.shape_cast %34 : vector<1x32x128xbf16> to vector<32x128xbf16>
    %cst_21 = arith.constant dense<0.000000e+00> : vector<8x128xf32>
    %36 = tpu.matmul %33, %35, %cst_21 {dimension_numbers = #tpu.dot_dimension_numbers<[1], [0], [0], [1], [0, 0, 1, 1], [], []>} : vector<8x32xbf16>, vector<32x128xbf16>, vector<8x128xf32> -> vector<8x128xf32>
    %37 = arith.addf %31, %36 : vector<8x128xf32>
    %c1_22 = arith.constant 1 : index
    %c0_23 = arith.constant 0 : index
    %38 = vector.load %arg11[%c1_22, %c0_23] : memref<10x32xf32, #tpu.memory_space<vmem>>, vector<8x32xf32>
    %39 = arith.truncf %38 : vector<8x32xf32> to vector<8x32xbf16>
    %c1_24 = arith.constant 1 : index
    %c0_25 = arith.constant 0 : index
    %c0_26 = arith.constant 0 : index
    %40 = vector.load %arg4[%c1_24, %c0_25, %c0_26] : memref<3x32x128xbf16, #tpu.memory_space<vmem>>, vector<1x32x128xbf16>
    %41 = vector.shape_cast %40 : vector<1x32x128xbf16> to vector<32x128xbf16>
    %cst_27 = arith.constant dense<0.000000e+00> : vector<8x128xf32>
    %42 = tpu.matmul %39, %41, %cst_27 {dimension_numbers = #tpu.dot_dimension_numbers<[1], [0], [0], [1], [0, 0, 1, 1], [], []>} : vector<8x32xbf16>, vector<32x128xbf16>, vector<8x128xf32> -> vector<8x128xf32>
    %43 = arith.addf %37, %42 : vector<8x128xf32>
    %c2 = arith.constant 2 : index
    %c0_28 = arith.constant 0 : index
    %44 = vector.load %arg11[%c2, %c0_28] : memref<10x32xf32, #tpu.memory_space<vmem>>, vector<8x32xf32>
    %45 = arith.truncf %44 : vector<8x32xf32> to vector<8x32xbf16>
    %c2_29 = arith.constant 2 : index
    %c0_30 = arith.constant 0 : index
    %c0_31 = arith.constant 0 : index
    %46 = vector.load %arg4[%c2_29, %c0_30, %c0_31] : memref<3x32x128xbf16, #tpu.memory_space<vmem>>, vector<1x32x128xbf16>
    %47 = vector.shape_cast %46 : vector<1x32x128xbf16> to vector<32x128xbf16>
    %cst_32 = arith.constant dense<0.000000e+00> : vector<8x128xf32>
    %48 = tpu.matmul %45, %47, %cst_32 {dimension_numbers = #tpu.dot_dimension_numbers<[1], [0], [0], [1], [0, 0, 1, 1], [], []>} : vector<8x32xbf16>, vector<32x128xbf16>, vector<8x128xf32> -> vector<8x128xf32>
    %49 = arith.addf %43, %48 : vector<8x128xf32>
    %c0_33 = arith.constant 0 : index
    %c0_34 = arith.constant 0 : index
    %50 = vector.load %arg5[%c0_33, %c0_34] : memref<1x128xf32, #tpu.memory_space<vmem>>, vector<1x128xf32>
    %51 = vector.broadcast %50 : vector<1x128xf32> to vector<8x128xf32>
    %52 = arith.addf %49, %51 : vector<8x128xf32>
    %cst_35 = arith.constant 0.000000e+00 : f32
    %53 = vector.broadcast %cst_35 : f32 to vector<8x128xf32>
    %54 = arith.maximumf %52, %53 : vector<8x128xf32>
    %cst_36 = arith.constant 0.000000e+00 : f32
    %55 = vector.broadcast %cst_36 : f32 to vector<1x128xf32>
    %c0_37 = arith.constant 0 : index
    %c0_38 = arith.constant 0 : index
    %56 = vector.load %arg12[%c0_37, %c0_38] : memref<10x128xf32, #tpu.memory_space<vmem>>, vector<1x128xf32>
    tpu.vector_store %arg12[%c0_37, %c0_38], %55 {strides = array<i32>} : memref<10x128xf32, #tpu.memory_space<vmem>>, vector<1x128xf32>,
    %c9_39 = arith.constant 9 : index
    %c0_40 = arith.constant 0 : index
    %57 = vector.load %arg12[%c9_39, %c0_40] : memref<10x128xf32, #tpu.memory_space<vmem>>, vector<1x128xf32>
    tpu.vector_store %arg12[%c9_39, %c0_40], %55 {strides = array<i32>} : memref<10x128xf32, #tpu.memory_space<vmem>>, vector<1x128xf32>,
    %c1_41 = arith.constant 1 : index
    %c0_42 = arith.constant 0 : index
    %58 = vector.load %arg12[%c1_41, %c0_42] : memref<10x128xf32, #tpu.memory_space<vmem>>, vector<8x128xf32>
    tpu.vector_store %arg12[%c1_41, %c0_42], %54 {strides = array<i32>} : memref<10x128xf32, #tpu.memory_space<vmem>>, vector<8x128xf32>,
    %cst_43 = arith.constant 0.000000e+00 : f32
    %59 = vector.broadcast %cst_43 : f32 to vector<8x32xf32>
    %c0_44 = arith.constant 0 : index
    %c0_45 = arith.constant 0 : index
    %60 = vector.load %arg12[%c0_44, %c0_45] : memref<10x128xf32, #tpu.memory_space<vmem>>, vector<8x128xf32>
    %61 = arith.truncf %60 : vector<8x128xf32> to vector<8x128xbf16>
    %c0_46 = arith.constant 0 : index
    %c0_47 = arith.constant 0 : index
    %c0_48 = arith.constant 0 : index
    %62 = vector.load %arg6[%c0_46, %c0_47, %c0_48] : memref<3x128x32xbf16, #tpu.memory_space<vmem>>, vector<1x128x32xbf16>
    %63 = vector.shape_cast %62 : vector<1x128x32xbf16> to vector<128x32xbf16>
    %cst_49 = arith.constant dense<0.000000e+00> : vector<8x32xf32>
    %64 = tpu.matmul %61, %63, %cst_49 {dimension_numbers = #tpu.dot_dimension_numbers<[1], [0], [0], [1], [0, 0, 1, 1], [], []>} : vector<8x128xbf16>, vector<128x32xbf16>, vector<8x32xf32> -> vector<8x32xf32>
    %65 = arith.addf %59, %64 : vector<8x32xf32>
    %c1_50 = arith.constant 1 : index
    %c0_51 = arith.constant 0 : index
    %66 = vector.load %arg12[%c1_50, %c0_51] : memref<10x128xf32, #tpu.memory_space<vmem>>, vector<8x128xf32>
    %67 = arith.truncf %66 : vector<8x128xf32> to vector<8x128xbf16>
    %c1_52 = arith.constant 1 : index
    %c0_53 = arith.constant 0 : index
    %c0_54 = arith.constant 0 : index
    %68 = vector.load %arg6[%c1_52, %c0_53, %c0_54] : memref<3x128x32xbf16, #tpu.memory_space<vmem>>, vector<1x128x32xbf16>
    %69 = vector.shape_cast %68 : vector<1x128x32xbf16> to vector<128x32xbf16>
    %cst_55 = arith.constant dense<0.000000e+00> : vector<8x32xf32>
    %70 = tpu.matmul %67, %69, %cst_55 {dimension_numbers = #tpu.dot_dimension_numbers<[1], [0], [0], [1], [0, 0, 1, 1], [], []>} : vector<8x128xbf16>, vector<128x32xbf16>, vector<8x32xf32> -> vector<8x32xf32>
    %71 = arith.addf %65, %70 : vector<8x32xf32>
    %c2_56 = arith.constant 2 : index
    %c0_57 = arith.constant 0 : index
    %72 = vector.load %arg12[%c2_56, %c0_57] : memref<10x128xf32, #tpu.memory_space<vmem>>, vector<8x128xf32>
    %73 = arith.truncf %72 : vector<8x128xf32> to vector<8x128xbf16>
    %c2_58 = arith.constant 2 : index
    %c0_59 = arith.constant 0 : index
    %c0_60 = arith.constant 0 : index
    %74 = vector.load %arg6[%c2_58, %c0_59, %c0_60] : memref<3x128x32xbf16, #tpu.memory_space<vmem>>, vector<1x128x32xbf16>
    %75 = vector.shape_cast %74 : vector<1x128x32xbf16> to vector<128x32xbf16>
    %cst_61 = arith.constant dense<0.000000e+00> : vector<8x32xf32>
    %76 = tpu.matmul %73, %75, %cst_61 {dimension_numbers = #tpu.dot_dimension_numbers<[1], [0], [0], [1], [0, 0, 1, 1], [], []>} : vector<8x128xbf16>, vector<128x32xbf16>, vector<8x32xf32> -> vector<8x32xf32>
    %77 = arith.addf %71, %76 : vector<8x32xf32>
    %78 = arith.addf %2, %77 : vector<8x32xf32>
    %c0_62 = arith.constant 0 : index
    %c0_63 = arith.constant 0 : index
    %79 = vector.load %arg7[%c0_62, %c0_63] : memref<1x32xf32, #tpu.memory_space<vmem>>, vector<1x32xf32>
    %80 = vector.broadcast %79 : vector<1x32xf32> to vector<8x32xf32>
    %81 = arith.addf %78, %80 : vector<8x32xf32>
    %cst_64 = arith.constant dense<0.000000e+00> : vector<8xf32>
    %82 = vector.multi_reduction <add>, %81, %cst_64 [1] : vector<8x32xf32> to vector<8xf32>
    %83 = vector.shape_cast %82 : vector<8xf32> to vector<8x1xf32>
    %cst_65 = arith.constant 3.200000e+01 : f32
    %84 = vector.broadcast %cst_65 : f32 to vector<8x1xf32>
    %85 = arith.divf %83, %84 : vector<8x1xf32>
    %86 = vector.broadcast %85 : vector<8x1xf32> to vector<8x32xf32>
    %87 = arith.subf %81, %86 : vector<8x32xf32>
    %88 = arith.mulf %87, %87 : vector<8x32xf32>
    %cst_66 = arith.constant dense<0.000000e+00> : vector<8xf32>
    %89 = vector.multi_reduction <add>, %88, %cst_66 [1] : vector<8x32xf32> to vector<8xf32>
    %90 = vector.shape_cast %89 : vector<8xf32> to vector<8x1xf32>
    %cst_67 = arith.constant 3.200000e+01 : f32
    %91 = vector.broadcast %cst_67 : f32 to vector<8x1xf32>
    %92 = arith.divf %90, %91 : vector<8x1xf32>
    %93 = vector.broadcast %85 : vector<8x1xf32> to vector<8x32xf32>
    %94 = arith.subf %81, %93 : vector<8x32xf32>
    %cst_68 = arith.constant 9.99999974E-6 : f32
    %95 = vector.broadcast %cst_68 : f32 to vector<8x1xf32>
    %96 = arith.addf %92, %95 : vector<8x1xf32>
    %97 = math.rsqrt %96 : vector<8x1xf32>
    %98 = vector.broadcast %97 : vector<8x1xf32> to vector<8x32xf32>
    %99 = arith.mulf %94, %98 : vector<8x32xf32>
    %c0_69 = arith.constant 0 : index
    %c0_70 = arith.constant 0 : index
    %100 = vector.load %arg8[%c0_69, %c0_70] : memref<1x32xf32, #tpu.memory_space<vmem>>, vector<1x32xf32>
    %101 = vector.broadcast %100 : vector<1x32xf32> to vector<8x32xf32>
    %102 = arith.mulf %99, %101 : vector<8x32xf32>
    %c0_71 = arith.constant 0 : index
    %c0_72 = arith.constant 0 : index
    %103 = vector.load %arg9[%c0_71, %c0_72] : memref<1x32xf32, #tpu.memory_space<vmem>>, vector<1x32xf32>
    %104 = vector.broadcast %103 : vector<1x32xf32> to vector<8x32xf32>
    %105 = arith.addf %102, %104 : vector<8x32xf32>
    %c0_73 = arith.constant 0 : index
    %c0_74 = arith.constant 0 : index
    %c0_75 = arith.constant 0 : index
    %106 = vector.load %arg10[%c0_73, %c0_74, %c0_75] : memref<1x8x32xf32, #tpu.memory_space<vmem>>, vector<1x8x32xf32>
    %107 = vector.shape_cast %106 : vector<1x8x32xf32> to vector<8x32xf32>
    %108 = vector.shape_cast %105 : vector<8x32xf32> to vector<1x8x32xf32>
    tpu.vector_store %arg10[%c0_73, %c0_74, %c0_75], %108 {strides = array<i32>} : memref<1x8x32xf32, #tpu.memory_space<vmem>>, vector<1x8x32xf32>,
    return
  }
  func.func @transform_0(%arg0: i32) -> (i32, i32, i32) {
    %c0_i32 = arith.constant 0 : i32
    %c0_i32_0 = arith.constant 0 : i32
    %c0_i32_1 = arith.constant 0 : i32
    return %arg0, %c0_i32, %c0_i32_0 : i32, i32, i32
  }
  func.func @transform_1(%arg0: i32) -> (i32, i32) {
    %c0_i32 = arith.constant 0 : i32
    %c0_i32_0 = arith.constant 0 : i32
    %c0_i32_1 = arith.constant 0 : i32
    return %c0_i32, %c0_i32_0 : i32, i32
  }
  func.func @transform_2(%arg0: i32) -> (i32, i32) {
    %c0_i32 = arith.constant 0 : i32
    %c0_i32_0 = arith.constant 0 : i32
    %c0_i32_1 = arith.constant 0 : i32
    return %c0_i32, %c0_i32_0 : i32, i32
  }
  func.func @transform_3(%arg0: i32) -> (i32, i32, i32) {
    %c0_i32 = arith.constant 0 : i32
    %c0_i32_0 = arith.constant 0 : i32
    %c0_i32_1 = arith.constant 0 : i32
    %c0_i32_2 = arith.constant 0 : i32
    return %c0_i32, %c0_i32_0, %c0_i32_1 : i32, i32, i32
  }
  func.func @transform_4(%arg0: i32) -> (i32, i32) {
    %c0_i32 = arith.constant 0 : i32
    %c0_i32_0 = arith.constant 0 : i32
    %c0_i32_1 = arith.constant 0 : i32
    return %c0_i32, %c0_i32_0 : i32, i32
  }
  func.func @transform_5(%arg0: i32) -> (i32, i32, i32) {
    %c0_i32 = arith.constant 0 : i32
    %c0_i32_0 = arith.constant 0 : i32
    %c0_i32_1 = arith.constant 0 : i32
    %c0_i32_2 = arith.constant 0 : i32
    return %c0_i32, %c0_i32_0, %c0_i32_1 : i32, i32, i32
  }
  func.func @transform_6(%arg0: i32) -> (i32, i32) {
    %c0_i32 = arith.constant 0 : i32
    %c0_i32_0 = arith.constant 0 : i32
    %c0_i32_1 = arith.constant 0 : i32
    return %c0_i32, %c0_i32_0 : i32, i32
  }
  func.func @transform_7(%arg0: i32) -> (i32, i32) {
    %c0_i32 = arith.constant 0 : i32
    %c0_i32_0 = arith.constant 0 : i32
    %c0_i32_1 = arith.constant 0 : i32
    return %c0_i32, %c0_i32_0 : i32, i32
  }
  func.func @transform_8(%arg0: i32) -> (i32, i32) {
    %c0_i32 = arith.constant 0 : i32
    %c0_i32_0 = arith.constant 0 : i32
    %c0_i32_1 = arith.constant 0 : i32
    return %c0_i32, %c0_i32_0 : i32, i32
  }
  func.func @transform_9(%arg0: i32) -> (i32, i32, i32) {
    %c0_i32 = arith.constant 0 : i32
    %c0_i32_0 = arith.constant 0 : i32
    %c0_i32_1 = arith.constant 0 : i32
    return %arg0, %c0_i32, %c0_i32_0 : i32, i32, i32
  }
}

</mosaic_0001>

<llo_original>
// kernel: _lambda_.7
$region0: #{_lambda_.7}
  #allocation0 [shape = 'u32[]', space=smem, size = 0x4, offset = 0x4, fixed_abs, tag = 'smem constant byte address 0x4 - core index']
  #allocation1 [shape = 'u32[144,128]{1,0:T(1,128)}', space=vmem, size = 0x12000, scoped, tag = 'internal scratch']
  %s0 = inlined_call_operand.hbm [shape: f32[2,8,8], index: 0, kind: input, shape index: {}]
  %s1 = inlined_call_operand.vmem [shape: bf16[8,32], index: 1, kind: input, shape index: {}]
  %s2 = inlined_call_operand.vmem [shape: f32[1,32], index: 2, kind: input, shape index: {}, may-alias: {2,4}]
  %s3 = inlined_call_operand.vmem [shape: bf16[32,32], index: 3, kind: input, shape index: {}]
  %s4 = inlined_call_operand.vmem [shape: f32[1,32], index: 4, kind: input, shape index: {}, may-alias: {2,4}]
  %s5 = inlined_call_operand.vmem [shape: f32[8,32], index: 5, kind: input, shape index: {}]
  %s6 = inlined_call_operand.vmem [shape: bf16[2,8,32], index: 6, kind: output, shape index: {}]
  %s7 = sld [smem:[#allocation0]]
  $region61: #{_lambda_.7} parent=0
    _
  %s9 = ssub.s32 1, %s7
  %s10 = scalar_select 0, %s9, %s7
  $region1: #{_lambda_.7} parent=0
    #allocation2 [shape = 'u8[8192]{0}', space=vmem, size = 0x2000, scoped, tag = 'input window, operand 0']
    #allocation3 [shape = 's32[2]{0}', space=sflag, size = 0x8, scoped, tag = 'scoped memory for _lambda_.7']
    %11 = vsyncpa [#allocation3], 0
    %s12 = scalar_lea.sflag [#allocation3], 1
    %13 = vsyncpa %s12, 0
    loop: start=0, step=1, limit=4
    $region2: #{_lambda_.7} parent=1 // loop_pre_header
      _
    $region3: #{_lambda_.7} parent=1 // loop_header
      %s15 = sphi 0, %s19
      %p16 = scmp.ge.s32.totalorder %s15, 4
      %s25 = sphi 0, %s27
      %s28 = sphi 0, %s25
      %s29 = sphi 0, %s28
      %s45 = sphi 0, %s29
      %s49 = sphi 0, %s49
      %s51 = sphi 0, %s49
      %s52 = sphi 0, %s51
      %s66 = sphi 0, %s52
      %s70 = sphi 0, %s70
      %s72 = sphi 0, %s70
      %s73 = sphi 0, %s72
      %s87 = sphi 0, %s73
      %s91 = sphi 0, %s91
      %s93 = sphi 0, %s91
      %s94 = sphi 0, %s93
      %s108 = sphi 0, %s94
      %s112 = sphi 0, %s112
      %s114 = sphi 0, %s112
      %s115 = sphi 0, %s114
      %s129 = sphi 0, %s115
      %s133 = sphi 0, %s133
      %s135 = sphi 0, %s133
      %s136 = sphi 0, %s135
      %s150 = sphi 0, %s136
      %s156 = sphi 0, %s158
      %s159 = sphi 0, %s156
      %s160 = sphi 0, %s159
      %s176 = sphi 0, %s160
    $region4: #{_lambda_.7} parent=1 // loop_header_branch
      %18 = sbr.rel (%p16) target = $region8
    $region5: #{_lambda_.7} parent=1 // loop_body
      %s20 = ssub.s32 %s15, 1
      %s21 = ssub.s32 %s15, 2
      %s22 = sadd.s32 %s15, 1
      %s23 = ssub.s32 %s15, %s22
      %p24 = scmp.eq.s32.totalorder %s23, 0
      %s26 = sadd.s32 %s25, 1
      %s27 = scalar_select %p24, %s25, %s26
      %p30 = pneg %p24
      %p31 = scmp.eq.s32.totalorder %s15, 1
      %p32 = por %p30, %p31
      %p33 = scmp.ne.s32.totalorder %s25, %s28
      %p34 = scmp.eq.s32.totalorder %s15, 0
      %p35 = por %p33, %p34
      %p36 = scmp.ne.s32.totalorder %s25, %s28
      %p37 = scmp.eq.s32.totalorder %s20, 1
      %p38 = por %p36, %p37
      %p39 = scmp.ne.s32.totalorder %s28, %s29
      %p40 = scmp.eq.s32.totalorder %s20, 0
      %p41 = por %p39, %p40
      %p42 = scmp.ne.s32.totalorder %s28, %s29
      %p43 = scmp.eq.s32.totalorder %s21, 1
      %p44 = por %p42, %p43
      %p46 = scmp.ne.s32.totalorder %s29, %s45
      %p47 = scmp.eq.s32.totalorder %s21, 0
      %p48 = por %p46, %p47
      %s50 = sadd.s32 %s49, 1
      %p53 = scmp.eq.s32.totalorder %s15, 1
      %p54 = scmp.ne.s32.totalorder %s49, %s51
      %p55 = scmp.eq.s32.totalorder %s15, 0
      %p56 = por %p54, %p55
      %p57 = scmp.ne.s32.totalorder %s49, %s51
      %p58 = scmp.eq.s32.totalorder %s20, 1
      %p59 = por %p57, %p58
      %p60 = scmp.ne.s32.totalorder %s51, %s52
      %p61 = scmp.eq.s32.totalorder %s20, 0
      %p62 = por %p60, %p61
      %p63 = scmp.ne.s32.totalorder %s51, %s52
      %p64 = scmp.eq.s32.totalorder %s21, 1
      %p65 = por %p63, %p64
      %p67 = scmp.ne.s32.totalorder %s52, %s66
      %p68 = scmp.eq.s32.totalorder %s21, 0
      %p69 = por %p67, %p68
      %s71 = sadd.s32 %s70, 1
      %p74 = scmp.eq.s32.totalorder %s15, 1
      %p75 = scmp.ne.s32.totalorder %s70, %s72
      %p76 = scmp.eq.s32.totalorder %s15, 0
      %p77 = por %p75, %p76
      %p78 = scmp.ne.s32.totalorder %s70, %s72
      %p79 = scmp.eq.s32.totalorder %s20, 1
      %p80 = por %p78, %p79
      %p81 = scmp.ne.s32.totalorder %s72, %s73
      %p82 = scmp.eq.s32.totalorder %s20, 0
      %p83 = por %p81, %p82
      %p84 = scmp.ne.s32.totalorder %s72, %s73
      %p85 = scmp.eq.s32.totalorder %s21, 1
      %p86 = por %p84, %p85
      %p88 = scmp.ne.s32.totalorder %s73, %s87
      %p89 = scmp.eq.s32.totalorder %s21, 0
      %p90 = por %p88, %p89
      %s92 = sadd.s32 %s91, 1
      %p95 = scmp.eq.s32.totalorder %s15, 1
      %p96 = scmp.ne.s32.totalorder %s91, %s93
      %p97 = scmp.eq.s32.totalorder %s15, 0
      %p98 = por %p96, %p97
      %p99 = scmp.ne.s32.totalorder %s91, %s93
      %p100 = scmp.eq.s32.totalorder %s20, 1
      %p101 = por %p99, %p100
      %p102 = scmp.ne.s32.totalorder %s93, %s94
      %p103 = scmp.eq.s32.totalorder %s20, 0
      %p104 = por %p102, %p103
      %p105 = scmp.ne.s32.totalorder %s93, %s94
      %p106 = scmp.eq.s32.totalorder %s21, 1
      %p107 = por %p105, %p106
      %p109 = scmp.ne.s32.totalorder %s94, %s108
      %p110 = scmp.eq.s32.totalorder %s21, 0
      %p111 = por %p109, %p110
      %s113 = sadd.s32 %s112, 1
      %p116 = scmp.eq.s32.totalorder %s15, 1
      %p117 = scmp.ne.s32.totalorder %s112, %s114
      %p118 = scmp.eq.s32.totalorder %s15, 0
      %p119 = por %p117, %p118
      %p120 = scmp.ne.s32.totalorder %s112, %s114
      %p121 = scmp.eq.s32.totalorder %s20, 1
      %p122 = por %p120, %p121
      %p123 = scmp.ne.s32.totalorder %s114, %s115
      %p124 = scmp.eq.s32.totalorder %s20, 0
      %p125 = por %p123, %p124
      %p126 = scmp.ne.s32.totalorder %s114, %s115
      %p127 = scmp.eq.s32.totalorder %s21, 1
      %p128 = por %p126, %p127
      %p130 = scmp.ne.s32.totalorder %s115, %s129
      %p131 = scmp.eq.s32.totalorder %s21, 0
      %p132 = por %p130, %p131
      %s134 = sadd.s32 %s133, 1
      %p137 = scmp.eq.s32.totalorder %s15, 1
      %p138 = scmp.ne.s32.totalorder %s133, %s135
      %p139 = scmp.eq.s32.totalorder %s15, 0
      %p140 = por %p138, %p139
      %p141 = scmp.ne.s32.totalorder %s133, %s135
      %p142 = scmp.eq.s32.totalorder %s20, 1
      %p143 = por %p141, %p142
      %p144 = scmp.ne.s32.totalorder %s135, %s136
      %p145 = scmp.eq.s32.totalorder %s20, 0
      %p146 = por %p144, %p145
      %p147 = scmp.ne.s32.totalorder %s135, %s136
      %p148 = scmp.eq.s32.totalorder %s21, 1
      %p149 = por %p147, %p148
      %p151 = scmp.ne.s32.totalorder %s136, %s150
      %p152 = scmp.eq.s32.totalorder %s21, 0
      %p153 = por %p151, %p152
      %s154 = ssub.s32 %s15, %s22
      %p155 = scmp.eq.s32.totalorder %s154, 0
      %s157 = sadd.s32 %s156, 1
      %s158 = scalar_select %p155, %s156, %s157
      %p161 = pneg %p155
      %p162 = scmp.eq.s32.totalorder %s15, 1
      %p163 = por %p161, %p162
      %p164 = scmp.ne.s32.totalorder %s156, %s159
      %p165 = scmp.eq.s32.totalorder %s15, 0
      %p166 = por %p164, %p165
      %p167 = scmp.ne.s32.totalorder %s156, %s159
      %p168 = scmp.eq.s32.totalorder %s20, 1
      %p169 = por %p167, %p168
      %p170 = scmp.ne.s32.totalorder %s159, %s160
      %p171 = scmp.eq.s32.totalorder %s20, 0
      %p172 = por %p170, %p171
      %p173 = scmp.ne.s32.totalorder %s159, %s160
      %p174 = scmp.eq.s32.totalorder %s21, 1
      %p175 = por %p173, %p174
      %p177 = scmp.ne.s32.totalorder %s160, %s176
      %p178 = scmp.eq.s32.totalorder %s21, 0
      %p179 = por %p177, %p178
      %p180 = scmp.le.s32.totalorder 1, %s15
      %p181 = scmp.lt.s32.totalorder %s15, 3
      %p182 = pnand %p180, %p181
      %p183 = pneg %p182
      // Predicated region
      $region9: #{_lambda_.7} parent=5 // pred_check
        _
      $region10: #{_lambda_.7} parent=5 // pred_check_branch
        %185 = sbr.rel (%p182) target = $region12
      $region11: #{_lambda_.7} parent=5 // pred_region
        %s186 = ssub.s32 %s15, 1
        // Predicated region
        $region13: #{_lambda_.7} parent=11 // pred_check
          %p187 = pneg %p62
        $region14: #{_lambda_.7} parent=11 // pred_check_branch
          %189 = sbr.rel (%p187) target = $region16
        $region15: #{_lambda_.7} parent=11 // pred_region
          _
        $region16: #{_lambda_.7} parent=11 // pred_fallthru
          _
        // Predicated region
        $region17: #{_lambda_.7} parent=11 // pred_check
          %p190 = pneg %p83
        $region18: #{_lambda_.7} parent=11 // pred_check_branch
          %192 = sbr.rel (%p190) target = $region20
        $region19: #{_lambda_.7} parent=11 // pred_region
          _
        $region20: #{_lambda_.7} parent=11 // pred_fallthru
          _
        // Predicated region
        $region21: #{_lambda_.7} parent=11 // pred_check
          %p193 = pneg %p104
        $region22: #{_lambda_.7} parent=11 // pred_check_branch
          %195 = sbr.rel (%p193) target = $region24
        $region23: #{_lambda_.7} parent=11 // pred_region
          _
        $region24: #{_lambda_.7} parent=11 // pred_fallthru
          _
        // Predicated region
        $region25: #{_lambda_.7} parent=11 // pred_check
          %p196 = pneg %p125
        $region26: #{_lambda_.7} parent=11 // pred_check_branch
          %198 = sbr.rel (%p196) target = $region28
        $region27: #{_lambda_.7} parent=11 // pred_region
          _
        $region28: #{_lambda_.7} parent=11 // pred_fallthru
          _
        // Predicated region
        $region29: #{_lambda_.7} parent=11 // pred_check
          %p199 = pneg %p146
        $region30: #{_lambda_.7} parent=11 // pred_check_branch
          %201 = sbr.rel (%p199) target = $region32
        $region31: #{_lambda_.7} parent=11 // pred_region
          _
        $region32: #{_lambda_.7} parent=11 // pred_fallthru
          _
      $region12: #{_lambda_.7} parent=5 // pred_fallthru
        _
      %p202 = scmp.lt.s32.totalorder %s15, 2
      // Predicated region
      $region33: #{_lambda_.7} parent=5 // pred_check
        %p203 = pneg %p202
      $region34: #{_lambda_.7} parent=5 // pred_check_branch
        %205 = sbr.rel (%p203) target = $region36
      $region35: #{_lambda_.7} parent=5 // pred_region
        // Predicated region
        $region37: #{_lambda_.7} parent=35 // pred_check
          %p206 = pneg %p35
        $region38: #{_lambda_.7} parent=35 // pred_check_branch
          %208 = sbr.rel (%p206) target = $region40
        $region39: #{_lambda_.7} parent=35 // pred_region
          %s209 = sand.u32 %s25, 1
          %s210 = scalar_lea.sflag [#allocation3], %s209
          %s211 = sand.u32 %s25, 1
          %s212 = smul.addr %s211, 8
          %s213 = scalar_lea.vmem [#allocation2], %s212
          %s215 = ssub.s32 128, 128
          %216 = vsyncadd %s210, %s215
          %s217 = smul.addr %s15, 128
          %s218 = scalar_lea.hbm %s0, %s217
          %s220 = sshll.u32 %s213, 4
          %s221 = int_to_ptr.vmem [resolvable:$true] %s220
          %223 = dma.hbm_to_vmem [thread:$0]  %s218, 128, %s221, %s210
        $region40: #{_lambda_.7} parent=35 // pred_fallthru
          _
      $region36: #{_lambda_.7} parent=5 // pred_fallthru
        _
      %p224 = scmp.le.s32.totalorder 1, %s15
      %p225 = scmp.lt.s32.totalorder %s15, 3
      %p226 = pnand %p224, %p225
      %p227 = pneg %p226
      // Predicated region
      $region41: #{_lambda_.7} parent=5 // pred_check
        _
      $region42: #{_lambda_.7} parent=5 // pred_check_branch
        %229 = sbr.rel (%p226) target = $region44
      $region43: #{_lambda_.7} parent=5 // pred_region
        %s230 = ssub.s32 %s15, 1
        %s231 = sand.u32 %s28, 1
        %s232 = scalar_lea.sflag [#allocation3], %s231
        %s233 = sand.u32 %s28, 1
        %s234 = smul.addr %s233, 8
        %s235 = scalar_lea.vmem [#allocation2], %s234
        // Predicated region
        $region45: #{_lambda_.7} parent=43 // pred_check
          %p236 = pneg %p41
        $region46: #{_lambda_.7} parent=43 // pred_check_branch
          %238 = sbr.rel (%p236) target = $region48
        $region47: #{_lambda_.7} parent=43 // pred_region
          %239 = dma.done %s232, 128
        $region48: #{_lambda_.7} parent=43 // pred_fallthru
          _
        %s240 = sand.u32 %s28, 1
        %s241 = scalar_lea.sflag [#allocation3], %s240
        %s242 = sand.u32 %s28, 1
        %s243 = smul.addr %s242, 8
        %s244 = scalar_lea.vmem [#allocation2], %s243
        %p245 = pneg %p41
        %p246 = pneg %p38
        %p247 = pneg %p62
        %p248 = pneg %p59
        %p249 = pneg %p83
        %p250 = pneg %p80
        %p251 = pneg %p104
        %p252 = pneg %p101
        %p253 = pneg %p125
        %p254 = pneg %p122
        %p255 = pneg %p146
        %p256 = pneg %p143
        %p257 = pneg %p172
        %p258 = pneg %p169
        %p259 = scmp.lt.s32.totalorder %s20, 1
        %s260 = scalar_select %p259, %s20, 1
        %s261 = smul.addr %s260, 4
        %s262 = scalar_lea.vmem %s6, %s261
        %p263 = scmp.lt.s32.totalorder %s20, 1
        %s264 = scalar_select %p263, %s20, 1
        %s265 = smul.addr %s264, 4
        %s266 = scalar_lea.vmem %s6, %s265
        %v268 = vld [vmem:[%s235] sm:$0xff]
        %v269 = vpack.c.bf16 %v268, %v268
        %v270 = vld [vmem:[%s1] sm:$0xf]
        %v271 = vld [vmem:[%s2] sm:$0x1]
        %v273 = vlaneseq
        %v274 = vshrl.u32 %v273, 7
        %v275 = vsub.s32 0, %v274
        %v276 = vrot.slane %v271, %v275
        %vm278 = vcmask 64512
        %v280 = vsel %vm278, %v269, 0
        %vm282 = vcmask 1043456
        %v284 = vsel %vm282, %v270, 0
        %286 = vmatprep.subr.bf16.mxu0 0
        %287 = vmatpush1.bf16.msra.mxu0 0
        %288 = vmatprep.subr.bf16.mxu0 0
        %289 = vmatpush1.bf16.msra.mxu0 0
        %290 = vmatprep.subr.bf16.mxu0 0
        %291 = vmatpush1.bf16.msra.mxu0 0
        %292 = vmatprep.subr.bf16.mxu0 0
        %293 = vmatpush1.bf16.msra.mxu0 0
        %294 = vmatprep.subr.bf16.mxu0 0
        %295 = vmatpush1.bf16.msra.mxu0 0
        %296 = vmatprep.subr.bf16.mxu0 0
        %297 = vmatpush1.bf16.msra.mxu0 0
        %298 = vmatprep.subr.bf16.mxu0 0
        %299 = vmatpush1.bf16.msra.mxu0 0
        %300 = vmatprep.subr.bf16.mxu0 0
        %301 = vmatpush1.bf16.msra.mxu0 %v284
        %302 = vmatprep.subr.bf16.mxu0 0
        %303 = vmatpush2.bf16.msra.mxu0 0
        %304 = vmatprep.subr.bf16.mxu0 0
        %305 = vmatpush2.bf16.msra.mxu0 0
        %306 = vmatprep.subr.bf16.mxu0 0
        %307 = vmatpush2.bf16.msra.mxu0 0
        %308 = vmatprep.subr.bf16.mxu0 0
        %309 = vmatpush2.bf16.msra.mxu0 0
        %310 = vmatprep.subr.bf16.mxu0 0
        %311 = vmatpush2.bf16.msra.mxu0 0
        %312 = vmatprep.subr.bf16.mxu0 0
        %313 = vmatpush2.bf16.msra.mxu0 0
        %314 = vmatprep.subr.bf16.mxu0 0
        %315 = vmatpush2.bf16.msra.mxu0 0
        %316 = vmatprep.subr.bf16.mxu0 0
        %317 = vmatpush2.bf16.msra.mxu0 0
        %318 = vmatprep.mubr.bf16.mxu0 0
        %319 = vmatmul.mubr.bf16.gmra.mxu0 %v280
        %v320 = vpop.f32.mrf.mxu0
        %v321 = vadd.f32 %v276, %v320
        %v322 = vpop.f32.mrf.mxu0
        %v323 = vpop.f32.mrf.mxu0
        %v324 = vpop.f32.mrf.mxu0
        %325 = vdwg.mxu0
        %v326 = vmax.f32 %v321, 0.0
        %v327 = vpack.c.bf16 %v326, %v326
        %v328 = vld [vmem:[%s3] sm:$0xf]
        %v329 = vld [vmem:[%s3 + $0x4] sm:$0xf]
        %v330 = vld [vmem:[%s3 + $0x8] sm:$0xf]
        %v331 = vld [vmem:[%s3 + $0xc] sm:$0xf]
        %v332 = vld [vmem:[%s4] sm:$0x1]
        %v334 = vlaneseq
        %v335 = vshrl.u32 %v334, 7
        %v336 = vsub.s32 0, %v335
        %v337 = vrot.slane %v332, %v336
        %v343 = vunpack.c.l.b16 %v328
        %v344 = vunpack.c.l.b16 %v329
        %v345 = vunpack.c.l.b16 %v330
        %v346 = vunpack.c.l.b16 %v331
        %v347 = vpack.c.b16 %v344, %v343
        %v348 = vpack.c.b16 %v346, %v345
        %vm351 = vcmask 261120
        %v353 = vsel %vm351, %v327, 0
        %355 = vmatprep.subr.bf16.mxu0 0
        %356 = vmatpush1.bf16.msra.mxu0 0
        %357 = vmatprep.subr.bf16.mxu0 0
        %358 = vmatpush1.bf16.msra.mxu0 0
        %359 = vmatprep.subr.bf16.mxu0 0
        %360 = vmatpush1.bf16.msra.mxu0 0
        %361 = vmatprep.subr.bf16.mxu0 0
        %362 = vmatpush1.bf16.msra.mxu0 0
        %363 = vmatprep.subr.bf16.mxu0 0
        %364 = vmatpush1.bf16.msra.mxu0 0
        %365 = vmatprep.subr.bf16.mxu0 0
        %366 = vmatpush1.bf16.msra.mxu0 0
        %367 = vmatprep.subr.bf16.mxu0 0
        %368 = vmatpush1.bf16.msra.mxu0 %v348
        %369 = vmatprep.subr.bf16.mxu0 0
        %370 = vmatpush1.bf16.msra.mxu0 %v347
        %371 = vmatprep.subr.bf16.mxu0 0
        %372 = vmatpush2.bf16.msra.mxu0 0
        %373 = vmatprep.subr.bf16.mxu0 0
        %374 = vmatpush2.bf16.msra.mxu0 0
        %375 = vmatprep.subr.bf16.mxu0 0
        %376 = vmatpush2.bf16.msra.mxu0 0
        %377 = vmatprep.subr.bf16.mxu0 0
        %378 = vmatpush2.bf16.msra.mxu0 0
        %379 = vmatprep.subr.bf16.mxu0 0
        %380 = vmatpush2.bf16.msra.mxu0 0
        %381 = vmatprep.subr.bf16.mxu0 0
        %382 = vmatpush2.bf16.msra.mxu0 0
        %383 = vmatprep.subr.bf16.mxu0 0
        %384 = vmatpush2.bf16.msra.mxu0 0
        %385 = vmatprep.subr.bf16.mxu0 0
        %386 = vmatpush2.bf16.msra.mxu0 0
        %387 = vmatprep.mubr.bf16.mxu0 0
        %388 = vmatmul.mubr.bf16.gmra.mxu0 %v353
        %v389 = vpop.f32.mrf.mxu0
        %v390 = vadd.f32 %v337, %v389
        %v391 = vpop.f32.mrf.mxu0
        %v392 = vpop.f32.mrf.mxu0
        %v393 = vpop.f32.mrf.mxu0
        %394 = vdwg.mxu0
        %v395 = vmax.f32 %v390, 0.0
        %v396 = vmul.f32 %v395, 5.656854
        %v397 = vld [vmem:[%s5] sm:$0xff]
        %v398 = vadd.f32 %v396, %v397
        %v399 = vpack.c.bf16 %v398, %v398
        %vm400 = vcmask 257024
        %401 = vst.msk [vmem:[%s266] sm:$0xf] %vm400, %v399
        %p402 = scmp.lt.s32.totalorder %s20, 1
        %s403 = scalar_select %p402, %s20, 1
        %s404 = smul.addr %s403, 4
        %s405 = scalar_lea.vmem %s6, %s404
        // Predicated region
        $region49: #{_lambda_.7} parent=43 // pred_check
          %p406 = pneg %p169
        $region50: #{_lambda_.7} parent=43 // pred_check_branch
          %408 = sbr.rel (%p406) target = $region52
        $region51: #{_lambda_.7} parent=43 // pred_region
          _
        $region52: #{_lambda_.7} parent=43 // pred_fallthru
          _
      $region44: #{_lambda_.7} parent=5 // pred_fallthru
        _
      %p409 = scmp.le.s32.totalorder 2, %s15
      // Predicated region
      $region53: #{_lambda_.7} parent=5 // pred_check
        %p410 = pneg %p409
      $region54: #{_lambda_.7} parent=5 // pred_check_branch
        %412 = sbr.rel (%p410) target = $region56
      $region55: #{_lambda_.7} parent=5 // pred_region
        %s413 = ssub.s32 %s15, 2
        // Predicated region
        $region57: #{_lambda_.7} parent=55 // pred_check
          %p414 = pneg %p175
        $region58: #{_lambda_.7} parent=55 // pred_check_branch
          %416 = sbr.rel (%p414) target = $region60
        $region59: #{_lambda_.7} parent=55 // pred_region
          %p417 = scmp.lt.s32.totalorder %s21, 1
          %s418 = scalar_select %p417, %s21, 1
          %s419 = smul.addr %s418, 4
          %s420 = scalar_lea.vmem %s6, %s419
        $region60: #{_lambda_.7} parent=55 // pred_fallthru
          _
      $region56: #{_lambda_.7} parent=5 // pred_fallthru
        _
    $region6: #{_lambda_.7} parent=1 // loop_footer
      %s19 = sadd.s32 1, %s15
    $region7: #{_lambda_.7} parent=1 // loop_footer_branch
      %14 = sbr.rel target = $region3
    $region8: #{_lambda_.7} parent=1 // loop_exit
      _
    %421 = vsyncpa [#allocation3], 1
    %s422 = scalar_lea.sflag [#allocation3], 1
    %423 = vsyncpa %s422, 1

// kernel: _lambda_.10
$region0: #{_lambda_.10}
  #allocation0 [shape = 'u32[]', space=smem, size = 0x4, offset = 0x4, fixed_abs, tag = 'smem constant byte address 0x4 - core index']
  #allocation1 [shape = 'u32[144,128]{1,0:T(1,128)}', space=vmem, size = 0x12000, scoped, tag = 'internal scratch']
  #allocation2 [shape = 'f32[10,32]{1,0:T(8,128)}', space=vmem, size = 0x2000, scoped, tag = 'scratch operand']
  #allocation3 [shape = 'f32[10,128]{1,0:T(8,128)}', space=vmem, size = 0x2000, scoped, tag = 'scratch operand']
  %s0 = inlined_call_operand.vmem [shape: bf16[2,8,32], index: 0, kind: input, shape index: {}]
  %s1 = inlined_call_operand.vmem [shape: f32[1,32], index: 1, kind: input, shape index: {}]
  %s2 = inlined_call_operand.vmem [shape: f32[1,32], index: 2, kind: input, shape index: {}, may-alias: {2,6}]
  %s3 = inlined_call_operand.vmem [shape: bf16[3,32,128], index: 3, kind: input, shape index: {}]
  %s4 = inlined_call_operand.vmem [shape: f32[1,128], index: 4, kind: input, shape index: {}]
  %s5 = inlined_call_operand.vmem [shape: bf16[3,128,32], index: 5, kind: input, shape index: {}]
  %s6 = inlined_call_operand.vmem [shape: f32[1,32], index: 6, kind: input, shape index: {}, may-alias: {2,6}]
  %s7 = inlined_call_operand.vmem [shape: bf16[2,8,32], index: 7, kind: output, shape index: {}]
  %s8 = sld [smem:[#allocation0]]
  $region61: #{_lambda_.10} parent=0
    _
  %s10 = ssub.s32 1, %s8
  %s11 = scalar_select 0, %s10, %s8
  loop: start=0, step=1, limit=4
  $region2: #{_lambda_.10} parent=0 // loop_pre_header
    _
  $region3: #{_lambda_.10} parent=0 // loop_header
    %s13 = sphi 0, %s17
    %p14 = scmp.ge.s32.totalorder %s13, 4
    %s23 = sphi 0, %s25
    %s26 = sphi 0, %s23
    %s27 = sphi 0, %s26
    %s43 = sphi 0, %s27
    %s47 = sphi 0, %s47
    %s49 = sphi 0, %s47
    %s50 = sphi 0, %s49
    %s64 = sphi 0, %s50
    %s68 = sphi 0, %s68
    %s70 = sphi 0, %s68
    %s71 = sphi 0, %s70
    %s85 = sphi 0, %s71
    %s89 = sphi 0, %s89
    %s91 = sphi 0, %s89
    %s92 = sphi 0, %s91
    %s106 = sphi 0, %s92
    %s110 = sphi 0, %s110
    %s112 = sphi 0, %s110
    %s113 = sphi 0, %s112
    %s127 = sphi 0, %s113
    %s131 = sphi 0, %s131
    %s133 = sphi 0, %s131
    %s134 = sphi 0, %s133
    %s148 = sphi 0, %s134
    %s152 = sphi 0, %s152
    %s154 = sphi 0, %s152
    %s155 = sphi 0, %s154
    %s169 = sphi 0, %s155
    %s175 = sphi 0, %s177
    %s178 = sphi 0, %s175
    %s179 = sphi 0, %s178
    %s195 = sphi 0, %s179
  $region4: #{_lambda_.10} parent=0 // loop_header_branch
    %16 = sbr.rel (%p14) target = $region8
  $region5: #{_lambda_.10} parent=0 // loop_body
    %s18 = ssub.s32 %s13, 1
    %s19 = ssub.s32 %s13, 2
    %s20 = sadd.s32 %s13, 1
    %s21 = ssub.s32 %s13, %s20
    %p22 = scmp.eq.s32.totalorder %s21, 0
    %s24 = sadd.s32 %s23, 1
    %s25 = scalar_select %p22, %s23, %s24
    %p28 = pneg %p22
    %p29 = scmp.eq.s32.totalorder %s13, 1
    %p30 = por %p28, %p29
    %p31 = scmp.ne.s32.totalorder %s23, %s26
    %p32 = scmp.eq.s32.totalorder %s13, 0
    %p33 = por %p31, %p32
    %p34 = scmp.ne.s32.totalorder %s23, %s26
    %p35 = scmp.eq.s32.totalorder %s18, 1
    %p36 = por %p34, %p35
    %p37 = scmp.ne.s32.totalorder %s26, %s27
    %p38 = scmp.eq.s32.totalorder %s18, 0
    %p39 = por %p37, %p38
    %p40 = scmp.ne.s32.totalorder %s26, %s27
    %p41 = scmp.eq.s32.totalorder %s19, 1
    %p42 = por %p40, %p41
    %p44 = scmp.ne.s32.totalorder %s27, %s43
    %p45 = scmp.eq.s32.totalorder %s19, 0
    %p46 = por %p44, %p45
    %s48 = sadd.s32 %s47, 1
    %p51 = scmp.eq.s32.totalorder %s13, 1
    %p52 = scmp.ne.s32.totalorder %s47, %s49
    %p53 = scmp.eq.s32.totalorder %s13, 0
    %p54 = por %p52, %p53
    %p55 = scmp.ne.s32.totalorder %s47, %s49
    %p56 = scmp.eq.s32.totalorder %s18, 1
    %p57 = por %p55, %p56
    %p58 = scmp.ne.s32.totalorder %s49, %s50
    %p59 = scmp.eq.s32.totalorder %s18, 0
    %p60 = por %p58, %p59
    %p61 = scmp.ne.s32.totalorder %s49, %s50
    %p62 = scmp.eq.s32.totalorder %s19, 1
    %p63 = por %p61, %p62
    %p65 = scmp.ne.s32.totalorder %s50, %s64
    %p66 = scmp.eq.s32.totalorder %s19, 0
    %p67 = por %p65, %p66
    %s69 = sadd.s32 %s68, 1
    %p72 = scmp.eq.s32.totalorder %s13, 1
    %p73 = scmp.ne.s32.totalorder %s68, %s70
    %p74 = scmp.eq.s32.totalorder %s13, 0
    %p75 = por %p73, %p74
    %p76 = scmp.ne.s32.totalorder %s68, %s70
    %p77 = scmp.eq.s32.totalorder %s18, 1
    %p78 = por %p76, %p77
    %p79 = scmp.ne.s32.totalorder %s70, %s71
    %p80 = scmp.eq.s32.totalorder %s18, 0
    %p81 = por %p79, %p80
    %p82 = scmp.ne.s32.totalorder %s70, %s71
    %p83 = scmp.eq.s32.totalorder %s19, 1
    %p84 = por %p82, %p83
    %p86 = scmp.ne.s32.totalorder %s71, %s85
    %p87 = scmp.eq.s32.totalorder %s19, 0
    %p88 = por %p86, %p87
    %s90 = sadd.s32 %s89, 1
    %p93 = scmp.eq.s32.totalorder %s13, 1
    %p94 = scmp.ne.s32.totalorder %s89, %s91
    %p95 = scmp.eq.s32.totalorder %s13, 0
    %p96 = por %p94, %p95
    %p97 = scmp.ne.s32.totalorder %s89, %s91
    %p98 = scmp.eq.s32.totalorder %s18, 1
    %p99 = por %p97, %p98
    %p100 = scmp.ne.s32.totalorder %s91, %s92
    %p101 = scmp.eq.s32.totalorder %s18, 0
    %p102 = por %p100, %p101
    %p103 = scmp.ne.s32.totalorder %s91, %s92
    %p104 = scmp.eq.s32.totalorder %s19, 1
    %p105 = por %p103, %p104
    %p107 = scmp.ne.s32.totalorder %s92, %s106
    %p108 = scmp.eq.s32.totalorder %s19, 0
    %p109 = por %p107, %p108
    %s111 = sadd.s32 %s110, 1
    %p114 = scmp.eq.s32.totalorder %s13, 1
    %p115 = scmp.ne.s32.totalorder %s110, %s112
    %p116 = scmp.eq.s32.totalorder %s13, 0
    %p117 = por %p115, %p116
    %p118 = scmp.ne.s32.totalorder %s110, %s112
    %p119 = scmp.eq.s32.totalorder %s18, 1
    %p120 = por %p118, %p119
    %p121 = scmp.ne.s32.totalorder %s112, %s113
    %p122 = scmp.eq.s32.totalorder %s18, 0
    %p123 = por %p121, %p122
    %p124 = scmp.ne.s32.totalorder %s112, %s113
    %p125 = scmp.eq.s32.totalorder %s19, 1
    %p126 = por %p124, %p125
    %p128 = scmp.ne.s32.totalorder %s113, %s127
    %p129 = scmp.eq.s32.totalorder %s19, 0
    %p130 = por %p128, %p129
    %s132 = sadd.s32 %s131, 1
    %p135 = scmp.eq.s32.totalorder %s13, 1
    %p136 = scmp.ne.s32.totalorder %s131, %s133
    %p137 = scmp.eq.s32.totalorder %s13, 0
    %p138 = por %p136, %p137
    %p139 = scmp.ne.s32.totalorder %s131, %s133
    %p140 = scmp.eq.s32.totalorder %s18, 1
    %p141 = por %p139, %p140
    %p142 = scmp.ne.s32.totalorder %s133, %s134
    %p143 = scmp.eq.s32.totalorder %s18, 0
    %p144 = por %p142, %p143
    %p145 = scmp.ne.s32.totalorder %s133, %s134
    %p146 = scmp.eq.s32.totalorder %s19, 1
    %p147 = por %p145, %p146
    %p149 = scmp.ne.s32.totalorder %s134, %s148
    %p150 = scmp.eq.s32.totalorder %s19, 0
    %p151 = por %p149, %p150
    %s153 = sadd.s32 %s152, 1
    %p156 = scmp.eq.s32.totalorder %s13, 1
    %p157 = scmp.ne.s32.totalorder %s152, %s154
    %p158 = scmp.eq.s32.totalorder %s13, 0
    %p159 = por %p157, %p158
    %p160 = scmp.ne.s32.totalorder %s152, %s154
    %p161 = scmp.eq.s32.totalorder %s18, 1
    %p162 = por %p160, %p161
    %p163 = scmp.ne.s32.totalorder %s154, %s155
    %p164 = scmp.eq.s32.totalorder %s18, 0
    %p165 = por %p163, %p164
    %p166 = scmp.ne.s32.totalorder %s154, %s155
    %p167 = scmp.eq.s32.totalorder %s19, 1
    %p168 = por %p166, %p167
    %p170 = scmp.ne.s32.totalorder %s155, %s169
    %p171 = scmp.eq.s32.totalorder %s19, 0
    %p172 = por %p170, %p171
    %s173 = ssub.s32 %s13, %s20
    %p174 = scmp.eq.s32.totalorder %s173, 0
    %s176 = sadd.s32 %s175, 1
    %s177 = scalar_select %p174, %s175, %s176
    %p180 = pneg %p174
    %p181 = scmp.eq.s32.totalorder %s13, 1
    %p182 = por %p180, %p181
    %p183 = scmp.ne.s32.totalorder %s175, %s178
    %p184 = scmp.eq.s32.totalorder %s13, 0
    %p185 = por %p183, %p184
    %p186 = scmp.ne.s32.totalorder %s175, %s178
    %p187 = scmp.eq.s32.totalorder %s18, 1
    %p188 = por %p186, %p187
    %p189 = scmp.ne.s32.totalorder %s178, %s179
    %p190 = scmp.eq.s32.totalorder %s18, 0
    %p191 = por %p189, %p190
    %p192 = scmp.ne.s32.totalorder %s178, %s179
    %p193 = scmp.eq.s32.totalorder %s19, 1
    %p194 = por %p192, %p193
    %p196 = scmp.ne.s32.totalorder %s179, %s195
    %p197 = scmp.eq.s32.totalorder %s19, 0
    %p198 = por %p196, %p197
    %p199 = scmp.le.s32.totalorder 1, %s13
    %p200 = scmp.lt.s32.totalorder %s13, 3
    %p201 = pnand %p199, %p200
    %p202 = pneg %p201
    // Predicated region
    $region9: #{_lambda_.10} parent=5 // pred_check
      _
    $region10: #{_lambda_.10} parent=5 // pred_check_branch
      %204 = sbr.rel (%p201) target = $region12
    $region11: #{_lambda_.10} parent=5 // pred_region
      %s205 = ssub.s32 %s13, 1
      // Predicated region
      $region13: #{_lambda_.10} parent=11 // pred_check
        %p206 = pneg %p60
      $region14: #{_lambda_.10} parent=11 // pred_check_branch
        %208 = sbr.rel (%p206) target = $region16
      $region15: #{_lambda_.10} parent=11 // pred_region
        _
      $region16: #{_lambda_.10} parent=11 // pred_fallthru
        _
      // Predicated region
      $region17: #{_lambda_.10} parent=11 // pred_check
        %p209 = pneg %p81
      $region18: #{_lambda_.10} parent=11 // pred_check_branch
        %211 = sbr.rel (%p209) target = $region20
      $region19: #{_lambda_.10} parent=11 // pred_region
        _
      $region20: #{_lambda_.10} parent=11 // pred_fallthru
        _
      // Predicated region
      $region21: #{_lambda_.10} parent=11 // pred_check
        %p212 = pneg %p102
      $region22: #{_lambda_.10} parent=11 // pred_check_branch
        %214 = sbr.rel (%p212) target = $region24
      $region23: #{_lambda_.10} parent=11 // pred_region
        _
      $region24: #{_lambda_.10} parent=11 // pred_fallthru
        _
      // Predicated region
      $region25: #{_lambda_.10} parent=11 // pred_check
        %p215 = pneg %p123
      $region26: #{_lambda_.10} parent=11 // pred_check_branch
        %217 = sbr.rel (%p215) target = $region28
      $region27: #{_lambda_.10} parent=11 // pred_region
        _
      $region28: #{_lambda_.10} parent=11 // pred_fallthru
        _
      // Predicated region
      $region29: #{_lambda_.10} parent=11 // pred_check
        %p218 = pneg %p144
      $region30: #{_lambda_.10} parent=11 // pred_check_branch
        %220 = sbr.rel (%p218) target = $region32
      $region31: #{_lambda_.10} parent=11 // pred_region
        _
      $region32: #{_lambda_.10} parent=11 // pred_fallthru
        _
      // Predicated region
      $region33: #{_lambda_.10} parent=11 // pred_check
        %p221 = pneg %p165
      $region34: #{_lambda_.10} parent=11 // pred_check_branch
        %223 = sbr.rel (%p221) target = $region36
      $region35: #{_lambda_.10} parent=11 // pred_region
        _
      $region36: #{_lambda_.10} parent=11 // pred_fallthru
        _
    $region12: #{_lambda_.10} parent=5 // pred_fallthru
      _
    %p224 = scmp.lt.s32.totalorder %s13, 2
    // Predicated region
    $region37: #{_lambda_.10} parent=5 // pred_check
      %p225 = pneg %p224
    $region38: #{_lambda_.10} parent=5 // pred_check_branch
      %227 = sbr.rel (%p225) target = $region40
    $region39: #{_lambda_.10} parent=5 // pred_region
      // Predicated region
      $region41: #{_lambda_.10} parent=39 // pred_check
        %p228 = pneg %p33
      $region42: #{_lambda_.10} parent=39 // pred_check_branch
        %230 = sbr.rel (%p228) target = $region44
      $region43: #{_lambda_.10} parent=39 // pred_region
        %p231 = scmp.lt.s32.totalorder %s13, 1
        %s232 = scalar_select %p231, %s13, 1
        %s233 = smul.addr %s232, 4
        %s234 = scalar_lea.vmem %s0, %s233
      $region44: #{_lambda_.10} parent=39 // pred_fallthru
        _
    $region40: #{_lambda_.10} parent=5 // pred_fallthru
      _
    %p235 = scmp.le.s32.totalorder 1, %s13
    %p236 = scmp.lt.s32.totalorder %s13, 3
    %p237 = pnand %p235, %p236
    %p238 = pneg %p237
    // Predicated region
    $region45: #{_lambda_.10} parent=5 // pred_check
      _
    $region46: #{_lambda_.10} parent=5 // pred_check_branch
      %240 = sbr.rel (%p237) target = $region48
    $region47: #{_lambda_.10} parent=5 // pred_region
      %s241 = ssub.s32 %s13, 1
      %p242 = scmp.lt.s32.totalorder %s18, 1
      %s243 = scalar_select %p242, %s18, 1
      %s244 = smul.addr %s243, 4
      %s245 = scalar_lea.vmem %s0, %s244
      %p246 = pneg %p39
      %p247 = pneg %p36
      %p248 = pneg %p60
      %p249 = pneg %p57
      %p250 = pneg %p81
      %p251 = pneg %p78
      %p252 = pneg %p102
      %p253 = pneg %p99
      %p254 = pneg %p123
      %p255 = pneg %p120
      %p256 = pneg %p144
      %p257 = pneg %p141
      %p258 = pneg %p165
      %p259 = pneg %p162
      %p260 = pneg %p191
      %p261 = pneg %p188
      %p262 = scmp.lt.s32.totalorder %s18, 1
      %s263 = scalar_select %p262, %s18, 1
      %s264 = smul.addr %s263, 4
      %s265 = scalar_lea.vmem %s7, %s264
      %p266 = scmp.lt.s32.totalorder %s18, 1
      %s267 = scalar_select %p266, %s18, 1
      %s268 = smul.addr %s267, 4
      %s269 = scalar_lea.vmem %s0, %s268
      %p270 = scmp.lt.s32.totalorder %s18, 1
      %s271 = scalar_select %p270, %s18, 1
      %s272 = smul.addr %s271, 4
      %s273 = scalar_lea.vmem %s7, %s272
      %v275 = vld [vmem:[%s269] sm:$0xf]
      %v276 = vunpack.c.l.bf16 %v275
      %vm277 = vcmask 261120
      %v278 = vsel %vm277, %v276, 0.0
      %279 = vadd.xlane.f32.xlu0 %v278
      %v280 = vpop.xlane.xlu0 %279
      %v281 = vrcp.pop 32.0
      %v282 = vmul.f32 %v280, %v281
      %v283 = vsub.f32 %v276, %v282
      %v284 = vmul.f32 %v283, %v283
      %v285 = vsel %vm277, %v284, 0.0
      %286 = vadd.xlane.f32.xlu0 %v285
      %v287 = vpop.xlane.xlu0 %286
      %v288 = vmul.f32 %v287, %v281
      %v289 = vadd.f32 %v288, 1e-05
      %v290 = vrsqrt.pop %v289
      %v291 = vmul.f32 %v283, %v290
      %v292 = vld [vmem:[%s1] sm:$0x1]
      %v294 = vlaneseq
      %v295 = vshrl.u32 %v294, 7
      %v296 = vsub.s32 0, %v295
      %v297 = vrot.slane %v292, %v296
      %v299 = vmul.f32 %v291, %v297
      %v300 = vld [vmem:[%s2] sm:$0x1]
      %v302 = vlaneseq
      %v303 = vshrl.u32 %v302, 7
      %v304 = vsub.s32 0, %v303
      %v305 = vrot.slane %v300, %v304
      %v307 = vadd.f32 %v299, %v305
      %vm308 = vcmask 253952
      %309 = vst.msk [vmem:[#allocation2] sm:$0x1] %vm308, 0.0
      %310 = vst.msk [vmem:[#allocation2 + $0x9] sm:$0x1] %vm308, 0.0
      %311 = vst.msk [vmem:[#allocation2 + $0x1] sm:$0xff] %vm277, %v307
      %v312 = vld [vmem:[#allocation2] sm:$0xff]
      %v313 = vpack.c.bf16 %v312, %v312
      %v314 = vld [vmem:[%s3] sm:$0xf]
      %v315 = vld [vmem:[%s3 + $0x4] sm:$0xf]
      %v316 = vld [vmem:[%s3 + $0x8] sm:$0xf]
      %v317 = vld [vmem:[%s3 + $0xc] sm:$0xf]
      %v318 = vld [vmem:[#allocation2 + $0x1] sm:$0xff]
      %v319 = vpack.c.bf16 %v318, %v318
      %s320 = scalar_lea.vmem %s3, 16
      %v321 = vld [vmem:[%s320] sm:$0xf]
      %v322 = vld [vmem:[%s320 + $0x4] sm:$0xf]
      %v323 = vld [vmem:[%s320 + $0x8] sm:$0xf]
      %v324 = vld [vmem:[%s320 + $0xc] sm:$0xf]
      %v329 = vunpack.c.l.b16 %v321
      %v330 = vunpack.c.l.b16 %v322
      %v331 = vunpack.c.l.b16 %v323
      %v332 = vunpack.c.l.b16 %v324
      %v333 = vpack.c.b16 %v330, %v329
      %v334 = vpack.c.b16 %v332, %v331
      %v338 = vsel %vm277, %v319, 0
      %340 = vmatprep.subr.bf16.mxu0 0
      %341 = vmatpush1.bf16.msra.mxu0 0
      %342 = vmatprep.subr.bf16.mxu0 0
      %343 = vmatpush1.bf16.msra.mxu0 0
      %344 = vmatprep.subr.bf16.mxu0 0
      %345 = vmatpush1.bf16.msra.mxu0 0
      %346 = vmatprep.subr.bf16.mxu0 0
      %347 = vmatpush1.bf16.msra.mxu0 0
      %348 = vmatprep.subr.bf16.mxu0 0
      %349 = vmatpush1.bf16.msra.mxu0 0
      %350 = vmatprep.subr.bf16.mxu0 0
      %351 = vmatpush1.bf16.msra.mxu0 0
      %352 = vmatprep.subr.bf16.mxu0 0
      %353 = vmatpush1.bf16.msra.mxu0 %v334
      %354 = vmatprep.subr.bf16.mxu0 0
      %355 = vmatpush1.bf16.msra.mxu0 %v333
      %356 = vmatprep.subr.bf16.mxu0 0
      %357 = vmatpush2.bf16.msra.mxu0 0
      %358 = vmatprep.subr.bf16.mxu0 0
      %359 = vmatpush2.bf16.msra.mxu0 0
      %360 = vmatprep.subr.bf16.mxu0 0
      %361 = vmatpush2.bf16.msra.mxu0 0
      %362 = vmatprep.subr.bf16.mxu0 0
      %363 = vmatpush2.bf16.msra.mxu0 0
      %364 = vmatprep.subr.bf16.mxu0 0
      %365 = vmatpush2.bf16.msra.mxu0 0
      %366 = vmatprep.subr.bf16.mxu0 0
      %367 = vmatpush2.bf16.msra.mxu0 0
      %368 = vmatprep.subr.bf16.mxu0 0
      %369 = vmatpush2.bf16.msra.mxu0 0
      %370 = vmatprep.subr.bf16.mxu0 0
      %371 = vmatpush2.bf16.msra.mxu0 0
      %372 = vmatprep.mubr.bf16.mxu0 0
      %373 = vmatmul.mubr.bf16.gmra.mxu0 %v338
      %v374 = vpop.f32.mrf.mxu0
      %v375 = vadd.f32 0.0, %v374
      %v376 = vpop.f32.mrf.mxu0
      %v377 = vpop.f32.mrf.mxu0
      %v378 = vpop.f32.mrf.mxu0
      %379 = vdwg.mxu0
      %v384 = vunpack.c.l.b16 %v314
      %v385 = vunpack.c.l.b16 %v315
      %v386 = vunpack.c.l.b16 %v316
      %v387 = vunpack.c.l.b16 %v317
      %v388 = vpack.c.b16 %v385, %v384
      %v389 = vpack.c.b16 %v387, %v386
      %v393 = vsel %vm277, %v313, 0
      %395 = vmatprep.subr.bf16.mxu0 0
      %396 = vmatpush1.bf16.msra.mxu0 0
      %397 = vmatprep.subr.bf16.mxu0 0
      %398 = vmatpush1.bf16.msra.mxu0 0
      %399 = vmatprep.subr.bf16.mxu0 0
      %400 = vmatpush1.bf16.msra.mxu0 0
      %401 = vmatprep.subr.bf16.mxu0 0
      %402 = vmatpush1.bf16.msra.mxu0 0
      %403 = vmatprep.subr.bf16.mxu0 0
      %404 = vmatpush1.bf16.msra.mxu0 0
      %405 = vmatprep.subr.bf16.mxu0 0
      %406 = vmatpush1.bf16.msra.mxu0 0
      %407 = vmatprep.subr.bf16.mxu0 0
      %408 = vmatpush1.bf16.msra.mxu0 %v389
      %409 = vmatprep.subr.bf16.mxu0 0
      %410 = vmatpush1.bf16.msra.mxu0 %v388
      %411 = vmatprep.subr.bf16.mxu0 0
      %412 = vmatpush2.bf16.msra.mxu0 0
      %413 = vmatprep.subr.bf16.mxu0 0
      %414 = vmatpush2.bf16.msra.mxu0 0
      %415 = vmatprep.subr.bf16.mxu0 0
      %416 = vmatpush2.bf16.msra.mxu0 0
      %417 = vmatprep.subr.bf16.mxu0 0
      %418 = vmatpush2.bf16.msra.mxu0 0
      %419 = vmatprep.subr.bf16.mxu0 0
      %420 = vmatpush2.bf16.msra.mxu0 0
      %421 = vmatprep.subr.bf16.mxu0 0
      %422 = vmatpush2.bf16.msra.mxu0 0
      %423 = vmatprep.subr.bf16.mxu0 0
      %424 = vmatpush2.bf16.msra.mxu0 0
      %425 = vmatprep.subr.bf16.mxu0 0
      %426 = vmatpush2.bf16.msra.mxu0 0
      %427 = vmatprep.mubr.bf16.mxu0 0
      %428 = vmatmul.mubr.bf16.gmra.mxu0 %v393
      %v429 = vpop.f32.mrf.mxu0
      %v430 = vadd.f32 %v375, %v429
      %v431 = vpop.f32.mrf.mxu0
      %v432 = vpop.f32.mrf.mxu0
      %v433 = vpop.f32.mrf.mxu0
      %434 = vdwg.mxu0
      %v435 = vld [vmem:[#allocation2 + $0x2] sm:$0xff]
      %v436 = vpack.c.bf16 %v435, %v435
      %s437 = scalar_lea.vmem %s3, 32
      %v438 = vld [vmem:[%s437] sm:$0xf]
      %v439 = vld [vmem:[%s437 + $0x4] sm:$0xf]
      %v440 = vld [vmem:[%s437 + $0x8] sm:$0xf]
      %v441 = vld [vmem:[%s437 + $0xc] sm:$0xf]
      %v446 = vunpack.c.l.b16 %v438
      %v447 = vunpack.c.l.b16 %v439
      %v448 = vunpack.c.l.b16 %v440
      %v449 = vunpack.c.l.b16 %v441
      %v450 = vpack.c.b16 %v447, %v446
      %v451 = vpack.c.b16 %v449, %v448
      %v455 = vsel %vm277, %v436, 0
      %457 = vmatprep.subr.bf16.mxu0 0
      %458 = vmatpush1.bf16.msra.mxu0 0
      %459 = vmatprep.subr.bf16.mxu0 0
      %460 = vmatpush1.bf16.msra.mxu0 0
      %461 = vmatprep.subr.bf16.mxu0 0
      %462 = vmatpush1.bf16.msra.mxu0 0
      %463 = vmatprep.subr.bf16.mxu0 0
      %464 = vmatpush1.bf16.msra.mxu0 0
      %465 = vmatprep.subr.bf16.mxu0 0
      %466 = vmatpush1.bf16.msra.mxu0 0
      %467 = vmatprep.subr.bf16.mxu0 0
      %468 = vmatpush1.bf16.msra.mxu0 0
      %469 = vmatprep.subr.bf16.mxu0 0
      %470 = vmatpush1.bf16.msra.mxu0 %v451
      %471 = vmatprep.subr.bf16.mxu0 0
      %472 = vmatpush1.bf16.msra.mxu0 %v450
      %473 = vmatprep.subr.bf16.mxu0 0
      %474 = vmatpush2.bf16.msra.mxu0 0
      %475 = vmatprep.subr.bf16.mxu0 0
      %476 = vmatpush2.bf16.msra.mxu0 0
      %477 = vmatprep.subr.bf16.mxu0 0
      %478 = vmatpush2.bf16.msra.mxu0 0
      %479 = vmatprep.subr.bf16.mxu0 0
      %480 = vmatpush2.bf16.msra.mxu0 0
      %481 = vmatprep.subr.bf16.mxu0 0
      %482 = vmatpush2.bf16.msra.mxu0 0
      %483 = vmatprep.subr.bf16.mxu0 0
      %484 = vmatpush2.bf16.msra.mxu0 0
      %485 = vmatprep.subr.bf16.mxu0 0
      %486 = vmatpush2.bf16.msra.mxu0 0
      %487 = vmatprep.subr.bf16.mxu0 0
      %488 = vmatpush2.bf16.msra.mxu0 0
      %489 = vmatprep.mubr.bf16.mxu0 0
      %490 = vmatmul.mubr.bf16.gmra.mxu0 %v455
      %v491 = vpop.f32.mrf.mxu0
      %v492 = vadd.f32 0.0, %v491
      %v493 = vpop.f32.mrf.mxu0
      %v494 = vpop.f32.mrf.mxu0
      %v495 = vpop.f32.mrf.mxu0
      %496 = vdwg.mxu0
      %v497 = vadd.f32 %v430, %v492
      %v498 = vld [vmem:[%s4] sm:$0x1]
      %v500 = vlaneseq
      %v501 = vshrl.u32 %v500, 7
      %v502 = vsub.s32 0, %v501
      %v503 = vrot.slane %v498, %v502
      %v505 = vadd.f32 %v497, %v503
      %v506 = vmax.f32 %v505, 0.0
      %507 = vst [vmem:[#allocation3] sm:$0x1] 0.0
      %508 = vst [vmem:[#allocation3 + $0x9] sm:$0x1] 0.0
      %509 = vst [vmem:[#allocation3 + $0x1] sm:$0xff] %v506
      %v510 = vld [vmem:[#allocation3] sm:$0xff]
      %v511 = vpack.c.bf16 %v510, %v510
      %v512 = vld [vmem:[%s5] sm:$0xf]
      %v513 = vld [vmem:[%s5 + $0x4] sm:$0xf]
      %v514 = vld [vmem:[%s5 + $0x8] sm:$0xf]
      %v515 = vld [vmem:[%s5 + $0xc] sm:$0xf]
      %v516 = vld [vmem:[%s5 + $0x10] sm:$0xf]
      %v517 = vld [vmem:[%s5 + $0x14] sm:$0xf]
      %v518 = vld [vmem:[%s5 + $0x18] sm:$0xf]
      %v519 = vld [vmem:[%s5 + $0x1c] sm:$0xf]
      %v520 = vld [vmem:[%s5 + $0x20] sm:$0xf]
      %v521 = vld [vmem:[%s5 + $0x24] sm:$0xf]
      %v522 = vld [vmem:[%s5 + $0x28] sm:$0xf]
      %v523 = vld [vmem:[%s5 + $0x2c] sm:$0xf]
      %v524 = vld [vmem:[%s5 + $0x30] sm:$0xf]
      %v525 = vld [vmem:[%s5 + $0x34] sm:$0xf]
      %v526 = vld [vmem:[%s5 + $0x38] sm:$0xf]
      %v527 = vld [vmem:[%s5 + $0x3c] sm:$0xf]
      %v528 = vld [vmem:[#allocation3 + $0x1] sm:$0xff]
      %v529 = vpack.c.bf16 %v528, %v528
      %s530 = scalar_lea.vmem %s5, 64
      %v531 = vld [vmem:[%s530] sm:$0xf]
      %v532 = vld [vmem:[%s530 + $0x4] sm:$0xf]
      %v533 = vld [vmem:[%s530 + $0x8] sm:$0xf]
      %v534 = vld [vmem:[%s530 + $0xc] sm:$0xf]
      %v535 = vld [vmem:[%s530 + $0x10] sm:$0xf]
      %v536 = vld [vmem:[%s530 + $0x14] sm:$0xf]
      %v537 = vld [vmem:[%s530 + $0x18] sm:$0xf]
      %v538 = vld [vmem:[%s530 + $0x1c] sm:$0xf]
      %v539 = vld [vmem:[%s530 + $0x20] sm:$0xf]
      %v540 = vld [vmem:[%s530 + $0x24] sm:$0xf]
      %v541 = vld [vmem:[%s530 + $0x28] sm:$0xf]
      %v542 = vld [vmem:[%s530 + $0x2c] sm:$0xf]
      %v543 = vld [vmem:[%s530 + $0x30] sm:$0xf]
      %v544 = vld [vmem:[%s530 + $0x34] sm:$0xf]
      %v545 = vld [vmem:[%s530 + $0x38] sm:$0xf]
      %v546 = vld [vmem:[%s530 + $0x3c] sm:$0xf]
      %v563 = vunpack.c.l.b16 %v531
      %v564 = vunpack.c.l.b16 %v532
      %v565 = vunpack.c.l.b16 %v533
      %v566 = vunpack.c.l.b16 %v534
      %v567 = vunpack.c.l.b16 %v535
      %v568 = vunpack.c.l.b16 %v536
      %v569 = vunpack.c.l.b16 %v537
      %v570 = vunpack.c.l.b16 %v538
      %v571 = vunpack.c.l.b16 %v539
      %v572 = vunpack.c.l.b16 %v540
      %v573 = vunpack.c.l.b16 %v541
      %v574 = vunpack.c.l.b16 %v542
      %v575 = vunpack.c.l.b16 %v543
      %v576 = vunpack.c.l.b16 %v544
      %v577 = vunpack.c.l.b16 %v545
      %v578 = vunpack.c.l.b16 %v546
      %v579 = vpack.c.b16 %v564, %v563
      %v580 = vpack.c.b16 %v566, %v565
      %v581 = vpack.c.b16 %v568, %v567
      %v582 = vpack.c.b16 %v570, %v569
      %v583 = vpack.c.b16 %v572, %v571
      %v584 = vpack.c.b16 %v574, %v573
      %v585 = vpack.c.b16 %v576, %v575
      %v586 = vpack.c.b16 %v578, %v577
      %595 = vmatprep.subr.bf16.mxu0 0
      %596 = vmatpush1.bf16.msra.mxu0 %v586
      %597 = vmatprep.subr.bf16.mxu0 0
      %598 = vmatpush1.bf16.msra.mxu0 %v585
      %599 = vmatprep.subr.bf16.mxu0 0
      %600 = vmatpush1.bf16.msra.mxu0 %v584
      %601 = vmatprep.subr.bf16.mxu0 0
      %602 = vmatpush1.bf16.msra.mxu0 %v583
      %603 = vmatprep.subr.bf16.mxu0 0
      %604 = vmatpush1.bf16.msra.mxu0 %v582
      %605 = vmatprep.subr.bf16.mxu0 0
      %606 = vmatpush1.bf16.msra.mxu0 %v581
      %607 = vmatprep.subr.bf16.mxu0 0
      %608 = vmatpush1.bf16.msra.mxu0 %v580
      %609 = vmatprep.subr.bf16.mxu0 0
      %610 = vmatpush1.bf16.msra.mxu0 %v579
      %611 = vmatprep.subr.bf16.mxu0 0
      %612 = vmatpush2.bf16.msra.mxu0 0
      %613 = vmatprep.subr.bf16.mxu0 0
      %614 = vmatpush2.bf16.msra.mxu0 0
      %615 = vmatprep.subr.bf16.mxu0 0
      %616 = vmatpush2.bf16.msra.mxu0 0
      %617 = vmatprep.subr.bf16.mxu0 0
      %618 = vmatpush2.bf16.msra.mxu0 0
      %619 = vmatprep.subr.bf16.mxu0 0
      %620 = vmatpush2.bf16.msra.mxu0 0
      %621 = vmatprep.subr.bf16.mxu0 0
      %622 = vmatpush2.bf16.msra.mxu0 0
      %623 = vmatprep.subr.bf16.mxu0 0
      %624 = vmatpush2.bf16.msra.mxu0 0
      %625 = vmatprep.subr.bf16.mxu0 0
      %626 = vmatpush2.bf16.msra.mxu0 0
      %627 = vmatprep.mubr.bf16.mxu0 0
      %628 = vmatmul.mubr.bf16.gmra.mxu0 %v529
      %v629 = vpop.f32.mrf.mxu0
      %v630 = vadd.f32 0.0, %v629
      %v631 = vpop.f32.mrf.mxu0
      %v632 = vpop.f32.mrf.mxu0
      %v633 = vpop.f32.mrf.mxu0
      %634 = vdwg.mxu0
      %v651 = vunpack.c.l.b16 %v512
      %v652 = vunpack.c.l.b16 %v513
      %v653 = vunpack.c.l.b16 %v514
      %v654 = vunpack.c.l.b16 %v515
      %v655 = vunpack.c.l.b16 %v516
      %v656 = vunpack.c.l.b16 %v517
      %v657 = vunpack.c.l.b16 %v518
      %v658 = vunpack.c.l.b16 %v519
      %v659 = vunpack.c.l.b16 %v520
      %v660 = vunpack.c.l.b16 %v521
      %v661 = vunpack.c.l.b16 %v522
      %v662 = vunpack.c.l.b16 %v523
      %v663 = vunpack.c.l.b16 %v524
      %v664 = vunpack.c.l.b16 %v525
      %v665 = vunpack.c.l.b16 %v526
      %v666 = vunpack.c.l.b16 %v527
      %v667 = vpack.c.b16 %v652, %v651
      %v668 = vpack.c.b16 %v654, %v653
      %v669 = vpack.c.b16 %v656, %v655
      %v670 = vpack.c.b16 %v658, %v657
      %v671 = vpack.c.b16 %v660, %v659
      %v672 = vpack.c.b16 %v662, %v661
      %v673 = vpack.c.b16 %v664, %v663
      %v674 = vpack.c.b16 %v666, %v665
      %683 = vmatprep.subr.bf16.mxu0 0
      %684 = vmatpush1.bf16.msra.mxu0 %v674
      %685 = vmatprep.subr.bf16.mxu0 0
      %686 = vmatpush1.bf16.msra.mxu0 %v673
      %687 = vmatprep.subr.bf16.mxu0 0
      %688 = vmatpush1.bf16.msra.mxu0 %v672
      %689 = vmatprep.subr.bf16.mxu0 0
      %690 = vmatpush1.bf16.msra.mxu0 %v671
      %691 = vmatprep.subr.bf16.mxu0 0
      %692 = vmatpush1.bf16.msra.mxu0 %v670
      %693 = vmatprep.subr.bf16.mxu0 0
      %694 = vmatpush1.bf16.msra.mxu0 %v669
      %695 = vmatprep.subr.bf16.mxu0 0
      %696 = vmatpush1.bf16.msra.mxu0 %v668
      %697 = vmatprep.subr.bf16.mxu0 0
      %698 = vmatpush1.bf16.msra.mxu0 %v667
      %699 = vmatprep.subr.bf16.mxu0 0
      %700 = vmatpush2.bf16.msra.mxu0 0
      %701 = vmatprep.subr.bf16.mxu0 0
      %702 = vmatpush2.bf16.msra.mxu0 0
      %703 = vmatprep.subr.bf16.mxu0 0
      %704 = vmatpush2.bf16.msra.mxu0 0
      %705 = vmatprep.subr.bf16.mxu0 0
      %706 = vmatpush2.bf16.msra.mxu0 0
      %707 = vmatprep.subr.bf16.mxu0 0
      %708 = vmatpush2.bf16.msra.mxu0 0
      %709 = vmatprep.subr.bf16.mxu0 0
      %710 = vmatpush2.bf16.msra.mxu0 0
      %711 = vmatprep.subr.bf16.mxu0 0
      %712 = vmatpush2.bf16.msra.mxu0 0
      %713 = vmatprep.subr.bf16.mxu0 0
      %714 = vmatpush2.bf16.msra.mxu0 0
      %715 = vmatprep.mubr.bf16.mxu0 0
      %716 = vmatmul.mubr.bf16.gmra.mxu0 %v511
      %v717 = vpop.f32.mrf.mxu0
      %v718 = vadd.f32 %v630, %v717
      %v719 = vpop.f32.mrf.mxu0
      %v720 = vpop.f32.mrf.mxu0
      %v721 = vpop.f32.mrf.mxu0
      %722 = vdwg.mxu0
      %v723 = vld [vmem:[#allocation3 + $0x2] sm:$0xff]
      %v724 = vpack.c.bf16 %v723, %v723
      %s725 = scalar_lea.vmem %s5, 128
      %v726 = vld [vmem:[%s725] sm:$0xf]
      %v727 = vld [vmem:[%s725 + $0x4] sm:$0xf]
      %v728 = vld [vmem:[%s725 + $0x8] sm:$0xf]
      %v729 = vld [vmem:[%s725 + $0xc] sm:$0xf]
      %v730 = vld [vmem:[%s725 + $0x10] sm:$0xf]
      %v731 = vld [vmem:[%s725 + $0x14] sm:$0xf]
      %v732 = vld [vmem:[%s725 + $0x18] sm:$0xf]
      %v733 = vld [vmem:[%s725 + $0x1c] sm:$0xf]
      %v734 = vld [vmem:[%s725 + $0x20] sm:$0xf]
      %v735 = vld [vmem:[%s725 + $0x24] sm:$0xf]
      %v736 = vld [vmem:[%s725 + $0x28] sm:$0xf]
      %v737 = vld [vmem:[%s725 + $0x2c] sm:$0xf]
      %v738 = vld [vmem:[%s725 + $0x30] sm:$0xf]
      %v739 = vld [vmem:[%s725 + $0x34] sm:$0xf]
      %v740 = vld [vmem:[%s725 + $0x38] sm:$0xf]
      %v741 = vld [vmem:[%s725 + $0x3c] sm:$0xf]
      %v758 = vunpack.c.l.b16 %v726
      %v759 = vunpack.c.l.b16 %v727
      %v760 = vunpack.c.l.b16 %v728
      %v761 = vunpack.c.l.b16 %v729
      %v762 = vunpack.c.l.b16 %v730
      %v763 = vunpack.c.l.b16 %v731
      %v764 = vunpack.c.l.b16 %v732
      %v765 = vunpack.c.l.b16 %v733
      %v766 = vunpack.c.l.b16 %v734
      %v767 = vunpack.c.l.b16 %v735
      %v768 = vunpack.c.l.b16 %v736
      %v769 = vunpack.c.l.b16 %v737
      %v770 = vunpack.c.l.b16 %v738
      %v771 = vunpack.c.l.b16 %v739
      %v772 = vunpack.c.l.b16 %v740
      %v773 = vunpack.c.l.b16 %v741
      %v774 = vpack.c.b16 %v759, %v758
      %v775 = vpack.c.b16 %v761, %v760
      %v776 = vpack.c.b16 %v763, %v762
      %v777 = vpack.c.b16 %v765, %v764
      %v778 = vpack.c.b16 %v767, %v766
      %v779 = vpack.c.b16 %v769, %v768
      %v780 = vpack.c.b16 %v771, %v770
      %v781 = vpack.c.b16 %v773, %v772
      %790 = vmatprep.subr.bf16.mxu0 0
      %791 = vmatpush1.bf16.msra.mxu0 %v781
      %792 = vmatprep.subr.bf16.mxu0 0
      %793 = vmatpush1.bf16.msra.mxu0 %v780
      %794 = vmatprep.subr.bf16.mxu0 0
      %795 = vmatpush1.bf16.msra.mxu0 %v779
      %796 = vmatprep.subr.bf16.mxu0 0
      %797 = vmatpush1.bf16.msra.mxu0 %v778
      %798 = vmatprep.subr.bf16.mxu0 0
      %799 = vmatpush1.bf16.msra.mxu0 %v777
      %800 = vmatprep.subr.bf16.mxu0 0
      %801 = vmatpush1.bf16.msra.mxu0 %v776
      %802 = vmatprep.subr.bf16.mxu0 0
      %803 = vmatpush1.bf16.msra.mxu0 %v775
      %804 = vmatprep.subr.bf16.mxu0 0
      %805 = vmatpush1.bf16.msra.mxu0 %v774
      %806 = vmatprep.subr.bf16.mxu0 0
      %807 = vmatpush2.bf16.msra.mxu0 0
      %808 = vmatprep.subr.bf16.mxu0 0
      %809 = vmatpush2.bf16.msra.mxu0 0
      %810 = vmatprep.subr.bf16.mxu0 0
      %811 = vmatpush2.bf16.msra.mxu0 0
      %812 = vmatprep.subr.bf16.mxu0 0
      %813 = vmatpush2.bf16.msra.mxu0 0
      %814 = vmatprep.subr.bf16.mxu0 0
      %815 = vmatpush2.bf16.msra.mxu0 0
      %816 = vmatprep.subr.bf16.mxu0 0
      %817 = vmatpush2.bf16.msra.mxu0 0
      %818 = vmatprep.subr.bf16.mxu0 0
      %819 = vmatpush2.bf16.msra.mxu0 0
      %820 = vmatprep.subr.bf16.mxu0 0
      %821 = vmatpush2.bf16.msra.mxu0 0
      %822 = vmatprep.mubr.bf16.mxu0 0
      %823 = vmatmul.mubr.bf16.gmra.mxu0 %v724
      %v824 = vpop.f32.mrf.mxu0
      %v825 = vadd.f32 0.0, %v824
      %v826 = vpop.f32.mrf.mxu0
      %v827 = vpop.f32.mrf.mxu0
      %v828 = vpop.f32.mrf.mxu0
      %829 = vdwg.mxu0
      %v830 = vadd.f32 %v718, %v825
      %v831 = vadd.f32 %v276, %v830
      %v832 = vld [vmem:[%s6] sm:$0x1]
      %v834 = vlaneseq
      %v835 = vshrl.u32 %v834, 7
      %v836 = vsub.s32 0, %v835
      %v837 = vrot.slane %v832, %v836
      %v839 = vadd.f32 %v831, %v837
      %v840 = vpack.c.bf16 %v839, %v839
      %vm841 = vcmask 257024
      %842 = vst.msk [vmem:[%s273] sm:$0xf] %vm841, %v840
      %p843 = scmp.lt.s32.totalorder %s18, 1
      %s844 = scalar_select %p843, %s18, 1
      %s845 = smul.addr %s844, 4
      %s846 = scalar_lea.vmem %s7, %s845
      // Predicated region
      $region49: #{_lambda_.10} parent=47 // pred_check
        %p847 = pneg %p188
      $region50: #{_lambda_.10} parent=47 // pred_check_branch
        %849 = sbr.rel (%p847) target = $region52
      $region51: #{_lambda_.10} parent=47 // pred_region
        _
      $region52: #{_lambda_.10} parent=47 // pred_fallthru
        _
    $region48: #{_lambda_.10} parent=5 // pred_fallthru
      _
    %p850 = scmp.le.s32.totalorder 2, %s13
    // Predicated region
    $region53: #{_lambda_.10} parent=5 // pred_check
      %p851 = pneg %p850
    $region54: #{_lambda_.10} parent=5 // pred_check_branch
      %853 = sbr.rel (%p851) target = $region56
    $region55: #{_lambda_.10} parent=5 // pred_region
      %s854 = ssub.s32 %s13, 2
      // Predicated region
      $region57: #{_lambda_.10} parent=55 // pred_check
        %p855 = pneg %p194
      $region58: #{_lambda_.10} parent=55 // pred_check_branch
        %857 = sbr.rel (%p855) target = $region60
      $region59: #{_lambda_.10} parent=55 // pred_region
        %p858 = scmp.lt.s32.totalorder %s19, 1
        %s859 = scalar_select %p858, %s19, 1
        %s860 = smul.addr %s859, 4
        %s861 = scalar_lea.vmem %s7, %s860
      $region60: #{_lambda_.10} parent=55 // pred_fallthru
        _
    $region56: #{_lambda_.10} parent=5 // pred_fallthru
      _
  $region6: #{_lambda_.10} parent=0 // loop_footer
    %s17 = sadd.s32 1, %s13
  $region7: #{_lambda_.10} parent=0 // loop_footer_branch
    %12 = sbr.rel target = $region3
  $region8: #{_lambda_.10} parent=0 // loop_exit
    _

// kernel: _lambda_.9
$region0: #{_lambda_.9}
  #allocation0 [shape = 'u32[]', space=smem, size = 0x4, offset = 0x4, fixed_abs, tag = 'smem constant byte address 0x4 - core index']
  #allocation1 [shape = 'u32[144,128]{1,0:T(1,128)}', space=vmem, size = 0x12000, scoped, tag = 'internal scratch']
  %s0 = inlined_call_operand.vmem [shape: bf16[2,8,32], index: 0, kind: input, shape index: {}]
  %s1 = inlined_call_operand.vmem [shape: bf16[2,16,32], index: 1, kind: input, shape index: {}]
  %s2 = inlined_call_operand.vmem [shape: bf16[2,1,16], index: 2, kind: input, shape index: {}]
  %s3 = inlined_call_operand.vmem [shape: f32[1,32], index: 3, kind: input, shape index: {}]
  %s4 = inlined_call_operand.vmem [shape: f32[1,32], index: 4, kind: input, shape index: {}, may-alias: {4,12}]
  %s5 = inlined_call_operand.vmem [shape: bf16[4,32,8], index: 5, kind: input, shape index: {}]
  %s6 = inlined_call_operand.vmem [shape: f32[4,1,8], index: 6, kind: input, shape index: {}, may-alias: {6,8,10}]
  %s7 = inlined_call_operand.vmem [shape: bf16[4,32,8], index: 7, kind: input, shape index: {}]
  %s8 = inlined_call_operand.vmem [shape: f32[4,1,8], index: 8, kind: input, shape index: {}, may-alias: {6,8,10}]
  %s9 = inlined_call_operand.vmem [shape: bf16[4,32,8], index: 9, kind: input, shape index: {}]
  %s10 = inlined_call_operand.vmem [shape: f32[4,1,8], index: 10, kind: input, shape index: {}, may-alias: {6,8,10}]
  %s11 = inlined_call_operand.vmem [shape: bf16[4,8,32], index: 11, kind: input, shape index: {}]
  %s12 = inlined_call_operand.vmem [shape: f32[1,32], index: 12, kind: input, shape index: {}, may-alias: {4,12}]
  %s13 = inlined_call_operand.vmem [shape: bf16[2,8,32], index: 13, kind: output, shape index: {0}]
  %s14 = inlined_call_operand.vmem [shape: bf16[2,4,8,16], index: 14, kind: output, shape index: {1}]
  %15 = xla_tuple %s13, %s14
  %s16 = sld [smem:[#allocation0]]
  $region93: #{_lambda_.9} parent=0
    _
  %s18 = ssub.s32 1, %s16
  %s19 = scalar_select 0, %s18, %s16
  loop: start=0, step=1, limit=4
  $region2: #{_lambda_.9} parent=0 // loop_pre_header
    _
  $region3: #{_lambda_.9} parent=0 // loop_header
    %s21 = sphi 0, %s25
    %p22 = scmp.ge.s32.totalorder %s21, 4
    %s31 = sphi 0, %s33
    %s34 = sphi 0, %s31
    %s35 = sphi 0, %s34
    %s51 = sphi 0, %s35
    %s57 = sphi 0, %s59
    %s60 = sphi 0, %s57
    %s61 = sphi 0, %s60
    %s77 = sphi 0, %s61
    %s83 = sphi 0, %s85
    %s86 = sphi 0, %s83
    %s87 = sphi 0, %s86
    %s103 = sphi 0, %s87
    %s107 = sphi 0, %s107
    %s109 = sphi 0, %s107
    %s110 = sphi 0, %s109
    %s124 = sphi 0, %s110
    %s128 = sphi 0, %s128
    %s130 = sphi 0, %s128
    %s131 = sphi 0, %s130
    %s145 = sphi 0, %s131
    %s149 = sphi 0, %s149
    %s151 = sphi 0, %s149
    %s152 = sphi 0, %s151
    %s166 = sphi 0, %s152
    %s170 = sphi 0, %s170
    %s172 = sphi 0, %s170
    %s173 = sphi 0, %s172
    %s187 = sphi 0, %s173
    %s191 = sphi 0, %s191
    %s193 = sphi 0, %s191
    %s194 = sphi 0, %s193
    %s208 = sphi 0, %s194
    %s212 = sphi 0, %s212
    %s214 = sphi 0, %s212
    %s215 = sphi 0, %s214
    %s229 = sphi 0, %s215
    %s233 = sphi 0, %s233
    %s235 = sphi 0, %s233
    %s236 = sphi 0, %s235
    %s250 = sphi 0, %s236
    %s254 = sphi 0, %s254
    %s256 = sphi 0, %s254
    %s257 = sphi 0, %s256
    %s271 = sphi 0, %s257
    %s275 = sphi 0, %s275
    %s277 = sphi 0, %s275
    %s278 = sphi 0, %s277
    %s292 = sphi 0, %s278
    %s296 = sphi 0, %s296
    %s298 = sphi 0, %s296
    %s299 = sphi 0, %s298
    %s313 = sphi 0, %s299
    %s319 = sphi 0, %s321
    %s322 = sphi 0, %s319
    %s323 = sphi 0, %s322
    %s339 = sphi 0, %s323
    %s345 = sphi 0, %s347
    %s348 = sphi 0, %s345
    %s349 = sphi 0, %s348
    %s365 = sphi 0, %s349
  $region4: #{_lambda_.9} parent=0 // loop_header_branch
    %24 = sbr.rel (%p22) target = $region8
  $region5: #{_lambda_.9} parent=0 // loop_body
    %s26 = ssub.s32 %s21, 1
    %s27 = ssub.s32 %s21, 2
    %s28 = sadd.s32 %s21, 1
    %s29 = ssub.s32 %s21, %s28
    %p30 = scmp.eq.s32.totalorder %s29, 0
    %s32 = sadd.s32 %s31, 1
    %s33 = scalar_select %p30, %s31, %s32
    %p36 = pneg %p30
    %p37 = scmp.eq.s32.totalorder %s21, 1
    %p38 = por %p36, %p37
    %p39 = scmp.ne.s32.totalorder %s31, %s34
    %p40 = scmp.eq.s32.totalorder %s21, 0
    %p41 = por %p39, %p40
    %p42 = scmp.ne.s32.totalorder %s31, %s34
    %p43 = scmp.eq.s32.totalorder %s26, 1
    %p44 = por %p42, %p43
    %p45 = scmp.ne.s32.totalorder %s34, %s35
    %p46 = scmp.eq.s32.totalorder %s26, 0
    %p47 = por %p45, %p46
    %p48 = scmp.ne.s32.totalorder %s34, %s35
    %p49 = scmp.eq.s32.totalorder %s27, 1
    %p50 = por %p48, %p49
    %p52 = scmp.ne.s32.totalorder %s35, %s51
    %p53 = scmp.eq.s32.totalorder %s27, 0
    %p54 = por %p52, %p53
    %s55 = ssub.s32 %s21, %s28
    %p56 = scmp.eq.s32.totalorder %s55, 0
    %s58 = sadd.s32 %s57, 1
    %s59 = scalar_select %p56, %s57, %s58
    %p62 = pneg %p56
    %p63 = scmp.eq.s32.totalorder %s21, 1
    %p64 = por %p62, %p63
    %p65 = scmp.ne.s32.totalorder %s57, %s60
    %p66 = scmp.eq.s32.totalorder %s21, 0
    %p67 = por %p65, %p66
    %p68 = scmp.ne.s32.totalorder %s57, %s60
    %p69 = scmp.eq.s32.totalorder %s26, 1
    %p70 = por %p68, %p69
    %p71 = scmp.ne.s32.totalorder %s60, %s61
    %p72 = scmp.eq.s32.totalorder %s26, 0
    %p73 = por %p71, %p72
    %p74 = scmp.ne.s32.totalorder %s60, %s61
    %p75 = scmp.eq.s32.totalorder %s27, 1
    %p76 = por %p74, %p75
    %p78 = scmp.ne.s32.totalorder %s61, %s77
    %p79 = scmp.eq.s32.totalorder %s27, 0
    %p80 = por %p78, %p79
    %s81 = ssub.s32 %s21, %s28
    %p82 = scmp.eq.s32.totalorder %s81, 0
    %s84 = sadd.s32 %s83, 1
    %s85 = scalar_select %p82, %s83, %s84
    %p88 = pneg %p82
    %p89 = scmp.eq.s32.totalorder %s21, 1
    %p90 = por %p88, %p89
    %p91 = scmp.ne.s32.totalorder %s83, %s86
    %p92 = scmp.eq.s32.totalorder %s21, 0
    %p93 = por %p91, %p92
    %p94 = scmp.ne.s32.totalorder %s83, %s86
    %p95 = scmp.eq.s32.totalorder %s26, 1
    %p96 = por %p94, %p95
    %p97 = scmp.ne.s32.totalorder %s86, %s87
    %p98 = scmp.eq.s32.totalorder %s26, 0
    %p99 = por %p97, %p98
    %p100 = scmp.ne.s32.totalorder %s86, %s87
    %p101 = scmp.eq.s32.totalorder %s27, 1
    %p102 = por %p100, %p101
    %p104 = scmp.ne.s32.totalorder %s87, %s103
    %p105 = scmp.eq.s32.totalorder %s27, 0
    %p106 = por %p104, %p105
    %s108 = sadd.s32 %s107, 1
    %p111 = scmp.eq.s32.totalorder %s21, 1
    %p112 = scmp.ne.s32.totalorder %s107, %s109
    %p113 = scmp.eq.s32.totalorder %s21, 0
    %p114 = por %p112, %p113
    %p115 = scmp.ne.s32.totalorder %s107, %s109
    %p116 = scmp.eq.s32.totalorder %s26, 1
    %p117 = por %p115, %p116
    %p118 = scmp.ne.s32.totalorder %s109, %s110
    %p119 = scmp.eq.s32.totalorder %s26, 0
    %p120 = por %p118, %p119
    %p121 = scmp.ne.s32.totalorder %s109, %s110
    %p122 = scmp.eq.s32.totalorder %s27, 1
    %p123 = por %p121, %p122
    %p125 = scmp.ne.s32.totalorder %s110, %s124
    %p126 = scmp.eq.s32.totalorder %s27, 0
    %p127 = por %p125, %p126
    %s129 = sadd.s32 %s128, 1
    %p132 = scmp.eq.s32.totalorder %s21, 1
    %p133 = scmp.ne.s32.totalorder %s128, %s130
    %p134 = scmp.eq.s32.totalorder %s21, 0
    %p135 = por %p133, %p134
    %p136 = scmp.ne.s32.totalorder %s128, %s130
    %p137 = scmp.eq.s32.totalorder %s26, 1
    %p138 = por %p136, %p137
    %p139 = scmp.ne.s32.totalorder %s130, %s131
    %p140 = scmp.eq.s32.totalorder %s26, 0
    %p141 = por %p139, %p140
    %p142 = scmp.ne.s32.totalorder %s130, %s131
    %p143 = scmp.eq.s32.totalorder %s27, 1
    %p144 = por %p142, %p143
    %p146 = scmp.ne.s32.totalorder %s131, %s145
    %p147 = scmp.eq.s32.totalorder %s27, 0
    %p148 = por %p146, %p147
    %s150 = sadd.s32 %s149, 1
    %p153 = scmp.eq.s32.totalorder %s21, 1
    %p154 = scmp.ne.s32.totalorder %s149, %s151
    %p155 = scmp.eq.s32.totalorder %s21, 0
    %p156 = por %p154, %p155
    %p157 = scmp.ne.s32.totalorder %s149, %s151
    %p158 = scmp.eq.s32.totalorder %s26, 1
    %p159 = por %p157, %p158
    %p160 = scmp.ne.s32.totalorder %s151, %s152
    %p161 = scmp.eq.s32.totalorder %s26, 0
    %p162 = por %p160, %p161
    %p163 = scmp.ne.s32.totalorder %s151, %s152
    %p164 = scmp.eq.s32.totalorder %s27, 1
    %p165 = por %p163, %p164
    %p167 = scmp.ne.s32.totalorder %s152, %s166
    %p168 = scmp.eq.s32.totalorder %s27, 0
    %p169 = por %p167, %p168
    %s171 = sadd.s32 %s170, 1
    %p174 = scmp.eq.s32.totalorder %s21, 1
    %p175 = scmp.ne.s32.totalorder %s170, %s172
    %p176 = scmp.eq.s32.totalorder %s21, 0
    %p177 = por %p175, %p176
    %p178 = scmp.ne.s32.totalorder %s170, %s172
    %p179 = scmp.eq.s32.totalorder %s26, 1
    %p180 = por %p178, %p179
    %p181 = scmp.ne.s32.totalorder %s172, %s173
    %p182 = scmp.eq.s32.totalorder %s26, 0
    %p183 = por %p181, %p182
    %p184 = scmp.ne.s32.totalorder %s172, %s173
    %p185 = scmp.eq.s32.totalorder %s27, 1
    %p186 = por %p184, %p185
    %p188 = scmp.ne.s32.totalorder %s173, %s187
    %p189 = scmp.eq.s32.totalorder %s27, 0
    %p190 = por %p188, %p189
    %s192 = sadd.s32 %s191, 1
    %p195 = scmp.eq.s32.totalorder %s21, 1
    %p196 = scmp.ne.s32.totalorder %s191, %s193
    %p197 = scmp.eq.s32.totalorder %s21, 0
    %p198 = por %p196, %p197
    %p199 = scmp.ne.s32.totalorder %s191, %s193
    %p200 = scmp.eq.s32.totalorder %s26, 1
    %p201 = por %p199, %p200
    %p202 = scmp.ne.s32.totalorder %s193, %s194
    %p203 = scmp.eq.s32.totalorder %s26, 0
    %p204 = por %p202, %p203
    %p205 = scmp.ne.s32.totalorder %s193, %s194
    %p206 = scmp.eq.s32.totalorder %s27, 1
    %p207 = por %p205, %p206
    %p209 = scmp.ne.s32.totalorder %s194, %s208
    %p210 = scmp.eq.s32.totalorder %s27, 0
    %p211 = por %p209, %p210
    %s213 = sadd.s32 %s212, 1
    %p216 = scmp.eq.s32.totalorder %s21, 1
    %p217 = scmp.ne.s32.totalorder %s212, %s214
    %p218 = scmp.eq.s32.totalorder %s21, 0
    %p219 = por %p217, %p218
    %p220 = scmp.ne.s32.totalorder %s212, %s214
    %p221 = scmp.eq.s32.totalorder %s26, 1
    %p222 = por %p220, %p221
    %p223 = scmp.ne.s32.totalorder %s214, %s215
    %p224 = scmp.eq.s32.totalorder %s26, 0
    %p225 = por %p223, %p224
    %p226 = scmp.ne.s32.totalorder %s214, %s215
    %p227 = scmp.eq.s32.totalorder %s27, 1
    %p228 = por %p226, %p227
    %p230 = scmp.ne.s32.totalorder %s215, %s229
    %p231 = scmp.eq.s32.totalorder %s27, 0
    %p232 = por %p230, %p231
    %s234 = sadd.s32 %s233, 1
    %p237 = scmp.eq.s32.totalorder %s21, 1
    %p238 = scmp.ne.s32.totalorder %s233, %s235
    %p239 = scmp.eq.s32.totalorder %s21, 0
    %p240 = por %p238, %p239
    %p241 = scmp.ne.s32.totalorder %s233, %s235
    %p242 = scmp.eq.s32.totalorder %s26, 1
    %p243 = por %p241, %p242
    %p244 = scmp.ne.s32.totalorder %s235, %s236
    %p245 = scmp.eq.s32.totalorder %s26, 0
    %p246 = por %p244, %p245
    %p247 = scmp.ne.s32.totalorder %s235, %s236
    %p248 = scmp.eq.s32.totalorder %s27, 1
    %p249 = por %p247, %p248
    %p251 = scmp.ne.s32.totalorder %s236, %s250
    %p252 = scmp.eq.s32.totalorder %s27, 0
    %p253 = por %p251, %p252
    %s255 = sadd.s32 %s254, 1
    %p258 = scmp.eq.s32.totalorder %s21, 1
    %p259 = scmp.ne.s32.totalorder %s254, %s256
    %p260 = scmp.eq.s32.totalorder %s21, 0
    %p261 = por %p259, %p260
    %p262 = scmp.ne.s32.totalorder %s254, %s256
    %p263 = scmp.eq.s32.totalorder %s26, 1
    %p264 = por %p262, %p263
    %p265 = scmp.ne.s32.totalorder %s256, %s257
    %p266 = scmp.eq.s32.totalorder %s26, 0
    %p267 = por %p265, %p266
    %p268 = scmp.ne.s32.totalorder %s256, %s257
    %p269 = scmp.eq.s32.totalorder %s27, 1
    %p270 = por %p268, %p269
    %p272 = scmp.ne.s32.totalorder %s257, %s271
    %p273 = scmp.eq.s32.totalorder %s27, 0
    %p274 = por %p272, %p273
    %s276 = sadd.s32 %s275, 1
    %p279 = scmp.eq.s32.totalorder %s21, 1
    %p280 = scmp.ne.s32.totalorder %s275, %s277
    %p281 = scmp.eq.s32.totalorder %s21, 0
    %p282 = por %p280, %p281
    %p283 = scmp.ne.s32.totalorder %s275, %s277
    %p284 = scmp.eq.s32.totalorder %s26, 1
    %p285 = por %p283, %p284
    %p286 = scmp.ne.s32.totalorder %s277, %s278
    %p287 = scmp.eq.s32.totalorder %s26, 0
    %p288 = por %p286, %p287
    %p289 = scmp.ne.s32.totalorder %s277, %s278
    %p290 = scmp.eq.s32.totalorder %s27, 1
    %p291 = por %p289, %p290
    %p293 = scmp.ne.s32.totalorder %s278, %s292
    %p294 = scmp.eq.s32.totalorder %s27, 0
    %p295 = por %p293, %p294
    %s297 = sadd.s32 %s296, 1
    %p300 = scmp.eq.s32.totalorder %s21, 1
    %p301 = scmp.ne.s32.totalorder %s296, %s298
    %p302 = scmp.eq.s32.totalorder %s21, 0
    %p303 = por %p301, %p302
    %p304 = scmp.ne.s32.totalorder %s296, %s298
    %p305 = scmp.eq.s32.totalorder %s26, 1
    %p306 = por %p304, %p305
    %p307 = scmp.ne.s32.totalorder %s298, %s299
    %p308 = scmp.eq.s32.totalorder %s26, 0
    %p309 = por %p307, %p308
    %p310 = scmp.ne.s32.totalorder %s298, %s299
    %p311 = scmp.eq.s32.totalorder %s27, 1
    %p312 = por %p310, %p311
    %p314 = scmp.ne.s32.totalorder %s299, %s313
    %p315 = scmp.eq.s32.totalorder %s27, 0
    %p316 = por %p314, %p315
    %s317 = ssub.s32 %s21, %s28
    %p318 = scmp.eq.s32.totalorder %s317, 0
    %s320 = sadd.s32 %s319, 1
    %s321 = scalar_select %p318, %s319, %s320
    %p324 = pneg %p318
    %p325 = scmp.eq.s32.totalorder %s21, 1
    %p326 = por %p324, %p325
    %p327 = scmp.ne.s32.totalorder %s319, %s322
    %p328 = scmp.eq.s32.totalorder %s21, 0
    %p329 = por %p327, %p328
    %p330 = scmp.ne.s32.totalorder %s319, %s322
    %p331 = scmp.eq.s32.totalorder %s26, 1
    %p332 = por %p330, %p331
    %p333 = scmp.ne.s32.totalorder %s322, %s323
    %p334 = scmp.eq.s32.totalorder %s26, 0
    %p335 = por %p333, %p334
    %p336 = scmp.ne.s32.totalorder %s322, %s323
    %p337 = scmp.eq.s32.totalorder %s27, 1
    %p338 = por %p336, %p337
    %p340 = scmp.ne.s32.totalorder %s323, %s339
    %p341 = scmp.eq.s32.totalorder %s27, 0
    %p342 = por %p340, %p341
    %s343 = ssub.s32 %s21, %s28
    %p344 = scmp.eq.s32.totalorder %s343, 0
    %s346 = sadd.s32 %s345, 1
    %s347 = scalar_select %p344, %s345, %s346
    %p350 = pneg %p344
    %p351 = scmp.eq.s32.totalorder %s21, 1
    %p352 = por %p350, %p351
    %p353 = scmp.ne.s32.totalorder %s345, %s348
    %p354 = scmp.eq.s32.totalorder %s21, 0
    %p355 = por %p353, %p354
    %p356 = scmp.ne.s32.totalorder %s345, %s348
    %p357 = scmp.eq.s32.totalorder %s26, 1
    %p358 = por %p356, %p357
    %p359 = scmp.ne.s32.totalorder %s348, %s349
    %p360 = scmp.eq.s32.totalorder %s26, 0
    %p361 = por %p359, %p360
    %p362 = scmp.ne.s32.totalorder %s348, %s349
    %p363 = scmp.eq.s32.totalorder %s27, 1
    %p364 = por %p362, %p363
    %p366 = scmp.ne.s32.totalorder %s349, %s365
    %p367 = scmp.eq.s32.totalorder %s27, 0
    %p368 = por %p366, %p367
    %p369 = scmp.le.s32.totalorder 1, %s21
    %p370 = scmp.lt.s32.totalorder %s21, 3
    %p371 = pnand %p369, %p370
    %p372 = pneg %p371
    // Predicated region
    $region9: #{_lambda_.9} parent=5 // pred_check
      _
    $region10: #{_lambda_.9} parent=5 // pred_check_branch
      %374 = sbr.rel (%p371) target = $region12
    $region11: #{_lambda_.9} parent=5 // pred_region
      %s375 = ssub.s32 %s21, 1
      // Predicated region
      $region13: #{_lambda_.9} parent=11 // pred_check
        %p376 = pneg %p120
      $region14: #{_lambda_.9} parent=11 // pred_check_branch
        %378 = sbr.rel (%p376) target = $region16
      $region15: #{_lambda_.9} parent=11 // pred_region
        _
      $region16: #{_lambda_.9} parent=11 // pred_fallthru
        _
      // Predicated region
      $region17: #{_lambda_.9} parent=11 // pred_check
        %p379 = pneg %p141
      $region18: #{_lambda_.9} parent=11 // pred_check_branch
        %381 = sbr.rel (%p379) target = $region20
      $region19: #{_lambda_.9} parent=11 // pred_region
        _
      $region20: #{_lambda_.9} parent=11 // pred_fallthru
        _
      // Predicated region
      $region21: #{_lambda_.9} parent=11 // pred_check
        %p382 = pneg %p162
      $region22: #{_lambda_.9} parent=11 // pred_check_branch
        %384 = sbr.rel (%p382) target = $region24
      $region23: #{_lambda_.9} parent=11 // pred_region
        _
      $region24: #{_lambda_.9} parent=11 // pred_fallthru
        _
      // Predicated region
      $region25: #{_lambda_.9} parent=11 // pred_check
        %p385 = pneg %p183
      $region26: #{_lambda_.9} parent=11 // pred_check_branch
        %387 = sbr.rel (%p385) target = $region28
      $region27: #{_lambda_.9} parent=11 // pred_region
        _
      $region28: #{_lambda_.9} parent=11 // pred_fallthru
        _
      // Predicated region
      $region29: #{_lambda_.9} parent=11 // pred_check
        %p388 = pneg %p204
      $region30: #{_lambda_.9} parent=11 // pred_check_branch
        %390 = sbr.rel (%p388) target = $region32
      $region31: #{_lambda_.9} parent=11 // pred_region
        _
      $region32: #{_lambda_.9} parent=11 // pred_fallthru
        _
      // Predicated region
      $region33: #{_lambda_.9} parent=11 // pred_check
        %p391 = pneg %p225
      $region34: #{_lambda_.9} parent=11 // pred_check_branch
        %393 = sbr.rel (%p391) target = $region36
      $region35: #{_lambda_.9} parent=11 // pred_region
        _
      $region36: #{_lambda_.9} parent=11 // pred_fallthru
        _
      // Predicated region
      $region37: #{_lambda_.9} parent=11 // pred_check
        %p394 = pneg %p246
      $region38: #{_lambda_.9} parent=11 // pred_check_branch
        %396 = sbr.rel (%p394) target = $region40
      $region39: #{_lambda_.9} parent=11 // pred_region
        _
      $region40: #{_lambda_.9} parent=11 // pred_fallthru
        _
      // Predicated region
      $region41: #{_lambda_.9} parent=11 // pred_check
        %p397 = pneg %p267
      $region42: #{_lambda_.9} parent=11 // pred_check_branch
        %399 = sbr.rel (%p397) target = $region44
      $region43: #{_lambda_.9} parent=11 // pred_region
        _
      $region44: #{_lambda_.9} parent=11 // pred_fallthru
        _
      // Predicated region
      $region45: #{_lambda_.9} parent=11 // pred_check
        %p400 = pneg %p288
      $region46: #{_lambda_.9} parent=11 // pred_check_branch
        %402 = sbr.rel (%p400) target = $region48
      $region47: #{_lambda_.9} parent=11 // pred_region
        _
      $region48: #{_lambda_.9} parent=11 // pred_fallthru
        _
      // Predicated region
      $region49: #{_lambda_.9} parent=11 // pred_check
        %p403 = pneg %p309
      $region50: #{_lambda_.9} parent=11 // pred_check_branch
        %405 = sbr.rel (%p403) target = $region52
      $region51: #{_lambda_.9} parent=11 // pred_region
        _
      $region52: #{_lambda_.9} parent=11 // pred_fallthru
        _
    $region12: #{_lambda_.9} parent=5 // pred_fallthru
      _
    %p406 = scmp.lt.s32.totalorder %s21, 2
    // Predicated region
    $region53: #{_lambda_.9} parent=5 // pred_check
      %p407 = pneg %p406
    $region54: #{_lambda_.9} parent=5 // pred_check_branch
      %409 = sbr.rel (%p407) target = $region56
    $region55: #{_lambda_.9} parent=5 // pred_region
      // Predicated region
      $region57: #{_lambda_.9} parent=55 // pred_check
        %p410 = pneg %p41
      $region58: #{_lambda_.9} parent=55 // pred_check_branch
        %412 = sbr.rel (%p410) target = $region60
      $region59: #{_lambda_.9} parent=55 // pred_region
        %p413 = scmp.lt.s32.totalorder %s21, 1
        %s414 = scalar_select %p413, %s21, 1
        %s415 = smul.addr %s414, 4
        %s416 = scalar_lea.vmem %s0, %s415
      $region60: #{_lambda_.9} parent=55 // pred_fallthru
        _
      // Predicated region
      $region61: #{_lambda_.9} parent=55 // pred_check
        %p417 = pneg %p67
      $region62: #{_lambda_.9} parent=55 // pred_check_branch
        %419 = sbr.rel (%p417) target = $region64
      $region63: #{_lambda_.9} parent=55 // pred_region
        %p420 = scmp.lt.s32.totalorder %s21, 1
        %s421 = scalar_select %p420, %s21, 1
        %s422 = smul.addr %s421, 2
        %s423 = smul.addr %s422, 4
        %s424 = scalar_lea.vmem %s1, %s423
      $region64: #{_lambda_.9} parent=55 // pred_fallthru
        _
      // Predicated region
      $region65: #{_lambda_.9} parent=55 // pred_check
        %p425 = pneg %p93
      $region66: #{_lambda_.9} parent=55 // pred_check_branch
        %427 = sbr.rel (%p425) target = $region68
      $region67: #{_lambda_.9} parent=55 // pred_region
        %p428 = scmp.lt.s32.totalorder %s21, 1
        %s429 = scalar_select %p428, %s21, 1
        %s430 = scalar_lea.vmem %s2, %s429
      $region68: #{_lambda_.9} parent=55 // pred_fallthru
        _
    $region56: #{_lambda_.9} parent=5 // pred_fallthru
      _
    %p431 = scmp.le.s32.totalorder 1, %s21
    %p432 = scmp.lt.s32.totalorder %s21, 3
    %p433 = pnand %p431, %p432
    %p434 = pneg %p433
    // Predicated region
    $region69: #{_lambda_.9} parent=5 // pred_check
      _
    $region70: #{_lambda_.9} parent=5 // pred_check_branch
      %436 = sbr.rel (%p433) target = $region72
    $region71: #{_lambda_.9} parent=5 // pred_region
      %s437 = ssub.s32 %s21, 1
      %p438 = scmp.lt.s32.totalorder %s26, 1
      %s439 = scalar_select %p438, %s26, 1
      %s440 = smul.addr %s439, 4
      %s441 = scalar_lea.vmem %s0, %s440
      %p442 = pneg %p47
      %p443 = pneg %p44
      %p444 = scmp.lt.s32.totalorder %s26, 1
      %s445 = scalar_select %p444, %s26, 1
      %s446 = smul.addr %s445, 2
      %s447 = smul.addr %s446, 4
      %s448 = scalar_lea.vmem %s1, %s447
      %p449 = pneg %p73
      %p450 = pneg %p70
      %p451 = scmp.lt.s32.totalorder %s26, 1
      %s452 = scalar_select %p451, %s26, 1
      %s453 = scalar_lea.vmem %s2, %s452
      %p454 = pneg %p99
      %p455 = pneg %p96
      %p456 = pneg %p120
      %p457 = pneg %p117
      %p458 = pneg %p141
      %p459 = pneg %p138
      %p460 = pneg %p162
      %p461 = pneg %p159
      %p462 = pneg %p183
      %p463 = pneg %p180
      %p464 = pneg %p204
      %p465 = pneg %p201
      %p466 = pneg %p225
      %p467 = pneg %p222
      %p468 = pneg %p246
      %p469 = pneg %p243
      %p470 = pneg %p267
      %p471 = pneg %p264
      %p472 = pneg %p288
      %p473 = pneg %p285
      %p474 = pneg %p309
      %p475 = pneg %p306
      %p476 = pneg %p335
      %p477 = pneg %p332
      %p478 = scmp.lt.s32.totalorder %s26, 1
      %s479 = scalar_select %p478, %s26, 1
      %s480 = smul.addr %s479, 4
      %s481 = scalar_lea.vmem %s13, %s480
      %p482 = pneg %p361
      %p483 = pneg %p358
      %p484 = scmp.lt.s32.totalorder %s26, 1
      %s485 = scalar_select %p484, %s26, 1
      %s486 = smul.addr %s485, 4
      %s487 = smul.addr %s486, 4
      %s488 = scalar_lea.vmem %s14, %s487
      %p489 = scmp.lt.s32.totalorder %s26, 1
      %s490 = scalar_select %p489, %s26, 1
      %s491 = smul.addr %s490, 4
      %s492 = scalar_lea.vmem %s0, %s491
      %p493 = scmp.lt.s32.totalorder %s26, 1
      %s494 = scalar_select %p493, %s26, 1
      %s495 = smul.addr %s494, 2
      %s496 = smul.addr %s495, 4
      %s497 = scalar_lea.vmem %s1, %s496
      %p498 = scmp.lt.s32.totalorder %s26, 1
      %s499 = scalar_select %p498, %s26, 1
      %s500 = scalar_lea.vmem %s2, %s499
      %p501 = scmp.lt.s32.totalorder %s26, 1
      %s502 = scalar_select %p501, %s26, 1
      %s503 = smul.addr %s502, 4
      %s504 = scalar_lea.vmem %s13, %s503
      %p505 = scmp.lt.s32.totalorder %s26, 1
      %s506 = scalar_select %p505, %s26, 1
      %s507 = smul.addr %s506, 4
      %s508 = smul.addr %s507, 4
      %s509 = scalar_lea.vmem %s14, %s508
      %v513 = vld [vmem:[%s492] sm:$0xf]
      %v514 = vunpack.c.l.bf16 %v513
      %vm515 = vcmask 261120
      %v516 = vsel %vm515, %v514, 0.0
      %517 = vadd.xlane.f32.xlu0 %v516
      %v518 = vpop.xlane.xlu0 %517
      %v519 = vrcp.pop 32.0
      %v520 = vmul.f32 %v518, %v519
      %v521 = vsub.f32 %v514, %v520
      %v522 = vmul.f32 %v521, %v521
      %v523 = vsel %vm515, %v522, 0.0
      %524 = vadd.xlane.f32.xlu0 %v523
      %v525 = vpop.xlane.xlu0 %524
      %v526 = vmul.f32 %v525, %v519
      %v527 = vadd.f32 %v526, 1e-05
      %v528 = vrsqrt.pop %v527
      %v529 = vmul.f32 %v521, %v528
      %v530 = vld [vmem:[%s3] sm:$0x1]
      %v532 = vlaneseq
      %v533 = vshrl.u32 %v532, 7
      %v534 = vsub.s32 0, %v533
      %v535 = vrot.slane %v530, %v534
      %v537 = vmul.f32 %v529, %v535
      %v538 = vld [vmem:[%s4] sm:$0x1]
      %v540 = vlaneseq
      %v541 = vshrl.u32 %v540, 7
      %v542 = vsub.s32 0, %v541
      %v543 = vrot.slane %v538, %v542
      %v545 = vadd.f32 %v537, %v543
      %v546 = vpack.c.bf16 %v545, %v545
      %v547 = vld [vmem:[%s497] sm:$0xf]
      %v548 = vld [vmem:[%s497 + $0x4] sm:$0xf]
      %v549 = vld [vmem:[%s500] sm:$0x1]
      %vm550 = vcmp.ne.bf16.partialorder %v549, 0
      %v551 = vld [vmem:[%s5] sm:$0xf]
      %v552 = vld [vmem:[%s5 + $0x4] sm:$0xf]
      %v553 = vld [vmem:[%s5 + $0x8] sm:$0xf]
      %v554 = vld [vmem:[%s5 + $0xc] sm:$0xf]
      %v555 = vld [vmem:[%s6] sm:$0x1]
      %v557 = vlaneseq
      %v558 = vshrl.u32 %v557, 7
      %v559 = vsub.s32 0, %v558
      %v560 = vrot.slane %v555, %v559
      %v566 = vunpack.c.l.b16 %v551
      %v567 = vunpack.c.l.b16 %v552
      %v568 = vunpack.c.l.b16 %v553
      %v569 = vunpack.c.l.b16 %v554
      %v570 = vpack.c.b16 %v567, %v566
      %v571 = vpack.c.b16 %v569, %v568
      %v575 = vsel %vm515, %v546, 0
      %577 = vmatprep.subr.bf16.mxu0 0
      %578 = vmatpush1.bf16.msra.mxu0 0
      %579 = vmatprep.subr.bf16.mxu0 0
      %580 = vmatpush1.bf16.msra.mxu0 0
      %581 = vmatprep.subr.bf16.mxu0 0
      %582 = vmatpush1.bf16.msra.mxu0 0
      %583 = vmatprep.subr.bf16.mxu0 0
      %584 = vmatpush1.bf16.msra.mxu0 0
      %585 = vmatprep.subr.bf16.mxu0 0
      %586 = vmatpush1.bf16.msra.mxu0 0
      %587 = vmatprep.subr.bf16.mxu0 0
      %588 = vmatpush1.bf16.msra.mxu0 0
      %589 = vmatprep.subr.bf16.mxu0 0
      %590 = vmatpush1.bf16.msra.mxu0 %v571
      %591 = vmatprep.subr.bf16.mxu0 0
      %592 = vmatpush1.bf16.msra.mxu0 %v570
      %593 = vmatprep.subr.bf16.mxu0 0
      %594 = vmatpush2.bf16.msra.mxu0 0
      %595 = vmatprep.subr.bf16.mxu0 0
      %596 = vmatpush2.bf16.msra.mxu0 0
      %597 = vmatprep.subr.bf16.mxu0 0
      %598 = vmatpush2.bf16.msra.mxu0 0
      %599 = vmatprep.subr.bf16.mxu0 0
      %600 = vmatpush2.bf16.msra.mxu0 0
      %601 = vmatprep.subr.bf16.mxu0 0
      %602 = vmatpush2.bf16.msra.mxu0 0
      %603 = vmatprep.subr.bf16.mxu0 0
      %604 = vmatpush2.bf16.msra.mxu0 0
      %605 = vmatprep.subr.bf16.mxu0 0
      %606 = vmatpush2.bf16.msra.mxu0 0
      %607 = vmatprep.subr.bf16.mxu0 0
      %608 = vmatpush2.bf16.msra.mxu0 0
      %609 = vmatprep.mubr.bf16.mxu0 0
      %610 = vmatmul.mubr.bf16.gmra.mxu0 %v575
      %v611 = vpop.f32.mrf.mxu0
      %v612 = vadd.f32 %v560, %v611
      %v613 = vpop.f32.mrf.mxu0
      %v614 = vpop.f32.mrf.mxu0
      %v615 = vpop.f32.mrf.mxu0
      %616 = vdwg.mxu0
      %v617 = vld [vmem:[%s7] sm:$0xf]
      %v618 = vld [vmem:[%s7 + $0x4] sm:$0xf]
      %v619 = vld [vmem:[%s7 + $0x8] sm:$0xf]
      %v620 = vld [vmem:[%s7 + $0xc] sm:$0xf]
      %v621 = vld [vmem:[%s8] sm:$0x1]
      %v623 = vlaneseq
      %v624 = vshrl.u32 %v623, 7
      %v625 = vsub.s32 0, %v624
      %v626 = vrot.slane %v621, %v625
      %v630 = vunpack.c.l.b16 %v547
      %v631 = vunpack.c.l.b16 %v548
      %v632 = vpack.c.b16 %v631, %v630
      %v637 = vunpack.c.l.b16 %v617
      %v638 = vunpack.c.l.b16 %v618
      %v639 = vunpack.c.l.b16 %v619
      %v640 = vunpack.c.l.b16 %v620
      %v641 = vpack.c.b16 %v638, %v637
      %v642 = vpack.c.b16 %v640, %v639
      %v646 = vsel %vm515, %v632, 0
      %648 = vmatprep.subr.bf16.mxu0 0
      %649 = vmatpush1.bf16.msra.mxu0 0
      %650 = vmatprep.subr.bf16.mxu0 0
      %651 = vmatpush1.bf16.msra.mxu0 0
      %652 = vmatprep.subr.bf16.mxu0 0
      %653 = vmatpush1.bf16.msra.mxu0 0
      %654 = vmatprep.subr.bf16.mxu0 0
      %655 = vmatpush1.bf16.msra.mxu0 0
      %656 = vmatprep.subr.bf16.mxu0 0
      %657 = vmatpush1.bf16.msra.mxu0 0
      %658 = vmatprep.subr.bf16.mxu0 0
      %659 = vmatpush1.bf16.msra.mxu0 0
      %660 = vmatprep.subr.bf16.mxu0 0
      %661 = vmatpush1.bf16.msra.mxu0 %v642
      %662 = vmatprep.subr.bf16.mxu0 0
      %663 = vmatpush1.bf16.msra.mxu0 %v641
      %664 = vmatprep.subr.bf16.mxu0 0
      %665 = vmatpush2.bf16.msra.mxu0 0
      %666 = vmatprep.subr.bf16.mxu0 0
      %667 = vmatpush2.bf16.msra.mxu0 0
      %668 = vmatprep.subr.bf16.mxu0 0
      %669 = vmatpush2.bf16.msra.mxu0 0
      %670 = vmatprep.subr.bf16.mxu0 0
      %671 = vmatpush2.bf16.msra.mxu0 0
      %672 = vmatprep.subr.bf16.mxu0 0
      %673 = vmatpush2.bf16.msra.mxu0 0
      %674 = vmatprep.subr.bf16.mxu0 0
      %675 = vmatpush2.bf16.msra.mxu0 0
      %676 = vmatprep.subr.bf16.mxu0 0
      %677 = vmatpush2.bf16.msra.mxu0 0
      %678 = vmatprep.subr.bf16.mxu0 0
      %679 = vmatpush2.bf16.msra.mxu0 0
      %680 = vmatprep.mubr.bf16.mxu0 0
      %681 = vmatmul.mubr.bf16.gmra.mxu0 %v646
      %v682 = vpop.f32.mrf.mxu0
      %v683 = vadd.f32 %v626, %v682
      %v684 = vpop.f32.mrf.mxu0
      %v685 = vpop.f32.mrf.mxu0
      %v686 = vadd.f32 %v626, %v685
      %v687 = vpop.f32.mrf.mxu0
      %688 = vdwg.mxu0
      %v689 = vld [vmem:[%s9] sm:$0xf]
      %v690 = vld [vmem:[%s9 + $0x4] sm:$0xf]
      %v691 = vld [vmem:[%s9 + $0x8] sm:$0xf]
      %v692 = vld [vmem:[%s9 + $0xc] sm:$0xf]
      %v693 = vld [vmem:[%s10] sm:$0x1]
      %v695 = vlaneseq
      %v696 = vshrl.u32 %v695, 7
      %v697 = vsub.s32 0, %v696
      %v698 = vrot.slane %v693, %v697
      %v704 = vunpack.c.l.b16 %v689
      %v705 = vunpack.c.l.b16 %v690
      %v706 = vunpack.c.l.b16 %v691
      %v707 = vunpack.c.l.b16 %v692
      %v708 = vpack.c.b16 %v705, %v704
      %v709 = vpack.c.b16 %v707, %v706
      %712 = vmatprep.subr.bf16.mxu0 0
      %713 = vmatpush1.bf16.msra.mxu0 0
      %714 = vmatprep.subr.bf16.mxu0 0
      %715 = vmatpush1.bf16.msra.mxu0 0
      %716 = vmatprep.subr.bf16.mxu0 0
      %717 = vmatpush1.bf16.msra.mxu0 0
      %718 = vmatprep.subr.bf16.mxu0 0
      %719 = vmatpush1.bf16.msra.mxu0 0
      %720 = vmatprep.subr.bf16.mxu0 0
      %721 = vmatpush1.bf16.msra.mxu0 0
      %722 = vmatprep.subr.bf16.mxu0 0
      %723 = vmatpush1.bf16.msra.mxu0 0
      %724 = vmatprep.subr.bf16.mxu0 0
      %725 = vmatpush1.bf16.msra.mxu0 %v709
      %726 = vmatprep.subr.bf16.mxu0 0
      %727 = vmatpush1.bf16.msra.mxu0 %v708
      %728 = vmatprep.subr.bf16.mxu0 0
      %729 = vmatpush2.bf16.msra.mxu0 0
      %730 = vmatprep.subr.bf16.mxu0 0
      %731 = vmatpush2.bf16.msra.mxu0 0
      %732 = vmatprep.subr.bf16.mxu0 0
      %733 = vmatpush2.bf16.msra.mxu0 0
      %734 = vmatprep.subr.bf16.mxu0 0
      %735 = vmatpush2.bf16.msra.mxu0 0
      %736 = vmatprep.subr.bf16.mxu0 0
      %737 = vmatpush2.bf16.msra.mxu0 0
      %738 = vmatprep.subr.bf16.mxu0 0
      %739 = vmatpush2.bf16.msra.mxu0 0
      %740 = vmatprep.subr.bf16.mxu0 0
      %741 = vmatpush2.bf16.msra.mxu0 0
      %742 = vmatprep.subr.bf16.mxu0 0
      %743 = vmatpush2.bf16.msra.mxu0 0
      %744 = vmatprep.mubr.bf16.mxu0 0
      %745 = vmatmul.mubr.bf16.gmra.mxu0 %v646
      %v746 = vpop.f32.mrf.mxu0
      %v747 = vadd.f32 %v698, %v746
      %v748 = vpop.f32.mrf.mxu0
      %v749 = vpop.f32.mrf.mxu0
      %v750 = vadd.f32 %v698, %v749
      %v751 = vpop.f32.mrf.mxu0
      %752 = vdwg.mxu0
      %v753 = vpack.c.bf16 %v612, %v612
      %v754 = vpack.c.bf16 %v686, %v683
      %vm755 = vcmask 64512
      %v757 = vsel %vm755, %v753, 0
      %v760 = vsel %vm755, %v754, 0
      %762 = vmatprep.subr.bf16.mxu0 0
      %763 = vmatpush1.bf16.xpose.msra.mxu0 0
      %764 = vmatprep.subr.bf16.mxu0 0
      %765 = vmatpush1.bf16.xpose.msra.mxu0 0
      %766 = vmatprep.subr.bf16.mxu0 0
      %767 = vmatpush1.bf16.xpose.msra.mxu0 0
      %768 = vmatprep.subr.bf16.mxu0 0
      %769 = vmatpush1.bf16.xpose.msra.mxu0 0
      %770 = vmatprep.subr.bf16.mxu0 0
      %771 = vmatpush1.bf16.xpose.msra.mxu0 0
      %772 = vmatprep.subr.bf16.mxu0 0
      %773 = vmatpush1.bf16.xpose.msra.mxu0 0
      %774 = vmatprep.subr.bf16.mxu0 0
      %775 = vmatpush1.bf16.xpose.msra.mxu0 0
      %776 = vmatprep.subr.bf16.mxu0 0
      %777 = vmatpush1.bf16.xpose.msra.mxu0 %v760
      %778 = vmatprep.subr.bf16.mxu0 0
      %779 = vmatpush2.bf16.xpose.msra.mxu0 0
      %780 = vmatprep.subr.bf16.mxu0 0
      %781 = vmatpush2.bf16.xpose.msra.mxu0 0
      %782 = vmatprep.subr.bf16.mxu0 0
      %783 = vmatpush2.bf16.xpose.msra.mxu0 0
      %784 = vmatprep.subr.bf16.mxu0 0
      %785 = vmatpush2.bf16.xpose.msra.mxu0 0
      %786 = vmatprep.subr.bf16.mxu0 0
      %787 = vmatpush2.bf16.xpose.msra.mxu0 0
      %788 = vmatprep.subr.bf16.mxu0 0
      %789 = vmatpush2.bf16.xpose.msra.mxu0 0
      %790 = vmatprep.subr.bf16.mxu0 0
      %791 = vmatpush2.bf16.xpose.msra.mxu0 0
      %792 = vmatprep.subr.bf16.mxu0 0
      %793 = vmatpush2.bf16.xpose.msra.mxu0 0
      %794 = vmatprep.mubr.bf16.mxu0 0
      %795 = vmatmul.mubr.bf16.gmra.mxu0 %v757
      %v796 = vpop.f32.mrf.mxu0
      %v797 = vadd.f32 0.0, %v796
      %v798 = vpop.f32.mrf.mxu0
      %v799 = vpop.f32.mrf.mxu0
      %v800 = vpop.f32.mrf.mxu0
      %801 = vdwg.mxu0
      %v802 = vmul.f32 %v797, 0.35355338
      %v803 = vsel %vm550, 65537, 0
      %v804 = vunpack.c.l.b16 %v803
      %vm805 = vcmp.ne.s32.totalorder %v804, 0
      %v806 = vsel %vm805, 1, 0
      %v807 = vlaneseq
      %v808 = vshrl.u32 %v807, 7
      %v809 = vsub.s32 0, %v808
      %v810 = vrot.slane %v806, %v809
      %vm811 = vcmp.eq.s32.totalorder %v810, 1
      %v812 = vsel %vm811, %v802, -1e+09
      %vm813 = vcmask 130048
      %v814 = vsel %vm813, %v812, -inf
      %815 = vmax.xlane.f32.xlu0 %v814
      %v816 = vpop.xlane.xlu0 %815
      %v817 = vsub.f32 %v812, %v816
      %v818 = vmul.f32 %v817, 1.442695
      %v819 = vpow.pop %v818
      %v820 = vsel %vm813, %v819, 0.0
      %821 = vadd.xlane.f32.xlu0 %v820
      %v822 = vpop.xlane.xlu0 %821
      %v823 = vrcp.pop %v822
      %v824 = vmul.f32 %v819, %v823
      %v825 = vpack.c.bf16 %v824, %v824
      %vm826 = vcmask 125952
      %827 = vst.msk [vmem:[%s509] sm:$0xf] %vm826, %v825
      %v828 = vpack.c.bf16 %v750, %v747
      %v830 = vsel %vm813, %v825, 0
      %832 = vmatprep.subr.bf16.mxu0 0
      %833 = vmatpush1.bf16.msra.mxu0 0
      %834 = vmatprep.subr.bf16.mxu0 0
      %835 = vmatpush1.bf16.msra.mxu0 0
      %836 = vmatprep.subr.bf16.mxu0 0
      %837 = vmatpush1.bf16.msra.mxu0 0
      %838 = vmatprep.subr.bf16.mxu0 0
      %839 = vmatpush1.bf16.msra.mxu0 0
      %840 = vmatprep.subr.bf16.mxu0 0
      %841 = vmatpush1.bf16.msra.mxu0 0
      %842 = vmatprep.subr.bf16.mxu0 0
      %843 = vmatpush1.bf16.msra.mxu0 0
      %844 = vmatprep.subr.bf16.mxu0 0
      %845 = vmatpush1.bf16.msra.mxu0 0
      %846 = vmatprep.subr.bf16.mxu0 0
      %847 = vmatpush1.bf16.msra.mxu0 %v828
      %848 = vmatprep.subr.bf16.mxu0 0
      %849 = vmatpush2.bf16.msra.mxu0 0
      %850 = vmatprep.subr.bf16.mxu0 0
      %851 = vmatpush2.bf16.msra.mxu0 0
      %852 = vmatprep.subr.bf16.mxu0 0
      %853 = vmatpush2.bf16.msra.mxu0 0
      %854 = vmatprep.subr.bf16.mxu0 0
      %855 = vmatpush2.bf16.msra.mxu0 0
      %856 = vmatprep.subr.bf16.mxu0 0
      %857 = vmatpush2.bf16.msra.mxu0 0
      %858 = vmatprep.subr.bf16.mxu0 0
      %859 = vmatpush2.bf16.msra.mxu0 0
      %860 = vmatprep.subr.bf16.mxu0 0
      %861 = vmatpush2.bf16.msra.mxu0 0
      %862 = vmatprep.subr.bf16.mxu0 0
      %863 = vmatpush2.bf16.msra.mxu0 0
      %864 = vmatprep.mubr.bf16.mxu0 0
      %865 = vmatmul.mubr.bf16.gmra.mxu0 %v830
      %v866 = vpop.f32.mrf.mxu0
      %v867 = vadd.f32 0.0, %v866
      %v868 = vpop.f32.mrf.mxu0
      %v869 = vpop.f32.mrf.mxu0
      %v870 = vpop.f32.mrf.mxu0
      %871 = vdwg.mxu0
      %v872 = vpack.c.bf16 %v867, %v867
      %v873 = vld [vmem:[%s11] sm:$0xf]
      %s874 = scalar_lea.vmem %s5, 16
      %v875 = vld [vmem:[%s874] sm:$0xf]
      %v876 = vld [vmem:[%s874 + $0x4] sm:$0xf]
      %v877 = vld [vmem:[%s874 + $0x8] sm:$0xf]
      %v878 = vld [vmem:[%s874 + $0xc] sm:$0xf]
      %s879 = scalar_lea.vmem %s6, 1
      %v880 = vld [vmem:[%s879] sm:$0x1]
      %v882 = vlaneseq
      %v883 = vshrl.u32 %v882, 7
      %v884 = vsub.s32 0, %v883
      %v885 = vrot.slane %v880, %v884
      %v891 = vunpack.c.l.b16 %v875
      %v892 = vunpack.c.l.b16 %v876
      %v893 = vunpack.c.l.b16 %v877
      %v894 = vunpack.c.l.b16 %v878
      %v895 = vpack.c.b16 %v892, %v891
      %v896 = vpack.c.b16 %v894, %v893
      %899 = vmatprep.subr.bf16.mxu0 0
      %900 = vmatpush1.bf16.msra.mxu0 0
      %901 = vmatprep.subr.bf16.mxu0 0
      %902 = vmatpush1.bf16.msra.mxu0 0
      %903 = vmatprep.subr.bf16.mxu0 0
      %904 = vmatpush1.bf16.msra.mxu0 0
      %905 = vmatprep.subr.bf16.mxu0 0
      %906 = vmatpush1.bf16.msra.mxu0 0
      %907 = vmatprep.subr.bf16.mxu0 0
      %908 = vmatpush1.bf16.msra.mxu0 0
      %909 = vmatprep.subr.bf16.mxu0 0
      %910 = vmatpush1.bf16.msra.mxu0 0
      %911 = vmatprep.subr.bf16.mxu0 0
      %912 = vmatpush1.bf16.msra.mxu0 %v896
      %913 = vmatprep.subr.bf16.mxu0 0
      %914 = vmatpush1.bf16.msra.mxu0 %v895
      %915 = vmatprep.subr.bf16.mxu0 0
      %916 = vmatpush2.bf16.msra.mxu0 0
      %917 = vmatprep.subr.bf16.mxu0 0
      %918 = vmatpush2.bf16.msra.mxu0 0
      %919 = vmatprep.subr.bf16.mxu0 0
      %920 = vmatpush2.bf16.msra.mxu0 0
      %921 = vmatprep.subr.bf16.mxu0 0
      %922 = vmatpush2.bf16.msra.mxu0 0
      %923 = vmatprep.subr.bf16.mxu0 0
      %924 = vmatpush2.bf16.msra.mxu0 0
      %925 = vmatprep.subr.bf16.mxu0 0
      %926 = vmatpush2.bf16.msra.mxu0 0
      %927 = vmatprep.subr.bf16.mxu0 0
      %928 = vmatpush2.bf16.msra.mxu0 0
      %929 = vmatprep.subr.bf16.mxu0 0
      %930 = vmatpush2.bf16.msra.mxu0 0
      %931 = vmatprep.mubr.bf16.mxu0 0
      %932 = vmatmul.mubr.bf16.gmra.mxu0 %v575
      %v933 = vpop.f32.mrf.mxu0
      %v934 = vadd.f32 %v885, %v933
      %v935 = vpop.f32.mrf.mxu0
      %v936 = vpop.f32.mrf.mxu0
      %v937 = vpop.f32.mrf.mxu0
      %938 = vdwg.mxu0
      %s939 = scalar_lea.vmem %s7, 16
      %v940 = vld [vmem:[%s939] sm:$0xf]
      %v941 = vld [vmem:[%s939 + $0x4] sm:$0xf]
      %v942 = vld [vmem:[%s939 + $0x8] sm:$0xf]
      %v943 = vld [vmem:[%s939 + $0xc] sm:$0xf]
      %s944 = scalar_lea.vmem %s8, 1
      %v945 = vld [vmem:[%s944] sm:$0x1]
      %v947 = vlaneseq
      %v948 = vshrl.u32 %v947, 7
      %v949 = vsub.s32 0, %v948
      %v950 = vrot.slane %v945, %v949
      %v956 = vunpack.c.l.b16 %v940
      %v957 = vunpack.c.l.b16 %v941
      %v958 = vunpack.c.l.b16 %v942
      %v959 = vunpack.c.l.b16 %v943
      %v960 = vpack.c.b16 %v957, %v956
      %v961 = vpack.c.b16 %v959, %v958
      %964 = vmatprep.subr.bf16.mxu0 0
      %965 = vmatpush1.bf16.msra.mxu0 0
      %966 = vmatprep.subr.bf16.mxu0 0
      %967 = vmatpush1.bf16.msra.mxu0 0
      %968 = vmatprep.subr.bf16.mxu0 0
      %969 = vmatpush1.bf16.msra.mxu0 0
      %970 = vmatprep.subr.bf16.mxu0 0
      %971 = vmatpush1.bf16.msra.mxu0 0
      %972 = vmatprep.subr.bf16.mxu0 0
      %973 = vmatpush1.bf16.msra.mxu0 0
      %974 = vmatprep.subr.bf16.mxu0 0
      %975 = vmatpush1.bf16.msra.mxu0 0
      %976 = vmatprep.subr.bf16.mxu0 0
      %977 = vmatpush1.bf16.msra.mxu0 %v961
      %978 = vmatprep.subr.bf16.mxu0 0
      %979 = vmatpush1.bf16.msra.mxu0 %v960
      %980 = vmatprep.subr.bf16.mxu0 0
      %981 = vmatpush2.bf16.msra.mxu0 0
      %982 = vmatprep.subr.bf16.mxu0 0
      %983 = vmatpush2.bf16.msra.mxu0 0
      %984 = vmatprep.subr.bf16.mxu0 0
      %985 = vmatpush2.bf16.msra.mxu0 0
      %986 = vmatprep.subr.bf16.mxu0 0
      %987 = vmatpush2.bf16.msra.mxu0 0
      %988 = vmatprep.subr.bf16.mxu0 0
      %989 = vmatpush2.bf16.msra.mxu0 0
      %990 = vmatprep.subr.bf16.mxu0 0
      %991 = vmatpush2.bf16.msra.mxu0 0
      %992 = vmatprep.subr.bf16.mxu0 0
      %993 = vmatpush2.bf16.msra.mxu0 0
      %994 = vmatprep.subr.bf16.mxu0 0
      %995 = vmatpush2.bf16.msra.mxu0 0
      %996 = vmatprep.mubr.bf16.mxu0 0
      %997 = vmatmul.mubr.bf16.gmra.mxu0 %v646
      %v998 = vpop.f32.mrf.mxu0
      %v999 = vadd.f32 %v950, %v998
      %v1000 = vpop.f32.mrf.mxu0
      %v1001 = vpop.f32.mrf.mxu0
      %v1002 = vadd.f32 %v950, %v1001
      %v1003 = vpop.f32.mrf.mxu0
      %1004 = vdwg.mxu0
      %s1005 = scalar_lea.vmem %s9, 16
      %v1006 = vld [vmem:[%s1005] sm:$0xf]
      %v1007 = vld [vmem:[%s1005 + $0x4] sm:$0xf]
      %v1008 = vld [vmem:[%s1005 + $0x8] sm:$0xf]
      %v1009 = vld [vmem:[%s1005 + $0xc] sm:$0xf]
      %s1010 = scalar_lea.vmem %s10, 1
      %v1011 = vld [vmem:[%s1010] sm:$0x1]
      %v1013 = vlaneseq
      %v1014 = vshrl.u32 %v1013, 7
      %v1015 = vsub.s32 0, %v1014
      %v1016 = vrot.slane %v1011, %v1015
      %v1022 = vunpack.c.l.b16 %v1006
      %v1023 = vunpack.c.l.b16 %v1007
      %v1024 = vunpack.c.l.b16 %v1008
      %v1025 = vunpack.c.l.b16 %v1009
      %v1026 = vpack.c.b16 %v1023, %v1022
      %v1027 = vpack.c.b16 %v1025, %v1024
      %1030 = vmatprep.subr.bf16.mxu0 0
      %1031 = vmatpush1.bf16.msra.mxu0 0
      %1032 = vmatprep.subr.bf16.mxu0 0
      %1033 = vmatpush1.bf16.msra.mxu0 0
      %1034 = vmatprep.subr.bf16.mxu0 0
      %1035 = vmatpush1.bf16.msra.mxu0 0
      %1036 = vmatprep.subr.bf16.mxu0 0
      %1037 = vmatpush1.bf16.msra.mxu0 0
      %1038 = vmatprep.subr.bf16.mxu0 0
      %1039 = vmatpush1.bf16.msra.mxu0 0
      %1040 = vmatprep.subr.bf16.mxu0 0
      %1041 = vmatpush1.bf16.msra.mxu0 0
      %1042 = vmatprep.subr.bf16.mxu0 0
      %1043 = vmatpush1.bf16.msra.mxu0 %v1027
      %1044 = vmatprep.subr.bf16.mxu0 0
      %1045 = vmatpush1.bf16.msra.mxu0 %v1026
      %1046 = vmatprep.subr.bf16.mxu0 0
      %1047 = vmatpush2.bf16.msra.mxu0 0
      %1048 = vmatprep.subr.bf16.mxu0 0
      %1049 = vmatpush2.bf16.msra.mxu0 0
      %1050 = vmatprep.subr.bf16.mxu0 0
      %1051 = vmatpush2.bf16.msra.mxu0 0
      %1052 = vmatprep.subr.bf16.mxu0 0
      %1053 = vmatpush2.bf16.msra.mxu0 0
      %1054 = vmatprep.subr.bf16.mxu0 0
      %1055 = vmatpush2.bf16.msra.mxu0 0
      %1056 = vmatprep.subr.bf16.mxu0 0
      %1057 = vmatpush2.bf16.msra.mxu0 0
      %1058 = vmatprep.subr.bf16.mxu0 0
      %1059 = vmatpush2.bf16.msra.mxu0 0
      %1060 = vmatprep.subr.bf16.mxu0 0
      %1061 = vmatpush2.bf16.msra.mxu0 0
      %1062 = vmatprep.mubr.bf16.mxu0 0
      %1063 = vmatmul.mubr.bf16.gmra.mxu0 %v646
      %v1064 = vpop.f32.mrf.mxu0
      %v1065 = vadd.f32 %v1016, %v1064
      %v1066 = vpop.f32.mrf.mxu0
      %v1067 = vpop.f32.mrf.mxu0
      %v1068 = vadd.f32 %v1016, %v1067
      %v1069 = vpop.f32.mrf.mxu0
      %1070 = vdwg.mxu0
      %v1071 = vpack.c.bf16 %v934, %v934
      %v1072 = vpack.c.bf16 %v1002, %v999
      %v1074 = vsel %vm755, %v1071, 0
      %v1077 = vsel %vm755, %v1072, 0
      %1079 = vmatprep.subr.bf16.mxu0 0
      %1080 = vmatpush1.bf16.xpose.msra.mxu0 0
      %1081 = vmatprep.subr.bf16.mxu0 0
      %1082 = vmatpush1.bf16.xpose.msra.mxu0 0
      %1083 = vmatprep.subr.bf16.mxu0 0
      %1084 = vmatpush1.bf16.xpose.msra.mxu0 0
      %1085 = vmatprep.subr.bf16.mxu0 0
      %1086 = vmatpush1.bf16.xpose.msra.mxu0 0
      %1087 = vmatprep.subr.bf16.mxu0 0
      %1088 = vmatpush1.bf16.xpose.msra.mxu0 0
      %1089 = vmatprep.subr.bf16.mxu0 0
      %1090 = vmatpush1.bf16.xpose.msra.mxu0 0
      %1091 = vmatprep.subr.bf16.mxu0 0
      %1092 = vmatpush1.bf16.xpose.msra.mxu0 0
      %1093 = vmatprep.subr.bf16.mxu0 0
      %1094 = vmatpush1.bf16.xpose.msra.mxu0 %v1077
      %1095 = vmatprep.subr.bf16.mxu0 0
      %1096 = vmatpush2.bf16.xpose.msra.mxu0 0
      %1097 = vmatprep.subr.bf16.mxu0 0
      %1098 = vmatpush2.bf16.xpose.msra.mxu0 0
      %1099 = vmatprep.subr.bf16.mxu0 0
      %1100 = vmatpush2.bf16.xpose.msra.mxu0 0
      %1101 = vmatprep.subr.bf16.mxu0 0
      %1102 = vmatpush2.bf16.xpose.msra.mxu0 0
      %1103 = vmatprep.subr.bf16.mxu0 0
      %1104 = vmatpush2.bf16.xpose.msra.mxu0 0
      %1105 = vmatprep.subr.bf16.mxu0 0
      %1106 = vmatpush2.bf16.xpose.msra.mxu0 0
      %1107 = vmatprep.subr.bf16.mxu0 0
      %1108 = vmatpush2.bf16.xpose.msra.mxu0 0
      %1109 = vmatprep.subr.bf16.mxu0 0
      %1110 = vmatpush2.bf16.xpose.msra.mxu0 0
      %1111 = vmatprep.mubr.bf16.mxu0 0
      %1112 = vmatmul.mubr.bf16.gmra.mxu0 %v1074
      %v1113 = vpop.f32.mrf.mxu0
      %v1114 = vadd.f32 0.0, %v1113
      %v1115 = vpop.f32.mrf.mxu0
      %v1116 = vpop.f32.mrf.mxu0
      %v1117 = vpop.f32.mrf.mxu0
      %1118 = vdwg.mxu0
      %v1119 = vmul.f32 %v1114, 0.35355338
      %v1120 = vsel %vm811, %v1119, -1e+09
      %v1121 = vsel %vm813, %v1120, -inf
      %1122 = vmax.xlane.f32.xlu0 %v1121
      %v1123 = vpop.xlane.xlu0 %1122
      %v1124 = vsub.f32 %v1120, %v1123
      %v1125 = vmul.f32 %v1124, 1.442695
      %v1126 = vpow.pop %v1125
      %v1127 = vsel %vm813, %v1126, 0.0
      %1128 = vadd.xlane.f32.xlu0 %v1127
      %v1129 = vpop.xlane.xlu0 %1128
      %v1130 = vrcp.pop %v1129
      %v1131 = vmul.f32 %v1126, %v1130
      %v1132 = vpack.c.bf16 %v1131, %v1131
      %s1133 = scalar_lea.vmem %s509, 4
      %1134 = vst.msk [vmem:[%s1133] sm:$0xf] %vm826, %v1132
      %v1135 = vpack.c.bf16 %v1068, %v1065
      %v1137 = vsel %vm813, %v1132, 0
      %1139 = vmatprep.subr.bf16.mxu0 0
      %1140 = vmatpush1.bf16.msra.mxu0 0
      %1141 = vmatprep.subr.bf16.mxu0 0
      %1142 = vmatpush1.bf16.msra.mxu0 0
      %1143 = vmatprep.subr.bf16.mxu0 0
      %1144 = vmatpush1.bf16.msra.mxu0 0
      %1145 = vmatprep.subr.bf16.mxu0 0
      %1146 = vmatpush1.bf16.msra.mxu0 0
      %1147 = vmatprep.subr.bf16.mxu0 0
      %1148 = vmatpush1.bf16.msra.mxu0 0
      %1149 = vmatprep.subr.bf16.mxu0 0
      %1150 = vmatpush1.bf16.msra.mxu0 0
      %1151 = vmatprep.subr.bf16.mxu0 0
      %1152 = vmatpush1.bf16.msra.mxu0 0
      %1153 = vmatprep.subr.bf16.mxu0 0
      %1154 = vmatpush1.bf16.msra.mxu0 %v1135
      %1155 = vmatprep.subr.bf16.mxu0 0
      %1156 = vmatpush2.bf16.msra.mxu0 0
      %1157 = vmatprep.subr.bf16.mxu0 0
      %1158 = vmatpush2.bf16.msra.mxu0 0
      %1159 = vmatprep.subr.bf16.mxu0 0
      %1160 = vmatpush2.bf16.msra.mxu0 0
      %1161 = vmatprep.subr.bf16.mxu0 0
      %1162 = vmatpush2.bf16.msra.mxu0 0
      %1163 = vmatprep.subr.bf16.mxu0 0
      %1164 = vmatpush2.bf16.msra.mxu0 0
      %1165 = vmatprep.subr.bf16.mxu0 0
      %1166 = vmatpush2.bf16.msra.mxu0 0
      %1167 = vmatprep.subr.bf16.mxu0 0
      %1168 = vmatpush2.bf16.msra.mxu0 0
      %1169 = vmatprep.subr.bf16.mxu0 0
      %1170 = vmatpush2.bf16.msra.mxu0 0
      %1171 = vmatprep.mubr.bf16.mxu0 0
      %1172 = vmatmul.mubr.bf16.gmra.mxu0 %v1137
      %v1173 = vpop.f32.mrf.mxu0
      %v1174 = vadd.f32 0.0, %v1173
      %v1175 = vpop.f32.mrf.mxu0
      %v1176 = vpop.f32.mrf.mxu0
      %v1177 = vpop.f32.mrf.mxu0
      %1178 = vdwg.mxu0
      %v1179 = vpack.c.bf16 %v1174, %v1174
      %s1180 = scalar_lea.vmem %s11, 4
      %v1181 = vld [vmem:[%s1180] sm:$0xf]
      %v1183 = vsel %vm755, %v1179, 0
      %vm1185 = vcmask 1043456
      %v1187 = vsel %vm1185, %v1181, 0
      %1189 = vmatprep.subr.bf16.mxu0 0
      %1190 = vmatpush1.bf16.msra.mxu0 0
      %1191 = vmatprep.subr.bf16.mxu0 0
      %1192 = vmatpush1.bf16.msra.mxu0 0
      %1193 = vmatprep.subr.bf16.mxu0 0
      %1194 = vmatpush1.bf16.msra.mxu0 0
      %1195 = vmatprep.subr.bf16.mxu0 0
      %1196 = vmatpush1.bf16.msra.mxu0 0
      %1197 = vmatprep.subr.bf16.mxu0 0
      %1198 = vmatpush1.bf16.msra.mxu0 0
      %1199 = vmatprep.subr.bf16.mxu0 0
      %1200 = vmatpush1.bf16.msra.mxu0 0
      %1201 = vmatprep.subr.bf16.mxu0 0
      %1202 = vmatpush1.bf16.msra.mxu0 0
      %1203 = vmatprep.subr.bf16.mxu0 0
      %1204 = vmatpush1.bf16.msra.mxu0 %v1187
      %1205 = vmatprep.subr.bf16.mxu0 0
      %1206 = vmatpush2.bf16.msra.mxu0 0
      %1207 = vmatprep.subr.bf16.mxu0 0
      %1208 = vmatpush2.bf16.msra.mxu0 0
      %1209 = vmatprep.subr.bf16.mxu0 0
      %1210 = vmatpush2.bf16.msra.mxu0 0
      %1211 = vmatprep.subr.bf16.mxu0 0
      %1212 = vmatpush2.bf16.msra.mxu0 0
      %1213 = vmatprep.subr.bf16.mxu0 0
      %1214 = vmatpush2.bf16.msra.mxu0 0
      %1215 = vmatprep.subr.bf16.mxu0 0
      %1216 = vmatpush2.bf16.msra.mxu0 0
      %1217 = vmatprep.subr.bf16.mxu0 0
      %1218 = vmatpush2.bf16.msra.mxu0 0
      %1219 = vmatprep.subr.bf16.mxu0 0
      %1220 = vmatpush2.bf16.msra.mxu0 0
      %1221 = vmatprep.mubr.bf16.mxu0 0
      %1222 = vmatmul.mubr.bf16.gmra.mxu0 %v1183
      %v1223 = vpop.f32.mrf.mxu0
      %v1224 = vadd.f32 0.0, %v1223
      %v1225 = vpop.f32.mrf.mxu0
      %v1226 = vpop.f32.mrf.mxu0
      %v1227 = vpop.f32.mrf.mxu0
      %1228 = vdwg.mxu0
      %v1230 = vsel %vm755, %v872, 0
      %v1233 = vsel %vm1185, %v873, 0
      %1235 = vmatprep.subr.bf16.mxu0 0
      %1236 = vmatpush1.bf16.msra.mxu0 0
      %1237 = vmatprep.subr.bf16.mxu0 0
      %1238 = vmatpush1.bf16.msra.mxu0 0
      %1239 = vmatprep.subr.bf16.mxu0 0
      %1240 = vmatpush1.bf16.msra.mxu0 0
      %1241 = vmatprep.subr.bf16.mxu0 0
      %1242 = vmatpush1.bf16.msra.mxu0 0
      %1243 = vmatprep.subr.bf16.mxu0 0
      %1244 = vmatpush1.bf16.msra.mxu0 0
      %1245 = vmatprep.subr.bf16.mxu0 0
      %1246 = vmatpush1.bf16.msra.mxu0 0
      %1247 = vmatprep.subr.bf16.mxu0 0
      %1248 = vmatpush1.bf16.msra.mxu0 0
      %1249 = vmatprep.subr.bf16.mxu0 0
      %1250 = vmatpush1.bf16.msra.mxu0 %v1233
      %1251 = vmatprep.subr.bf16.mxu0 0
      %1252 = vmatpush2.bf16.msra.mxu0 0
      %1253 = vmatprep.subr.bf16.mxu0 0
      %1254 = vmatpush2.bf16.msra.mxu0 0
      %1255 = vmatprep.subr.bf16.mxu0 0
      %1256 = vmatpush2.bf16.msra.mxu0 0
      %1257 = vmatprep.subr.bf16.mxu0 0
      %1258 = vmatpush2.bf16.msra.mxu0 0
      %1259 = vmatprep.subr.bf16.mxu0 0
      %1260 = vmatpush2.bf16.msra.mxu0 0
      %1261 = vmatprep.subr.bf16.mxu0 0
      %1262 = vmatpush2.bf16.msra.mxu0 0
      %1263 = vmatprep.subr.bf16.mxu0 0
      %1264 = vmatpush2.bf16.msra.mxu0 0
      %1265 = vmatprep.subr.bf16.mxu0 0
      %1266 = vmatpush2.bf16.msra.mxu0 0
      %1267 = vmatprep.mubr.bf16.mxu0 0
      %1268 = vmatmul.mubr.bf16.gmra.mxu0 %v1230
      %v1269 = vpop.f32.mrf.mxu0
      %v1270 = vadd.f32 %v1224, %v1269
      %v1271 = vpop.f32.mrf.mxu0
      %v1272 = vpop.f32.mrf.mxu0
      %v1273 = vpop.f32.mrf.mxu0
      %1274 = vdwg.mxu0
      %s1275 = scalar_lea.vmem %s5, 32
      %v1276 = vld [vmem:[%s1275] sm:$0xf]
      %v1277 = vld [vmem:[%s1275 + $0x4] sm:$0xf]
      %v1278 = vld [vmem:[%s1275 + $0x8] sm:$0xf]
      %v1279 = vld [vmem:[%s1275 + $0xc] sm:$0xf]
      %s1280 = scalar_lea.vmem %s6, 2
      %v1281 = vld [vmem:[%s1280] sm:$0x1]
      %v1283 = vlaneseq
      %v1284 = vshrl.u32 %v1283, 7
      %v1285 = vsub.s32 0, %v1284
      %v1286 = vrot.slane %v1281, %v1285
      %v1292 = vunpack.c.l.b16 %v1276
      %v1293 = vunpack.c.l.b16 %v1277
      %v1294 = vunpack.c.l.b16 %v1278
      %v1295 = vunpack.c.l.b16 %v1279
      %v1296 = vpack.c.b16 %v1293, %v1292
      %v1297 = vpack.c.b16 %v1295, %v1294
      %1300 = vmatprep.subr.bf16.mxu0 0
      %1301 = vmatpush1.bf16.msra.mxu0 0
      %1302 = vmatprep.subr.bf16.mxu0 0
      %1303 = vmatpush1.bf16.msra.mxu0 0
      %1304 = vmatprep.subr.bf16.mxu0 0
      %1305 = vmatpush1.bf16.msra.mxu0 0
      %1306 = vmatprep.subr.bf16.mxu0 0
      %1307 = vmatpush1.bf16.msra.mxu0 0
      %1308 = vmatprep.subr.bf16.mxu0 0
      %1309 = vmatpush1.bf16.msra.mxu0 0
      %1310 = vmatprep.subr.bf16.mxu0 0
      %1311 = vmatpush1.bf16.msra.mxu0 0
      %1312 = vmatprep.subr.bf16.mxu0 0
      %1313 = vmatpush1.bf16.msra.mxu0 %v1297
      %1314 = vmatprep.subr.bf16.mxu0 0
      %1315 = vmatpush1.bf16.msra.mxu0 %v1296
      %1316 = vmatprep.subr.bf16.mxu0 0
      %1317 = vmatpush2.bf16.msra.mxu0 0
      %1318 = vmatprep.subr.bf16.mxu0 0
      %1319 = vmatpush2.bf16.msra.mxu0 0
      %1320 = vmatprep.subr.bf16.mxu0 0
      %1321 = vmatpush2.bf16.msra.mxu0 0
      %1322 = vmatprep.subr.bf16.mxu0 0
      %1323 = vmatpush2.bf16.msra.mxu0 0
      %1324 = vmatprep.subr.bf16.mxu0 0
      %1325 = vmatpush2.bf16.msra.mxu0 0
      %1326 = vmatprep.subr.bf16.mxu0 0
      %1327 = vmatpush2.bf16.msra.mxu0 0
      %1328 = vmatprep.subr.bf16.mxu0 0
      %1329 = vmatpush2.bf16.msra.mxu0 0
      %1330 = vmatprep.subr.bf16.mxu0 0
      %1331 = vmatpush2.bf16.msra.mxu0 0
      %1332 = vmatprep.mubr.bf16.mxu0 0
      %1333 = vmatmul.mubr.bf16.gmra.mxu0 %v575
      %v1334 = vpop.f32.mrf.mxu0
      %v1335 = vadd.f32 %v1286, %v1334
      %v1336 = vpop.f32.mrf.mxu0
      %v1337 = vpop.f32.mrf.mxu0
      %v1338 = vpop.f32.mrf.mxu0
      %1339 = vdwg.mxu0
      %s1340 = scalar_lea.vmem %s7, 32
      %v1341 = vld [vmem:[%s1340] sm:$0xf]
      %v1342 = vld [vmem:[%s1340 + $0x4] sm:$0xf]
      %v1343 = vld [vmem:[%s1340 + $0x8] sm:$0xf]
      %v1344 = vld [vmem:[%s1340 + $0xc] sm:$0xf]
      %s1345 = scalar_lea.vmem %s8, 2
      %v1346 = vld [vmem:[%s1345] sm:$0x1]
      %v1348 = vlaneseq
      %v1349 = vshrl.u32 %v1348, 7
      %v1350 = vsub.s32 0, %v1349
      %v1351 = vrot.slane %v1346, %v1350
      %v1357 = vunpack.c.l.b16 %v1341
      %v1358 = vunpack.c.l.b16 %v1342
      %v1359 = vunpack.c.l.b16 %v1343
      %v1360 = vunpack.c.l.b16 %v1344
      %v1361 = vpack.c.b16 %v1358, %v1357
      %v1362 = vpack.c.b16 %v1360, %v1359
      %1365 = vmatprep.subr.bf16.mxu0 0
      %1366 = vmatpush1.bf16.msra.mxu0 0
      %1367 = vmatprep.subr.bf16.mxu0 0
      %1368 = vmatpush1.bf16.msra.mxu0 0
      %1369 = vmatprep.subr.bf16.mxu0 0
      %1370 = vmatpush1.bf16.msra.mxu0 0
      %1371 = vmatprep.subr.bf16.mxu0 0
      %1372 = vmatpush1.bf16.msra.mxu0 0
      %1373 = vmatprep.subr.bf16.mxu0 0
      %1374 = vmatpush1.bf16.msra.mxu0 0
      %1375 = vmatprep.subr.bf16.mxu0 0
      %1376 = vmatpush1.bf16.msra.mxu0 0
      %1377 = vmatprep.subr.bf16.mxu0 0
      %1378 = vmatpush1.bf16.msra.mxu0 %v1362
      %1379 = vmatprep.subr.bf16.mxu0 0
      %1380 = vmatpush1.bf16.msra.mxu0 %v1361
      %1381 = vmatprep.subr.bf16.mxu0 0
      %1382 = vmatpush2.bf16.msra.mxu0 0
      %1383 = vmatprep.subr.bf16.mxu0 0
      %1384 = vmatpush2.bf16.msra.mxu0 0
      %1385 = vmatprep.subr.bf16.mxu0 0
      %1386 = vmatpush2.bf16.msra.mxu0 0
      %1387 = vmatprep.subr.bf16.mxu0 0
      %1388 = vmatpush2.bf16.msra.mxu0 0
      %1389 = vmatprep.subr.bf16.mxu0 0
      %1390 = vmatpush2.bf16.msra.mxu0 0
      %1391 = vmatprep.subr.bf16.mxu0 0
      %1392 = vmatpush2.bf16.msra.mxu0 0
      %1393 = vmatprep.subr.bf16.mxu0 0
      %1394 = vmatpush2.bf16.msra.mxu0 0
      %1395 = vmatprep.subr.bf16.mxu0 0
      %1396 = vmatpush2.bf16.msra.mxu0 0
      %1397 = vmatprep.mubr.bf16.mxu0 0
      %1398 = vmatmul.mubr.bf16.gmra.mxu0 %v646
      %v1399 = vpop.f32.mrf.mxu0
      %v1400 = vadd.f32 %v1351, %v1399
      %v1401 = vpop.f32.mrf.mxu0
      %v1402 = vpop.f32.mrf.mxu0
      %v1403 = vadd.f32 %v1351, %v1402
      %v1404 = vpop.f32.mrf.mxu0
      %1405 = vdwg.mxu0
      %s1406 = scalar_lea.vmem %s9, 32
      %v1407 = vld [vmem:[%s1406] sm:$0xf]
      %v1408 = vld [vmem:[%s1406 + $0x4] sm:$0xf]
      %v1409 = vld [vmem:[%s1406 + $0x8] sm:$0xf]
      %v1410 = vld [vmem:[%s1406 + $0xc] sm:$0xf]
      %s1411 = scalar_lea.vmem %s10, 2
      %v1412 = vld [vmem:[%s1411] sm:$0x1]
      %v1414 = vlaneseq
      %v1415 = vshrl.u32 %v1414, 7
      %v1416 = vsub.s32 0, %v1415
      %v1417 = vrot.slane %v1412, %v1416
      %v1423 = vunpack.c.l.b16 %v1407
      %v1424 = vunpack.c.l.b16 %v1408
      %v1425 = vunpack.c.l.b16 %v1409
      %v1426 = vunpack.c.l.b16 %v1410
      %v1427 = vpack.c.b16 %v1424, %v1423
      %v1428 = vpack.c.b16 %v1426, %v1425
      %1431 = vmatprep.subr.bf16.mxu0 0
      %1432 = vmatpush1.bf16.msra.mxu0 0
      %1433 = vmatprep.subr.bf16.mxu0 0
      %1434 = vmatpush1.bf16.msra.mxu0 0
      %1435 = vmatprep.subr.bf16.mxu0 0
      %1436 = vmatpush1.bf16.msra.mxu0 0
      %1437 = vmatprep.subr.bf16.mxu0 0
      %1438 = vmatpush1.bf16.msra.mxu0 0
      %1439 = vmatprep.subr.bf16.mxu0 0
      %1440 = vmatpush1.bf16.msra.mxu0 0
      %1441 = vmatprep.subr.bf16.mxu0 0
      %1442 = vmatpush1.bf16.msra.mxu0 0
      %1443 = vmatprep.subr.bf16.mxu0 0
      %1444 = vmatpush1.bf16.msra.mxu0 %v1428
      %1445 = vmatprep.subr.bf16.mxu0 0
      %1446 = vmatpush1.bf16.msra.mxu0 %v1427
      %1447 = vmatprep.subr.bf16.mxu0 0
      %1448 = vmatpush2.bf16.msra.mxu0 0
      %1449 = vmatprep.subr.bf16.mxu0 0
      %1450 = vmatpush2.bf16.msra.mxu0 0
      %1451 = vmatprep.subr.bf16.mxu0 0
      %1452 = vmatpush2.bf16.msra.mxu0 0
      %1453 = vmatprep.subr.bf16.mxu0 0
      %1454 = vmatpush2.bf16.msra.mxu0 0
      %1455 = vmatprep.subr.bf16.mxu0 0
      %1456 = vmatpush2.bf16.msra.mxu0 0
      %1457 = vmatprep.subr.bf16.mxu0 0
      %1458 = vmatpush2.bf16.msra.mxu0 0
      %1459 = vmatprep.subr.bf16.mxu0 0
      %1460 = vmatpush2.bf16.msra.mxu0 0
      %1461 = vmatprep.subr.bf16.mxu0 0
      %1462 = vmatpush2.bf16.msra.mxu0 0
      %1463 = vmatprep.mubr.bf16.mxu0 0
      %1464 = vmatmul.mubr.bf16.gmra.mxu0 %v646
      %v1465 = vpop.f32.mrf.mxu0
      %v1466 = vadd.f32 %v1417, %v1465
      %v1467 = vpop.f32.mrf.mxu0
      %v1468 = vpop.f32.mrf.mxu0
      %v1469 = vadd.f32 %v1417, %v1468
      %v1470 = vpop.f32.mrf.mxu0
      %1471 = vdwg.mxu0
      %v1472 = vpack.c.bf16 %v1335, %v1335
      %v1473 = vpack.c.bf16 %v1403, %v1400
      %v1475 = vsel %vm755, %v1472, 0
      %v1478 = vsel %vm755, %v1473, 0
      %1480 = vmatprep.subr.bf16.mxu0 0
      %1481 = vmatpush1.bf16.xpose.msra.mxu0 0
      %1482 = vmatprep.subr.bf16.mxu0 0
      %1483 = vmatpush1.bf16.xpose.msra.mxu0 0
      %1484 = vmatprep.subr.bf16.mxu0 0
      %1485 = vmatpush1.bf16.xpose.msra.mxu0 0
      %1486 = vmatprep.subr.bf16.mxu0 0
      %1487 = vmatpush1.bf16.xpose.msra.mxu0 0
      %1488 = vmatprep.subr.bf16.mxu0 0
      %1489 = vmatpush1.bf16.xpose.msra.mxu0 0
      %1490 = vmatprep.subr.bf16.mxu0 0
      %1491 = vmatpush1.bf16.xpose.msra.mxu0 0
      %1492 = vmatprep.subr.bf16.mxu0 0
      %1493 = vmatpush1.bf16.xpose.msra.mxu0 0
      %1494 = vmatprep.subr.bf16.mxu0 0
      %1495 = vmatpush1.bf16.xpose.msra.mxu0 %v1478
      %1496 = vmatprep.subr.bf16.mxu0 0
      %1497 = vmatpush2.bf16.xpose.msra.mxu0 0
      %1498 = vmatprep.subr.bf16.mxu0 0
      %1499 = vmatpush2.bf16.xpose.msra.mxu0 0
      %1500 = vmatprep.subr.bf16.mxu0 0
      %1501 = vmatpush2.bf16.xpose.msra.mxu0 0
      %1502 = vmatprep.subr.bf16.mxu0 0
      %1503 = vmatpush2.bf16.xpose.msra.mxu0 0
      %1504 = vmatprep.subr.bf16.mxu0 0
      %1505 = vmatpush2.bf16.xpose.msra.mxu0 0
      %1506 = vmatprep.subr.bf16.mxu0 0
      %1507 = vmatpush2.bf16.xpose.msra.mxu0 0
      %1508 = vmatprep.subr.bf16.mxu0 0
      %1509 = vmatpush2.bf16.xpose.msra.mxu0 0
      %1510 = vmatprep.subr.bf16.mxu0 0
      %1511 = vmatpush2.bf16.xpose.msra.mxu0 0
      %1512 = vmatprep.mubr.bf16.mxu0 0
      %1513 = vmatmul.mubr.bf16.gmra.mxu0 %v1475
      %v1514 = vpop.f32.mrf.mxu0
      %v1515 = vadd.f32 0.0, %v1514
      %v1516 = vpop.f32.mrf.mxu0
      %v1517 = vpop.f32.mrf.mxu0
      %v1518 = vpop.f32.mrf.mxu0
      %1519 = vdwg.mxu0
      %v1520 = vmul.f32 %v1515, 0.35355338
      %v1521 = vsel %vm811, %v1520, -1e+09
      %v1522 = vsel %vm813, %v1521, -inf
      %1523 = vmax.xlane.f32.xlu0 %v1522
      %v1524 = vpop.xlane.xlu0 %1523
      %v1525 = vsub.f32 %v1521, %v1524
      %v1526 = vmul.f32 %v1525, 1.442695
      %v1527 = vpow.pop %v1526
      %v1528 = vsel %vm813, %v1527, 0.0
      %1529 = vadd.xlane.f32.xlu0 %v1528
      %v1530 = vpop.xlane.xlu0 %1529
      %v1531 = vrcp.pop %v1530
      %v1532 = vmul.f32 %v1527, %v1531
      %v1533 = vpack.c.bf16 %v1532, %v1532
      %s1534 = scalar_lea.vmem %s509, 8
      %1535 = vst.msk [vmem:[%s1534] sm:$0xf] %vm826, %v1533
      %v1536 = vpack.c.bf16 %v1469, %v1466
      %v1538 = vsel %vm813, %v1533, 0
      %1540 = vmatprep.subr.bf16.mxu0 0
      %1541 = vmatpush1.bf16.msra.mxu0 0
      %1542 = vmatprep.subr.bf16.mxu0 0
      %1543 = vmatpush1.bf16.msra.mxu0 0
      %1544 = vmatprep.subr.bf16.mxu0 0
      %1545 = vmatpush1.bf16.msra.mxu0 0
      %1546 = vmatprep.subr.bf16.mxu0 0
      %1547 = vmatpush1.bf16.msra.mxu0 0
      %1548 = vmatprep.subr.bf16.mxu0 0
      %1549 = vmatpush1.bf16.msra.mxu0 0
      %1550 = vmatprep.subr.bf16.mxu0 0
      %1551 = vmatpush1.bf16.msra.mxu0 0
      %1552 = vmatprep.subr.bf16.mxu0 0
      %1553 = vmatpush1.bf16.msra.mxu0 0
      %1554 = vmatprep.subr.bf16.mxu0 0
      %1555 = vmatpush1.bf16.msra.mxu0 %v1536
      %1556 = vmatprep.subr.bf16.mxu0 0
      %1557 = vmatpush2.bf16.msra.mxu0 0
      %1558 = vmatprep.subr.bf16.mxu0 0
      %1559 = vmatpush2.bf16.msra.mxu0 0
      %1560 = vmatprep.subr.bf16.mxu0 0
      %1561 = vmatpush2.bf16.msra.mxu0 0
      %1562 = vmatprep.subr.bf16.mxu0 0
      %1563 = vmatpush2.bf16.msra.mxu0 0
      %1564 = vmatprep.subr.bf16.mxu0 0
      %1565 = vmatpush2.bf16.msra.mxu0 0
      %1566 = vmatprep.subr.bf16.mxu0 0
      %1567 = vmatpush2.bf16.msra.mxu0 0
      %1568 = vmatprep.subr.bf16.mxu0 0
      %1569 = vmatpush2.bf16.msra.mxu0 0
      %1570 = vmatprep.subr.bf16.mxu0 0
      %1571 = vmatpush2.bf16.msra.mxu0 0
      %1572 = vmatprep.mubr.bf16.mxu0 0
      %1573 = vmatmul.mubr.bf16.gmra.mxu0 %v1538
      %v1574 = vpop.f32.mrf.mxu0
      %v1575 = vadd.f32 0.0, %v1574
      %v1576 = vpop.f32.mrf.mxu0
      %v1577 = vpop.f32.mrf.mxu0
      %v1578 = vpop.f32.mrf.mxu0
      %1579 = vdwg.mxu0
      %v1580 = vpack.c.bf16 %v1575, %v1575
      %s1581 = scalar_lea.vmem %s11, 8
      %v1582 = vld [vmem:[%s1581] sm:$0xf]
      %v1584 = vsel %vm755, %v1580, 0
      %v1587 = vsel %vm1185, %v1582, 0
      %1589 = vmatprep.subr.bf16.mxu0 0
      %1590 = vmatpush1.bf16.msra.mxu0 0
      %1591 = vmatprep.subr.bf16.mxu0 0
      %1592 = vmatpush1.bf16.msra.mxu0 0
      %1593 = vmatprep.subr.bf16.mxu0 0
      %1594 = vmatpush1.bf16.msra.mxu0 0
      %1595 = vmatprep.subr.bf16.mxu0 0
      %1596 = vmatpush1.bf16.msra.mxu0 0
      %1597 = vmatprep.subr.bf16.mxu0 0
      %1598 = vmatpush1.bf16.msra.mxu0 0
      %1599 = vmatprep.subr.bf16.mxu0 0
      %1600 = vmatpush1.bf16.msra.mxu0 0
      %1601 = vmatprep.subr.bf16.mxu0 0
      %1602 = vmatpush1.bf16.msra.mxu0 0
      %1603 = vmatprep.subr.bf16.mxu0 0
      %1604 = vmatpush1.bf16.msra.mxu0 %v1587
      %1605 = vmatprep.subr.bf16.mxu0 0
      %1606 = vmatpush2.bf16.msra.mxu0 0
      %1607 = vmatprep.subr.bf16.mxu0 0
      %1608 = vmatpush2.bf16.msra.mxu0 0
      %1609 = vmatprep.subr.bf16.mxu0 0
      %1610 = vmatpush2.bf16.msra.mxu0 0
      %1611 = vmatprep.subr.bf16.mxu0 0
      %1612 = vmatpush2.bf16.msra.mxu0 0
      %1613 = vmatprep.subr.bf16.mxu0 0
      %1614 = vmatpush2.bf16.msra.mxu0 0
      %1615 = vmatprep.subr.bf16.mxu0 0
      %1616 = vmatpush2.bf16.msra.mxu0 0
      %1617 = vmatprep.subr.bf16.mxu0 0
      %1618 = vmatpush2.bf16.msra.mxu0 0
      %1619 = vmatprep.subr.bf16.mxu0 0
      %1620 = vmatpush2.bf16.msra.mxu0 0
      %1621 = vmatprep.mubr.bf16.mxu0 0
      %1622 = vmatmul.mubr.bf16.gmra.mxu0 %v1584
      %v1623 = vpop.f32.mrf.mxu0
      %v1624 = vadd.f32 0.0, %v1623
      %v1625 = vpop.f32.mrf.mxu0
      %v1626 = vpop.f32.mrf.mxu0
      %v1627 = vpop.f32.mrf.mxu0
      %1628 = vdwg.mxu0
      %v1629 = vadd.f32 %v1270, %v1624
      %s1630 = scalar_lea.vmem %s5, 48
      %v1631 = vld [vmem:[%s1630] sm:$0xf]
      %v1632 = vld [vmem:[%s1630 + $0x4] sm:$0xf]
      %v1633 = vld [vmem:[%s1630 + $0x8] sm:$0xf]
      %v1634 = vld [vmem:[%s1630 + $0xc] sm:$0xf]
      %s1635 = scalar_lea.vmem %s6, 3
      %v1636 = vld [vmem:[%s1635] sm:$0x1]
      %v1638 = vlaneseq
      %v1639 = vshrl.u32 %v1638, 7
      %v1640 = vsub.s32 0, %v1639
      %v1641 = vrot.slane %v1636, %v1640
      %v1647 = vunpack.c.l.b16 %v1631
      %v1648 = vunpack.c.l.b16 %v1632
      %v1649 = vunpack.c.l.b16 %v1633
      %v1650 = vunpack.c.l.b16 %v1634
      %v1651 = vpack.c.b16 %v1648, %v1647
      %v1652 = vpack.c.b16 %v1650, %v1649
      %1655 = vmatprep.subr.bf16.mxu0 0
      %1656 = vmatpush1.bf16.msra.mxu0 0
      %1657 = vmatprep.subr.bf16.mxu0 0
      %1658 = vmatpush1.bf16.msra.mxu0 0
      %1659 = vmatprep.subr.bf16.mxu0 0
      %1660 = vmatpush1.bf16.msra.mxu0 0
      %1661 = vmatprep.subr.bf16.mxu0 0
      %1662 = vmatpush1.bf16.msra.mxu0 0
      %1663 = vmatprep.subr.bf16.mxu0 0
      %1664 = vmatpush1.bf16.msra.mxu0 0
      %1665 = vmatprep.subr.bf16.mxu0 0
      %1666 = vmatpush1.bf16.msra.mxu0 0
      %1667 = vmatprep.subr.bf16.mxu0 0
      %1668 = vmatpush1.bf16.msra.mxu0 %v1652
      %1669 = vmatprep.subr.bf16.mxu0 0
      %1670 = vmatpush1.bf16.msra.mxu0 %v1651
      %1671 = vmatprep.subr.bf16.mxu0 0
      %1672 = vmatpush2.bf16.msra.mxu0 0
      %1673 = vmatprep.subr.bf16.mxu0 0
      %1674 = vmatpush2.bf16.msra.mxu0 0
      %1675 = vmatprep.subr.bf16.mxu0 0
      %1676 = vmatpush2.bf16.msra.mxu0 0
      %1677 = vmatprep.subr.bf16.mxu0 0
      %1678 = vmatpush2.bf16.msra.mxu0 0
      %1679 = vmatprep.subr.bf16.mxu0 0
      %1680 = vmatpush2.bf16.msra.mxu0 0
      %1681 = vmatprep.subr.bf16.mxu0 0
      %1682 = vmatpush2.bf16.msra.mxu0 0
      %1683 = vmatprep.subr.bf16.mxu0 0
      %1684 = vmatpush2.bf16.msra.mxu0 0
      %1685 = vmatprep.subr.bf16.mxu0 0
      %1686 = vmatpush2.bf16.msra.mxu0 0
      %1687 = vmatprep.mubr.bf16.mxu0 0
      %1688 = vmatmul.mubr.bf16.gmra.mxu0 %v575
      %v1689 = vpop.f32.mrf.mxu0
      %v1690 = vadd.f32 %v1641, %v1689
      %v1691 = vpop.f32.mrf.mxu0
      %v1692 = vpop.f32.mrf.mxu0
      %v1693 = vpop.f32.mrf.mxu0
      %1694 = vdwg.mxu0
      %s1695 = scalar_lea.vmem %s7, 48
      %v1696 = vld [vmem:[%s1695] sm:$0xf]
      %v1697 = vld [vmem:[%s1695 + $0x4] sm:$0xf]
      %v1698 = vld [vmem:[%s1695 + $0x8] sm:$0xf]
      %v1699 = vld [vmem:[%s1695 + $0xc] sm:$0xf]
      %s1700 = scalar_lea.vmem %s8, 3
      %v1701 = vld [vmem:[%s1700] sm:$0x1]
      %v1703 = vlaneseq
      %v1704 = vshrl.u32 %v1703, 7
      %v1705 = vsub.s32 0, %v1704
      %v1706 = vrot.slane %v1701, %v1705
      %v1712 = vunpack.c.l.b16 %v1696
      %v1713 = vunpack.c.l.b16 %v1697
      %v1714 = vunpack.c.l.b16 %v1698
      %v1715 = vunpack.c.l.b16 %v1699
      %v1716 = vpack.c.b16 %v1713, %v1712
      %v1717 = vpack.c.b16 %v1715, %v1714
      %1720 = vmatprep.subr.bf16.mxu0 0
      %1721 = vmatpush1.bf16.msra.mxu0 0
      %1722 = vmatprep.subr.bf16.mxu0 0
      %1723 = vmatpush1.bf16.msra.mxu0 0
      %1724 = vmatprep.subr.bf16.mxu0 0
      %1725 = vmatpush1.bf16.msra.mxu0 0
      %1726 = vmatprep.subr.bf16.mxu0 0
      %1727 = vmatpush1.bf16.msra.mxu0 0
      %1728 = vmatprep.subr.bf16.mxu0 0
      %1729 = vmatpush1.bf16.msra.mxu0 0
      %1730 = vmatprep.subr.bf16.mxu0 0
      %1731 = vmatpush1.bf16.msra.mxu0 0
      %1732 = vmatprep.subr.bf16.mxu0 0
      %1733 = vmatpush1.bf16.msra.mxu0 %v1717
      %1734 = vmatprep.subr.bf16.mxu0 0
      %1735 = vmatpush1.bf16.msra.mxu0 %v1716
      %1736 = vmatprep.subr.bf16.mxu0 0
      %1737 = vmatpush2.bf16.msra.mxu0 0
      %1738 = vmatprep.subr.bf16.mxu0 0
      %1739 = vmatpush2.bf16.msra.mxu0 0
      %1740 = vmatprep.subr.bf16.mxu0 0
      %1741 = vmatpush2.bf16.msra.mxu0 0
      %1742 = vmatprep.subr.bf16.mxu0 0
      %1743 = vmatpush2.bf16.msra.mxu0 0
      %1744 = vmatprep.subr.bf16.mxu0 0
      %1745 = vmatpush2.bf16.msra.mxu0 0
      %1746 = vmatprep.subr.bf16.mxu0 0
      %1747 = vmatpush2.bf16.msra.mxu0 0
      %1748 = vmatprep.subr.bf16.mxu0 0
      %1749 = vmatpush2.bf16.msra.mxu0 0
      %1750 = vmatprep.subr.bf16.mxu0 0
      %1751 = vmatpush2.bf16.msra.mxu0 0
      %1752 = vmatprep.mubr.bf16.mxu0 0
      %1753 = vmatmul.mubr.bf16.gmra.mxu0 %v646
      %v1754 = vpop.f32.mrf.mxu0
      %v1755 = vadd.f32 %v1706, %v1754
      %v1756 = vpop.f32.mrf.mxu0
      %v1757 = vpop.f32.mrf.mxu0
      %v1758 = vadd.f32 %v1706, %v1757
      %v1759 = vpop.f32.mrf.mxu0
      %1760 = vdwg.mxu0
      %s1761 = scalar_lea.vmem %s9, 48
      %v1762 = vld [vmem:[%s1761] sm:$0xf]
      %v1763 = vld [vmem:[%s1761 + $0x4] sm:$0xf]
      %v1764 = vld [vmem:[%s1761 + $0x8] sm:$0xf]
      %v1765 = vld [vmem:[%s1761 + $0xc] sm:$0xf]
      %s1766 = scalar_lea.vmem %s10, 3
      %v1767 = vld [vmem:[%s1766] sm:$0x1]
      %v1769 = vlaneseq
      %v1770 = vshrl.u32 %v1769, 7
      %v1771 = vsub.s32 0, %v1770
      %v1772 = vrot.slane %v1767, %v1771
      %v1778 = vunpack.c.l.b16 %v1762
      %v1779 = vunpack.c.l.b16 %v1763
      %v1780 = vunpack.c.l.b16 %v1764
      %v1781 = vunpack.c.l.b16 %v1765
      %v1782 = vpack.c.b16 %v1779, %v1778
      %v1783 = vpack.c.b16 %v1781, %v1780
      %1786 = vmatprep.subr.bf16.mxu0 0
      %1787 = vmatpush1.bf16.msra.mxu0 0
      %1788 = vmatprep.subr.bf16.mxu0 0
      %1789 = vmatpush1.bf16.msra.mxu0 0
      %1790 = vmatprep.subr.bf16.mxu0 0
      %1791 = vmatpush1.bf16.msra.mxu0 0
      %1792 = vmatprep.subr.bf16.mxu0 0
      %1793 = vmatpush1.bf16.msra.mxu0 0
      %1794 = vmatprep.subr.bf16.mxu0 0
      %1795 = vmatpush1.bf16.msra.mxu0 0
      %1796 = vmatprep.subr.bf16.mxu0 0
      %1797 = vmatpush1.bf16.msra.mxu0 0
      %1798 = vmatprep.subr.bf16.mxu0 0
      %1799 = vmatpush1.bf16.msra.mxu0 %v1783
      %1800 = vmatprep.subr.bf16.mxu0 0
      %1801 = vmatpush1.bf16.msra.mxu0 %v1782
      %1802 = vmatprep.subr.bf16.mxu0 0
      %1803 = vmatpush2.bf16.msra.mxu0 0
      %1804 = vmatprep.subr.bf16.mxu0 0
      %1805 = vmatpush2.bf16.msra.mxu0 0
      %1806 = vmatprep.subr.bf16.mxu0 0
      %1807 = vmatpush2.bf16.msra.mxu0 0
      %1808 = vmatprep.subr.bf16.mxu0 0
      %1809 = vmatpush2.bf16.msra.mxu0 0
      %1810 = vmatprep.subr.bf16.mxu0 0
      %1811 = vmatpush2.bf16.msra.mxu0 0
      %1812 = vmatprep.subr.bf16.mxu0 0
      %1813 = vmatpush2.bf16.msra.mxu0 0
      %1814 = vmatprep.subr.bf16.mxu0 0
      %1815 = vmatpush2.bf16.msra.mxu0 0
      %1816 = vmatprep.subr.bf16.mxu0 0
      %1817 = vmatpush2.bf16.msra.mxu0 0
      %1818 = vmatprep.mubr.bf16.mxu0 0
      %1819 = vmatmul.mubr.bf16.gmra.mxu0 %v646
      %v1820 = vpop.f32.mrf.mxu0
      %v1821 = vadd.f32 %v1772, %v1820
      %v1822 = vpop.f32.mrf.mxu0
      %v1823 = vpop.f32.mrf.mxu0
      %v1824 = vadd.f32 %v1772, %v1823
      %v1825 = vpop.f32.mrf.mxu0
      %1826 = vdwg.mxu0
      %v1827 = vpack.c.bf16 %v1690, %v1690
      %v1828 = vpack.c.bf16 %v1758, %v1755
      %v1830 = vsel %vm755, %v1827, 0
      %v1833 = vsel %vm755, %v1828, 0
      %1835 = vmatprep.subr.bf16.mxu0 0
      %1836 = vmatpush1.bf16.xpose.msra.mxu0 0
      %1837 = vmatprep.subr.bf16.mxu0 0
      %1838 = vmatpush1.bf16.xpose.msra.mxu0 0
      %1839 = vmatprep.subr.bf16.mxu0 0
      %1840 = vmatpush1.bf16.xpose.msra.mxu0 0
      %1841 = vmatprep.subr.bf16.mxu0 0
      %1842 = vmatpush1.bf16.xpose.msra.mxu0 0
      %1843 = vmatprep.subr.bf16.mxu0 0
      %1844 = vmatpush1.bf16.xpose.msra.mxu0 0
      %1845 = vmatprep.subr.bf16.mxu0 0
      %1846 = vmatpush1.bf16.xpose.msra.mxu0 0
      %1847 = vmatprep.subr.bf16.mxu0 0
      %1848 = vmatpush1.bf16.xpose.msra.mxu0 0
      %1849 = vmatprep.subr.bf16.mxu0 0
      %1850 = vmatpush1.bf16.xpose.msra.mxu0 %v1833
      %1851 = vmatprep.subr.bf16.mxu0 0
      %1852 = vmatpush2.bf16.xpose.msra.mxu0 0
      %1853 = vmatprep.subr.bf16.mxu0 0
      %1854 = vmatpush2.bf16.xpose.msra.mxu0 0
      %1855 = vmatprep.subr.bf16.mxu0 0
      %1856 = vmatpush2.bf16.xpose.msra.mxu0 0
      %1857 = vmatprep.subr.bf16.mxu0 0
      %1858 = vmatpush2.bf16.xpose.msra.mxu0 0
      %1859 = vmatprep.subr.bf16.mxu0 0
      %1860 = vmatpush2.bf16.xpose.msra.mxu0 0
      %1861 = vmatprep.subr.bf16.mxu0 0
      %1862 = vmatpush2.bf16.xpose.msra.mxu0 0
      %1863 = vmatprep.subr.bf16.mxu0 0
      %1864 = vmatpush2.bf16.xpose.msra.mxu0 0
      %1865 = vmatprep.subr.bf16.mxu0 0
      %1866 = vmatpush2.bf16.xpose.msra.mxu0 0
      %1867 = vmatprep.mubr.bf16.mxu0 0
      %1868 = vmatmul.mubr.bf16.gmra.mxu0 %v1830
      %v1869 = vpop.f32.mrf.mxu0
      %v1870 = vadd.f32 0.0, %v1869
      %v1871 = vpop.f32.mrf.mxu0
      %v1872 = vpop.f32.mrf.mxu0
      %v1873 = vpop.f32.mrf.mxu0
      %1874 = vdwg.mxu0
      %v1875 = vmul.f32 %v1870, 0.35355338
      %v1876 = vsel %vm811, %v1875, -1e+09
      %v1877 = vsel %vm813, %v1876, -inf
      %1878 = vmax.xlane.f32.xlu0 %v1877
      %v1879 = vpop.xlane.xlu0 %1878
      %v1880 = vsub.f32 %v1876, %v1879
      %v1881 = vmul.f32 %v1880, 1.442695
      %v1882 = vpow.pop %v1881
      %v1883 = vsel %vm813, %v1882, 0.0
      %1884 = vadd.xlane.f32.xlu0 %v1883
      %v1885 = vpop.xlane.xlu0 %1884
      %v1886 = vrcp.pop %v1885
      %v1887 = vmul.f32 %v1882, %v1886
      %v1888 = vpack.c.bf16 %v1887, %v1887
      %s1889 = scalar_lea.vmem %s509, 12
      %1890 = vst.msk [vmem:[%s1889] sm:$0xf] %vm826, %v1888
      %v1891 = vpack.c.bf16 %v1824, %v1821
      %v1893 = vsel %vm813, %v1888, 0
      %1895 = vmatprep.subr.bf16.mxu0 0
      %1896 = vmatpush1.bf16.msra.mxu0 0
      %1897 = vmatprep.subr.bf16.mxu0 0
      %1898 = vmatpush1.bf16.msra.mxu0 0
      %1899 = vmatprep.subr.bf16.mxu0 0
      %1900 = vmatpush1.bf16.msra.mxu0 0
      %1901 = vmatprep.subr.bf16.mxu0 0
      %1902 = vmatpush1.bf16.msra.mxu0 0
      %1903 = vmatprep.subr.bf16.mxu0 0
      %1904 = vmatpush1.bf16.msra.mxu0 0
      %1905 = vmatprep.subr.bf16.mxu0 0
      %1906 = vmatpush1.bf16.msra.mxu0 0
      %1907 = vmatprep.subr.bf16.mxu0 0
      %1908 = vmatpush1.bf16.msra.mxu0 0
      %1909 = vmatprep.subr.bf16.mxu0 0
      %1910 = vmatpush1.bf16.msra.mxu0 %v1891
      %1911 = vmatprep.subr.bf16.mxu0 0
      %1912 = vmatpush2.bf16.msra.mxu0 0
      %1913 = vmatprep.subr.bf16.mxu0 0
      %1914 = vmatpush2.bf16.msra.mxu0 0
      %1915 = vmatprep.subr.bf16.mxu0 0
      %1916 = vmatpush2.bf16.msra.mxu0 0
      %1917 = vmatprep.subr.bf16.mxu0 0
      %1918 = vmatpush2.bf16.msra.mxu0 0
      %1919 = vmatprep.subr.bf16.mxu0 0
      %1920 = vmatpush2.bf16.msra.mxu0 0
      %1921 = vmatprep.subr.bf16.mxu0 0
      %1922 = vmatpush2.bf16.msra.mxu0 0
      %1923 = vmatprep.subr.bf16.mxu0 0
      %1924 = vmatpush2.bf16.msra.mxu0 0
      %1925 = vmatprep.subr.bf16.mxu0 0
      %1926 = vmatpush2.bf16.msra.mxu0 0
      %1927 = vmatprep.mubr.bf16.mxu0 0
      %1928 = vmatmul.mubr.bf16.gmra.mxu0 %v1893
      %v1929 = vpop.f32.mrf.mxu0
      %v1930 = vadd.f32 0.0, %v1929
      %v1931 = vpop.f32.mrf.mxu0
      %v1932 = vpop.f32.mrf.mxu0
      %v1933 = vpop.f32.mrf.mxu0
      %1934 = vdwg.mxu0
      %v1935 = vpack.c.bf16 %v1930, %v1930
      %s1936 = scalar_lea.vmem %s11, 12
      %v1937 = vld [vmem:[%s1936] sm:$0xf]
      %v1939 = vsel %vm755, %v1935, 0
      %v1942 = vsel %vm1185, %v1937, 0
      %1944 = vmatprep.subr.bf16.mxu0 0
      %1945 = vmatpush1.bf16.msra.mxu0 0
      %1946 = vmatprep.subr.bf16.mxu0 0
      %1947 = vmatpush1.bf16.msra.mxu0 0
      %1948 = vmatprep.subr.bf16.mxu0 0
      %1949 = vmatpush1.bf16.msra.mxu0 0
      %1950 = vmatprep.subr.bf16.mxu0 0
      %1951 = vmatpush1.bf16.msra.mxu0 0
      %1952 = vmatprep.subr.bf16.mxu0 0
      %1953 = vmatpush1.bf16.msra.mxu0 0
      %1954 = vmatprep.subr.bf16.mxu0 0
      %1955 = vmatpush1.bf16.msra.mxu0 0
      %1956 = vmatprep.subr.bf16.mxu0 0
      %1957 = vmatpush1.bf16.msra.mxu0 0
      %1958 = vmatprep.subr.bf16.mxu0 0
      %1959 = vmatpush1.bf16.msra.mxu0 %v1942
      %1960 = vmatprep.subr.bf16.mxu0 0
      %1961 = vmatpush2.bf16.msra.mxu0 0
      %1962 = vmatprep.subr.bf16.mxu0 0
      %1963 = vmatpush2.bf16.msra.mxu0 0
      %1964 = vmatprep.subr.bf16.mxu0 0
      %1965 = vmatpush2.bf16.msra.mxu0 0
      %1966 = vmatprep.subr.bf16.mxu0 0
      %1967 = vmatpush2.bf16.msra.mxu0 0
      %1968 = vmatprep.subr.bf16.mxu0 0
      %1969 = vmatpush2.bf16.msra.mxu0 0
      %1970 = vmatprep.subr.bf16.mxu0 0
      %1971 = vmatpush2.bf16.msra.mxu0 0
      %1972 = vmatprep.subr.bf16.mxu0 0
      %1973 = vmatpush2.bf16.msra.mxu0 0
      %1974 = vmatprep.subr.bf16.mxu0 0
      %1975 = vmatpush2.bf16.msra.mxu0 0
      %1976 = vmatprep.mubr.bf16.mxu0 0
      %1977 = vmatmul.mubr.bf16.gmra.mxu0 %v1939
      %v1978 = vpop.f32.mrf.mxu0
      %v1979 = vadd.f32 0.0, %v1978
      %v1980 = vpop.f32.mrf.mxu0
      %v1981 = vpop.f32.mrf.mxu0
      %v1982 = vpop.f32.mrf.mxu0
      %1983 = vdwg.mxu0
      %v1984 = vadd.f32 %v1629, %v1979
      %v1985 = vld [vmem:[%s12] sm:$0x1]
      %v1987 = vlaneseq
      %v1988 = vshrl.u32 %v1987, 7
      %v1989 = vsub.s32 0, %v1988
      %v1990 = vrot.slane %v1985, %v1989
      %v1992 = vadd.f32 %v1984, %v1990
      %v1993 = vadd.f32 %v514, %v1992
      %v1994 = vpack.c.bf16 %v1993, %v1993
      %vm1995 = vcmask 257024
      %1996 = vst.msk [vmem:[%s504] sm:$0xf] %vm1995, %v1994
      %p1997 = scmp.lt.s32.totalorder %s26, 1
      %s1998 = scalar_select %p1997, %s26, 1
      %s1999 = smul.addr %s1998, 4
      %s2000 = scalar_lea.vmem %s13, %s1999
      %p2001 = scmp.lt.s32.totalorder %s26, 1
      %s2002 = scalar_select %p2001, %s26, 1
      %s2003 = smul.addr %s2002, 4
      %s2004 = smul.addr %s2003, 4
      %s2005 = scalar_lea.vmem %s14, %s2004
      // Predicated region
      $region73: #{_lambda_.9} parent=71 // pred_check
        %p2006 = pneg %p332
      $region74: #{_lambda_.9} parent=71 // pred_check_branch
        %2008 = sbr.rel (%p2006) target = $region76
      $region75: #{_lambda_.9} parent=71 // pred_region
        _
      $region76: #{_lambda_.9} parent=71 // pred_fallthru
        _
      // Predicated region
      $region77: #{_lambda_.9} parent=71 // pred_check
        %p2009 = pneg %p358
      $region78: #{_lambda_.9} parent=71 // pred_check_branch
        %2011 = sbr.rel (%p2009) target = $region80
      $region79: #{_lambda_.9} parent=71 // pred_region
        _
      $region80: #{_lambda_.9} parent=71 // pred_fallthru
        _
    $region72: #{_lambda_.9} parent=5 // pred_fallthru
      _
    %p2012 = scmp.le.s32.totalorder 2, %s21
    // Predicated region
    $region81: #{_lambda_.9} parent=5 // pred_check
      %p2013 = pneg %p2012
    $region82: #{_lambda_.9} parent=5 // pred_check_branch
      %2015 = sbr.rel (%p2013) target = $region84
    $region83: #{_lambda_.9} parent=5 // pred_region
      %s2016 = ssub.s32 %s21, 2
      // Predicated region
      $region85: #{_lambda_.9} parent=83 // pred_check
        %p2017 = pneg %p338
      $region86: #{_lambda_.9} parent=83 // pred_check_branch
        %2019 = sbr.rel (%p2017) target = $region88
      $region87: #{_lambda_.9} parent=83 // pred_region
        %p2020 = scmp.lt.s32.totalorder %s27, 1
        %s2021 = scalar_select %p2020, %s27, 1
        %s2022 = smul.addr %s2021, 4
        %s2023 = scalar_lea.vmem %s13, %s2022
      $region88: #{_lambda_.9} parent=83 // pred_fallthru
        _
      // Predicated region
      $region89: #{_lambda_.9} parent=83 // pred_check
        %p2024 = pneg %p364
      $region90: #{_lambda_.9} parent=83 // pred_check_branch
        %2026 = sbr.rel (%p2024) target = $region92
      $region91: #{_lambda_.9} parent=83 // pred_region
        %p2027 = scmp.lt.s32.totalorder %s27, 1
        %s2028 = scalar_select %p2027, %s27, 1
        %s2029 = smul.addr %s2028, 4
        %s2030 = smul.addr %s2029, 4
        %s2031 = scalar_lea.vmem %s14, %s2030
      $region92: #{_lambda_.9} parent=83 // pred_fallthru
        _
    $region84: #{_lambda_.9} parent=5 // pred_fallthru
      _
  $region6: #{_lambda_.9} parent=0 // loop_footer
    %s25 = sadd.s32 1, %s21
  $region7: #{_lambda_.9} parent=0 // loop_footer_branch
    %20 = sbr.rel target = $region3
  $region8: #{_lambda_.9} parent=0 // loop_exit
    _

// kernel: _lambda_.8
$region0: #{_lambda_.8}
  #allocation0 [shape = 'u32[]', space=smem, size = 0x4, offset = 0x4, fixed_abs, tag = 'smem constant byte address 0x4 - core index']
  #allocation1 [shape = 'u32[144,128]{1,0:T(1,128)}', space=vmem, size = 0x12000, scoped, tag = 'internal scratch']
  %s0 = inlined_call_operand.vmem [shape: bf16[2,8,32], index: 0, kind: input, shape index: {}]
  %s1 = inlined_call_operand.vmem [shape: bf16[2,8,8], index: 1, kind: input, shape index: {}]
  %s2 = inlined_call_operand.vmem [shape: f32[1,32], index: 2, kind: input, shape index: {}]
  %s3 = inlined_call_operand.vmem [shape: f32[1,32], index: 3, kind: input, shape index: {}, may-alias: {3,11}]
  %s4 = inlined_call_operand.vmem [shape: bf16[4,32,8], index: 4, kind: input, shape index: {}]
  %s5 = inlined_call_operand.vmem [shape: f32[4,1,8], index: 5, kind: input, shape index: {}, may-alias: {5,7,9}]
  %s6 = inlined_call_operand.vmem [shape: bf16[4,32,8], index: 6, kind: input, shape index: {}]
  %s7 = inlined_call_operand.vmem [shape: f32[4,1,8], index: 7, kind: input, shape index: {}, may-alias: {5,7,9}]
  %s8 = inlined_call_operand.hbm [shape: bf16[4,32,8], index: 8, kind: input, shape index: {}]
  %s9 = inlined_call_operand.vmem [shape: f32[4,1,8], index: 9, kind: input, shape index: {}, may-alias: {5,7,9}]
  %s10 = inlined_call_operand.vmem [shape: bf16[4,8,32], index: 10, kind: input, shape index: {}]
  %s11 = inlined_call_operand.vmem [shape: f32[1,32], index: 11, kind: input, shape index: {}, may-alias: {3,11}]
  %s12 = inlined_call_operand.vmem [shape: bf16[2,8,32], index: 12, kind: output, shape index: {0}]
  %s13 = inlined_call_operand.vmem [shape: bf16[2,4,8,8], index: 13, kind: output, shape index: {1}]
  %14 = xla_tuple %s12, %s13
  %s15 = sld [smem:[#allocation0]]
  $region93: #{_lambda_.8} parent=0
    _
  %s17 = ssub.s32 1, %s15
  %s18 = scalar_select 0, %s17, %s15
  $region1: #{_lambda_.8} parent=0
    #allocation2 [shape = 'u8[32768]{0}', space=vmem, size = 0x8000, scoped, tag = 'input window, operand 8, single buffered']
    #allocation3 [shape = 's32[2]{0}', space=sflag, size = 0x8, scoped, tag = 'scoped memory for _lambda_.8']
    %19 = vsyncpa [#allocation3], 0
    loop: start=0, step=1, limit=4
    $region2: #{_lambda_.8} parent=1 // loop_pre_header
      _
    $region3: #{_lambda_.8} parent=1 // loop_header
      %s21 = sphi 0, %s25
      %p22 = scmp.ge.s32.totalorder %s21, 4
      %s31 = sphi 0, %s33
      %s34 = sphi 0, %s31
      %s35 = sphi 0, %s34
      %s51 = sphi 0, %s35
      %s57 = sphi 0, %s59
      %s60 = sphi 0, %s57
      %s61 = sphi 0, %s60
      %s77 = sphi 0, %s61
      %s81 = sphi 0, %s81
      %s83 = sphi 0, %s81
      %s84 = sphi 0, %s83
      %s98 = sphi 0, %s84
      %s102 = sphi 0, %s102
      %s104 = sphi 0, %s102
      %s105 = sphi 0, %s104
      %s119 = sphi 0, %s105
      %s123 = sphi 0, %s123
      %s125 = sphi 0, %s123
      %s126 = sphi 0, %s125
      %s140 = sphi 0, %s126
      %s144 = sphi 0, %s144
      %s146 = sphi 0, %s144
      %s147 = sphi 0, %s146
      %s161 = sphi 0, %s147
      %s165 = sphi 0, %s165
      %s167 = sphi 0, %s165
      %s168 = sphi 0, %s167
      %s182 = sphi 0, %s168
      %s186 = sphi 0, %s186
      %s188 = sphi 0, %s186
      %s189 = sphi 0, %s188
      %s203 = sphi 0, %s189
      %s207 = sphi 0, %s207
      %s209 = sphi 0, %s207
      %s210 = sphi 0, %s209
      %s224 = sphi 0, %s210
      %s228 = sphi 0, %s228
      %s230 = sphi 0, %s228
      %s231 = sphi 0, %s230
      %s245 = sphi 0, %s231
      %s249 = sphi 0, %s249
      %s251 = sphi 0, %s249
      %s252 = sphi 0, %s251
      %s266 = sphi 0, %s252
      %s270 = sphi 0, %s270
      %s272 = sphi 0, %s270
      %s273 = sphi 0, %s272
      %s287 = sphi 0, %s273
      %s293 = sphi 0, %s295
      %s296 = sphi 0, %s293
      %s297 = sphi 0, %s296
      %s313 = sphi 0, %s297
      %s319 = sphi 0, %s321
      %s322 = sphi 0, %s319
      %s323 = sphi 0, %s322
      %s339 = sphi 0, %s323
    $region4: #{_lambda_.8} parent=1 // loop_header_branch
      %24 = sbr.rel (%p22) target = $region8
    $region5: #{_lambda_.8} parent=1 // loop_body
      %s26 = ssub.s32 %s21, 1
      %s27 = ssub.s32 %s21, 2
      %s28 = sadd.s32 %s21, 1
      %s29 = ssub.s32 %s21, %s28
      %p30 = scmp.eq.s32.totalorder %s29, 0
      %s32 = sadd.s32 %s31, 1
      %s33 = scalar_select %p30, %s31, %s32
      %p36 = pneg %p30
      %p37 = scmp.eq.s32.totalorder %s21, 1
      %p38 = por %p36, %p37
      %p39 = scmp.ne.s32.totalorder %s31, %s34
      %p40 = scmp.eq.s32.totalorder %s21, 0
      %p41 = por %p39, %p40
      %p42 = scmp.ne.s32.totalorder %s31, %s34
      %p43 = scmp.eq.s32.totalorder %s26, 1
      %p44 = por %p42, %p43
      %p45 = scmp.ne.s32.totalorder %s34, %s35
      %p46 = scmp.eq.s32.totalorder %s26, 0
      %p47 = por %p45, %p46
      %p48 = scmp.ne.s32.totalorder %s34, %s35
      %p49 = scmp.eq.s32.totalorder %s27, 1
      %p50 = por %p48, %p49
      %p52 = scmp.ne.s32.totalorder %s35, %s51
      %p53 = scmp.eq.s32.totalorder %s27, 0
      %p54 = por %p52, %p53
      %s55 = ssub.s32 %s21, %s28
      %p56 = scmp.eq.s32.totalorder %s55, 0
      %s58 = sadd.s32 %s57, 1
      %s59 = scalar_select %p56, %s57, %s58
      %p62 = pneg %p56
      %p63 = scmp.eq.s32.totalorder %s21, 1
      %p64 = por %p62, %p63
      %p65 = scmp.ne.s32.totalorder %s57, %s60
      %p66 = scmp.eq.s32.totalorder %s21, 0
      %p67 = por %p65, %p66
      %p68 = scmp.ne.s32.totalorder %s57, %s60
      %p69 = scmp.eq.s32.totalorder %s26, 1
      %p70 = por %p68, %p69
      %p71 = scmp.ne.s32.totalorder %s60, %s61
      %p72 = scmp.eq.s32.totalorder %s26, 0
      %p73 = por %p71, %p72
      %p74 = scmp.ne.s32.totalorder %s60, %s61
      %p75 = scmp.eq.s32.totalorder %s27, 1
      %p76 = por %p74, %p75
      %p78 = scmp.ne.s32.totalorder %s61, %s77
      %p79 = scmp.eq.s32.totalorder %s27, 0
      %p80 = por %p78, %p79
      %s82 = sadd.s32 %s81, 1
      %p85 = scmp.eq.s32.totalorder %s21, 1
      %p86 = scmp.ne.s32.totalorder %s81, %s83
      %p87 = scmp.eq.s32.totalorder %s21, 0
      %p88 = por %p86, %p87
      %p89 = scmp.ne.s32.totalorder %s81, %s83
      %p90 = scmp.eq.s32.totalorder %s26, 1
      %p91 = por %p89, %p90
      %p92 = scmp.ne.s32.totalorder %s83, %s84
      %p93 = scmp.eq.s32.totalorder %s26, 0
      %p94 = por %p92, %p93
      %p95 = scmp.ne.s32.totalorder %s83, %s84
      %p96 = scmp.eq.s32.totalorder %s27, 1
      %p97 = por %p95, %p96
      %p99 = scmp.ne.s32.totalorder %s84, %s98
      %p100 = scmp.eq.s32.totalorder %s27, 0
      %p101 = por %p99, %p100
      %s103 = sadd.s32 %s102, 1
      %p106 = scmp.eq.s32.totalorder %s21, 1
      %p107 = scmp.ne.s32.totalorder %s102, %s104
      %p108 = scmp.eq.s32.totalorder %s21, 0
      %p109 = por %p107, %p108
      %p110 = scmp.ne.s32.totalorder %s102, %s104
      %p111 = scmp.eq.s32.totalorder %s26, 1
      %p112 = por %p110, %p111
      %p113 = scmp.ne.s32.totalorder %s104, %s105
      %p114 = scmp.eq.s32.totalorder %s26, 0
      %p115 = por %p113, %p114
      %p116 = scmp.ne.s32.totalorder %s104, %s105
      %p117 = scmp.eq.s32.totalorder %s27, 1
      %p118 = por %p116, %p117
      %p120 = scmp.ne.s32.totalorder %s105, %s119
      %p121 = scmp.eq.s32.totalorder %s27, 0
      %p122 = por %p120, %p121
      %s124 = sadd.s32 %s123, 1
      %p127 = scmp.eq.s32.totalorder %s21, 1
      %p128 = scmp.ne.s32.totalorder %s123, %s125
      %p129 = scmp.eq.s32.totalorder %s21, 0
      %p130 = por %p128, %p129
      %p131 = scmp.ne.s32.totalorder %s123, %s125
      %p132 = scmp.eq.s32.totalorder %s26, 1
      %p133 = por %p131, %p132
      %p134 = scmp.ne.s32.totalorder %s125, %s126
      %p135 = scmp.eq.s32.totalorder %s26, 0
      %p136 = por %p134, %p135
      %p137 = scmp.ne.s32.totalorder %s125, %s126
      %p138 = scmp.eq.s32.totalorder %s27, 1
      %p139 = por %p137, %p138
      %p141 = scmp.ne.s32.totalorder %s126, %s140
      %p142 = scmp.eq.s32.totalorder %s27, 0
      %p143 = por %p141, %p142
      %s145 = sadd.s32 %s144, 1
      %p148 = scmp.eq.s32.totalorder %s21, 1
      %p149 = scmp.ne.s32.totalorder %s144, %s146
      %p150 = scmp.eq.s32.totalorder %s21, 0
      %p151 = por %p149, %p150
      %p152 = scmp.ne.s32.totalorder %s144, %s146
      %p153 = scmp.eq.s32.totalorder %s26, 1
      %p154 = por %p152, %p153
      %p155 = scmp.ne.s32.totalorder %s146, %s147
      %p156 = scmp.eq.s32.totalorder %s26, 0
      %p157 = por %p155, %p156
      %p158 = scmp.ne.s32.totalorder %s146, %s147
      %p159 = scmp.eq.s32.totalorder %s27, 1
      %p160 = por %p158, %p159
      %p162 = scmp.ne.s32.totalorder %s147, %s161
      %p163 = scmp.eq.s32.totalorder %s27, 0
      %p164 = por %p162, %p163
      %s166 = sadd.s32 %s165, 1
      %p169 = scmp.eq.s32.totalorder %s21, 1
      %p170 = scmp.ne.s32.totalorder %s165, %s167
      %p171 = scmp.eq.s32.totalorder %s21, 0
      %p172 = por %p170, %p171
      %p173 = scmp.ne.s32.totalorder %s165, %s167
      %p174 = scmp.eq.s32.totalorder %s26, 1
      %p175 = por %p173, %p174
      %p176 = scmp.ne.s32.totalorder %s167, %s168
      %p177 = scmp.eq.s32.totalorder %s26, 0
      %p178 = por %p176, %p177
      %p179 = scmp.ne.s32.totalorder %s167, %s168
      %p180 = scmp.eq.s32.totalorder %s27, 1
      %p181 = por %p179, %p180
      %p183 = scmp.ne.s32.totalorder %s168, %s182
      %p184 = scmp.eq.s32.totalorder %s27, 0
      %p185 = por %p183, %p184
      %s187 = sadd.s32 %s186, 1
      %p190 = scmp.eq.s32.totalorder %s21, 1
      %p191 = scmp.ne.s32.totalorder %s186, %s188
      %p192 = scmp.eq.s32.totalorder %s21, 0
      %p193 = por %p191, %p192
      %p194 = scmp.ne.s32.totalorder %s186, %s188
      %p195 = scmp.eq.s32.totalorder %s26, 1
      %p196 = por %p194, %p195
      %p197 = scmp.ne.s32.totalorder %s188, %s189
      %p198 = scmp.eq.s32.totalorder %s26, 0
      %p199 = por %p197, %p198
      %p200 = scmp.ne.s32.totalorder %s188, %s189
      %p201 = scmp.eq.s32.totalorder %s27, 1
      %p202 = por %p200, %p201
      %p204 = scmp.ne.s32.totalorder %s189, %s203
      %p205 = scmp.eq.s32.totalorder %s27, 0
      %p206 = por %p204, %p205
      %s208 = sadd.s32 %s207, 1
      %p211 = scmp.eq.s32.totalorder %s21, 1
      %p212 = scmp.ne.s32.totalorder %s207, %s209
      %p213 = scmp.eq.s32.totalorder %s21, 0
      %p214 = por %p212, %p213
      %p215 = scmp.ne.s32.totalorder %s207, %s209
      %p216 = scmp.eq.s32.totalorder %s26, 1
      %p217 = por %p215, %p216
      %p218 = scmp.ne.s32.totalorder %s209, %s210
      %p219 = scmp.eq.s32.totalorder %s26, 0
      %p220 = por %p218, %p219
      %p221 = scmp.ne.s32.totalorder %s209, %s210
      %p222 = scmp.eq.s32.totalorder %s27, 1
      %p223 = por %p221, %p222
      %p225 = scmp.ne.s32.totalorder %s210, %s224
      %p226 = scmp.eq.s32.totalorder %s27, 0
      %p227 = por %p225, %p226
      %s229 = sadd.s32 %s228, 1
      %p232 = scmp.eq.s32.totalorder %s21, 1
      %p233 = scmp.ne.s32.totalorder %s228, %s230
      %p234 = scmp.eq.s32.totalorder %s21, 0
      %p235 = por %p233, %p234
      %p236 = scmp.ne.s32.totalorder %s228, %s230
      %p237 = scmp.eq.s32.totalorder %s26, 1
      %p238 = por %p236, %p237
      %p239 = scmp.ne.s32.totalorder %s230, %s231
      %p240 = scmp.eq.s32.totalorder %s26, 0
      %p241 = por %p239, %p240
      %p242 = scmp.ne.s32.totalorder %s230, %s231
      %p243 = scmp.eq.s32.totalorder %s27, 1
      %p244 = por %p242, %p243
      %p246 = scmp.ne.s32.totalorder %s231, %s245
      %p247 = scmp.eq.s32.totalorder %s27, 0
      %p248 = por %p246, %p247
      %s250 = sadd.s32 %s249, 1
      %p253 = scmp.eq.s32.totalorder %s21, 1
      %p254 = scmp.ne.s32.totalorder %s249, %s251
      %p255 = scmp.eq.s32.totalorder %s21, 0
      %p256 = por %p254, %p255
      %p257 = scmp.ne.s32.totalorder %s249, %s251
      %p258 = scmp.eq.s32.totalorder %s26, 1
      %p259 = por %p257, %p258
      %p260 = scmp.ne.s32.totalorder %s251, %s252
      %p261 = scmp.eq.s32.totalorder %s26, 0
      %p262 = por %p260, %p261
      %p263 = scmp.ne.s32.totalorder %s251, %s252
      %p264 = scmp.eq.s32.totalorder %s27, 1
      %p265 = por %p263, %p264
      %p267 = scmp.ne.s32.totalorder %s252, %s266
      %p268 = scmp.eq.s32.totalorder %s27, 0
      %p269 = por %p267, %p268
      %s271 = sadd.s32 %s270, 1
      %p274 = scmp.eq.s32.totalorder %s21, 1
      %p275 = scmp.ne.s32.totalorder %s270, %s272
      %p276 = scmp.eq.s32.totalorder %s21, 0
      %p277 = por %p275, %p276
      %p278 = scmp.ne.s32.totalorder %s270, %s272
      %p279 = scmp.eq.s32.totalorder %s26, 1
      %p280 = por %p278, %p279
      %p281 = scmp.ne.s32.totalorder %s272, %s273
      %p282 = scmp.eq.s32.totalorder %s26, 0
      %p283 = por %p281, %p282
      %p284 = scmp.ne.s32.totalorder %s272, %s273
      %p285 = scmp.eq.s32.totalorder %s27, 1
      %p286 = por %p284, %p285
      %p288 = scmp.ne.s32.totalorder %s273, %s287
      %p289 = scmp.eq.s32.totalorder %s27, 0
      %p290 = por %p288, %p289
      %s291 = ssub.s32 %s21, %s28
      %p292 = scmp.eq.s32.totalorder %s291, 0
      %s294 = sadd.s32 %s293, 1
      %s295 = scalar_select %p292, %s293, %s294
      %p298 = pneg %p292
      %p299 = scmp.eq.s32.totalorder %s21, 1
      %p300 = por %p298, %p299
      %p301 = scmp.ne.s32.totalorder %s293, %s296
      %p302 = scmp.eq.s32.totalorder %s21, 0
      %p303 = por %p301, %p302
      %p304 = scmp.ne.s32.totalorder %s293, %s296
      %p305 = scmp.eq.s32.totalorder %s26, 1
      %p306 = por %p304, %p305
      %p307 = scmp.ne.s32.totalorder %s296, %s297
      %p308 = scmp.eq.s32.totalorder %s26, 0
      %p309 = por %p307, %p308
      %p310 = scmp.ne.s32.totalorder %s296, %s297
      %p311 = scmp.eq.s32.totalorder %s27, 1
      %p312 = por %p310, %p311
      %p314 = scmp.ne.s32.totalorder %s297, %s313
      %p315 = scmp.eq.s32.totalorder %s27, 0
      %p316 = por %p314, %p315
      %s317 = ssub.s32 %s21, %s28
      %p318 = scmp.eq.s32.totalorder %s317, 0
      %s320 = sadd.s32 %s319, 1
      %s321 = scalar_select %p318, %s319, %s320
      %p324 = pneg %p318
      %p325 = scmp.eq.s32.totalorder %s21, 1
      %p326 = por %p324, %p325
      %p327 = scmp.ne.s32.totalorder %s319, %s322
      %p328 = scmp.eq.s32.totalorder %s21, 0
      %p329 = por %p327, %p328
      %p330 = scmp.ne.s32.totalorder %s319, %s322
      %p331 = scmp.eq.s32.totalorder %s26, 1
      %p332 = por %p330, %p331
      %p333 = scmp.ne.s32.totalorder %s322, %s323
      %p334 = scmp.eq.s32.totalorder %s26, 0
      %p335 = por %p333, %p334
      %p336 = scmp.ne.s32.totalorder %s322, %s323
      %p337 = scmp.eq.s32.totalorder %s27, 1
      %p338 = por %p336, %p337
      %p340 = scmp.ne.s32.totalorder %s323, %s339
      %p341 = scmp.eq.s32.totalorder %s27, 0
      %p342 = por %p340, %p341
      %p343 = scmp.le.s32.totalorder 1, %s21
      %p344 = scmp.lt.s32.totalorder %s21, 3
      %p345 = pnand %p343, %p344
      %p346 = pneg %p345
      // Predicated region
      $region9: #{_lambda_.8} parent=5 // pred_check
        _
      $region10: #{_lambda_.8} parent=5 // pred_check_branch
        %348 = sbr.rel (%p345) target = $region12
      $region11: #{_lambda_.8} parent=5 // pred_region
        %s349 = ssub.s32 %s21, 1
        // Predicated region
        $region13: #{_lambda_.8} parent=11 // pred_check
          %p350 = pneg %p94
        $region14: #{_lambda_.8} parent=11 // pred_check_branch
          %352 = sbr.rel (%p350) target = $region16
        $region15: #{_lambda_.8} parent=11 // pred_region
          _
        $region16: #{_lambda_.8} parent=11 // pred_fallthru
          _
        // Predicated region
        $region17: #{_lambda_.8} parent=11 // pred_check
          %p353 = pneg %p115
        $region18: #{_lambda_.8} parent=11 // pred_check_branch
          %355 = sbr.rel (%p353) target = $region20
        $region19: #{_lambda_.8} parent=11 // pred_region
          _
        $region20: #{_lambda_.8} parent=11 // pred_fallthru
          _
        // Predicated region
        $region21: #{_lambda_.8} parent=11 // pred_check
          %p356 = pneg %p136
        $region22: #{_lambda_.8} parent=11 // pred_check_branch
          %358 = sbr.rel (%p356) target = $region24
        $region23: #{_lambda_.8} parent=11 // pred_region
          _
        $region24: #{_lambda_.8} parent=11 // pred_fallthru
          _
        // Predicated region
        $region25: #{_lambda_.8} parent=11 // pred_check
          %p359 = pneg %p157
        $region26: #{_lambda_.8} parent=11 // pred_check_branch
          %361 = sbr.rel (%p359) target = $region28
        $region27: #{_lambda_.8} parent=11 // pred_region
          _
        $region28: #{_lambda_.8} parent=11 // pred_fallthru
          _
        // Predicated region
        $region29: #{_lambda_.8} parent=11 // pred_check
          %p362 = pneg %p178
        $region30: #{_lambda_.8} parent=11 // pred_check_branch
          %364 = sbr.rel (%p362) target = $region32
        $region31: #{_lambda_.8} parent=11 // pred_region
          _
        $region32: #{_lambda_.8} parent=11 // pred_fallthru
          _
        // Predicated region
        $region33: #{_lambda_.8} parent=11 // pred_check
          %p365 = pneg %p199
        $region34: #{_lambda_.8} parent=11 // pred_check_branch
          %367 = sbr.rel (%p365) target = $region36
        $region35: #{_lambda_.8} parent=11 // pred_region
          _
        $region36: #{_lambda_.8} parent=11 // pred_fallthru
          _
        // Predicated region
        $region37: #{_lambda_.8} parent=11 // pred_check
          %p368 = pneg %p220
        $region38: #{_lambda_.8} parent=11 // pred_check_branch
          %370 = sbr.rel (%p368) target = $region40
        $region39: #{_lambda_.8} parent=11 // pred_region
          %s372 = ssub.s32 1024, 1024
          %373 = vsyncadd [#allocation3], %s372
          %s374 = sshll.u32 [#allocation2], 4
          %s375 = int_to_ptr.vmem [resolvable:$true] %s374
          %380 = dma.hbm_to_vmem [thread:$0]  %s8, 1024, %s375, [#allocation3], 64, 64, 4
        $region40: #{_lambda_.8} parent=11 // pred_fallthru
          _
        // Predicated region
        $region41: #{_lambda_.8} parent=11 // pred_check
          %p381 = pneg %p241
        $region42: #{_lambda_.8} parent=11 // pred_check_branch
          %383 = sbr.rel (%p381) target = $region44
        $region43: #{_lambda_.8} parent=11 // pred_region
          _
        $region44: #{_lambda_.8} parent=11 // pred_fallthru
          _
        // Predicated region
        $region45: #{_lambda_.8} parent=11 // pred_check
          %p384 = pneg %p262
        $region46: #{_lambda_.8} parent=11 // pred_check_branch
          %386 = sbr.rel (%p384) target = $region48
        $region47: #{_lambda_.8} parent=11 // pred_region
          _
        $region48: #{_lambda_.8} parent=11 // pred_fallthru
          _
        // Predicated region
        $region49: #{_lambda_.8} parent=11 // pred_check
          %p387 = pneg %p283
        $region50: #{_lambda_.8} parent=11 // pred_check_branch
          %389 = sbr.rel (%p387) target = $region52
        $region51: #{_lambda_.8} parent=11 // pred_region
          _
        $region52: #{_lambda_.8} parent=11 // pred_fallthru
          _
      $region12: #{_lambda_.8} parent=5 // pred_fallthru
        _
      %p390 = scmp.lt.s32.totalorder %s21, 2
      // Predicated region
      $region53: #{_lambda_.8} parent=5 // pred_check
        %p391 = pneg %p390
      $region54: #{_lambda_.8} parent=5 // pred_check_branch
        %393 = sbr.rel (%p391) target = $region56
      $region55: #{_lambda_.8} parent=5 // pred_region
        // Predicated region
        $region57: #{_lambda_.8} parent=55 // pred_check
          %p394 = pneg %p41
        $region58: #{_lambda_.8} parent=55 // pred_check_branch
          %396 = sbr.rel (%p394) target = $region60
        $region59: #{_lambda_.8} parent=55 // pred_region
          %p397 = scmp.lt.s32.totalorder %s21, 1
          %s398 = scalar_select %p397, %s21, 1
          %s399 = smul.addr %s398, 4
          %s400 = scalar_lea.vmem %s0, %s399
        $region60: #{_lambda_.8} parent=55 // pred_fallthru
          _
        // Predicated region
        $region61: #{_lambda_.8} parent=55 // pred_check
          %p401 = pneg %p67
        $region62: #{_lambda_.8} parent=55 // pred_check_branch
          %403 = sbr.rel (%p401) target = $region64
        $region63: #{_lambda_.8} parent=55 // pred_region
          %p404 = scmp.lt.s32.totalorder %s21, 1
          %s405 = scalar_select %p404, %s21, 1
          %s406 = smul.addr %s405, 4
          %s407 = scalar_lea.vmem %s1, %s406
        $region64: #{_lambda_.8} parent=55 // pred_fallthru
          _
      $region56: #{_lambda_.8} parent=5 // pred_fallthru
        _
      %p408 = scmp.le.s32.totalorder 1, %s21
      %p409 = scmp.lt.s32.totalorder %s21, 3
      %p410 = pnand %p408, %p409
      %p411 = pneg %p410
      // Predicated region
      $region65: #{_lambda_.8} parent=5 // pred_check
        _
      $region66: #{_lambda_.8} parent=5 // pred_check_branch
        %413 = sbr.rel (%p410) target = $region68
      $region67: #{_lambda_.8} parent=5 // pred_region
        %s414 = ssub.s32 %s21, 1
        // Predicated region
        $region69: #{_lambda_.8} parent=67 // pred_check
          %p415 = pneg %p220
        $region70: #{_lambda_.8} parent=67 // pred_check_branch
          %417 = sbr.rel (%p415) target = $region72
        $region71: #{_lambda_.8} parent=67 // pred_region
          %418 = dma.done [#allocation3], 1024
        $region72: #{_lambda_.8} parent=67 // pred_fallthru
          _
        %p419 = scmp.lt.s32.totalorder %s26, 1
        %s420 = scalar_select %p419, %s26, 1
        %s421 = smul.addr %s420, 4
        %s422 = scalar_lea.vmem %s0, %s421
        %p423 = pneg %p47
        %p424 = pneg %p44
        %p425 = scmp.lt.s32.totalorder %s26, 1
        %s426 = scalar_select %p425, %s26, 1
        %s427 = smul.addr %s426, 4
        %s428 = scalar_lea.vmem %s1, %s427
        %p429 = pneg %p73
        %p430 = pneg %p70
        %p431 = pneg %p94
        %p432 = pneg %p91
        %p433 = pneg %p115
        %p434 = pneg %p112
        %p435 = pneg %p136
        %p436 = pneg %p133
        %p437 = pneg %p157
        %p438 = pneg %p154
        %p439 = pneg %p178
        %p440 = pneg %p175
        %p441 = pneg %p199
        %p442 = pneg %p196
        %p443 = pneg %p220
        %p444 = pneg %p217
        %p445 = pneg %p241
        %p446 = pneg %p238
        %p447 = pneg %p262
        %p448 = pneg %p259
        %p449 = pneg %p283
        %p450 = pneg %p280
        %p451 = pneg %p309
        %p452 = pneg %p306
        %p453 = scmp.lt.s32.totalorder %s26, 1
        %s454 = scalar_select %p453, %s26, 1
        %s455 = smul.addr %s454, 4
        %s456 = scalar_lea.vmem %s12, %s455
        %p457 = pneg %p335
        %p458 = pneg %p332
        %p459 = scmp.lt.s32.totalorder %s26, 1
        %s460 = scalar_select %p459, %s26, 1
        %s461 = smul.addr %s460, 4
        %s462 = smul.addr %s461, 4
        %s463 = scalar_lea.vmem %s13, %s462
        %p464 = scmp.lt.s32.totalorder %s26, 1
        %s465 = scalar_select %p464, %s26, 1
        %s466 = smul.addr %s465, 4
        %s467 = scalar_lea.vmem %s0, %s466
        %p468 = scmp.lt.s32.totalorder %s26, 1
        %s469 = scalar_select %p468, %s26, 1
        %s470 = smul.addr %s469, 4
        %s471 = scalar_lea.vmem %s1, %s470
        %p472 = scmp.lt.s32.totalorder %s26, 1
        %s473 = scalar_select %p472, %s26, 1
        %s474 = smul.addr %s473, 4
        %s475 = scalar_lea.vmem %s12, %s474
        %p476 = scmp.lt.s32.totalorder %s26, 1
        %s477 = scalar_select %p476, %s26, 1
        %s478 = smul.addr %s477, 4
        %s479 = smul.addr %s478, 4
        %s480 = scalar_lea.vmem %s13, %s479
        %v484 = vld [vmem:[%s467] sm:$0xf]
        %v485 = vunpack.c.l.bf16 %v484
        %vm486 = vcmask 261120
        %v487 = vsel %vm486, %v485, 0.0
        %488 = vadd.xlane.f32.xlu0 %v487
        %v489 = vpop.xlane.xlu0 %488
        %v490 = vrcp.pop 32.0
        %v491 = vmul.f32 %v489, %v490
        %v492 = vsub.f32 %v485, %v491
        %v493 = vmul.f32 %v492, %v492
        %v494 = vsel %vm486, %v493, 0.0
        %495 = vadd.xlane.f32.xlu0 %v494
        %v496 = vpop.xlane.xlu0 %495
        %v497 = vmul.f32 %v496, %v490
        %v498 = vadd.f32 %v497, 1e-05
        %v499 = vrsqrt.pop %v498
        %v500 = vmul.f32 %v492, %v499
        %v501 = vld [vmem:[%s2] sm:$0x1]
        %v503 = vlaneseq
        %v504 = vshrl.u32 %v503, 7
        %v505 = vsub.s32 0, %v504
        %v506 = vrot.slane %v501, %v505
        %v508 = vmul.f32 %v500, %v506
        %v509 = vld [vmem:[%s3] sm:$0x1]
        %v511 = vlaneseq
        %v512 = vshrl.u32 %v511, 7
        %v513 = vsub.s32 0, %v512
        %v514 = vrot.slane %v509, %v513
        %v516 = vadd.f32 %v508, %v514
        %v517 = vpack.c.bf16 %v516, %v516
        %v518 = vld [vmem:[%s471] sm:$0xf]
        %vm519 = vcmp.ne.bf16.partialorder %v518, 0
        %v520 = vld [vmem:[%s4] sm:$0xf]
        %v521 = vld [vmem:[%s4 + $0x4] sm:$0xf]
        %v522 = vld [vmem:[%s4 + $0x8] sm:$0xf]
        %v523 = vld [vmem:[%s4 + $0xc] sm:$0xf]
        %v524 = vld [vmem:[%s5] sm:$0x1]
        %v526 = vlaneseq
        %v527 = vshrl.u32 %v526, 7
        %v528 = vsub.s32 0, %v527
        %v529 = vrot.slane %v524, %v528
        %v535 = vunpack.c.l.b16 %v520
        %v536 = vunpack.c.l.b16 %v521
        %v537 = vunpack.c.l.b16 %v522
        %v538 = vunpack.c.l.b16 %v523
        %v539 = vpack.c.b16 %v536, %v535
        %v540 = vpack.c.b16 %v538, %v537
        %v544 = vsel %vm486, %v517, 0
        %546 = vmatprep.subr.bf16.mxu0 0
        %547 = vmatpush1.bf16.msra.mxu0 0
        %548 = vmatprep.subr.bf16.mxu0 0
        %549 = vmatpush1.bf16.msra.mxu0 0
        %550 = vmatprep.subr.bf16.mxu0 0
        %551 = vmatpush1.bf16.msra.mxu0 0
        %552 = vmatprep.subr.bf16.mxu0 0
        %553 = vmatpush1.bf16.msra.mxu0 0
        %554 = vmatprep.subr.bf16.mxu0 0
        %555 = vmatpush1.bf16.msra.mxu0 0
        %556 = vmatprep.subr.bf16.mxu0 0
        %557 = vmatpush1.bf16.msra.mxu0 0
        %558 = vmatprep.subr.bf16.mxu0 0
        %559 = vmatpush1.bf16.msra.mxu0 %v540
        %560 = vmatprep.subr.bf16.mxu0 0
        %561 = vmatpush1.bf16.msra.mxu0 %v539
        %562 = vmatprep.subr.bf16.mxu0 0
        %563 = vmatpush2.bf16.msra.mxu0 0
        %564 = vmatprep.subr.bf16.mxu0 0
        %565 = vmatpush2.bf16.msra.mxu0 0
        %566 = vmatprep.subr.bf16.mxu0 0
        %567 = vmatpush2.bf16.msra.mxu0 0
        %568 = vmatprep.subr.bf16.mxu0 0
        %569 = vmatpush2.bf16.msra.mxu0 0
        %570 = vmatprep.subr.bf16.mxu0 0
        %571 = vmatpush2.bf16.msra.mxu0 0
        %572 = vmatprep.subr.bf16.mxu0 0
        %573 = vmatpush2.bf16.msra.mxu0 0
        %574 = vmatprep.subr.bf16.mxu0 0
        %575 = vmatpush2.bf16.msra.mxu0 0
        %576 = vmatprep.subr.bf16.mxu0 0
        %577 = vmatpush2.bf16.msra.mxu0 0
        %578 = vmatprep.mubr.bf16.mxu0 0
        %579 = vmatmul.mubr.bf16.gmra.mxu0 %v544
        %v580 = vpop.f32.mrf.mxu0
        %v581 = vadd.f32 %v529, %v580
        %v582 = vpop.f32.mrf.mxu0
        %v583 = vpop.f32.mrf.mxu0
        %v584 = vpop.f32.mrf.mxu0
        %585 = vdwg.mxu0
        %v586 = vld [vmem:[%s6] sm:$0xf]
        %v587 = vld [vmem:[%s6 + $0x4] sm:$0xf]
        %v588 = vld [vmem:[%s6 + $0x8] sm:$0xf]
        %v589 = vld [vmem:[%s6 + $0xc] sm:$0xf]
        %v590 = vld [vmem:[%s7] sm:$0x1]
        %v592 = vlaneseq
        %v593 = vshrl.u32 %v592, 7
        %v594 = vsub.s32 0, %v593
        %v595 = vrot.slane %v590, %v594
        %v601 = vunpack.c.l.b16 %v586
        %v602 = vunpack.c.l.b16 %v587
        %v603 = vunpack.c.l.b16 %v588
        %v604 = vunpack.c.l.b16 %v589
        %v605 = vpack.c.b16 %v602, %v601
        %v606 = vpack.c.b16 %v604, %v603
        %609 = vmatprep.subr.bf16.mxu0 0
        %610 = vmatpush1.bf16.msra.mxu0 0
        %611 = vmatprep.subr.bf16.mxu0 0
        %612 = vmatpush1.bf16.msra.mxu0 0
        %613 = vmatprep.subr.bf16.mxu0 0
        %614 = vmatpush1.bf16.msra.mxu0 0
        %615 = vmatprep.subr.bf16.mxu0 0
        %616 = vmatpush1.bf16.msra.mxu0 0
        %617 = vmatprep.subr.bf16.mxu0 0
        %618 = vmatpush1.bf16.msra.mxu0 0
        %619 = vmatprep.subr.bf16.mxu0 0
        %620 = vmatpush1.bf16.msra.mxu0 0
        %621 = vmatprep.subr.bf16.mxu0 0
        %622 = vmatpush1.bf16.msra.mxu0 %v606
        %623 = vmatprep.subr.bf16.mxu0 0
        %624 = vmatpush1.bf16.msra.mxu0 %v605
        %625 = vmatprep.subr.bf16.mxu0 0
        %626 = vmatpush2.bf16.msra.mxu0 0
        %627 = vmatprep.subr.bf16.mxu0 0
        %628 = vmatpush2.bf16.msra.mxu0 0
        %629 = vmatprep.subr.bf16.mxu0 0
        %630 = vmatpush2.bf16.msra.mxu0 0
        %631 = vmatprep.subr.bf16.mxu0 0
        %632 = vmatpush2.bf16.msra.mxu0 0
        %633 = vmatprep.subr.bf16.mxu0 0
        %634 = vmatpush2.bf16.msra.mxu0 0
        %635 = vmatprep.subr.bf16.mxu0 0
        %636 = vmatpush2.bf16.msra.mxu0 0
        %637 = vmatprep.subr.bf16.mxu0 0
        %638 = vmatpush2.bf16.msra.mxu0 0
        %639 = vmatprep.subr.bf16.mxu0 0
        %640 = vmatpush2.bf16.msra.mxu0 0
        %641 = vmatprep.mubr.bf16.mxu0 0
        %642 = vmatmul.mubr.bf16.gmra.mxu0 %v544
        %v643 = vpop.f32.mrf.mxu0
        %v644 = vadd.f32 %v595, %v643
        %v645 = vpop.f32.mrf.mxu0
        %v646 = vpop.f32.mrf.mxu0
        %v647 = vpop.f32.mrf.mxu0
        %648 = vdwg.mxu0
        %v649 = vld [vmem:[#allocation2] sm:$0xf]
        %v650 = vld [vmem:[#allocation2 + $0x4] sm:$0xf]
        %v651 = vld [vmem:[#allocation2 + $0x8] sm:$0xf]
        %v652 = vld [vmem:[#allocation2 + $0xc] sm:$0xf]
        %v653 = vld [vmem:[%s9] sm:$0x1]
        %v655 = vlaneseq
        %v656 = vshrl.u32 %v655, 7
        %v657 = vsub.s32 0, %v656
        %v658 = vrot.slane %v653, %v657
        %v664 = vunpack.c.l.b16 %v649
        %v665 = vunpack.c.l.b16 %v650
        %v666 = vunpack.c.l.b16 %v651
        %v667 = vunpack.c.l.b16 %v652
        %v668 = vpack.c.b16 %v665, %v664
        %v669 = vpack.c.b16 %v667, %v666
        %672 = vmatprep.subr.bf16.mxu0 0
        %673 = vmatpush1.bf16.msra.mxu0 0
        %674 = vmatprep.subr.bf16.mxu0 0
        %675 = vmatpush1.bf16.msra.mxu0 0
        %676 = vmatprep.subr.bf16.mxu0 0
        %677 = vmatpush1.bf16.msra.mxu0 0
        %678 = vmatprep.subr.bf16.mxu0 0
        %679 = vmatpush1.bf16.msra.mxu0 0
        %680 = vmatprep.subr.bf16.mxu0 0
        %681 = vmatpush1.bf16.msra.mxu0 0
        %682 = vmatprep.subr.bf16.mxu0 0
        %683 = vmatpush1.bf16.msra.mxu0 0
        %684 = vmatprep.subr.bf16.mxu0 0
        %685 = vmatpush1.bf16.msra.mxu0 %v669
        %686 = vmatprep.subr.bf16.mxu0 0
        %687 = vmatpush1.bf16.msra.mxu0 %v668
        %688 = vmatprep.subr.bf16.mxu0 0
        %689 = vmatpush2.bf16.msra.mxu0 0
        %690 = vmatprep.subr.bf16.mxu0 0
        %691 = vmatpush2.bf16.msra.mxu0 0
        %692 = vmatprep.subr.bf16.mxu0 0
        %693 = vmatpush2.bf16.msra.mxu0 0
        %694 = vmatprep.subr.bf16.mxu0 0
        %695 = vmatpush2.bf16.msra.mxu0 0
        %696 = vmatprep.subr.bf16.mxu0 0
        %697 = vmatpush2.bf16.msra.mxu0 0
        %698 = vmatprep.subr.bf16.mxu0 0
        %699 = vmatpush2.bf16.msra.mxu0 0
        %700 = vmatprep.subr.bf16.mxu0 0
        %701 = vmatpush2.bf16.msra.mxu0 0
        %702 = vmatprep.subr.bf16.mxu0 0
        %703 = vmatpush2.bf16.msra.mxu0 0
        %704 = vmatprep.mubr.bf16.mxu0 0
        %705 = vmatmul.mubr.bf16.gmra.mxu0 %v544
        %v706 = vpop.f32.mrf.mxu0
        %v707 = vadd.f32 %v658, %v706
        %v708 = vpop.f32.mrf.mxu0
        %v709 = vpop.f32.mrf.mxu0
        %v710 = vpop.f32.mrf.mxu0
        %711 = vdwg.mxu0
        %v712 = vpack.c.bf16 %v581, %v581
        %v713 = vpack.c.bf16 %v644, %v644
        %vm714 = vcmask 64512
        %v716 = vsel %vm714, %v712, 0
        %v719 = vsel %vm714, %v713, 0
        %721 = vmatprep.subr.bf16.mxu0 0
        %722 = vmatpush1.bf16.xpose.msra.mxu0 0
        %723 = vmatprep.subr.bf16.mxu0 0
        %724 = vmatpush1.bf16.xpose.msra.mxu0 0
        %725 = vmatprep.subr.bf16.mxu0 0
        %726 = vmatpush1.bf16.xpose.msra.mxu0 0
        %727 = vmatprep.subr.bf16.mxu0 0
        %728 = vmatpush1.bf16.xpose.msra.mxu0 0
        %729 = vmatprep.subr.bf16.mxu0 0
        %730 = vmatpush1.bf16.xpose.msra.mxu0 0
        %731 = vmatprep.subr.bf16.mxu0 0
        %732 = vmatpush1.bf16.xpose.msra.mxu0 0
        %733 = vmatprep.subr.bf16.mxu0 0
        %734 = vmatpush1.bf16.xpose.msra.mxu0 0
        %735 = vmatprep.subr.bf16.mxu0 0
        %736 = vmatpush1.bf16.xpose.msra.mxu0 %v719
        %737 = vmatprep.subr.bf16.mxu0 0
        %738 = vmatpush2.bf16.xpose.msra.mxu0 0
        %739 = vmatprep.subr.bf16.mxu0 0
        %740 = vmatpush2.bf16.xpose.msra.mxu0 0
        %741 = vmatprep.subr.bf16.mxu0 0
        %742 = vmatpush2.bf16.xpose.msra.mxu0 0
        %743 = vmatprep.subr.bf16.mxu0 0
        %744 = vmatpush2.bf16.xpose.msra.mxu0 0
        %745 = vmatprep.subr.bf16.mxu0 0
        %746 = vmatpush2.bf16.xpose.msra.mxu0 0
        %747 = vmatprep.subr.bf16.mxu0 0
        %748 = vmatpush2.bf16.xpose.msra.mxu0 0
        %749 = vmatprep.subr.bf16.mxu0 0
        %750 = vmatpush2.bf16.xpose.msra.mxu0 0
        %751 = vmatprep.subr.bf16.mxu0 0
        %752 = vmatpush2.bf16.xpose.msra.mxu0 0
        %753 = vmatprep.mubr.bf16.mxu0 0
        %754 = vmatmul.mubr.bf16.gmra.mxu0 %v716
        %v755 = vpop.f32.mrf.mxu0
        %v756 = vadd.f32 0.0, %v755
        %v757 = vpop.f32.mrf.mxu0
        %v758 = vpop.f32.mrf.mxu0
        %v759 = vpop.f32.mrf.mxu0
        %760 = vdwg.mxu0
        %v761 = vmul.f32 %v756, 0.35355338
        %v762 = vsel %vm519, 65537, 0
        %v763 = vunpack.c.l.b16 %v762
        %vm764 = vcmp.ne.s32.totalorder %v763, 0
        %v765 = vsel %vm764, %v761, -1e+09
        %v766 = vsel %vm714, %v765, -inf
        %767 = vmax.xlane.f32.xlu0 %v766
        %v768 = vpop.xlane.xlu0 %767
        %v769 = vsub.f32 %v765, %v768
        %v770 = vmul.f32 %v769, 1.442695
        %v771 = vpow.pop %v770
        %v772 = vsel %vm714, %v771, 0.0
        %773 = vadd.xlane.f32.xlu0 %v772
        %v774 = vpop.xlane.xlu0 %773
        %v775 = vrcp.pop %v774
        %v776 = vmul.f32 %v771, %v775
        %v777 = vpack.c.bf16 %v776, %v776
        %vm778 = vcmask 60416
        %779 = vst.msk [vmem:[%s480] sm:$0xf] %vm778, %v777
        %v780 = vpack.c.bf16 %v707, %v707
        %v782 = vsel %vm714, %v777, 0
        %vm784 = vcmask 1043456
        %v786 = vsel %vm784, %v780, 0
        %788 = vmatprep.subr.bf16.mxu0 0
        %789 = vmatpush1.bf16.msra.mxu0 0
        %790 = vmatprep.subr.bf16.mxu0 0
        %791 = vmatpush1.bf16.msra.mxu0 0
        %792 = vmatprep.subr.bf16.mxu0 0
        %793 = vmatpush1.bf16.msra.mxu0 0
        %794 = vmatprep.subr.bf16.mxu0 0
        %795 = vmatpush1.bf16.msra.mxu0 0
        %796 = vmatprep.subr.bf16.mxu0 0
        %797 = vmatpush1.bf16.msra.mxu0 0
        %798 = vmatprep.subr.bf16.mxu0 0
        %799 = vmatpush1.bf16.msra.mxu0 0
        %800 = vmatprep.subr.bf16.mxu0 0
        %801 = vmatpush1.bf16.msra.mxu0 0
        %802 = vmatprep.subr.bf16.mxu0 0
        %803 = vmatpush1.bf16.msra.mxu0 %v786
        %804 = vmatprep.subr.bf16.mxu0 0
        %805 = vmatpush2.bf16.msra.mxu0 0
        %806 = vmatprep.subr.bf16.mxu0 0
        %807 = vmatpush2.bf16.msra.mxu0 0
        %808 = vmatprep.subr.bf16.mxu0 0
        %809 = vmatpush2.bf16.msra.mxu0 0
        %810 = vmatprep.subr.bf16.mxu0 0
        %811 = vmatpush2.bf16.msra.mxu0 0
        %812 = vmatprep.subr.bf16.mxu0 0
        %813 = vmatpush2.bf16.msra.mxu0 0
        %814 = vmatprep.subr.bf16.mxu0 0
        %815 = vmatpush2.bf16.msra.mxu0 0
        %816 = vmatprep.subr.bf16.mxu0 0
        %817 = vmatpush2.bf16.msra.mxu0 0
        %818 = vmatprep.subr.bf16.mxu0 0
        %819 = vmatpush2.bf16.msra.mxu0 0
        %820 = vmatprep.mubr.bf16.mxu0 0
        %821 = vmatmul.mubr.bf16.gmra.mxu0 %v782
        %v822 = vpop.f32.mrf.mxu0
        %v823 = vadd.f32 0.0, %v822
        %v824 = vpop.f32.mrf.mxu0
        %v825 = vpop.f32.mrf.mxu0
        %v826 = vpop.f32.mrf.mxu0
        %827 = vdwg.mxu0
        %v828 = vpack.c.bf16 %v823, %v823
        %v829 = vld [vmem:[%s10] sm:$0xf]
        %s830 = scalar_lea.vmem %s4, 16
        %v831 = vld [vmem:[%s830] sm:$0xf]
        %v832 = vld [vmem:[%s830 + $0x4] sm:$0xf]
        %v833 = vld [vmem:[%s830 + $0x8] sm:$0xf]
        %v834 = vld [vmem:[%s830 + $0xc] sm:$0xf]
        %s835 = scalar_lea.vmem %s5, 1
        %v836 = vld [vmem:[%s835] sm:$0x1]
        %v838 = vlaneseq
        %v839 = vshrl.u32 %v838, 7
        %v840 = vsub.s32 0, %v839
        %v841 = vrot.slane %v836, %v840
        %v847 = vunpack.c.l.b16 %v831
        %v848 = vunpack.c.l.b16 %v832
        %v849 = vunpack.c.l.b16 %v833
        %v850 = vunpack.c.l.b16 %v834
        %v851 = vpack.c.b16 %v848, %v847
        %v852 = vpack.c.b16 %v850, %v849
        %855 = vmatprep.subr.bf16.mxu0 0
        %856 = vmatpush1.bf16.msra.mxu0 0
        %857 = vmatprep.subr.bf16.mxu0 0
        %858 = vmatpush1.bf16.msra.mxu0 0
        %859 = vmatprep.subr.bf16.mxu0 0
        %860 = vmatpush1.bf16.msra.mxu0 0
        %861 = vmatprep.subr.bf16.mxu0 0
        %862 = vmatpush1.bf16.msra.mxu0 0
        %863 = vmatprep.subr.bf16.mxu0 0
        %864 = vmatpush1.bf16.msra.mxu0 0
        %865 = vmatprep.subr.bf16.mxu0 0
        %866 = vmatpush1.bf16.msra.mxu0 0
        %867 = vmatprep.subr.bf16.mxu0 0
        %868 = vmatpush1.bf16.msra.mxu0 %v852
        %869 = vmatprep.subr.bf16.mxu0 0
        %870 = vmatpush1.bf16.msra.mxu0 %v851
        %871 = vmatprep.subr.bf16.mxu0 0
        %872 = vmatpush2.bf16.msra.mxu0 0
        %873 = vmatprep.subr.bf16.mxu0 0
        %874 = vmatpush2.bf16.msra.mxu0 0
        %875 = vmatprep.subr.bf16.mxu0 0
        %876 = vmatpush2.bf16.msra.mxu0 0
        %877 = vmatprep.subr.bf16.mxu0 0
        %878 = vmatpush2.bf16.msra.mxu0 0
        %879 = vmatprep.subr.bf16.mxu0 0
        %880 = vmatpush2.bf16.msra.mxu0 0
        %881 = vmatprep.subr.bf16.mxu0 0
        %882 = vmatpush2.bf16.msra.mxu0 0
        %883 = vmatprep.subr.bf16.mxu0 0
        %884 = vmatpush2.bf16.msra.mxu0 0
        %885 = vmatprep.subr.bf16.mxu0 0
        %886 = vmatpush2.bf16.msra.mxu0 0
        %887 = vmatprep.mubr.bf16.mxu0 0
        %888 = vmatmul.mubr.bf16.gmra.mxu0 %v544
        %v889 = vpop.f32.mrf.mxu0
        %v890 = vadd.f32 %v841, %v889
        %v891 = vpop.f32.mrf.mxu0
        %v892 = vpop.f32.mrf.mxu0
        %v893 = vpop.f32.mrf.mxu0
        %894 = vdwg.mxu0
        %s895 = scalar_lea.vmem %s6, 16
        %v896 = vld [vmem:[%s895] sm:$0xf]
        %v897 = vld [vmem:[%s895 + $0x4] sm:$0xf]
        %v898 = vld [vmem:[%s895 + $0x8] sm:$0xf]
        %v899 = vld [vmem:[%s895 + $0xc] sm:$0xf]
        %s900 = scalar_lea.vmem %s7, 1
        %v901 = vld [vmem:[%s900] sm:$0x1]
        %v903 = vlaneseq
        %v904 = vshrl.u32 %v903, 7
        %v905 = vsub.s32 0, %v904
        %v906 = vrot.slane %v901, %v905
        %v912 = vunpack.c.l.b16 %v896
        %v913 = vunpack.c.l.b16 %v897
        %v914 = vunpack.c.l.b16 %v898
        %v915 = vunpack.c.l.b16 %v899
        %v916 = vpack.c.b16 %v913, %v912
        %v917 = vpack.c.b16 %v915, %v914
        %920 = vmatprep.subr.bf16.mxu0 0
        %921 = vmatpush1.bf16.msra.mxu0 0
        %922 = vmatprep.subr.bf16.mxu0 0
        %923 = vmatpush1.bf16.msra.mxu0 0
        %924 = vmatprep.subr.bf16.mxu0 0
        %925 = vmatpush1.bf16.msra.mxu0 0
        %926 = vmatprep.subr.bf16.mxu0 0
        %927 = vmatpush1.bf16.msra.mxu0 0
        %928 = vmatprep.subr.bf16.mxu0 0
        %929 = vmatpush1.bf16.msra.mxu0 0
        %930 = vmatprep.subr.bf16.mxu0 0
        %931 = vmatpush1.bf16.msra.mxu0 0
        %932 = vmatprep.subr.bf16.mxu0 0
        %933 = vmatpush1.bf16.msra.mxu0 %v917
        %934 = vmatprep.subr.bf16.mxu0 0
        %935 = vmatpush1.bf16.msra.mxu0 %v916
        %936 = vmatprep.subr.bf16.mxu0 0
        %937 = vmatpush2.bf16.msra.mxu0 0
        %938 = vmatprep.subr.bf16.mxu0 0
        %939 = vmatpush2.bf16.msra.mxu0 0
        %940 = vmatprep.subr.bf16.mxu0 0
        %941 = vmatpush2.bf16.msra.mxu0 0
        %942 = vmatprep.subr.bf16.mxu0 0
        %943 = vmatpush2.bf16.msra.mxu0 0
        %944 = vmatprep.subr.bf16.mxu0 0
        %945 = vmatpush2.bf16.msra.mxu0 0
        %946 = vmatprep.subr.bf16.mxu0 0
        %947 = vmatpush2.bf16.msra.mxu0 0
        %948 = vmatprep.subr.bf16.mxu0 0
        %949 = vmatpush2.bf16.msra.mxu0 0
        %950 = vmatprep.subr.bf16.mxu0 0
        %951 = vmatpush2.bf16.msra.mxu0 0
        %952 = vmatprep.mubr.bf16.mxu0 0
        %953 = vmatmul.mubr.bf16.gmra.mxu0 %v544
        %v954 = vpop.f32.mrf.mxu0
        %v955 = vadd.f32 %v906, %v954
        %v956 = vpop.f32.mrf.mxu0
        %v957 = vpop.f32.mrf.mxu0
        %v958 = vpop.f32.mrf.mxu0
        %959 = vdwg.mxu0
        %s960 = scalar_lea.vmem [#allocation2], 16
        %v961 = vld [vmem:[%s960] sm:$0xf]
        %v962 = vld [vmem:[%s960 + $0x4] sm:$0xf]
        %v963 = vld [vmem:[%s960 + $0x8] sm:$0xf]
        %v964 = vld [vmem:[%s960 + $0xc] sm:$0xf]
        %s965 = scalar_lea.vmem %s9, 1
        %v966 = vld [vmem:[%s965] sm:$0x1]
        %v968 = vlaneseq
        %v969 = vshrl.u32 %v968, 7
        %v970 = vsub.s32 0, %v969
        %v971 = vrot.slane %v966, %v970
        %v977 = vunpack.c.l.b16 %v961
        %v978 = vunpack.c.l.b16 %v962
        %v979 = vunpack.c.l.b16 %v963
        %v980 = vunpack.c.l.b16 %v964
        %v981 = vpack.c.b16 %v978, %v977
        %v982 = vpack.c.b16 %v980, %v979
        %985 = vmatprep.subr.bf16.mxu0 0
        %986 = vmatpush1.bf16.msra.mxu0 0
        %987 = vmatprep.subr.bf16.mxu0 0
        %988 = vmatpush1.bf16.msra.mxu0 0
        %989 = vmatprep.subr.bf16.mxu0 0
        %990 = vmatpush1.bf16.msra.mxu0 0
        %991 = vmatprep.subr.bf16.mxu0 0
        %992 = vmatpush1.bf16.msra.mxu0 0
        %993 = vmatprep.subr.bf16.mxu0 0
        %994 = vmatpush1.bf16.msra.mxu0 0
        %995 = vmatprep.subr.bf16.mxu0 0
        %996 = vmatpush1.bf16.msra.mxu0 0
        %997 = vmatprep.subr.bf16.mxu0 0
        %998 = vmatpush1.bf16.msra.mxu0 %v982
        %999 = vmatprep.subr.bf16.mxu0 0
        %1000 = vmatpush1.bf16.msra.mxu0 %v981
        %1001 = vmatprep.subr.bf16.mxu0 0
        %1002 = vmatpush2.bf16.msra.mxu0 0
        %1003 = vmatprep.subr.bf16.mxu0 0
        %1004 = vmatpush2.bf16.msra.mxu0 0
        %1005 = vmatprep.subr.bf16.mxu0 0
        %1006 = vmatpush2.bf16.msra.mxu0 0
        %1007 = vmatprep.subr.bf16.mxu0 0
        %1008 = vmatpush2.bf16.msra.mxu0 0
        %1009 = vmatprep.subr.bf16.mxu0 0
        %1010 = vmatpush2.bf16.msra.mxu0 0
        %1011 = vmatprep.subr.bf16.mxu0 0
        %1012 = vmatpush2.bf16.msra.mxu0 0
        %1013 = vmatprep.subr.bf16.mxu0 0
        %1014 = vmatpush2.bf16.msra.mxu0 0
        %1015 = vmatprep.subr.bf16.mxu0 0
        %1016 = vmatpush2.bf16.msra.mxu0 0
        %1017 = vmatprep.mubr.bf16.mxu0 0
        %1018 = vmatmul.mubr.bf16.gmra.mxu0 %v544
        %v1019 = vpop.f32.mrf.mxu0
        %v1020 = vadd.f32 %v971, %v1019
        %v1021 = vpop.f32.mrf.mxu0
        %v1022 = vpop.f32.mrf.mxu0
        %v1023 = vpop.f32.mrf.mxu0
        %1024 = vdwg.mxu0
        %v1025 = vpack.c.bf16 %v890, %v890
        %v1026 = vpack.c.bf16 %v955, %v955
        %v1028 = vsel %vm714, %v1025, 0
        %v1031 = vsel %vm714, %v1026, 0
        %1033 = vmatprep.subr.bf16.mxu0 0
        %1034 = vmatpush1.bf16.xpose.msra.mxu0 0
        %1035 = vmatprep.subr.bf16.mxu0 0
        %1036 = vmatpush1.bf16.xpose.msra.mxu0 0
        %1037 = vmatprep.subr.bf16.mxu0 0
        %1038 = vmatpush1.bf16.xpose.msra.mxu0 0
        %1039 = vmatprep.subr.bf16.mxu0 0
        %1040 = vmatpush1.bf16.xpose.msra.mxu0 0
        %1041 = vmatprep.subr.bf16.mxu0 0
        %1042 = vmatpush1.bf16.xpose.msra.mxu0 0
        %1043 = vmatprep.subr.bf16.mxu0 0
        %1044 = vmatpush1.bf16.xpose.msra.mxu0 0
        %1045 = vmatprep.subr.bf16.mxu0 0
        %1046 = vmatpush1.bf16.xpose.msra.mxu0 0
        %1047 = vmatprep.subr.bf16.mxu0 0
        %1048 = vmatpush1.bf16.xpose.msra.mxu0 %v1031
        %1049 = vmatprep.subr.bf16.mxu0 0
        %1050 = vmatpush2.bf16.xpose.msra.mxu0 0
        %1051 = vmatprep.subr.bf16.mxu0 0
        %1052 = vmatpush2.bf16.xpose.msra.mxu0 0
        %1053 = vmatprep.subr.bf16.mxu0 0
        %1054 = vmatpush2.bf16.xpose.msra.mxu0 0
        %1055 = vmatprep.subr.bf16.mxu0 0
        %1056 = vmatpush2.bf16.xpose.msra.mxu0 0
        %1057 = vmatprep.subr.bf16.mxu0 0
        %1058 = vmatpush2.bf16.xpose.msra.mxu0 0
        %1059 = vmatprep.subr.bf16.mxu0 0
        %1060 = vmatpush2.bf16.xpose.msra.mxu0 0
        %1061 = vmatprep.subr.bf16.mxu0 0
        %1062 = vmatpush2.bf16.xpose.msra.mxu0 0
        %1063 = vmatprep.subr.bf16.mxu0 0
        %1064 = vmatpush2.bf16.xpose.msra.mxu0 0
        %1065 = vmatprep.mubr.bf16.mxu0 0
        %1066 = vmatmul.mubr.bf16.gmra.mxu0 %v1028
        %v1067 = vpop.f32.mrf.mxu0
        %v1068 = vadd.f32 0.0, %v1067
        %v1069 = vpop.f32.mrf.mxu0
        %v1070 = vpop.f32.mrf.mxu0
        %v1071 = vpop.f32.mrf.mxu0
        %1072 = vdwg.mxu0
        %v1073 = vmul.f32 %v1068, 0.35355338
        %v1074 = vsel %vm764, %v1073, -1e+09
        %v1075 = vsel %vm714, %v1074, -inf
        %1076 = vmax.xlane.f32.xlu0 %v1075
        %v1077 = vpop.xlane.xlu0 %1076
        %v1078 = vsub.f32 %v1074, %v1077
        %v1079 = vmul.f32 %v1078, 1.442695
        %v1080 = vpow.pop %v1079
        %v1081 = vsel %vm714, %v1080, 0.0
        %1082 = vadd.xlane.f32.xlu0 %v1081
        %v1083 = vpop.xlane.xlu0 %1082
        %v1084 = vrcp.pop %v1083
        %v1085 = vmul.f32 %v1080, %v1084
        %v1086 = vpack.c.bf16 %v1085, %v1085
        %s1087 = scalar_lea.vmem %s480, 4
        %1088 = vst.msk [vmem:[%s1087] sm:$0xf] %vm778, %v1086
        %v1089 = vpack.c.bf16 %v1020, %v1020
        %v1091 = vsel %vm714, %v1086, 0
        %v1094 = vsel %vm784, %v1089, 0
        %1096 = vmatprep.subr.bf16.mxu0 0
        %1097 = vmatpush1.bf16.msra.mxu0 0
        %1098 = vmatprep.subr.bf16.mxu0 0
        %1099 = vmatpush1.bf16.msra.mxu0 0
        %1100 = vmatprep.subr.bf16.mxu0 0
        %1101 = vmatpush1.bf16.msra.mxu0 0
        %1102 = vmatprep.subr.bf16.mxu0 0
        %1103 = vmatpush1.bf16.msra.mxu0 0
        %1104 = vmatprep.subr.bf16.mxu0 0
        %1105 = vmatpush1.bf16.msra.mxu0 0
        %1106 = vmatprep.subr.bf16.mxu0 0
        %1107 = vmatpush1.bf16.msra.mxu0 0
        %1108 = vmatprep.subr.bf16.mxu0 0
        %1109 = vmatpush1.bf16.msra.mxu0 0
        %1110 = vmatprep.subr.bf16.mxu0 0
        %1111 = vmatpush1.bf16.msra.mxu0 %v1094
        %1112 = vmatprep.subr.bf16.mxu0 0
        %1113 = vmatpush2.bf16.msra.mxu0 0
        %1114 = vmatprep.subr.bf16.mxu0 0
        %1115 = vmatpush2.bf16.msra.mxu0 0
        %1116 = vmatprep.subr.bf16.mxu0 0
        %1117 = vmatpush2.bf16.msra.mxu0 0
        %1118 = vmatprep.subr.bf16.mxu0 0
        %1119 = vmatpush2.bf16.msra.mxu0 0
        %1120 = vmatprep.subr.bf16.mxu0 0
        %1121 = vmatpush2.bf16.msra.mxu0 0
        %1122 = vmatprep.subr.bf16.mxu0 0
        %1123 = vmatpush2.bf16.msra.mxu0 0
        %1124 = vmatprep.subr.bf16.mxu0 0
        %1125 = vmatpush2.bf16.msra.mxu0 0
        %1126 = vmatprep.subr.bf16.mxu0 0
        %1127 = vmatpush2.bf16.msra.mxu0 0
        %1128 = vmatprep.mubr.bf16.mxu0 0
        %1129 = vmatmul.mubr.bf16.gmra.mxu0 %v1091
        %v1130 = vpop.f32.mrf.mxu0
        %v1131 = vadd.f32 0.0, %v1130
        %v1132 = vpop.f32.mrf.mxu0
        %v1133 = vpop.f32.mrf.mxu0
        %v1134 = vpop.f32.mrf.mxu0
        %1135 = vdwg.mxu0
        %v1136 = vpack.c.bf16 %v1131, %v1131
        %s1137 = scalar_lea.vmem %s10, 4
        %v1138 = vld [vmem:[%s1137] sm:$0xf]
        %v1140 = vsel %vm714, %v1136, 0
        %v1143 = vsel %vm784, %v1138, 0
        %1145 = vmatprep.subr.bf16.mxu0 0
        %1146 = vmatpush1.bf16.msra.mxu0 0
        %1147 = vmatprep.subr.bf16.mxu0 0
        %1148 = vmatpush1.bf16.msra.mxu0 0
        %1149 = vmatprep.subr.bf16.mxu0 0
        %1150 = vmatpush1.bf16.msra.mxu0 0
        %1151 = vmatprep.subr.bf16.mxu0 0
        %1152 = vmatpush1.bf16.msra.mxu0 0
        %1153 = vmatprep.subr.bf16.mxu0 0
        %1154 = vmatpush1.bf16.msra.mxu0 0
        %1155 = vmatprep.subr.bf16.mxu0 0
        %1156 = vmatpush1.bf16.msra.mxu0 0
        %1157 = vmatprep.subr.bf16.mxu0 0
        %1158 = vmatpush1.bf16.msra.mxu0 0
        %1159 = vmatprep.subr.bf16.mxu0 0
        %1160 = vmatpush1.bf16.msra.mxu0 %v1143
        %1161 = vmatprep.subr.bf16.mxu0 0
        %1162 = vmatpush2.bf16.msra.mxu0 0
        %1163 = vmatprep.subr.bf16.mxu0 0
        %1164 = vmatpush2.bf16.msra.mxu0 0
        %1165 = vmatprep.subr.bf16.mxu0 0
        %1166 = vmatpush2.bf16.msra.mxu0 0
        %1167 = vmatprep.subr.bf16.mxu0 0
        %1168 = vmatpush2.bf16.msra.mxu0 0
        %1169 = vmatprep.subr.bf16.mxu0 0
        %1170 = vmatpush2.bf16.msra.mxu0 0
        %1171 = vmatprep.subr.bf16.mxu0 0
        %1172 = vmatpush2.bf16.msra.mxu0 0
        %1173 = vmatprep.subr.bf16.mxu0 0
        %1174 = vmatpush2.bf16.msra.mxu0 0
        %1175 = vmatprep.subr.bf16.mxu0 0
        %1176 = vmatpush2.bf16.msra.mxu0 0
        %1177 = vmatprep.mubr.bf16.mxu0 0
        %1178 = vmatmul.mubr.bf16.gmra.mxu0 %v1140
        %v1179 = vpop.f32.mrf.mxu0
        %v1180 = vadd.f32 0.0, %v1179
        %v1181 = vpop.f32.mrf.mxu0
        %v1182 = vpop.f32.mrf.mxu0
        %v1183 = vpop.f32.mrf.mxu0
        %1184 = vdwg.mxu0
        %v1186 = vsel %vm714, %v828, 0
        %v1189 = vsel %vm784, %v829, 0
        %1191 = vmatprep.subr.bf16.mxu0 0
        %1192 = vmatpush1.bf16.msra.mxu0 0
        %1193 = vmatprep.subr.bf16.mxu0 0
        %1194 = vmatpush1.bf16.msra.mxu0 0
        %1195 = vmatprep.subr.bf16.mxu0 0
        %1196 = vmatpush1.bf16.msra.mxu0 0
        %1197 = vmatprep.subr.bf16.mxu0 0
        %1198 = vmatpush1.bf16.msra.mxu0 0
        %1199 = vmatprep.subr.bf16.mxu0 0
        %1200 = vmatpush1.bf16.msra.mxu0 0
        %1201 = vmatprep.subr.bf16.mxu0 0
        %1202 = vmatpush1.bf16.msra.mxu0 0
        %1203 = vmatprep.subr.bf16.mxu0 0
        %1204 = vmatpush1.bf16.msra.mxu0 0
        %1205 = vmatprep.subr.bf16.mxu0 0
        %1206 = vmatpush1.bf16.msra.mxu0 %v1189
        %1207 = vmatprep.subr.bf16.mxu0 0
        %1208 = vmatpush2.bf16.msra.mxu0 0
        %1209 = vmatprep.subr.bf16.mxu0 0
        %1210 = vmatpush2.bf16.msra.mxu0 0
        %1211 = vmatprep.subr.bf16.mxu0 0
        %1212 = vmatpush2.bf16.msra.mxu0 0
        %1213 = vmatprep.subr.bf16.mxu0 0
        %1214 = vmatpush2.bf16.msra.mxu0 0
        %1215 = vmatprep.subr.bf16.mxu0 0
        %1216 = vmatpush2.bf16.msra.mxu0 0
        %1217 = vmatprep.subr.bf16.mxu0 0
        %1218 = vmatpush2.bf16.msra.mxu0 0
        %1219 = vmatprep.subr.bf16.mxu0 0
        %1220 = vmatpush2.bf16.msra.mxu0 0
        %1221 = vmatprep.subr.bf16.mxu0 0
        %1222 = vmatpush2.bf16.msra.mxu0 0
        %1223 = vmatprep.mubr.bf16.mxu0 0
        %1224 = vmatmul.mubr.bf16.gmra.mxu0 %v1186
        %v1225 = vpop.f32.mrf.mxu0
        %v1226 = vadd.f32 %v1180, %v1225
        %v1227 = vpop.f32.mrf.mxu0
        %v1228 = vpop.f32.mrf.mxu0
        %v1229 = vpop.f32.mrf.mxu0
        %1230 = vdwg.mxu0
        %s1231 = scalar_lea.vmem %s4, 32
        %v1232 = vld [vmem:[%s1231] sm:$0xf]
        %v1233 = vld [vmem:[%s1231 + $0x4] sm:$0xf]
        %v1234 = vld [vmem:[%s1231 + $0x8] sm:$0xf]
        %v1235 = vld [vmem:[%s1231 + $0xc] sm:$0xf]
        %s1236 = scalar_lea.vmem %s5, 2
        %v1237 = vld [vmem:[%s1236] sm:$0x1]
        %v1239 = vlaneseq
        %v1240 = vshrl.u32 %v1239, 7
        %v1241 = vsub.s32 0, %v1240
        %v1242 = vrot.slane %v1237, %v1241
        %v1248 = vunpack.c.l.b16 %v1232
        %v1249 = vunpack.c.l.b16 %v1233
        %v1250 = vunpack.c.l.b16 %v1234
        %v1251 = vunpack.c.l.b16 %v1235
        %v1252 = vpack.c.b16 %v1249, %v1248
        %v1253 = vpack.c.b16 %v1251, %v1250
        %1256 = vmatprep.subr.bf16.mxu0 0
        %1257 = vmatpush1.bf16.msra.mxu0 0
        %1258 = vmatprep.subr.bf16.mxu0 0
        %1259 = vmatpush1.bf16.msra.mxu0 0
        %1260 = vmatprep.subr.bf16.mxu0 0
        %1261 = vmatpush1.bf16.msra.mxu0 0
        %1262 = vmatprep.subr.bf16.mxu0 0
        %1263 = vmatpush1.bf16.msra.mxu0 0
        %1264 = vmatprep.subr.bf16.mxu0 0
        %1265 = vmatpush1.bf16.msra.mxu0 0
        %1266 = vmatprep.subr.bf16.mxu0 0
        %1267 = vmatpush1.bf16.msra.mxu0 0
        %1268 = vmatprep.subr.bf16.mxu0 0
        %1269 = vmatpush1.bf16.msra.mxu0 %v1253
        %1270 = vmatprep.subr.bf16.mxu0 0
        %1271 = vmatpush1.bf16.msra.mxu0 %v1252
        %1272 = vmatprep.subr.bf16.mxu0 0
        %1273 = vmatpush2.bf16.msra.mxu0 0
        %1274 = vmatprep.subr.bf16.mxu0 0
        %1275 = vmatpush2.bf16.msra.mxu0 0
        %1276 = vmatprep.subr.bf16.mxu0 0
        %1277 = vmatpush2.bf16.msra.mxu0 0
        %1278 = vmatprep.subr.bf16.mxu0 0
        %1279 = vmatpush2.bf16.msra.mxu0 0
        %1280 = vmatprep.subr.bf16.mxu0 0
        %1281 = vmatpush2.bf16.msra.mxu0 0
        %1282 = vmatprep.subr.bf16.mxu0 0
        %1283 = vmatpush2.bf16.msra.mxu0 0
        %1284 = vmatprep.subr.bf16.mxu0 0
        %1285 = vmatpush2.bf16.msra.mxu0 0
        %1286 = vmatprep.subr.bf16.mxu0 0
        %1287 = vmatpush2.bf16.msra.mxu0 0
        %1288 = vmatprep.mubr.bf16.mxu0 0
        %1289 = vmatmul.mubr.bf16.gmra.mxu0 %v544
        %v1290 = vpop.f32.mrf.mxu0
        %v1291 = vadd.f32 %v1242, %v1290
        %v1292 = vpop.f32.mrf.mxu0
        %v1293 = vpop.f32.mrf.mxu0
        %v1294 = vpop.f32.mrf.mxu0
        %1295 = vdwg.mxu0
        %s1296 = scalar_lea.vmem %s6, 32
        %v1297 = vld [vmem:[%s1296] sm:$0xf]
        %v1298 = vld [vmem:[%s1296 + $0x4] sm:$0xf]
        %v1299 = vld [vmem:[%s1296 + $0x8] sm:$0xf]
        %v1300 = vld [vmem:[%s1296 + $0xc] sm:$0xf]
        %s1301 = scalar_lea.vmem %s7, 2
        %v1302 = vld [vmem:[%s1301] sm:$0x1]
        %v1304 = vlaneseq
        %v1305 = vshrl.u32 %v1304, 7
        %v1306 = vsub.s32 0, %v1305
        %v1307 = vrot.slane %v1302, %v1306
        %v1313 = vunpack.c.l.b16 %v1297
        %v1314 = vunpack.c.l.b16 %v1298
        %v1315 = vunpack.c.l.b16 %v1299
        %v1316 = vunpack.c.l.b16 %v1300
        %v1317 = vpack.c.b16 %v1314, %v1313
        %v1318 = vpack.c.b16 %v1316, %v1315
        %1321 = vmatprep.subr.bf16.mxu0 0
        %1322 = vmatpush1.bf16.msra.mxu0 0
        %1323 = vmatprep.subr.bf16.mxu0 0
        %1324 = vmatpush1.bf16.msra.mxu0 0
        %1325 = vmatprep.subr.bf16.mxu0 0
        %1326 = vmatpush1.bf16.msra.mxu0 0
        %1327 = vmatprep.subr.bf16.mxu0 0
        %1328 = vmatpush1.bf16.msra.mxu0 0
        %1329 = vmatprep.subr.bf16.mxu0 0
        %1330 = vmatpush1.bf16.msra.mxu0 0
        %1331 = vmatprep.subr.bf16.mxu0 0
        %1332 = vmatpush1.bf16.msra.mxu0 0
        %1333 = vmatprep.subr.bf16.mxu0 0
        %1334 = vmatpush1.bf16.msra.mxu0 %v1318
        %1335 = vmatprep.subr.bf16.mxu0 0
        %1336 = vmatpush1.bf16.msra.mxu0 %v1317
        %1337 = vmatprep.subr.bf16.mxu0 0
        %1338 = vmatpush2.bf16.msra.mxu0 0
        %1339 = vmatprep.subr.bf16.mxu0 0
        %1340 = vmatpush2.bf16.msra.mxu0 0
        %1341 = vmatprep.subr.bf16.mxu0 0
        %1342 = vmatpush2.bf16.msra.mxu0 0
        %1343 = vmatprep.subr.bf16.mxu0 0
        %1344 = vmatpush2.bf16.msra.mxu0 0
        %1345 = vmatprep.subr.bf16.mxu0 0
        %1346 = vmatpush2.bf16.msra.mxu0 0
        %1347 = vmatprep.subr.bf16.mxu0 0
        %1348 = vmatpush2.bf16.msra.mxu0 0
        %1349 = vmatprep.subr.bf16.mxu0 0
        %1350 = vmatpush2.bf16.msra.mxu0 0
        %1351 = vmatprep.subr.bf16.mxu0 0
        %1352 = vmatpush2.bf16.msra.mxu0 0
        %1353 = vmatprep.mubr.bf16.mxu0 0
        %1354 = vmatmul.mubr.bf16.gmra.mxu0 %v544
        %v1355 = vpop.f32.mrf.mxu0
        %v1356 = vadd.f32 %v1307, %v1355
        %v1357 = vpop.f32.mrf.mxu0
        %v1358 = vpop.f32.mrf.mxu0
        %v1359 = vpop.f32.mrf.mxu0
        %1360 = vdwg.mxu0
        %s1361 = scalar_lea.vmem [#allocation2], 32
        %v1362 = vld [vmem:[%s1361] sm:$0xf]
        %v1363 = vld [vmem:[%s1361 + $0x4] sm:$0xf]
        %v1364 = vld [vmem:[%s1361 + $0x8] sm:$0xf]
        %v1365 = vld [vmem:[%s1361 + $0xc] sm:$0xf]
        %s1366 = scalar_lea.vmem %s9, 2
        %v1367 = vld [vmem:[%s1366] sm:$0x1]
        %v1369 = vlaneseq
        %v1370 = vshrl.u32 %v1369, 7
        %v1371 = vsub.s32 0, %v1370
        %v1372 = vrot.slane %v1367, %v1371
        %v1378 = vunpack.c.l.b16 %v1362
        %v1379 = vunpack.c.l.b16 %v1363
        %v1380 = vunpack.c.l.b16 %v1364
        %v1381 = vunpack.c.l.b16 %v1365
        %v1382 = vpack.c.b16 %v1379, %v1378
        %v1383 = vpack.c.b16 %v1381, %v1380
        %1386 = vmatprep.subr.bf16.mxu0 0
        %1387 = vmatpush1.bf16.msra.mxu0 0
        %1388 = vmatprep.subr.bf16.mxu0 0
        %1389 = vmatpush1.bf16.msra.mxu0 0
        %1390 = vmatprep.subr.bf16.mxu0 0
        %1391 = vmatpush1.bf16.msra.mxu0 0
        %1392 = vmatprep.subr.bf16.mxu0 0
        %1393 = vmatpush1.bf16.msra.mxu0 0
        %1394 = vmatprep.subr.bf16.mxu0 0
        %1395 = vmatpush1.bf16.msra.mxu0 0
        %1396 = vmatprep.subr.bf16.mxu0 0
        %1397 = vmatpush1.bf16.msra.mxu0 0
        %1398 = vmatprep.subr.bf16.mxu0 0
        %1399 = vmatpush1.bf16.msra.mxu0 %v1383
        %1400 = vmatprep.subr.bf16.mxu0 0
        %1401 = vmatpush1.bf16.msra.mxu0 %v1382
        %1402 = vmatprep.subr.bf16.mxu0 0
        %1403 = vmatpush2.bf16.msra.mxu0 0
        %1404 = vmatprep.subr.bf16.mxu0 0
        %1405 = vmatpush2.bf16.msra.mxu0 0
        %1406 = vmatprep.subr.bf16.mxu0 0
        %1407 = vmatpush2.bf16.msra.mxu0 0
        %1408 = vmatprep.subr.bf16.mxu0 0
        %1409 = vmatpush2.bf16.msra.mxu0 0
        %1410 = vmatprep.subr.bf16.mxu0 0
        %1411 = vmatpush2.bf16.msra.mxu0 0
        %1412 = vmatprep.subr.bf16.mxu0 0
        %1413 = vmatpush2.bf16.msra.mxu0 0
        %1414 = vmatprep.subr.bf16.mxu0 0
        %1415 = vmatpush2.bf16.msra.mxu0 0
        %1416 = vmatprep.subr.bf16.mxu0 0
        %1417 = vmatpush2.bf16.msra.mxu0 0
        %1418 = vmatprep.mubr.bf16.mxu0 0
        %1419 = vmatmul.mubr.bf16.gmra.mxu0 %v544
        %v1420 = vpop.f32.mrf.mxu0
        %v1421 = vadd.f32 %v1372, %v1420
        %v1422 = vpop.f32.mrf.mxu0
        %v1423 = vpop.f32.mrf.mxu0
        %v1424 = vpop.f32.mrf.mxu0
        %1425 = vdwg.mxu0
        %v1426 = vpack.c.bf16 %v1291, %v1291
        %v1427 = vpack.c.bf16 %v1356, %v1356
        %v1429 = vsel %vm714, %v1426, 0
        %v1432 = vsel %vm714, %v1427, 0
        %1434 = vmatprep.subr.bf16.mxu0 0
        %1435 = vmatpush1.bf16.xpose.msra.mxu0 0
        %1436 = vmatprep.subr.bf16.mxu0 0
        %1437 = vmatpush1.bf16.xpose.msra.mxu0 0
        %1438 = vmatprep.subr.bf16.mxu0 0
        %1439 = vmatpush1.bf16.xpose.msra.mxu0 0
        %1440 = vmatprep.subr.bf16.mxu0 0
        %1441 = vmatpush1.bf16.xpose.msra.mxu0 0
        %1442 = vmatprep.subr.bf16.mxu0 0
        %1443 = vmatpush1.bf16.xpose.msra.mxu0 0
        %1444 = vmatprep.subr.bf16.mxu0 0
        %1445 = vmatpush1.bf16.xpose.msra.mxu0 0
        %1446 = vmatprep.subr.bf16.mxu0 0
        %1447 = vmatpush1.bf16.xpose.msra.mxu0 0
        %1448 = vmatprep.subr.bf16.mxu0 0
        %1449 = vmatpush1.bf16.xpose.msra.mxu0 %v1432
        %1450 = vmatprep.subr.bf16.mxu0 0
        %1451 = vmatpush2.bf16.xpose.msra.mxu0 0
        %1452 = vmatprep.subr.bf16.mxu0 0
        %1453 = vmatpush2.bf16.xpose.msra.mxu0 0
        %1454 = vmatprep.subr.bf16.mxu0 0
        %1455 = vmatpush2.bf16.xpose.msra.mxu0 0
        %1456 = vmatprep.subr.bf16.mxu0 0
        %1457 = vmatpush2.bf16.xpose.msra.mxu0 0
        %1458 = vmatprep.subr.bf16.mxu0 0
        %1459 = vmatpush2.bf16.xpose.msra.mxu0 0
        %1460 = vmatprep.subr.bf16.mxu0 0
        %1461 = vmatpush2.bf16.xpose.msra.mxu0 0
        %1462 = vmatprep.subr.bf16.mxu0 0
        %1463 = vmatpush2.bf16.xpose.msra.mxu0 0
        %1464 = vmatprep.subr.bf16.mxu0 0
        %1465 = vmatpush2.bf16.xpose.msra.mxu0 0
        %1466 = vmatprep.mubr.bf16.mxu0 0
        %1467 = vmatmul.mubr.bf16.gmra.mxu0 %v1429
        %v1468 = vpop.f32.mrf.mxu0
        %v1469 = vadd.f32 0.0, %v1468
        %v1470 = vpop.f32.mrf.mxu0
        %v1471 = vpop.f32.mrf.mxu0
        %v1472 = vpop.f32.mrf.mxu0
        %1473 = vdwg.mxu0
        %v1474 = vmul.f32 %v1469, 0.35355338
        %v1475 = vsel %vm764, %v1474, -1e+09
        %v1476 = vsel %vm714, %v1475, -inf
        %1477 = vmax.xlane.f32.xlu0 %v1476
        %v1478 = vpop.xlane.xlu0 %1477
        %v1479 = vsub.f32 %v1475, %v1478
        %v1480 = vmul.f32 %v1479, 1.442695
        %v1481 = vpow.pop %v1480
        %v1482 = vsel %vm714, %v1481, 0.0
        %1483 = vadd.xlane.f32.xlu0 %v1482
        %v1484 = vpop.xlane.xlu0 %1483
        %v1485 = vrcp.pop %v1484
        %v1486 = vmul.f32 %v1481, %v1485
        %v1487 = vpack.c.bf16 %v1486, %v1486
        %s1488 = scalar_lea.vmem %s480, 8
        %1489 = vst.msk [vmem:[%s1488] sm:$0xf] %vm778, %v1487
        %v1490 = vpack.c.bf16 %v1421, %v1421
        %v1492 = vsel %vm714, %v1487, 0
        %v1495 = vsel %vm784, %v1490, 0
        %1497 = vmatprep.subr.bf16.mxu0 0
        %1498 = vmatpush1.bf16.msra.mxu0 0
        %1499 = vmatprep.subr.bf16.mxu0 0
        %1500 = vmatpush1.bf16.msra.mxu0 0
        %1501 = vmatprep.subr.bf16.mxu0 0
        %1502 = vmatpush1.bf16.msra.mxu0 0
        %1503 = vmatprep.subr.bf16.mxu0 0
        %1504 = vmatpush1.bf16.msra.mxu0 0
        %1505 = vmatprep.subr.bf16.mxu0 0
        %1506 = vmatpush1.bf16.msra.mxu0 0
        %1507 = vmatprep.subr.bf16.mxu0 0
        %1508 = vmatpush1.bf16.msra.mxu0 0
        %1509 = vmatprep.subr.bf16.mxu0 0
        %1510 = vmatpush1.bf16.msra.mxu0 0
        %1511 = vmatprep.subr.bf16.mxu0 0
        %1512 = vmatpush1.bf16.msra.mxu0 %v1495
        %1513 = vmatprep.subr.bf16.mxu0 0
        %1514 = vmatpush2.bf16.msra.mxu0 0
        %1515 = vmatprep.subr.bf16.mxu0 0
        %1516 = vmatpush2.bf16.msra.mxu0 0
        %1517 = vmatprep.subr.bf16.mxu0 0
        %1518 = vmatpush2.bf16.msra.mxu0 0
        %1519 = vmatprep.subr.bf16.mxu0 0
        %1520 = vmatpush2.bf16.msra.mxu0 0
        %1521 = vmatprep.subr.bf16.mxu0 0
        %1522 = vmatpush2.bf16.msra.mxu0 0
        %1523 = vmatprep.subr.bf16.mxu0 0
        %1524 = vmatpush2.bf16.msra.mxu0 0
        %1525 = vmatprep.subr.bf16.mxu0 0
        %1526 = vmatpush2.bf16.msra.mxu0 0
        %1527 = vmatprep.subr.bf16.mxu0 0
        %1528 = vmatpush2.bf16.msra.mxu0 0
        %1529 = vmatprep.mubr.bf16.mxu0 0
        %1530 = vmatmul.mubr.bf16.gmra.mxu0 %v1492
        %v1531 = vpop.f32.mrf.mxu0
        %v1532 = vadd.f32 0.0, %v1531
        %v1533 = vpop.f32.mrf.mxu0
        %v1534 = vpop.f32.mrf.mxu0
        %v1535 = vpop.f32.mrf.mxu0
        %1536 = vdwg.mxu0
        %v1537 = vpack.c.bf16 %v1532, %v1532
        %s1538 = scalar_lea.vmem %s10, 8
        %v1539 = vld [vmem:[%s1538] sm:$0xf]
        %v1541 = vsel %vm714, %v1537, 0
        %v1544 = vsel %vm784, %v1539, 0
        %1546 = vmatprep.subr.bf16.mxu0 0
        %1547 = vmatpush1.bf16.msra.mxu0 0
        %1548 = vmatprep.subr.bf16.mxu0 0
        %1549 = vmatpush1.bf16.msra.mxu0 0
        %1550 = vmatprep.subr.bf16.mxu0 0
        %1551 = vmatpush1.bf16.msra.mxu0 0
        %1552 = vmatprep.subr.bf16.mxu0 0
        %1553 = vmatpush1.bf16.msra.mxu0 0
        %1554 = vmatprep.subr.bf16.mxu0 0
        %1555 = vmatpush1.bf16.msra.mxu0 0
        %1556 = vmatprep.subr.bf16.mxu0 0
        %1557 = vmatpush1.bf16.msra.mxu0 0
        %1558 = vmatprep.subr.bf16.mxu0 0
        %1559 = vmatpush1.bf16.msra.mxu0 0
        %1560 = vmatprep.subr.bf16.mxu0 0
        %1561 = vmatpush1.bf16.msra.mxu0 %v1544
        %1562 = vmatprep.subr.bf16.mxu0 0
        %1563 = vmatpush2.bf16.msra.mxu0 0
        %1564 = vmatprep.subr.bf16.mxu0 0
        %1565 = vmatpush2.bf16.msra.mxu0 0
        %1566 = vmatprep.subr.bf16.mxu0 0
        %1567 = vmatpush2.bf16.msra.mxu0 0
        %1568 = vmatprep.subr.bf16.mxu0 0
        %1569 = vmatpush2.bf16.msra.mxu0 0
        %1570 = vmatprep.subr.bf16.mxu0 0
        %1571 = vmatpush2.bf16.msra.mxu0 0
        %1572 = vmatprep.subr.bf16.mxu0 0
        %1573 = vmatpush2.bf16.msra.mxu0 0
        %1574 = vmatprep.subr.bf16.mxu0 0
        %1575 = vmatpush2.bf16.msra.mxu0 0
        %1576 = vmatprep.subr.bf16.mxu0 0
        %1577 = vmatpush2.bf16.msra.mxu0 0
        %1578 = vmatprep.mubr.bf16.mxu0 0
        %1579 = vmatmul.mubr.bf16.gmra.mxu0 %v1541
        %v1580 = vpop.f32.mrf.mxu0
        %v1581 = vadd.f32 0.0, %v1580
        %v1582 = vpop.f32.mrf.mxu0
        %v1583 = vpop.f32.mrf.mxu0
        %v1584 = vpop.f32.mrf.mxu0
        %1585 = vdwg.mxu0
        %v1586 = vadd.f32 %v1226, %v1581
        %s1587 = scalar_lea.vmem %s4, 48
        %v1588 = vld [vmem:[%s1587] sm:$0xf]
        %v1589 = vld [vmem:[%s1587 + $0x4] sm:$0xf]
        %v1590 = vld [vmem:[%s1587 + $0x8] sm:$0xf]
        %v1591 = vld [vmem:[%s1587 + $0xc] sm:$0xf]
        %s1592 = scalar_lea.vmem %s5, 3
        %v1593 = vld [vmem:[%s1592] sm:$0x1]
        %v1595 = vlaneseq
        %v1596 = vshrl.u32 %v1595, 7
        %v1597 = vsub.s32 0, %v1596
        %v1598 = vrot.slane %v1593, %v1597
        %v1604 = vunpack.c.l.b16 %v1588
        %v1605 = vunpack.c.l.b16 %v1589
        %v1606 = vunpack.c.l.b16 %v1590
        %v1607 = vunpack.c.l.b16 %v1591
        %v1608 = vpack.c.b16 %v1605, %v1604
        %v1609 = vpack.c.b16 %v1607, %v1606
        %1612 = vmatprep.subr.bf16.mxu0 0
        %1613 = vmatpush1.bf16.msra.mxu0 0
        %1614 = vmatprep.subr.bf16.mxu0 0
        %1615 = vmatpush1.bf16.msra.mxu0 0
        %1616 = vmatprep.subr.bf16.mxu0 0
        %1617 = vmatpush1.bf16.msra.mxu0 0
        %1618 = vmatprep.subr.bf16.mxu0 0
        %1619 = vmatpush1.bf16.msra.mxu0 0
        %1620 = vmatprep.subr.bf16.mxu0 0
        %1621 = vmatpush1.bf16.msra.mxu0 0
        %1622 = vmatprep.subr.bf16.mxu0 0
        %1623 = vmatpush1.bf16.msra.mxu0 0
        %1624 = vmatprep.subr.bf16.mxu0 0
        %1625 = vmatpush1.bf16.msra.mxu0 %v1609
        %1626 = vmatprep.subr.bf16.mxu0 0
        %1627 = vmatpush1.bf16.msra.mxu0 %v1608
        %1628 = vmatprep.subr.bf16.mxu0 0
        %1629 = vmatpush2.bf16.msra.mxu0 0
        %1630 = vmatprep.subr.bf16.mxu0 0
        %1631 = vmatpush2.bf16.msra.mxu0 0
        %1632 = vmatprep.subr.bf16.mxu0 0
        %1633 = vmatpush2.bf16.msra.mxu0 0
        %1634 = vmatprep.subr.bf16.mxu0 0
        %1635 = vmatpush2.bf16.msra.mxu0 0
        %1636 = vmatprep.subr.bf16.mxu0 0
        %1637 = vmatpush2.bf16.msra.mxu0 0
        %1638 = vmatprep.subr.bf16.mxu0 0
        %1639 = vmatpush2.bf16.msra.mxu0 0
        %1640 = vmatprep.subr.bf16.mxu0 0
        %1641 = vmatpush2.bf16.msra.mxu0 0
        %1642 = vmatprep.subr.bf16.mxu0 0
        %1643 = vmatpush2.bf16.msra.mxu0 0
        %1644 = vmatprep.mubr.bf16.mxu0 0
        %1645 = vmatmul.mubr.bf16.gmra.mxu0 %v544
        %v1646 = vpop.f32.mrf.mxu0
        %v1647 = vadd.f32 %v1598, %v1646
        %v1648 = vpop.f32.mrf.mxu0
        %v1649 = vpop.f32.mrf.mxu0
        %v1650 = vpop.f32.mrf.mxu0
        %1651 = vdwg.mxu0
        %s1652 = scalar_lea.vmem %s6, 48
        %v1653 = vld [vmem:[%s1652] sm:$0xf]
        %v1654 = vld [vmem:[%s1652 + $0x4] sm:$0xf]
        %v1655 = vld [vmem:[%s1652 + $0x8] sm:$0xf]
        %v1656 = vld [vmem:[%s1652 + $0xc] sm:$0xf]
        %s1657 = scalar_lea.vmem %s7, 3
        %v1658 = vld [vmem:[%s1657] sm:$0x1]
        %v1660 = vlaneseq
        %v1661 = vshrl.u32 %v1660, 7
        %v1662 = vsub.s32 0, %v1661
        %v1663 = vrot.slane %v1658, %v1662
        %v1669 = vunpack.c.l.b16 %v1653
        %v1670 = vunpack.c.l.b16 %v1654
        %v1671 = vunpack.c.l.b16 %v1655
        %v1672 = vunpack.c.l.b16 %v1656
        %v1673 = vpack.c.b16 %v1670, %v1669
        %v1674 = vpack.c.b16 %v1672, %v1671
        %1677 = vmatprep.subr.bf16.mxu0 0
        %1678 = vmatpush1.bf16.msra.mxu0 0
        %1679 = vmatprep.subr.bf16.mxu0 0
        %1680 = vmatpush1.bf16.msra.mxu0 0
        %1681 = vmatprep.subr.bf16.mxu0 0
        %1682 = vmatpush1.bf16.msra.mxu0 0
        %1683 = vmatprep.subr.bf16.mxu0 0
        %1684 = vmatpush1.bf16.msra.mxu0 0
        %1685 = vmatprep.subr.bf16.mxu0 0
        %1686 = vmatpush1.bf16.msra.mxu0 0
        %1687 = vmatprep.subr.bf16.mxu0 0
        %1688 = vmatpush1.bf16.msra.mxu0 0
        %1689 = vmatprep.subr.bf16.mxu0 0
        %1690 = vmatpush1.bf16.msra.mxu0 %v1674
        %1691 = vmatprep.subr.bf16.mxu0 0
        %1692 = vmatpush1.bf16.msra.mxu0 %v1673
        %1693 = vmatprep.subr.bf16.mxu0 0
        %1694 = vmatpush2.bf16.msra.mxu0 0
        %1695 = vmatprep.subr.bf16.mxu0 0
        %1696 = vmatpush2.bf16.msra.mxu0 0
        %1697 = vmatprep.subr.bf16.mxu0 0
        %1698 = vmatpush2.bf16.msra.mxu0 0
        %1699 = vmatprep.subr.bf16.mxu0 0
        %1700 = vmatpush2.bf16.msra.mxu0 0
        %1701 = vmatprep.subr.bf16.mxu0 0
        %1702 = vmatpush2.bf16.msra.mxu0 0
        %1703 = vmatprep.subr.bf16.mxu0 0
        %1704 = vmatpush2.bf16.msra.mxu0 0
        %1705 = vmatprep.subr.bf16.mxu0 0
        %1706 = vmatpush2.bf16.msra.mxu0 0
        %1707 = vmatprep.subr.bf16.mxu0 0
        %1708 = vmatpush2.bf16.msra.mxu0 0
        %1709 = vmatprep.mubr.bf16.mxu0 0
        %1710 = vmatmul.mubr.bf16.gmra.mxu0 %v544
        %v1711 = vpop.f32.mrf.mxu0
        %v1712 = vadd.f32 %v1663, %v1711
        %v1713 = vpop.f32.mrf.mxu0
        %v1714 = vpop.f32.mrf.mxu0
        %v1715 = vpop.f32.mrf.mxu0
        %1716 = vdwg.mxu0
        %s1717 = scalar_lea.vmem [#allocation2], 48
        %v1718 = vld [vmem:[%s1717] sm:$0xf]
        %v1719 = vld [vmem:[%s1717 + $0x4] sm:$0xf]
        %v1720 = vld [vmem:[%s1717 + $0x8] sm:$0xf]
        %v1721 = vld [vmem:[%s1717 + $0xc] sm:$0xf]
        %s1722 = scalar_lea.vmem %s9, 3
        %v1723 = vld [vmem:[%s1722] sm:$0x1]
        %v1725 = vlaneseq
        %v1726 = vshrl.u32 %v1725, 7
        %v1727 = vsub.s32 0, %v1726
        %v1728 = vrot.slane %v1723, %v1727
        %v1734 = vunpack.c.l.b16 %v1718
        %v1735 = vunpack.c.l.b16 %v1719
        %v1736 = vunpack.c.l.b16 %v1720
        %v1737 = vunpack.c.l.b16 %v1721
        %v1738 = vpack.c.b16 %v1735, %v1734
        %v1739 = vpack.c.b16 %v1737, %v1736
        %1742 = vmatprep.subr.bf16.mxu0 0
        %1743 = vmatpush1.bf16.msra.mxu0 0
        %1744 = vmatprep.subr.bf16.mxu0 0
        %1745 = vmatpush1.bf16.msra.mxu0 0
        %1746 = vmatprep.subr.bf16.mxu0 0
        %1747 = vmatpush1.bf16.msra.mxu0 0
        %1748 = vmatprep.subr.bf16.mxu0 0
        %1749 = vmatpush1.bf16.msra.mxu0 0
        %1750 = vmatprep.subr.bf16.mxu0 0
        %1751 = vmatpush1.bf16.msra.mxu0 0
        %1752 = vmatprep.subr.bf16.mxu0 0
        %1753 = vmatpush1.bf16.msra.mxu0 0
        %1754 = vmatprep.subr.bf16.mxu0 0
        %1755 = vmatpush1.bf16.msra.mxu0 %v1739
        %1756 = vmatprep.subr.bf16.mxu0 0
        %1757 = vmatpush1.bf16.msra.mxu0 %v1738
        %1758 = vmatprep.subr.bf16.mxu0 0
        %1759 = vmatpush2.bf16.msra.mxu0 0
        %1760 = vmatprep.subr.bf16.mxu0 0
        %1761 = vmatpush2.bf16.msra.mxu0 0
        %1762 = vmatprep.subr.bf16.mxu0 0
        %1763 = vmatpush2.bf16.msra.mxu0 0
        %1764 = vmatprep.subr.bf16.mxu0 0
        %1765 = vmatpush2.bf16.msra.mxu0 0
        %1766 = vmatprep.subr.bf16.mxu0 0
        %1767 = vmatpush2.bf16.msra.mxu0 0
        %1768 = vmatprep.subr.bf16.mxu0 0
        %1769 = vmatpush2.bf16.msra.mxu0 0
        %1770 = vmatprep.subr.bf16.mxu0 0
        %1771 = vmatpush2.bf16.msra.mxu0 0
        %1772 = vmatprep.subr.bf16.mxu0 0
        %1773 = vmatpush2.bf16.msra.mxu0 0
        %1774 = vmatprep.mubr.bf16.mxu0 0
        %1775 = vmatmul.mubr.bf16.gmra.mxu0 %v544
        %v1776 = vpop.f32.mrf.mxu0
        %v1777 = vadd.f32 %v1728, %v1776
        %v1778 = vpop.f32.mrf.mxu0
        %v1779 = vpop.f32.mrf.mxu0
        %v1780 = vpop.f32.mrf.mxu0
        %1781 = vdwg.mxu0
        %v1782 = vpack.c.bf16 %v1647, %v1647
        %v1783 = vpack.c.bf16 %v1712, %v1712
        %v1785 = vsel %vm714, %v1782, 0
        %v1788 = vsel %vm714, %v1783, 0
        %1790 = vmatprep.subr.bf16.mxu0 0
        %1791 = vmatpush1.bf16.xpose.msra.mxu0 0
        %1792 = vmatprep.subr.bf16.mxu0 0
        %1793 = vmatpush1.bf16.xpose.msra.mxu0 0
        %1794 = vmatprep.subr.bf16.mxu0 0
        %1795 = vmatpush1.bf16.xpose.msra.mxu0 0
        %1796 = vmatprep.subr.bf16.mxu0 0
        %1797 = vmatpush1.bf16.xpose.msra.mxu0 0
        %1798 = vmatprep.subr.bf16.mxu0 0
        %1799 = vmatpush1.bf16.xpose.msra.mxu0 0
        %1800 = vmatprep.subr.bf16.mxu0 0
        %1801 = vmatpush1.bf16.xpose.msra.mxu0 0
        %1802 = vmatprep.subr.bf16.mxu0 0
        %1803 = vmatpush1.bf16.xpose.msra.mxu0 0
        %1804 = vmatprep.subr.bf16.mxu0 0
        %1805 = vmatpush1.bf16.xpose.msra.mxu0 %v1788
        %1806 = vmatprep.subr.bf16.mxu0 0
        %1807 = vmatpush2.bf16.xpose.msra.mxu0 0
        %1808 = vmatprep.subr.bf16.mxu0 0
        %1809 = vmatpush2.bf16.xpose.msra.mxu0 0
        %1810 = vmatprep.subr.bf16.mxu0 0
        %1811 = vmatpush2.bf16.xpose.msra.mxu0 0
        %1812 = vmatprep.subr.bf16.mxu0 0
        %1813 = vmatpush2.bf16.xpose.msra.mxu0 0
        %1814 = vmatprep.subr.bf16.mxu0 0
        %1815 = vmatpush2.bf16.xpose.msra.mxu0 0
        %1816 = vmatprep.subr.bf16.mxu0 0
        %1817 = vmatpush2.bf16.xpose.msra.mxu0 0
        %1818 = vmatprep.subr.bf16.mxu0 0
        %1819 = vmatpush2.bf16.xpose.msra.mxu0 0
        %1820 = vmatprep.subr.bf16.mxu0 0
        %1821 = vmatpush2.bf16.xpose.msra.mxu0 0
        %1822 = vmatprep.mubr.bf16.mxu0 0
        %1823 = vmatmul.mubr.bf16.gmra.mxu0 %v1785
        %v1824 = vpop.f32.mrf.mxu0
        %v1825 = vadd.f32 0.0, %v1824
        %v1826 = vpop.f32.mrf.mxu0
        %v1827 = vpop.f32.mrf.mxu0
        %v1828 = vpop.f32.mrf.mxu0
        %1829 = vdwg.mxu0
        %v1830 = vmul.f32 %v1825, 0.35355338
        %v1831 = vsel %vm764, %v1830, -1e+09
        %v1832 = vsel %vm714, %v1831, -inf
        %1833 = vmax.xlane.f32.xlu0 %v1832
        %v1834 = vpop.xlane.xlu0 %1833
        %v1835 = vsub.f32 %v1831, %v1834
        %v1836 = vmul.f32 %v1835, 1.442695
        %v1837 = vpow.pop %v1836
        %v1838 = vsel %vm714, %v1837, 0.0
        %1839 = vadd.xlane.f32.xlu0 %v1838
        %v1840 = vpop.xlane.xlu0 %1839
        %v1841 = vrcp.pop %v1840
        %v1842 = vmul.f32 %v1837, %v1841
        %v1843 = vpack.c.bf16 %v1842, %v1842
        %s1844 = scalar_lea.vmem %s480, 12
        %1845 = vst.msk [vmem:[%s1844] sm:$0xf] %vm778, %v1843
        %v1846 = vpack.c.bf16 %v1777, %v1777
        %v1848 = vsel %vm714, %v1843, 0
        %v1851 = vsel %vm784, %v1846, 0
        %1853 = vmatprep.subr.bf16.mxu0 0
        %1854 = vmatpush1.bf16.msra.mxu0 0
        %1855 = vmatprep.subr.bf16.mxu0 0
        %1856 = vmatpush1.bf16.msra.mxu0 0
        %1857 = vmatprep.subr.bf16.mxu0 0
        %1858 = vmatpush1.bf16.msra.mxu0 0
        %1859 = vmatprep.subr.bf16.mxu0 0
        %1860 = vmatpush1.bf16.msra.mxu0 0
        %1861 = vmatprep.subr.bf16.mxu0 0
        %1862 = vmatpush1.bf16.msra.mxu0 0
        %1863 = vmatprep.subr.bf16.mxu0 0
        %1864 = vmatpush1.bf16.msra.mxu0 0
        %1865 = vmatprep.subr.bf16.mxu0 0
        %1866 = vmatpush1.bf16.msra.mxu0 0
        %1867 = vmatprep.subr.bf16.mxu0 0
        %1868 = vmatpush1.bf16.msra.mxu0 %v1851
        %1869 = vmatprep.subr.bf16.mxu0 0
        %1870 = vmatpush2.bf16.msra.mxu0 0
        %1871 = vmatprep.subr.bf16.mxu0 0
        %1872 = vmatpush2.bf16.msra.mxu0 0
        %1873 = vmatprep.subr.bf16.mxu0 0
        %1874 = vmatpush2.bf16.msra.mxu0 0
        %1875 = vmatprep.subr.bf16.mxu0 0
        %1876 = vmatpush2.bf16.msra.mxu0 0
        %1877 = vmatprep.subr.bf16.mxu0 0
        %1878 = vmatpush2.bf16.msra.mxu0 0
        %1879 = vmatprep.subr.bf16.mxu0 0
        %1880 = vmatpush2.bf16.msra.mxu0 0
        %1881 = vmatprep.subr.bf16.mxu0 0
        %1882 = vmatpush2.bf16.msra.mxu0 0
        %1883 = vmatprep.subr.bf16.mxu0 0
        %1884 = vmatpush2.bf16.msra.mxu0 0
        %1885 = vmatprep.mubr.bf16.mxu0 0
        %1886 = vmatmul.mubr.bf16.gmra.mxu0 %v1848
        %v1887 = vpop.f32.mrf.mxu0
        %v1888 = vadd.f32 0.0, %v1887
        %v1889 = vpop.f32.mrf.mxu0
        %v1890 = vpop.f32.mrf.mxu0
        %v1891 = vpop.f32.mrf.mxu0
        %1892 = vdwg.mxu0
        %v1893 = vpack.c.bf16 %v1888, %v1888
        %s1894 = scalar_lea.vmem %s10, 12
        %v1895 = vld [vmem:[%s1894] sm:$0xf]
        %v1897 = vsel %vm714, %v1893, 0
        %v1900 = vsel %vm784, %v1895, 0
        %1902 = vmatprep.subr.bf16.mxu0 0
        %1903 = vmatpush1.bf16.msra.mxu0 0
        %1904 = vmatprep.subr.bf16.mxu0 0
        %1905 = vmatpush1.bf16.msra.mxu0 0
        %1906 = vmatprep.subr.bf16.mxu0 0
        %1907 = vmatpush1.bf16.msra.mxu0 0
        %1908 = vmatprep.subr.bf16.mxu0 0
        %1909 = vmatpush1.bf16.msra.mxu0 0
        %1910 = vmatprep.subr.bf16.mxu0 0
        %1911 = vmatpush1.bf16.msra.mxu0 0
        %1912 = vmatprep.subr.bf16.mxu0 0
        %1913 = vmatpush1.bf16.msra.mxu0 0
        %1914 = vmatprep.subr.bf16.mxu0 0
        %1915 = vmatpush1.bf16.msra.mxu0 0
        %1916 = vmatprep.subr.bf16.mxu0 0
        %1917 = vmatpush1.bf16.msra.mxu0 %v1900
        %1918 = vmatprep.subr.bf16.mxu0 0
        %1919 = vmatpush2.bf16.msra.mxu0 0
        %1920 = vmatprep.subr.bf16.mxu0 0
        %1921 = vmatpush2.bf16.msra.mxu0 0
        %1922 = vmatprep.subr.bf16.mxu0 0
        %1923 = vmatpush2.bf16.msra.mxu0 0
        %1924 = vmatprep.subr.bf16.mxu0 0
        %1925 = vmatpush2.bf16.msra.mxu0 0
        %1926 = vmatprep.subr.bf16.mxu0 0
        %1927 = vmatpush2.bf16.msra.mxu0 0
        %1928 = vmatprep.subr.bf16.mxu0 0
        %1929 = vmatpush2.bf16.msra.mxu0 0
        %1930 = vmatprep.subr.bf16.mxu0 0
        %1931 = vmatpush2.bf16.msra.mxu0 0
        %1932 = vmatprep.subr.bf16.mxu0 0
        %1933 = vmatpush2.bf16.msra.mxu0 0
        %1934 = vmatprep.mubr.bf16.mxu0 0
        %1935 = vmatmul.mubr.bf16.gmra.mxu0 %v1897
        %v1936 = vpop.f32.mrf.mxu0
        %v1937 = vadd.f32 0.0, %v1936
        %v1938 = vpop.f32.mrf.mxu0
        %v1939 = vpop.f32.mrf.mxu0
        %v1940 = vpop.f32.mrf.mxu0
        %1941 = vdwg.mxu0
        %v1942 = vadd.f32 %v1586, %v1937
        %v1943 = vld [vmem:[%s11] sm:$0x1]
        %v1945 = vlaneseq
        %v1946 = vshrl.u32 %v1945, 7
        %v1947 = vsub.s32 0, %v1946
        %v1948 = vrot.slane %v1943, %v1947
        %v1950 = vadd.f32 %v1942, %v1948
        %v1951 = vadd.f32 %v485, %v1950
        %v1952 = vpack.c.bf16 %v1951, %v1951
        %vm1953 = vcmask 257024
        %1954 = vst.msk [vmem:[%s475] sm:$0xf] %vm1953, %v1952
        %p1955 = scmp.lt.s32.totalorder %s26, 1
        %s1956 = scalar_select %p1955, %s26, 1
        %s1957 = smul.addr %s1956, 4
        %s1958 = scalar_lea.vmem %s12, %s1957
        %p1959 = scmp.lt.s32.totalorder %s26, 1
        %s1960 = scalar_select %p1959, %s26, 1
        %s1961 = smul.addr %s1960, 4
        %s1962 = smul.addr %s1961, 4
        %s1963 = scalar_lea.vmem %s13, %s1962
        // Predicated region
        $region73: #{_lambda_.8} parent=67 // pred_check
          %p1964 = pneg %p306
        $region74: #{_lambda_.8} parent=67 // pred_check_branch
          %1966 = sbr.rel (%p1964) target = $region76
        $region75: #{_lambda_.8} parent=67 // pred_region
          _
        $region76: #{_lambda_.8} parent=67 // pred_fallthru
          _
        // Predicated region
        $region77: #{_lambda_.8} parent=67 // pred_check
          %p1967 = pneg %p332
        $region78: #{_lambda_.8} parent=67 // pred_check_branch
          %1969 = sbr.rel (%p1967) target = $region80
        $region79: #{_lambda_.8} parent=67 // pred_region
          _
        $region80: #{_lambda_.8} parent=67 // pred_fallthru
          _
      $region68: #{_lambda_.8} parent=5 // pred_fallthru
        _
      %p1970 = scmp.le.s32.totalorder 2, %s21
      // Predicated region
      $region81: #{_lambda_.8} parent=5 // pred_check
        %p1971 = pneg %p1970
      $region82: #{_lambda_.8} parent=5 // pred_check_branch
        %1973 = sbr.rel (%p1971) target = $region84
      $region83: #{_lambda_.8} parent=5 // pred_region
        %s1974 = ssub.s32 %s21, 2
        // Predicated region
        $region85: #{_lambda_.8} parent=83 // pred_check
          %p1975 = pneg %p312
        $region86: #{_lambda_.8} parent=83 // pred_check_branch
          %1977 = sbr.rel (%p1975) target = $region88
        $region87: #{_lambda_.8} parent=83 // pred_region
          %p1978 = scmp.lt.s32.totalorder %s27, 1
          %s1979 = scalar_select %p1978, %s27, 1
          %s1980 = smul.addr %s1979, 4
          %s1981 = scalar_lea.vmem %s12, %s1980
        $region88: #{_lambda_.8} parent=83 // pred_fallthru
          _
        // Predicated region
        $region89: #{_lambda_.8} parent=83 // pred_check
          %p1982 = pneg %p338
        $region90: #{_lambda_.8} parent=83 // pred_check_branch
          %1984 = sbr.rel (%p1982) target = $region92
        $region91: #{_lambda_.8} parent=83 // pred_region
          %p1985 = scmp.lt.s32.totalorder %s27, 1
          %s1986 = scalar_select %p1985, %s27, 1
          %s1987 = smul.addr %s1986, 4
          %s1988 = smul.addr %s1987, 4
          %s1989 = scalar_lea.vmem %s13, %s1988
        $region92: #{_lambda_.8} parent=83 // pred_fallthru
          _
      $region84: #{_lambda_.8} parent=5 // pred_fallthru
        _
    $region6: #{_lambda_.8} parent=1 // loop_footer
      %s25 = sadd.s32 1, %s21
    $region7: #{_lambda_.8} parent=1 // loop_footer_branch
      %20 = sbr.rel target = $region3
    $region8: #{_lambda_.8} parent=1 // loop_exit
      _
    %1990 = vsyncpa [#allocation3], 1
    %s1991 = scalar_lea.sflag [#allocation3], 1
    %1992 = vsyncpa %s1991, 1

// kernel: _lambda_.13
$region0: #{_lambda_.13}
  #allocation0 [shape = 'u32[]', space=smem, size = 0x4, offset = 0x4, fixed_abs, tag = 'smem constant byte address 0x4 - core index']
  #allocation1 [shape = 'u32[144,128]{1,0:T(1,128)}', space=vmem, size = 0x12000, scoped, tag = 'internal scratch']
  #allocation2 [shape = 'f32[10,32]{1,0:T(8,128)}', space=vmem, size = 0x2000, scoped, tag = 'scratch operand']
  #allocation3 [shape = 'f32[10,128]{1,0:T(8,128)}', space=vmem, size = 0x2000, scoped, tag = 'scratch operand']
  %s0 = inlined_call_operand.vmem [shape: bf16[2,8,32], index: 0, kind: input, shape index: {}]
  %s1 = inlined_call_operand.vmem [shape: f32[1,32], index: 1, kind: input, shape index: {}, may-alias: {1,7}]
  %s2 = inlined_call_operand.vmem [shape: f32[1,32], index: 2, kind: input, shape index: {}, may-alias: {2,6,8}]
  %s3 = inlined_call_operand.vmem [shape: bf16[3,32,128], index: 3, kind: input, shape index: {}]
  %s4 = inlined_call_operand.vmem [shape: f32[1,128], index: 4, kind: input, shape index: {}]
  %s5 = inlined_call_operand.vmem [shape: bf16[3,128,32], index: 5, kind: input, shape index: {}]
  %s6 = inlined_call_operand.vmem [shape: f32[1,32], index: 6, kind: input, shape index: {}, may-alias: {2,6,8}]
  %s7 = inlined_call_operand.vmem [shape: f32[1,32], index: 7, kind: input, shape index: {}, may-alias: {1,7}]
  %s8 = inlined_call_operand.vmem [shape: f32[1,32], index: 8, kind: input, shape index: {}, may-alias: {2,6,8}]
  %s9 = inlined_call_operand.hbm [shape: f32[2,8,32], index: 9, kind: output, shape index: {}]
  %s10 = sld [smem:[#allocation0]]
  $region69: #{_lambda_.13} parent=0
    _
  %s12 = ssub.s32 1, %s10
  %s13 = scalar_select 0, %s12, %s10
  $region1: #{_lambda_.13} parent=0
    #allocation4 [shape = 'u8[8192]{0}', space=vmem, size = 0x2000, scoped, tag = 'output window, operand 0']
    #allocation5 [shape = 's32[2]{0}', space=sflag, size = 0x8, scoped, tag = 'scoped memory for _lambda_.13']
    %14 = vsyncpa [#allocation5], 0
    %s15 = scalar_lea.sflag [#allocation5], 1
    %16 = vsyncpa %s15, 0
    loop: start=0, step=1, limit=4
    $region2: #{_lambda_.13} parent=1 // loop_pre_header
      _
    $region3: #{_lambda_.13} parent=1 // loop_header
      %s18 = sphi 0, %s22
      %p19 = scmp.ge.s32.totalorder %s18, 4
      %s28 = sphi 0, %s30
      %s31 = sphi 0, %s28
      %s32 = sphi 0, %s31
      %s48 = sphi 0, %s32
      %s52 = sphi 0, %s52
      %s54 = sphi 0, %s52
      %s55 = sphi 0, %s54
      %s69 = sphi 0, %s55
      %s73 = sphi 0, %s73
      %s75 = sphi 0, %s73
      %s76 = sphi 0, %s75
      %s90 = sphi 0, %s76
      %s94 = sphi 0, %s94
      %s96 = sphi 0, %s94
      %s97 = sphi 0, %s96
      %s111 = sphi 0, %s97
      %s115 = sphi 0, %s115
      %s117 = sphi 0, %s115
      %s118 = sphi 0, %s117
      %s132 = sphi 0, %s118
      %s136 = sphi 0, %s136
      %s138 = sphi 0, %s136
      %s139 = sphi 0, %s138
      %s153 = sphi 0, %s139
      %s157 = sphi 0, %s157
      %s159 = sphi 0, %s157
      %s160 = sphi 0, %s159
      %s174 = sphi 0, %s160
      %s178 = sphi 0, %s178
      %s180 = sphi 0, %s178
      %s181 = sphi 0, %s180
      %s195 = sphi 0, %s181
      %s199 = sphi 0, %s199
      %s201 = sphi 0, %s199
      %s202 = sphi 0, %s201
      %s216 = sphi 0, %s202
      %s222 = sphi 0, %s224
      %s225 = sphi 0, %s222
      %s226 = sphi 0, %s225
      %s242 = sphi 0, %s226
    $region4: #{_lambda_.13} parent=1 // loop_header_branch
      %21 = sbr.rel (%p19) target = $region8
    $region5: #{_lambda_.13} parent=1 // loop_body
      %s23 = ssub.s32 %s18, 1
      %s24 = ssub.s32 %s18, 2
      %s25 = sadd.s32 %s18, 1
      %s26 = ssub.s32 %s18, %s25
      %p27 = scmp.eq.s32.totalorder %s26, 0
      %s29 = sadd.s32 %s28, 1
      %s30 = scalar_select %p27, %s28, %s29
      %p33 = pneg %p27
      %p34 = scmp.eq.s32.totalorder %s18, 1
      %p35 = por %p33, %p34
      %p36 = scmp.ne.s32.totalorder %s28, %s31
      %p37 = scmp.eq.s32.totalorder %s18, 0
      %p38 = por %p36, %p37
      %p39 = scmp.ne.s32.totalorder %s28, %s31
      %p40 = scmp.eq.s32.totalorder %s23, 1
      %p41 = por %p39, %p40
      %p42 = scmp.ne.s32.totalorder %s31, %s32
      %p43 = scmp.eq.s32.totalorder %s23, 0
      %p44 = por %p42, %p43
      %p45 = scmp.ne.s32.totalorder %s31, %s32
      %p46 = scmp.eq.s32.totalorder %s24, 1
      %p47 = por %p45, %p46
      %p49 = scmp.ne.s32.totalorder %s32, %s48
      %p50 = scmp.eq.s32.totalorder %s24, 0
      %p51 = por %p49, %p50
      %s53 = sadd.s32 %s52, 1
      %p56 = scmp.eq.s32.totalorder %s18, 1
      %p57 = scmp.ne.s32.totalorder %s52, %s54
      %p58 = scmp.eq.s32.totalorder %s18, 0
      %p59 = por %p57, %p58
      %p60 = scmp.ne.s32.totalorder %s52, %s54
      %p61 = scmp.eq.s32.totalorder %s23, 1
      %p62 = por %p60, %p61
      %p63 = scmp.ne.s32.totalorder %s54, %s55
      %p64 = scmp.eq.s32.totalorder %s23, 0
      %p65 = por %p63, %p64
      %p66 = scmp.ne.s32.totalorder %s54, %s55
      %p67 = scmp.eq.s32.totalorder %s24, 1
      %p68 = por %p66, %p67
      %p70 = scmp.ne.s32.totalorder %s55, %s69
      %p71 = scmp.eq.s32.totalorder %s24, 0
      %p72 = por %p70, %p71
      %s74 = sadd.s32 %s73, 1
      %p77 = scmp.eq.s32.totalorder %s18, 1
      %p78 = scmp.ne.s32.totalorder %s73, %s75
      %p79 = scmp.eq.s32.totalorder %s18, 0
      %p80 = por %p78, %p79
      %p81 = scmp.ne.s32.totalorder %s73, %s75
      %p82 = scmp.eq.s32.totalorder %s23, 1
      %p83 = por %p81, %p82
      %p84 = scmp.ne.s32.totalorder %s75, %s76
      %p85 = scmp.eq.s32.totalorder %s23, 0
      %p86 = por %p84, %p85
      %p87 = scmp.ne.s32.totalorder %s75, %s76
      %p88 = scmp.eq.s32.totalorder %s24, 1
      %p89 = por %p87, %p88
      %p91 = scmp.ne.s32.totalorder %s76, %s90
      %p92 = scmp.eq.s32.totalorder %s24, 0
      %p93 = por %p91, %p92
      %s95 = sadd.s32 %s94, 1
      %p98 = scmp.eq.s32.totalorder %s18, 1
      %p99 = scmp.ne.s32.totalorder %s94, %s96
      %p100 = scmp.eq.s32.totalorder %s18, 0
      %p101 = por %p99, %p100
      %p102 = scmp.ne.s32.totalorder %s94, %s96
      %p103 = scmp.eq.s32.totalorder %s23, 1
      %p104 = por %p102, %p103
      %p105 = scmp.ne.s32.totalorder %s96, %s97
      %p106 = scmp.eq.s32.totalorder %s23, 0
      %p107 = por %p105, %p106
      %p108 = scmp.ne.s32.totalorder %s96, %s97
      %p109 = scmp.eq.s32.totalorder %s24, 1
      %p110 = por %p108, %p109
      %p112 = scmp.ne.s32.totalorder %s97, %s111
      %p113 = scmp.eq.s32.totalorder %s24, 0
      %p114 = por %p112, %p113
      %s116 = sadd.s32 %s115, 1
      %p119 = scmp.eq.s32.totalorder %s18, 1
      %p120 = scmp.ne.s32.totalorder %s115, %s117
      %p121 = scmp.eq.s32.totalorder %s18, 0
      %p122 = por %p120, %p121
      %p123 = scmp.ne.s32.totalorder %s115, %s117
      %p124 = scmp.eq.s32.totalorder %s23, 1
      %p125 = por %p123, %p124
      %p126 = scmp.ne.s32.totalorder %s117, %s118
      %p127 = scmp.eq.s32.totalorder %s23, 0
      %p128 = por %p126, %p127
      %p129 = scmp.ne.s32.totalorder %s117, %s118
      %p130 = scmp.eq.s32.totalorder %s24, 1
      %p131 = por %p129, %p130
      %p133 = scmp.ne.s32.totalorder %s118, %s132
      %p134 = scmp.eq.s32.totalorder %s24, 0
      %p135 = por %p133, %p134
      %s137 = sadd.s32 %s136, 1
      %p140 = scmp.eq.s32.totalorder %s18, 1
      %p141 = scmp.ne.s32.totalorder %s136, %s138
      %p142 = scmp.eq.s32.totalorder %s18, 0
      %p143 = por %p141, %p142
      %p144 = scmp.ne.s32.totalorder %s136, %s138
      %p145 = scmp.eq.s32.totalorder %s23, 1
      %p146 = por %p144, %p145
      %p147 = scmp.ne.s32.totalorder %s138, %s139
      %p148 = scmp.eq.s32.totalorder %s23, 0
      %p149 = por %p147, %p148
      %p150 = scmp.ne.s32.totalorder %s138, %s139
      %p151 = scmp.eq.s32.totalorder %s24, 1
      %p152 = por %p150, %p151
      %p154 = scmp.ne.s32.totalorder %s139, %s153
      %p155 = scmp.eq.s32.totalorder %s24, 0
      %p156 = por %p154, %p155
      %s158 = sadd.s32 %s157, 1
      %p161 = scmp.eq.s32.totalorder %s18, 1
      %p162 = scmp.ne.s32.totalorder %s157, %s159
      %p163 = scmp.eq.s32.totalorder %s18, 0
      %p164 = por %p162, %p163
      %p165 = scmp.ne.s32.totalorder %s157, %s159
      %p166 = scmp.eq.s32.totalorder %s23, 1
      %p167 = por %p165, %p166
      %p168 = scmp.ne.s32.totalorder %s159, %s160
      %p169 = scmp.eq.s32.totalorder %s23, 0
      %p170 = por %p168, %p169
      %p171 = scmp.ne.s32.totalorder %s159, %s160
      %p172 = scmp.eq.s32.totalorder %s24, 1
      %p173 = por %p171, %p172
      %p175 = scmp.ne.s32.totalorder %s160, %s174
      %p176 = scmp.eq.s32.totalorder %s24, 0
      %p177 = por %p175, %p176
      %s179 = sadd.s32 %s178, 1
      %p182 = scmp.eq.s32.totalorder %s18, 1
      %p183 = scmp.ne.s32.totalorder %s178, %s180
      %p184 = scmp.eq.s32.totalorder %s18, 0
      %p185 = por %p183, %p184
      %p186 = scmp.ne.s32.totalorder %s178, %s180
      %p187 = scmp.eq.s32.totalorder %s23, 1
      %p188 = por %p186, %p187
      %p189 = scmp.ne.s32.totalorder %s180, %s181
      %p190 = scmp.eq.s32.totalorder %s23, 0
      %p191 = por %p189, %p190
      %p192 = scmp.ne.s32.totalorder %s180, %s181
      %p193 = scmp.eq.s32.totalorder %s24, 1
      %p194 = por %p192, %p193
      %p196 = scmp.ne.s32.totalorder %s181, %s195
      %p197 = scmp.eq.s32.totalorder %s24, 0
      %p198 = por %p196, %p197
      %s200 = sadd.s32 %s199, 1
      %p203 = scmp.eq.s32.totalorder %s18, 1
      %p204 = scmp.ne.s32.totalorder %s199, %s201
      %p205 = scmp.eq.s32.totalorder %s18, 0
      %p206 = por %p204, %p205
      %p207 = scmp.ne.s32.totalorder %s199, %s201
      %p208 = scmp.eq.s32.totalorder %s23, 1
      %p209 = por %p207, %p208
      %p210 = scmp.ne.s32.totalorder %s201, %s202
      %p211 = scmp.eq.s32.totalorder %s23, 0
      %p212 = por %p210, %p211
      %p213 = scmp.ne.s32.totalorder %s201, %s202
      %p214 = scmp.eq.s32.totalorder %s24, 1
      %p215 = por %p213, %p214
      %p217 = scmp.ne.s32.totalorder %s202, %s216
      %p218 = scmp.eq.s32.totalorder %s24, 0
      %p219 = por %p217, %p218
      %s220 = ssub.s32 %s18, %s25
      %p221 = scmp.eq.s32.totalorder %s220, 0
      %s223 = sadd.s32 %s222, 1
      %s224 = scalar_select %p221, %s222, %s223
      %p227 = pneg %p221
      %p228 = scmp.eq.s32.totalorder %s18, 1
      %p229 = por %p227, %p228
      %p230 = scmp.ne.s32.totalorder %s222, %s225
      %p231 = scmp.eq.s32.totalorder %s18, 0
      %p232 = por %p230, %p231
      %p233 = scmp.ne.s32.totalorder %s222, %s225
      %p234 = scmp.eq.s32.totalorder %s23, 1
      %p235 = por %p233, %p234
      %p236 = scmp.ne.s32.totalorder %s225, %s226
      %p237 = scmp.eq.s32.totalorder %s23, 0
      %p238 = por %p236, %p237
      %p239 = scmp.ne.s32.totalorder %s225, %s226
      %p240 = scmp.eq.s32.totalorder %s24, 1
      %p241 = por %p239, %p240
      %p243 = scmp.ne.s32.totalorder %s226, %s242
      %p244 = scmp.eq.s32.totalorder %s24, 0
      %p245 = por %p243, %p244
      %p246 = scmp.le.s32.totalorder 1, %s18
      %p247 = scmp.lt.s32.totalorder %s18, 3
      %p248 = pnand %p246, %p247
      %p249 = pneg %p248
      // Predicated region
      $region9: #{_lambda_.13} parent=5 // pred_check
        _
      $region10: #{_lambda_.13} parent=5 // pred_check_branch
        %251 = sbr.rel (%p248) target = $region12
      $region11: #{_lambda_.13} parent=5 // pred_region
        %s252 = ssub.s32 %s18, 1
        // Predicated region
        $region13: #{_lambda_.13} parent=11 // pred_check
          %p253 = pneg %p65
        $region14: #{_lambda_.13} parent=11 // pred_check_branch
          %255 = sbr.rel (%p253) target = $region16
        $region15: #{_lambda_.13} parent=11 // pred_region
          _
        $region16: #{_lambda_.13} parent=11 // pred_fallthru
          _
        // Predicated region
        $region17: #{_lambda_.13} parent=11 // pred_check
          %p256 = pneg %p86
        $region18: #{_lambda_.13} parent=11 // pred_check_branch
          %258 = sbr.rel (%p256) target = $region20
        $region19: #{_lambda_.13} parent=11 // pred_region
          _
        $region20: #{_lambda_.13} parent=11 // pred_fallthru
          _
        // Predicated region
        $region21: #{_lambda_.13} parent=11 // pred_check
          %p259 = pneg %p107
        $region22: #{_lambda_.13} parent=11 // pred_check_branch
          %261 = sbr.rel (%p259) target = $region24
        $region23: #{_lambda_.13} parent=11 // pred_region
          _
        $region24: #{_lambda_.13} parent=11 // pred_fallthru
          _
        // Predicated region
        $region25: #{_lambda_.13} parent=11 // pred_check
          %p262 = pneg %p128
        $region26: #{_lambda_.13} parent=11 // pred_check_branch
          %264 = sbr.rel (%p262) target = $region28
        $region27: #{_lambda_.13} parent=11 // pred_region
          _
        $region28: #{_lambda_.13} parent=11 // pred_fallthru
          _
        // Predicated region
        $region29: #{_lambda_.13} parent=11 // pred_check
          %p265 = pneg %p149
        $region30: #{_lambda_.13} parent=11 // pred_check_branch
          %267 = sbr.rel (%p265) target = $region32
        $region31: #{_lambda_.13} parent=11 // pred_region
          _
        $region32: #{_lambda_.13} parent=11 // pred_fallthru
          _
        // Predicated region
        $region33: #{_lambda_.13} parent=11 // pred_check
          %p268 = pneg %p170
        $region34: #{_lambda_.13} parent=11 // pred_check_branch
          %270 = sbr.rel (%p268) target = $region36
        $region35: #{_lambda_.13} parent=11 // pred_region
          _
        $region36: #{_lambda_.13} parent=11 // pred_fallthru
          _
        // Predicated region
        $region37: #{_lambda_.13} parent=11 // pred_check
          %p271 = pneg %p191
        $region38: #{_lambda_.13} parent=11 // pred_check_branch
          %273 = sbr.rel (%p271) target = $region40
        $region39: #{_lambda_.13} parent=11 // pred_region
          _
        $region40: #{_lambda_.13} parent=11 // pred_fallthru
          _
        // Predicated region
        $region41: #{_lambda_.13} parent=11 // pred_check
          %p274 = pneg %p212
        $region42: #{_lambda_.13} parent=11 // pred_check_branch
          %276 = sbr.rel (%p274) target = $region44
        $region43: #{_lambda_.13} parent=11 // pred_region
          _
        $region44: #{_lambda_.13} parent=11 // pred_fallthru
          _
      $region12: #{_lambda_.13} parent=5 // pred_fallthru
        _
      %p277 = scmp.lt.s32.totalorder %s18, 2
      // Predicated region
      $region45: #{_lambda_.13} parent=5 // pred_check
        %p278 = pneg %p277
      $region46: #{_lambda_.13} parent=5 // pred_check_branch
        %280 = sbr.rel (%p278) target = $region48
      $region47: #{_lambda_.13} parent=5 // pred_region
        // Predicated region
        $region49: #{_lambda_.13} parent=47 // pred_check
          %p281 = pneg %p38
        $region50: #{_lambda_.13} parent=47 // pred_check_branch
          %283 = sbr.rel (%p281) target = $region52
        $region51: #{_lambda_.13} parent=47 // pred_region
          %p284 = scmp.lt.s32.totalorder %s18, 1
          %s285 = scalar_select %p284, %s18, 1
          %s286 = smul.addr %s285, 4
          %s287 = scalar_lea.vmem %s0, %s286
        $region52: #{_lambda_.13} parent=47 // pred_fallthru
          _
      $region48: #{_lambda_.13} parent=5 // pred_fallthru
        _
      %p288 = scmp.le.s32.totalorder 1, %s18
      %p289 = scmp.lt.s32.totalorder %s18, 3
      %p290 = pnand %p288, %p289
      %p291 = pneg %p290
      // Predicated region
      $region53: #{_lambda_.13} parent=5 // pred_check
        _
      $region54: #{_lambda_.13} parent=5 // pred_check_branch
        %293 = sbr.rel (%p290) target = $region56
      $region55: #{_lambda_.13} parent=5 // pred_region
        %s294 = ssub.s32 %s18, 1
        %p295 = scmp.lt.s32.totalorder %s23, 1
        %s296 = scalar_select %p295, %s23, 1
        %s297 = smul.addr %s296, 4
        %s298 = scalar_lea.vmem %s0, %s297
        %p299 = pneg %p44
        %p300 = pneg %p41
        %p301 = pneg %p65
        %p302 = pneg %p62
        %p303 = pneg %p86
        %p304 = pneg %p83
        %p305 = pneg %p107
        %p306 = pneg %p104
        %p307 = pneg %p128
        %p308 = pneg %p125
        %p309 = pneg %p149
        %p310 = pneg %p146
        %p311 = pneg %p170
        %p312 = pneg %p167
        %p313 = pneg %p191
        %p314 = pneg %p188
        %p315 = pneg %p212
        %p316 = pneg %p209
        %p317 = pneg %p238
        %p318 = pneg %p235
        %s319 = sand.u32 %s225, 1
        %s320 = scalar_lea.sflag [#allocation5], %s319
        %s321 = sand.u32 %s225, 1
        %s322 = smul.addr %s321, 8
        %s323 = scalar_lea.vmem [#allocation4], %s322
        %p324 = scmp.lt.s32.totalorder %s23, 1
        %s325 = scalar_select %p324, %s23, 1
        %s326 = smul.addr %s325, 4
        %s327 = scalar_lea.vmem %s0, %s326
        %v329 = vld [vmem:[%s327] sm:$0xf]
        %v330 = vunpack.c.l.bf16 %v329
        %vm331 = vcmask 261120
        %v332 = vsel %vm331, %v330, 0.0
        %333 = vadd.xlane.f32.xlu0 %v332
        %v334 = vpop.xlane.xlu0 %333
        %v335 = vrcp.pop 32.0
        %v336 = vmul.f32 %v334, %v335
        %v337 = vsub.f32 %v330, %v336
        %v338 = vmul.f32 %v337, %v337
        %v339 = vsel %vm331, %v338, 0.0
        %340 = vadd.xlane.f32.xlu0 %v339
        %v341 = vpop.xlane.xlu0 %340
        %v342 = vmul.f32 %v341, %v335
        %v343 = vadd.f32 %v342, 1e-05
        %v344 = vrsqrt.pop %v343
        %v345 = vmul.f32 %v337, %v344
        %v346 = vld [vmem:[%s1] sm:$0x1]
        %v348 = vlaneseq
        %v349 = vshrl.u32 %v348, 7
        %v350 = vsub.s32 0, %v349
        %v351 = vrot.slane %v346, %v350
        %v353 = vmul.f32 %v345, %v351
        %v354 = vld [vmem:[%s2] sm:$0x1]
        %v356 = vlaneseq
        %v357 = vshrl.u32 %v356, 7
        %v358 = vsub.s32 0, %v357
        %v359 = vrot.slane %v354, %v358
        %v361 = vadd.f32 %v353, %v359
        %vm362 = vcmask 253952
        %363 = vst.msk [vmem:[#allocation2] sm:$0x1] %vm362, 0.0
        %364 = vst.msk [vmem:[#allocation2 + $0x9] sm:$0x1] %vm362, 0.0
        %365 = vst.msk [vmem:[#allocation2 + $0x1] sm:$0xff] %vm331, %v361
        %v366 = vld [vmem:[#allocation2] sm:$0xff]
        %v367 = vpack.c.bf16 %v366, %v366
        %v368 = vld [vmem:[%s3] sm:$0xf]
        %v369 = vld [vmem:[%s3 + $0x4] sm:$0xf]
        %v370 = vld [vmem:[%s3 + $0x8] sm:$0xf]
        %v371 = vld [vmem:[%s3 + $0xc] sm:$0xf]
        %v372 = vld [vmem:[#allocation2 + $0x1] sm:$0xff]
        %v373 = vpack.c.bf16 %v372, %v372
        %s374 = scalar_lea.vmem %s3, 16
        %v375 = vld [vmem:[%s374] sm:$0xf]
        %v376 = vld [vmem:[%s374 + $0x4] sm:$0xf]
        %v377 = vld [vmem:[%s374 + $0x8] sm:$0xf]
        %v378 = vld [vmem:[%s374 + $0xc] sm:$0xf]
        %v383 = vunpack.c.l.b16 %v375
        %v384 = vunpack.c.l.b16 %v376
        %v385 = vunpack.c.l.b16 %v377
        %v386 = vunpack.c.l.b16 %v378
        %v387 = vpack.c.b16 %v384, %v383
        %v388 = vpack.c.b16 %v386, %v385
        %v392 = vsel %vm331, %v373, 0
        %394 = vmatprep.subr.bf16.mxu0 0
        %395 = vmatpush1.bf16.msra.mxu0 0
        %396 = vmatprep.subr.bf16.mxu0 0
        %397 = vmatpush1.bf16.msra.mxu0 0
        %398 = vmatprep.subr.bf16.mxu0 0
        %399 = vmatpush1.bf16.msra.mxu0 0
        %400 = vmatprep.subr.bf16.mxu0 0
        %401 = vmatpush1.bf16.msra.mxu0 0
        %402 = vmatprep.subr.bf16.mxu0 0
        %403 = vmatpush1.bf16.msra.mxu0 0
        %404 = vmatprep.subr.bf16.mxu0 0
        %405 = vmatpush1.bf16.msra.mxu0 0
        %406 = vmatprep.subr.bf16.mxu0 0
        %407 = vmatpush1.bf16.msra.mxu0 %v388
        %408 = vmatprep.subr.bf16.mxu0 0
        %409 = vmatpush1.bf16.msra.mxu0 %v387
        %410 = vmatprep.subr.bf16.mxu0 0
        %411 = vmatpush2.bf16.msra.mxu0 0
        %412 = vmatprep.subr.bf16.mxu0 0
        %413 = vmatpush2.bf16.msra.mxu0 0
        %414 = vmatprep.subr.bf16.mxu0 0
        %415 = vmatpush2.bf16.msra.mxu0 0
        %416 = vmatprep.subr.bf16.mxu0 0
        %417 = vmatpush2.bf16.msra.mxu0 0
        %418 = vmatprep.subr.bf16.mxu0 0
        %419 = vmatpush2.bf16.msra.mxu0 0
        %420 = vmatprep.subr.bf16.mxu0 0
        %421 = vmatpush2.bf16.msra.mxu0 0
        %422 = vmatprep.subr.bf16.mxu0 0
        %423 = vmatpush2.bf16.msra.mxu0 0
        %424 = vmatprep.subr.bf16.mxu0 0
        %425 = vmatpush2.bf16.msra.mxu0 0
        %426 = vmatprep.mubr.bf16.mxu0 0
        %427 = vmatmul.mubr.bf16.gmra.mxu0 %v392
        %v428 = vpop.f32.mrf.mxu0
        %v429 = vadd.f32 0.0, %v428
        %v430 = vpop.f32.mrf.mxu0
        %v431 = vpop.f32.mrf.mxu0
        %v432 = vpop.f32.mrf.mxu0
        %433 = vdwg.mxu0
        %v438 = vunpack.c.l.b16 %v368
        %v439 = vunpack.c.l.b16 %v369
        %v440 = vunpack.c.l.b16 %v370
        %v441 = vunpack.c.l.b16 %v371
        %v442 = vpack.c.b16 %v439, %v438
        %v443 = vpack.c.b16 %v441, %v440
        %v447 = vsel %vm331, %v367, 0
        %449 = vmatprep.subr.bf16.mxu0 0
        %450 = vmatpush1.bf16.msra.mxu0 0
        %451 = vmatprep.subr.bf16.mxu0 0
        %452 = vmatpush1.bf16.msra.mxu0 0
        %453 = vmatprep.subr.bf16.mxu0 0
        %454 = vmatpush1.bf16.msra.mxu0 0
        %455 = vmatprep.subr.bf16.mxu0 0
        %456 = vmatpush1.bf16.msra.mxu0 0
        %457 = vmatprep.subr.bf16.mxu0 0
        %458 = vmatpush1.bf16.msra.mxu0 0
        %459 = vmatprep.subr.bf16.mxu0 0
        %460 = vmatpush1.bf16.msra.mxu0 0
        %461 = vmatprep.subr.bf16.mxu0 0
        %462 = vmatpush1.bf16.msra.mxu0 %v443
        %463 = vmatprep.subr.bf16.mxu0 0
        %464 = vmatpush1.bf16.msra.mxu0 %v442
        %465 = vmatprep.subr.bf16.mxu0 0
        %466 = vmatpush2.bf16.msra.mxu0 0
        %467 = vmatprep.subr.bf16.mxu0 0
        %468 = vmatpush2.bf16.msra.mxu0 0
        %469 = vmatprep.subr.bf16.mxu0 0
        %470 = vmatpush2.bf16.msra.mxu0 0
        %471 = vmatprep.subr.bf16.mxu0 0
        %472 = vmatpush2.bf16.msra.mxu0 0
        %473 = vmatprep.subr.bf16.mxu0 0
        %474 = vmatpush2.bf16.msra.mxu0 0
        %475 = vmatprep.subr.bf16.mxu0 0
        %476 = vmatpush2.bf16.msra.mxu0 0
        %477 = vmatprep.subr.bf16.mxu0 0
        %478 = vmatpush2.bf16.msra.mxu0 0
        %479 = vmatprep.subr.bf16.mxu0 0
        %480 = vmatpush2.bf16.msra.mxu0 0
        %481 = vmatprep.mubr.bf16.mxu0 0
        %482 = vmatmul.mubr.bf16.gmra.mxu0 %v447
        %v483 = vpop.f32.mrf.mxu0
        %v484 = vadd.f32 %v429, %v483
        %v485 = vpop.f32.mrf.mxu0
        %v486 = vpop.f32.mrf.mxu0
        %v487 = vpop.f32.mrf.mxu0
        %488 = vdwg.mxu0
        %v489 = vld [vmem:[#allocation2 + $0x2] sm:$0xff]
        %v490 = vpack.c.bf16 %v489, %v489
        %s491 = scalar_lea.vmem %s3, 32
        %v492 = vld [vmem:[%s491] sm:$0xf]
        %v493 = vld [vmem:[%s491 + $0x4] sm:$0xf]
        %v494 = vld [vmem:[%s491 + $0x8] sm:$0xf]
        %v495 = vld [vmem:[%s491 + $0xc] sm:$0xf]
        %v500 = vunpack.c.l.b16 %v492
        %v501 = vunpack.c.l.b16 %v493
        %v502 = vunpack.c.l.b16 %v494
        %v503 = vunpack.c.l.b16 %v495
        %v504 = vpack.c.b16 %v501, %v500
        %v505 = vpack.c.b16 %v503, %v502
        %v509 = vsel %vm331, %v490, 0
        %511 = vmatprep.subr.bf16.mxu0 0
        %512 = vmatpush1.bf16.msra.mxu0 0
        %513 = vmatprep.subr.bf16.mxu0 0
        %514 = vmatpush1.bf16.msra.mxu0 0
        %515 = vmatprep.subr.bf16.mxu0 0
        %516 = vmatpush1.bf16.msra.mxu0 0
        %517 = vmatprep.subr.bf16.mxu0 0
        %518 = vmatpush1.bf16.msra.mxu0 0
        %519 = vmatprep.subr.bf16.mxu0 0
        %520 = vmatpush1.bf16.msra.mxu0 0
        %521 = vmatprep.subr.bf16.mxu0 0
        %522 = vmatpush1.bf16.msra.mxu0 0
        %523 = vmatprep.subr.bf16.mxu0 0
        %524 = vmatpush1.bf16.msra.mxu0 %v505
        %525 = vmatprep.subr.bf16.mxu0 0
        %526 = vmatpush1.bf16.msra.mxu0 %v504
        %527 = vmatprep.subr.bf16.mxu0 0
        %528 = vmatpush2.bf16.msra.mxu0 0
        %529 = vmatprep.subr.bf16.mxu0 0
        %530 = vmatpush2.bf16.msra.mxu0 0
        %531 = vmatprep.subr.bf16.mxu0 0
        %532 = vmatpush2.bf16.msra.mxu0 0
        %533 = vmatprep.subr.bf16.mxu0 0
        %534 = vmatpush2.bf16.msra.mxu0 0
        %535 = vmatprep.subr.bf16.mxu0 0
        %536 = vmatpush2.bf16.msra.mxu0 0
        %537 = vmatprep.subr.bf16.mxu0 0
        %538 = vmatpush2.bf16.msra.mxu0 0
        %539 = vmatprep.subr.bf16.mxu0 0
        %540 = vmatpush2.bf16.msra.mxu0 0
        %541 = vmatprep.subr.bf16.mxu0 0
        %542 = vmatpush2.bf16.msra.mxu0 0
        %543 = vmatprep.mubr.bf16.mxu0 0
        %544 = vmatmul.mubr.bf16.gmra.mxu0 %v509
        %v545 = vpop.f32.mrf.mxu0
        %v546 = vadd.f32 0.0, %v545
        %v547 = vpop.f32.mrf.mxu0
        %v548 = vpop.f32.mrf.mxu0
        %v549 = vpop.f32.mrf.mxu0
        %550 = vdwg.mxu0
        %v551 = vadd.f32 %v484, %v546
        %v552 = vld [vmem:[%s4] sm:$0x1]
        %v554 = vlaneseq
        %v555 = vshrl.u32 %v554, 7
        %v556 = vsub.s32 0, %v555
        %v557 = vrot.slane %v552, %v556
        %v559 = vadd.f32 %v551, %v557
        %v560 = vmax.f32 %v559, 0.0
        %561 = vst [vmem:[#allocation3] sm:$0x1] 0.0
        %562 = vst [vmem:[#allocation3 + $0x9] sm:$0x1] 0.0
        %563 = vst [vmem:[#allocation3 + $0x1] sm:$0xff] %v560
        %v564 = vld [vmem:[#allocation3] sm:$0xff]
        %v565 = vpack.c.bf16 %v564, %v564
        %v566 = vld [vmem:[%s5] sm:$0xf]
        %v567 = vld [vmem:[%s5 + $0x4] sm:$0xf]
        %v568 = vld [vmem:[%s5 + $0x8] sm:$0xf]
        %v569 = vld [vmem:[%s5 + $0xc] sm:$0xf]
        %v570 = vld [vmem:[%s5 + $0x10] sm:$0xf]
        %v571 = vld [vmem:[%s5 + $0x14] sm:$0xf]
        %v572 = vld [vmem:[%s5 + $0x18] sm:$0xf]
        %v573 = vld [vmem:[%s5 + $0x1c] sm:$0xf]
        %v574 = vld [vmem:[%s5 + $0x20] sm:$0xf]
        %v575 = vld [vmem:[%s5 + $0x24] sm:$0xf]
        %v576 = vld [vmem:[%s5 + $0x28] sm:$0xf]
        %v577 = vld [vmem:[%s5 + $0x2c] sm:$0xf]
        %v578 = vld [vmem:[%s5 + $0x30] sm:$0xf]
        %v579 = vld [vmem:[%s5 + $0x34] sm:$0xf]
        %v580 = vld [vmem:[%s5 + $0x38] sm:$0xf]
        %v581 = vld [vmem:[%s5 + $0x3c] sm:$0xf]
        %v582 = vld [vmem:[#allocation3 + $0x1] sm:$0xff]
        %v583 = vpack.c.bf16 %v582, %v582
        %s584 = scalar_lea.vmem %s5, 64
        %v585 = vld [vmem:[%s584] sm:$0xf]
        %v586 = vld [vmem:[%s584 + $0x4] sm:$0xf]
        %v587 = vld [vmem:[%s584 + $0x8] sm:$0xf]
        %v588 = vld [vmem:[%s584 + $0xc] sm:$0xf]
        %v589 = vld [vmem:[%s584 + $0x10] sm:$0xf]
        %v590 = vld [vmem:[%s584 + $0x14] sm:$0xf]
        %v591 = vld [vmem:[%s584 + $0x18] sm:$0xf]
        %v592 = vld [vmem:[%s584 + $0x1c] sm:$0xf]
        %v593 = vld [vmem:[%s584 + $0x20] sm:$0xf]
        %v594 = vld [vmem:[%s584 + $0x24] sm:$0xf]
        %v595 = vld [vmem:[%s584 + $0x28] sm:$0xf]
        %v596 = vld [vmem:[%s584 + $0x2c] sm:$0xf]
        %v597 = vld [vmem:[%s584 + $0x30] sm:$0xf]
        %v598 = vld [vmem:[%s584 + $0x34] sm:$0xf]
        %v599 = vld [vmem:[%s584 + $0x38] sm:$0xf]
        %v600 = vld [vmem:[%s584 + $0x3c] sm:$0xf]
        %v617 = vunpack.c.l.b16 %v585
        %v618 = vunpack.c.l.b16 %v586
        %v619 = vunpack.c.l.b16 %v587
        %v620 = vunpack.c.l.b16 %v588
        %v621 = vunpack.c.l.b16 %v589
        %v622 = vunpack.c.l.b16 %v590
        %v623 = vunpack.c.l.b16 %v591
        %v624 = vunpack.c.l.b16 %v592
        %v625 = vunpack.c.l.b16 %v593
        %v626 = vunpack.c.l.b16 %v594
        %v627 = vunpack.c.l.b16 %v595
        %v628 = vunpack.c.l.b16 %v596
        %v629 = vunpack.c.l.b16 %v597
        %v630 = vunpack.c.l.b16 %v598
        %v631 = vunpack.c.l.b16 %v599
        %v632 = vunpack.c.l.b16 %v600
        %v633 = vpack.c.b16 %v618, %v617
        %v634 = vpack.c.b16 %v620, %v619
        %v635 = vpack.c.b16 %v622, %v621
        %v636 = vpack.c.b16 %v624, %v623
        %v637 = vpack.c.b16 %v626, %v625
        %v638 = vpack.c.b16 %v628, %v627
        %v639 = vpack.c.b16 %v630, %v629
        %v640 = vpack.c.b16 %v632, %v631
        %649 = vmatprep.subr.bf16.mxu0 0
        %650 = vmatpush1.bf16.msra.mxu0 %v640
        %651 = vmatprep.subr.bf16.mxu0 0
        %652 = vmatpush1.bf16.msra.mxu0 %v639
        %653 = vmatprep.subr.bf16.mxu0 0
        %654 = vmatpush1.bf16.msra.mxu0 %v638
        %655 = vmatprep.subr.bf16.mxu0 0
        %656 = vmatpush1.bf16.msra.mxu0 %v637
        %657 = vmatprep.subr.bf16.mxu0 0
        %658 = vmatpush1.bf16.msra.mxu0 %v636
        %659 = vmatprep.subr.bf16.mxu0 0
        %660 = vmatpush1.bf16.msra.mxu0 %v635
        %661 = vmatprep.subr.bf16.mxu0 0
        %662 = vmatpush1.bf16.msra.mxu0 %v634
        %663 = vmatprep.subr.bf16.mxu0 0
        %664 = vmatpush1.bf16.msra.mxu0 %v633
        %665 = vmatprep.subr.bf16.mxu0 0
        %666 = vmatpush2.bf16.msra.mxu0 0
        %667 = vmatprep.subr.bf16.mxu0 0
        %668 = vmatpush2.bf16.msra.mxu0 0
        %669 = vmatprep.subr.bf16.mxu0 0
        %670 = vmatpush2.bf16.msra.mxu0 0
        %671 = vmatprep.subr.bf16.mxu0 0
        %672 = vmatpush2.bf16.msra.mxu0 0
        %673 = vmatprep.subr.bf16.mxu0 0
        %674 = vmatpush2.bf16.msra.mxu0 0
        %675 = vmatprep.subr.bf16.mxu0 0
        %676 = vmatpush2.bf16.msra.mxu0 0
        %677 = vmatprep.subr.bf16.mxu0 0
        %678 = vmatpush2.bf16.msra.mxu0 0
        %679 = vmatprep.subr.bf16.mxu0 0
        %680 = vmatpush2.bf16.msra.mxu0 0
        %681 = vmatprep.mubr.bf16.mxu0 0
        %682 = vmatmul.mubr.bf16.gmra.mxu0 %v583
        %v683 = vpop.f32.mrf.mxu0
        %v684 = vadd.f32 0.0, %v683
        %v685 = vpop.f32.mrf.mxu0
        %v686 = vpop.f32.mrf.mxu0
        %v687 = vpop.f32.mrf.mxu0
        %688 = vdwg.mxu0
        %v705 = vunpack.c.l.b16 %v566
        %v706 = vunpack.c.l.b16 %v567
        %v707 = vunpack.c.l.b16 %v568
        %v708 = vunpack.c.l.b16 %v569
        %v709 = vunpack.c.l.b16 %v570
        %v710 = vunpack.c.l.b16 %v571
        %v711 = vunpack.c.l.b16 %v572
        %v712 = vunpack.c.l.b16 %v573
        %v713 = vunpack.c.l.b16 %v574
        %v714 = vunpack.c.l.b16 %v575
        %v715 = vunpack.c.l.b16 %v576
        %v716 = vunpack.c.l.b16 %v577
        %v717 = vunpack.c.l.b16 %v578
        %v718 = vunpack.c.l.b16 %v579
        %v719 = vunpack.c.l.b16 %v580
        %v720 = vunpack.c.l.b16 %v581
        %v721 = vpack.c.b16 %v706, %v705
        %v722 = vpack.c.b16 %v708, %v707
        %v723 = vpack.c.b16 %v710, %v709
        %v724 = vpack.c.b16 %v712, %v711
        %v725 = vpack.c.b16 %v714, %v713
        %v726 = vpack.c.b16 %v716, %v715
        %v727 = vpack.c.b16 %v718, %v717
        %v728 = vpack.c.b16 %v720, %v719
        %737 = vmatprep.subr.bf16.mxu0 0
        %738 = vmatpush1.bf16.msra.mxu0 %v728
        %739 = vmatprep.subr.bf16.mxu0 0
        %740 = vmatpush1.bf16.msra.mxu0 %v727
        %741 = vmatprep.subr.bf16.mxu0 0
        %742 = vmatpush1.bf16.msra.mxu0 %v726
        %743 = vmatprep.subr.bf16.mxu0 0
        %744 = vmatpush1.bf16.msra.mxu0 %v725
        %745 = vmatprep.subr.bf16.mxu0 0
        %746 = vmatpush1.bf16.msra.mxu0 %v724
        %747 = vmatprep.subr.bf16.mxu0 0
        %748 = vmatpush1.bf16.msra.mxu0 %v723
        %749 = vmatprep.subr.bf16.mxu0 0
        %750 = vmatpush1.bf16.msra.mxu0 %v722
        %751 = vmatprep.subr.bf16.mxu0 0
        %752 = vmatpush1.bf16.msra.mxu0 %v721
        %753 = vmatprep.subr.bf16.mxu0 0
        %754 = vmatpush2.bf16.msra.mxu0 0
        %755 = vmatprep.subr.bf16.mxu0 0
        %756 = vmatpush2.bf16.msra.mxu0 0
        %757 = vmatprep.subr.bf16.mxu0 0
        %758 = vmatpush2.bf16.msra.mxu0 0
        %759 = vmatprep.subr.bf16.mxu0 0
        %760 = vmatpush2.bf16.msra.mxu0 0
        %761 = vmatprep.subr.bf16.mxu0 0
        %762 = vmatpush2.bf16.msra.mxu0 0
        %763 = vmatprep.subr.bf16.mxu0 0
        %764 = vmatpush2.bf16.msra.mxu0 0
        %765 = vmatprep.subr.bf16.mxu0 0
        %766 = vmatpush2.bf16.msra.mxu0 0
        %767 = vmatprep.subr.bf16.mxu0 0
        %768 = vmatpush2.bf16.msra.mxu0 0
        %769 = vmatprep.mubr.bf16.mxu0 0
        %770 = vmatmul.mubr.bf16.gmra.mxu0 %v565
        %v771 = vpop.f32.mrf.mxu0
        %v772 = vadd.f32 %v684, %v771
        %v773 = vpop.f32.mrf.mxu0
        %v774 = vpop.f32.mrf.mxu0
        %v775 = vpop.f32.mrf.mxu0
        %776 = vdwg.mxu0
        %v777 = vld [vmem:[#allocation3 + $0x2] sm:$0xff]
        %v778 = vpack.c.bf16 %v777, %v777
        %s779 = scalar_lea.vmem %s5, 128
        %v780 = vld [vmem:[%s779] sm:$0xf]
        %v781 = vld [vmem:[%s779 + $0x4] sm:$0xf]
        %v782 = vld [vmem:[%s779 + $0x8] sm:$0xf]
        %v783 = vld [vmem:[%s779 + $0xc] sm:$0xf]
        %v784 = vld [vmem:[%s779 + $0x10] sm:$0xf]
        %v785 = vld [vmem:[%s779 + $0x14] sm:$0xf]
        %v786 = vld [vmem:[%s779 + $0x18] sm:$0xf]
        %v787 = vld [vmem:[%s779 + $0x1c] sm:$0xf]
        %v788 = vld [vmem:[%s779 + $0x20] sm:$0xf]
        %v789 = vld [vmem:[%s779 + $0x24] sm:$0xf]
        %v790 = vld [vmem:[%s779 + $0x28] sm:$0xf]
        %v791 = vld [vmem:[%s779 + $0x2c] sm:$0xf]
        %v792 = vld [vmem:[%s779 + $0x30] sm:$0xf]
        %v793 = vld [vmem:[%s779 + $0x34] sm:$0xf]
        %v794 = vld [vmem:[%s779 + $0x38] sm:$0xf]
        %v795 = vld [vmem:[%s779 + $0x3c] sm:$0xf]
        %v812 = vunpack.c.l.b16 %v780
        %v813 = vunpack.c.l.b16 %v781
        %v814 = vunpack.c.l.b16 %v782
        %v815 = vunpack.c.l.b16 %v783
        %v816 = vunpack.c.l.b16 %v784
        %v817 = vunpack.c.l.b16 %v785
        %v818 = vunpack.c.l.b16 %v786
        %v819 = vunpack.c.l.b16 %v787
        %v820 = vunpack.c.l.b16 %v788
        %v821 = vunpack.c.l.b16 %v789
        %v822 = vunpack.c.l.b16 %v790
        %v823 = vunpack.c.l.b16 %v791
        %v824 = vunpack.c.l.b16 %v792
        %v825 = vunpack.c.l.b16 %v793
        %v826 = vunpack.c.l.b16 %v794
        %v827 = vunpack.c.l.b16 %v795
        %v828 = vpack.c.b16 %v813, %v812
        %v829 = vpack.c.b16 %v815, %v814
        %v830 = vpack.c.b16 %v817, %v816
        %v831 = vpack.c.b16 %v819, %v818
        %v832 = vpack.c.b16 %v821, %v820
        %v833 = vpack.c.b16 %v823, %v822
        %v834 = vpack.c.b16 %v825, %v824
        %v835 = vpack.c.b16 %v827, %v826
        %844 = vmatprep.subr.bf16.mxu0 0
        %845 = vmatpush1.bf16.msra.mxu0 %v835
        %846 = vmatprep.subr.bf16.mxu0 0
        %847 = vmatpush1.bf16.msra.mxu0 %v834
        %848 = vmatprep.subr.bf16.mxu0 0
        %849 = vmatpush1.bf16.msra.mxu0 %v833
        %850 = vmatprep.subr.bf16.mxu0 0
        %851 = vmatpush1.bf16.msra.mxu0 %v832
        %852 = vmatprep.subr.bf16.mxu0 0
        %853 = vmatpush1.bf16.msra.mxu0 %v831
        %854 = vmatprep.subr.bf16.mxu0 0
        %855 = vmatpush1.bf16.msra.mxu0 %v830
        %856 = vmatprep.subr.bf16.mxu0 0
        %857 = vmatpush1.bf16.msra.mxu0 %v829
        %858 = vmatprep.subr.bf16.mxu0 0
        %859 = vmatpush1.bf16.msra.mxu0 %v828
        %860 = vmatprep.subr.bf16.mxu0 0
        %861 = vmatpush2.bf16.msra.mxu0 0
        %862 = vmatprep.subr.bf16.mxu0 0
        %863 = vmatpush2.bf16.msra.mxu0 0
        %864 = vmatprep.subr.bf16.mxu0 0
        %865 = vmatpush2.bf16.msra.mxu0 0
        %866 = vmatprep.subr.bf16.mxu0 0
        %867 = vmatpush2.bf16.msra.mxu0 0
        %868 = vmatprep.subr.bf16.mxu0 0
        %869 = vmatpush2.bf16.msra.mxu0 0
        %870 = vmatprep.subr.bf16.mxu0 0
        %871 = vmatpush2.bf16.msra.mxu0 0
        %872 = vmatprep.subr.bf16.mxu0 0
        %873 = vmatpush2.bf16.msra.mxu0 0
        %874 = vmatprep.subr.bf16.mxu0 0
        %875 = vmatpush2.bf16.msra.mxu0 0
        %876 = vmatprep.mubr.bf16.mxu0 0
        %877 = vmatmul.mubr.bf16.gmra.mxu0 %v778
        %v878 = vpop.f32.mrf.mxu0
        %v879 = vadd.f32 0.0, %v878
        %v880 = vpop.f32.mrf.mxu0
        %v881 = vpop.f32.mrf.mxu0
        %v882 = vpop.f32.mrf.mxu0
        %883 = vdwg.mxu0
        %v884 = vadd.f32 %v772, %v879
        %v885 = vadd.f32 %v330, %v884
        %v886 = vld [vmem:[%s6] sm:$0x1]
        %v888 = vlaneseq
        %v889 = vshrl.u32 %v888, 7
        %v890 = vsub.s32 0, %v889
        %v891 = vrot.slane %v886, %v890
        %v893 = vadd.f32 %v885, %v891
        %v894 = vsel %vm331, %v893, 0.0
        %895 = vadd.xlane.f32.xlu0 %v894
        %v896 = vpop.xlane.xlu0 %895
        %v897 = vmul.f32 %v896, %v335
        %v898 = vsub.f32 %v893, %v897
        %v899 = vmul.f32 %v898, %v898
        %v900 = vsel %vm331, %v899, 0.0
        %901 = vadd.xlane.f32.xlu0 %v900
        %v902 = vpop.xlane.xlu0 %901
        %v903 = vmul.f32 %v902, %v335
        %v904 = vadd.f32 %v903, 1e-05
        %v905 = vrsqrt.pop %v904
        %v906 = vmul.f32 %v898, %v905
        %v907 = vld [vmem:[%s7] sm:$0x1]
        %v909 = vlaneseq
        %v910 = vshrl.u32 %v909, 7
        %v911 = vsub.s32 0, %v910
        %v912 = vrot.slane %v907, %v911
        %v914 = vmul.f32 %v906, %v912
        %v915 = vld [vmem:[%s8] sm:$0x1]
        %v917 = vlaneseq
        %v918 = vshrl.u32 %v917, 7
        %v919 = vsub.s32 0, %v918
        %v920 = vrot.slane %v915, %v919
        %v922 = vadd.f32 %v914, %v920
        %923 = vst.msk [vmem:[%s323] sm:$0xff] %vm331, %v922
        %s924 = sand.u32 %s225, 1
        %s925 = scalar_lea.sflag [#allocation5], %s924
        %s926 = sand.u32 %s225, 1
        %s927 = smul.addr %s926, 8
        %s928 = scalar_lea.vmem [#allocation4], %s927
        // Predicated region
        $region57: #{_lambda_.13} parent=55 // pred_check
          %p929 = pneg %p235
        $region58: #{_lambda_.13} parent=55 // pred_check_branch
          %931 = sbr.rel (%p929) target = $region60
        $region59: #{_lambda_.13} parent=55 // pred_region
          %s933 = ssub.s32 128, 128
          %934 = vsyncadd %s925, %s933
          %s935 = smul.addr %s23, 128
          %s936 = scalar_lea.hbm %s9, %s935
          %s938 = sshll.u32 %s928, 4
          %s939 = int_to_ptr.vmem [resolvable:$true] %s938
          %941 = dma.vmem_to_hbm [thread:$0]  %s939, 128, %s936, %s925
        $region60: #{_lambda_.13} parent=55 // pred_fallthru
          _
      $region56: #{_lambda_.13} parent=5 // pred_fallthru
        _
      %p942 = scmp.le.s32.totalorder 2, %s18
      // Predicated region
      $region61: #{_lambda_.13} parent=5 // pred_check
        %p943 = pneg %p942
      $region62: #{_lambda_.13} parent=5 // pred_check_branch
        %945 = sbr.rel (%p943) target = $region64
      $region63: #{_lambda_.13} parent=5 // pred_region
        %s946 = ssub.s32 %s18, 2
        // Predicated region
        $region65: #{_lambda_.13} parent=63 // pred_check
          %p947 = pneg %p241
        $region66: #{_lambda_.13} parent=63 // pred_check_branch
          %949 = sbr.rel (%p947) target = $region68
        $region67: #{_lambda_.13} parent=63 // pred_region
          %s950 = sand.u32 %s226, 1
          %s951 = scalar_lea.sflag [#allocation5], %s950
          %s952 = sand.u32 %s226, 1
          %s953 = smul.addr %s952, 8
          %s954 = scalar_lea.vmem [#allocation4], %s953
          %955 = dma.done %s951, 128
        $region68: #{_lambda_.13} parent=63 // pred_fallthru
          _
      $region64: #{_lambda_.13} parent=5 // pred_fallthru
        _
    $region6: #{_lambda_.13} parent=1 // loop_footer
      %s22 = sadd.s32 1, %s18
    $region7: #{_lambda_.13} parent=1 // loop_footer_branch
      %17 = sbr.rel target = $region3
    $region8: #{_lambda_.13} parent=1 // loop_exit
      _
    %956 = vsyncpa [#allocation5], 1
    %s957 = scalar_lea.sflag [#allocation5], 1
    %958 = vsyncpa %s957, 1

// kernel: _lambda_.11
$region0: #{_lambda_.11}
  #allocation0 [shape = 'u32[]', space=smem, size = 0x4, offset = 0x4, fixed_abs, tag = 'smem constant byte address 0x4 - core index']
  #allocation1 [shape = 'u32[144,128]{1,0:T(1,128)}', space=vmem, size = 0x12000, scoped, tag = 'internal scratch']
  %s0 = inlined_call_operand.vmem [shape: bf16[2,8,32], index: 0, kind: input, shape index: {}]
  %s1 = inlined_call_operand.vmem [shape: bf16[2,8,8], index: 1, kind: input, shape index: {}]
  %s2 = inlined_call_operand.vmem [shape: f32[1,32], index: 2, kind: input, shape index: {}]
  %s3 = inlined_call_operand.vmem [shape: f32[1,32], index: 3, kind: input, shape index: {}, may-alias: {3,11}]
  %s4 = inlined_call_operand.vmem [shape: bf16[4,32,8], index: 4, kind: input, shape index: {}]
  %s5 = inlined_call_operand.vmem [shape: f32[4,1,8], index: 5, kind: input, shape index: {}, may-alias: {5,7,9}]
  %s6 = inlined_call_operand.vmem [shape: bf16[4,32,8], index: 6, kind: input, shape index: {}]
  %s7 = inlined_call_operand.vmem [shape: f32[4,1,8], index: 7, kind: input, shape index: {}, may-alias: {5,7,9}]
  %s8 = inlined_call_operand.vmem [shape: bf16[4,32,8], index: 8, kind: input, shape index: {}]
  %s9 = inlined_call_operand.vmem [shape: f32[4,1,8], index: 9, kind: input, shape index: {}, may-alias: {5,7,9}]
  %s10 = inlined_call_operand.vmem [shape: bf16[4,8,32], index: 10, kind: input, shape index: {}]
  %s11 = inlined_call_operand.vmem [shape: f32[1,32], index: 11, kind: input, shape index: {}, may-alias: {3,11}]
  %s12 = inlined_call_operand.vmem [shape: bf16[2,8,32], index: 12, kind: output, shape index: {0}]
  %s13 = inlined_call_operand.vmem [shape: bf16[2,4,8,8], index: 13, kind: output, shape index: {1}]
  %14 = xla_tuple %s12, %s13
  %s15 = sld [smem:[#allocation0]]
  $region89: #{_lambda_.11} parent=0
    _
  %s17 = ssub.s32 1, %s15
  %s18 = scalar_select 0, %s17, %s15
  loop: start=0, step=1, limit=4
  $region2: #{_lambda_.11} parent=0 // loop_pre_header
    _
  $region3: #{_lambda_.11} parent=0 // loop_header
    %s20 = sphi 0, %s24
    %p21 = scmp.ge.s32.totalorder %s20, 4
    %s30 = sphi 0, %s32
    %s33 = sphi 0, %s30
    %s34 = sphi 0, %s33
    %s50 = sphi 0, %s34
    %s56 = sphi 0, %s58
    %s59 = sphi 0, %s56
    %s60 = sphi 0, %s59
    %s76 = sphi 0, %s60
    %s80 = sphi 0, %s80
    %s82 = sphi 0, %s80
    %s83 = sphi 0, %s82
    %s97 = sphi 0, %s83
    %s101 = sphi 0, %s101
    %s103 = sphi 0, %s101
    %s104 = sphi 0, %s103
    %s118 = sphi 0, %s104
    %s122 = sphi 0, %s122
    %s124 = sphi 0, %s122
    %s125 = sphi 0, %s124
    %s139 = sphi 0, %s125
    %s143 = sphi 0, %s143
    %s145 = sphi 0, %s143
    %s146 = sphi 0, %s145
    %s160 = sphi 0, %s146
    %s164 = sphi 0, %s164
    %s166 = sphi 0, %s164
    %s167 = sphi 0, %s166
    %s181 = sphi 0, %s167
    %s185 = sphi 0, %s185
    %s187 = sphi 0, %s185
    %s188 = sphi 0, %s187
    %s202 = sphi 0, %s188
    %s206 = sphi 0, %s206
    %s208 = sphi 0, %s206
    %s209 = sphi 0, %s208
    %s223 = sphi 0, %s209
    %s227 = sphi 0, %s227
    %s229 = sphi 0, %s227
    %s230 = sphi 0, %s229
    %s244 = sphi 0, %s230
    %s248 = sphi 0, %s248
    %s250 = sphi 0, %s248
    %s251 = sphi 0, %s250
    %s265 = sphi 0, %s251
    %s269 = sphi 0, %s269
    %s271 = sphi 0, %s269
    %s272 = sphi 0, %s271
    %s286 = sphi 0, %s272
    %s292 = sphi 0, %s294
    %s295 = sphi 0, %s292
    %s296 = sphi 0, %s295
    %s312 = sphi 0, %s296
    %s318 = sphi 0, %s320
    %s321 = sphi 0, %s318
    %s322 = sphi 0, %s321
    %s338 = sphi 0, %s322
  $region4: #{_lambda_.11} parent=0 // loop_header_branch
    %23 = sbr.rel (%p21) target = $region8
  $region5: #{_lambda_.11} parent=0 // loop_body
    %s25 = ssub.s32 %s20, 1
    %s26 = ssub.s32 %s20, 2
    %s27 = sadd.s32 %s20, 1
    %s28 = ssub.s32 %s20, %s27
    %p29 = scmp.eq.s32.totalorder %s28, 0
    %s31 = sadd.s32 %s30, 1
    %s32 = scalar_select %p29, %s30, %s31
    %p35 = pneg %p29
    %p36 = scmp.eq.s32.totalorder %s20, 1
    %p37 = por %p35, %p36
    %p38 = scmp.ne.s32.totalorder %s30, %s33
    %p39 = scmp.eq.s32.totalorder %s20, 0
    %p40 = por %p38, %p39
    %p41 = scmp.ne.s32.totalorder %s30, %s33
    %p42 = scmp.eq.s32.totalorder %s25, 1
    %p43 = por %p41, %p42
    %p44 = scmp.ne.s32.totalorder %s33, %s34
    %p45 = scmp.eq.s32.totalorder %s25, 0
    %p46 = por %p44, %p45
    %p47 = scmp.ne.s32.totalorder %s33, %s34
    %p48 = scmp.eq.s32.totalorder %s26, 1
    %p49 = por %p47, %p48
    %p51 = scmp.ne.s32.totalorder %s34, %s50
    %p52 = scmp.eq.s32.totalorder %s26, 0
    %p53 = por %p51, %p52
    %s54 = ssub.s32 %s20, %s27
    %p55 = scmp.eq.s32.totalorder %s54, 0
    %s57 = sadd.s32 %s56, 1
    %s58 = scalar_select %p55, %s56, %s57
    %p61 = pneg %p55
    %p62 = scmp.eq.s32.totalorder %s20, 1
    %p63 = por %p61, %p62
    %p64 = scmp.ne.s32.totalorder %s56, %s59
    %p65 = scmp.eq.s32.totalorder %s20, 0
    %p66 = por %p64, %p65
    %p67 = scmp.ne.s32.totalorder %s56, %s59
    %p68 = scmp.eq.s32.totalorder %s25, 1
    %p69 = por %p67, %p68
    %p70 = scmp.ne.s32.totalorder %s59, %s60
    %p71 = scmp.eq.s32.totalorder %s25, 0
    %p72 = por %p70, %p71
    %p73 = scmp.ne.s32.totalorder %s59, %s60
    %p74 = scmp.eq.s32.totalorder %s26, 1
    %p75 = por %p73, %p74
    %p77 = scmp.ne.s32.totalorder %s60, %s76
    %p78 = scmp.eq.s32.totalorder %s26, 0
    %p79 = por %p77, %p78
    %s81 = sadd.s32 %s80, 1
    %p84 = scmp.eq.s32.totalorder %s20, 1
    %p85 = scmp.ne.s32.totalorder %s80, %s82
    %p86 = scmp.eq.s32.totalorder %s20, 0
    %p87 = por %p85, %p86
    %p88 = scmp.ne.s32.totalorder %s80, %s82
    %p89 = scmp.eq.s32.totalorder %s25, 1
    %p90 = por %p88, %p89
    %p91 = scmp.ne.s32.totalorder %s82, %s83
    %p92 = scmp.eq.s32.totalorder %s25, 0
    %p93 = por %p91, %p92
    %p94 = scmp.ne.s32.totalorder %s82, %s83
    %p95 = scmp.eq.s32.totalorder %s26, 1
    %p96 = por %p94, %p95
    %p98 = scmp.ne.s32.totalorder %s83, %s97
    %p99 = scmp.eq.s32.totalorder %s26, 0
    %p100 = por %p98, %p99
    %s102 = sadd.s32 %s101, 1
    %p105 = scmp.eq.s32.totalorder %s20, 1
    %p106 = scmp.ne.s32.totalorder %s101, %s103
    %p107 = scmp.eq.s32.totalorder %s20, 0
    %p108 = por %p106, %p107
    %p109 = scmp.ne.s32.totalorder %s101, %s103
    %p110 = scmp.eq.s32.totalorder %s25, 1
    %p111 = por %p109, %p110
    %p112 = scmp.ne.s32.totalorder %s103, %s104
    %p113 = scmp.eq.s32.totalorder %s25, 0
    %p114 = por %p112, %p113
    %p115 = scmp.ne.s32.totalorder %s103, %s104
    %p116 = scmp.eq.s32.totalorder %s26, 1
    %p117 = por %p115, %p116
    %p119 = scmp.ne.s32.totalorder %s104, %s118
    %p120 = scmp.eq.s32.totalorder %s26, 0
    %p121 = por %p119, %p120
    %s123 = sadd.s32 %s122, 1
    %p126 = scmp.eq.s32.totalorder %s20, 1
    %p127 = scmp.ne.s32.totalorder %s122, %s124
    %p128 = scmp.eq.s32.totalorder %s20, 0
    %p129 = por %p127, %p128
    %p130 = scmp.ne.s32.totalorder %s122, %s124
    %p131 = scmp.eq.s32.totalorder %s25, 1
    %p132 = por %p130, %p131
    %p133 = scmp.ne.s32.totalorder %s124, %s125
    %p134 = scmp.eq.s32.totalorder %s25, 0
    %p135 = por %p133, %p134
    %p136 = scmp.ne.s32.totalorder %s124, %s125
    %p137 = scmp.eq.s32.totalorder %s26, 1
    %p138 = por %p136, %p137
    %p140 = scmp.ne.s32.totalorder %s125, %s139
    %p141 = scmp.eq.s32.totalorder %s26, 0
    %p142 = por %p140, %p141
    %s144 = sadd.s32 %s143, 1
    %p147 = scmp.eq.s32.totalorder %s20, 1
    %p148 = scmp.ne.s32.totalorder %s143, %s145
    %p149 = scmp.eq.s32.totalorder %s20, 0
    %p150 = por %p148, %p149
    %p151 = scmp.ne.s32.totalorder %s143, %s145
    %p152 = scmp.eq.s32.totalorder %s25, 1
    %p153 = por %p151, %p152
    %p154 = scmp.ne.s32.totalorder %s145, %s146
    %p155 = scmp.eq.s32.totalorder %s25, 0
    %p156 = por %p154, %p155
    %p157 = scmp.ne.s32.totalorder %s145, %s146
    %p158 = scmp.eq.s32.totalorder %s26, 1
    %p159 = por %p157, %p158
    %p161 = scmp.ne.s32.totalorder %s146, %s160
    %p162 = scmp.eq.s32.totalorder %s26, 0
    %p163 = por %p161, %p162
    %s165 = sadd.s32 %s164, 1
    %p168 = scmp.eq.s32.totalorder %s20, 1
    %p169 = scmp.ne.s32.totalorder %s164, %s166
    %p170 = scmp.eq.s32.totalorder %s20, 0
    %p171 = por %p169, %p170
    %p172 = scmp.ne.s32.totalorder %s164, %s166
    %p173 = scmp.eq.s32.totalorder %s25, 1
    %p174 = por %p172, %p173
    %p175 = scmp.ne.s32.totalorder %s166, %s167
    %p176 = scmp.eq.s32.totalorder %s25, 0
    %p177 = por %p175, %p176
    %p178 = scmp.ne.s32.totalorder %s166, %s167
    %p179 = scmp.eq.s32.totalorder %s26, 1
    %p180 = por %p178, %p179
    %p182 = scmp.ne.s32.totalorder %s167, %s181
    %p183 = scmp.eq.s32.totalorder %s26, 0
    %p184 = por %p182, %p183
    %s186 = sadd.s32 %s185, 1
    %p189 = scmp.eq.s32.totalorder %s20, 1
    %p190 = scmp.ne.s32.totalorder %s185, %s187
    %p191 = scmp.eq.s32.totalorder %s20, 0
    %p192 = por %p190, %p191
    %p193 = scmp.ne.s32.totalorder %s185, %s187
    %p194 = scmp.eq.s32.totalorder %s25, 1
    %p195 = por %p193, %p194
    %p196 = scmp.ne.s32.totalorder %s187, %s188
    %p197 = scmp.eq.s32.totalorder %s25, 0
    %p198 = por %p196, %p197
    %p199 = scmp.ne.s32.totalorder %s187, %s188
    %p200 = scmp.eq.s32.totalorder %s26, 1
    %p201 = por %p199, %p200
    %p203 = scmp.ne.s32.totalorder %s188, %s202
    %p204 = scmp.eq.s32.totalorder %s26, 0
    %p205 = por %p203, %p204
    %s207 = sadd.s32 %s206, 1
    %p210 = scmp.eq.s32.totalorder %s20, 1
    %p211 = scmp.ne.s32.totalorder %s206, %s208
    %p212 = scmp.eq.s32.totalorder %s20, 0
    %p213 = por %p211, %p212
    %p214 = scmp.ne.s32.totalorder %s206, %s208
    %p215 = scmp.eq.s32.totalorder %s25, 1
    %p216 = por %p214, %p215
    %p217 = scmp.ne.s32.totalorder %s208, %s209
    %p218 = scmp.eq.s32.totalorder %s25, 0
    %p219 = por %p217, %p218
    %p220 = scmp.ne.s32.totalorder %s208, %s209
    %p221 = scmp.eq.s32.totalorder %s26, 1
    %p222 = por %p220, %p221
    %p224 = scmp.ne.s32.totalorder %s209, %s223
    %p225 = scmp.eq.s32.totalorder %s26, 0
    %p226 = por %p224, %p225
    %s228 = sadd.s32 %s227, 1
    %p231 = scmp.eq.s32.totalorder %s20, 1
    %p232 = scmp.ne.s32.totalorder %s227, %s229
    %p233 = scmp.eq.s32.totalorder %s20, 0
    %p234 = por %p232, %p233
    %p235 = scmp.ne.s32.totalorder %s227, %s229
    %p236 = scmp.eq.s32.totalorder %s25, 1
    %p237 = por %p235, %p236
    %p238 = scmp.ne.s32.totalorder %s229, %s230
    %p239 = scmp.eq.s32.totalorder %s25, 0
    %p240 = por %p238, %p239
    %p241 = scmp.ne.s32.totalorder %s229, %s230
    %p242 = scmp.eq.s32.totalorder %s26, 1
    %p243 = por %p241, %p242
    %p245 = scmp.ne.s32.totalorder %s230, %s244
    %p246 = scmp.eq.s32.totalorder %s26, 0
    %p247 = por %p245, %p246
    %s249 = sadd.s32 %s248, 1
    %p252 = scmp.eq.s32.totalorder %s20, 1
    %p253 = scmp.ne.s32.totalorder %s248, %s250
    %p254 = scmp.eq.s32.totalorder %s20, 0
    %p255 = por %p253, %p254
    %p256 = scmp.ne.s32.totalorder %s248, %s250
    %p257 = scmp.eq.s32.totalorder %s25, 1
    %p258 = por %p256, %p257
    %p259 = scmp.ne.s32.totalorder %s250, %s251
    %p260 = scmp.eq.s32.totalorder %s25, 0
    %p261 = por %p259, %p260
    %p262 = scmp.ne.s32.totalorder %s250, %s251
    %p263 = scmp.eq.s32.totalorder %s26, 1
    %p264 = por %p262, %p263
    %p266 = scmp.ne.s32.totalorder %s251, %s265
    %p267 = scmp.eq.s32.totalorder %s26, 0
    %p268 = por %p266, %p267
    %s270 = sadd.s32 %s269, 1
    %p273 = scmp.eq.s32.totalorder %s20, 1
    %p274 = scmp.ne.s32.totalorder %s269, %s271
    %p275 = scmp.eq.s32.totalorder %s20, 0
    %p276 = por %p274, %p275
    %p277 = scmp.ne.s32.totalorder %s269, %s271
    %p278 = scmp.eq.s32.totalorder %s25, 1
    %p279 = por %p277, %p278
    %p280 = scmp.ne.s32.totalorder %s271, %s272
    %p281 = scmp.eq.s32.totalorder %s25, 0
    %p282 = por %p280, %p281
    %p283 = scmp.ne.s32.totalorder %s271, %s272
    %p284 = scmp.eq.s32.totalorder %s26, 1
    %p285 = por %p283, %p284
    %p287 = scmp.ne.s32.totalorder %s272, %s286
    %p288 = scmp.eq.s32.totalorder %s26, 0
    %p289 = por %p287, %p288
    %s290 = ssub.s32 %s20, %s27
    %p291 = scmp.eq.s32.totalorder %s290, 0
    %s293 = sadd.s32 %s292, 1
    %s294 = scalar_select %p291, %s292, %s293
    %p297 = pneg %p291
    %p298 = scmp.eq.s32.totalorder %s20, 1
    %p299 = por %p297, %p298
    %p300 = scmp.ne.s32.totalorder %s292, %s295
    %p301 = scmp.eq.s32.totalorder %s20, 0
    %p302 = por %p300, %p301
    %p303 = scmp.ne.s32.totalorder %s292, %s295
    %p304 = scmp.eq.s32.totalorder %s25, 1
    %p305 = por %p303, %p304
    %p306 = scmp.ne.s32.totalorder %s295, %s296
    %p307 = scmp.eq.s32.totalorder %s25, 0
    %p308 = por %p306, %p307
    %p309 = scmp.ne.s32.totalorder %s295, %s296
    %p310 = scmp.eq.s32.totalorder %s26, 1
    %p311 = por %p309, %p310
    %p313 = scmp.ne.s32.totalorder %s296, %s312
    %p314 = scmp.eq.s32.totalorder %s26, 0
    %p315 = por %p313, %p314
    %s316 = ssub.s32 %s20, %s27
    %p317 = scmp.eq.s32.totalorder %s316, 0
    %s319 = sadd.s32 %s318, 1
    %s320 = scalar_select %p317, %s318, %s319
    %p323 = pneg %p317
    %p324 = scmp.eq.s32.totalorder %s20, 1
    %p325 = por %p323, %p324
    %p326 = scmp.ne.s32.totalorder %s318, %s321
    %p327 = scmp.eq.s32.totalorder %s20, 0
    %p328 = por %p326, %p327
    %p329 = scmp.ne.s32.totalorder %s318, %s321
    %p330 = scmp.eq.s32.totalorder %s25, 1
    %p331 = por %p329, %p330
    %p332 = scmp.ne.s32.totalorder %s321, %s322
    %p333 = scmp.eq.s32.totalorder %s25, 0
    %p334 = por %p332, %p333
    %p335 = scmp.ne.s32.totalorder %s321, %s322
    %p336 = scmp.eq.s32.totalorder %s26, 1
    %p337 = por %p335, %p336
    %p339 = scmp.ne.s32.totalorder %s322, %s338
    %p340 = scmp.eq.s32.totalorder %s26, 0
    %p341 = por %p339, %p340
    %p342 = scmp.le.s32.totalorder 1, %s20
    %p343 = scmp.lt.s32.totalorder %s20, 3
    %p344 = pnand %p342, %p343
    %p345 = pneg %p344
    // Predicated region
    $region9: #{_lambda_.11} parent=5 // pred_check
      _
    $region10: #{_lambda_.11} parent=5 // pred_check_branch
      %347 = sbr.rel (%p344) target = $region12
    $region11: #{_lambda_.11} parent=5 // pred_region
      %s348 = ssub.s32 %s20, 1
      // Predicated region
      $region13: #{_lambda_.11} parent=11 // pred_check
        %p349 = pneg %p93
      $region14: #{_lambda_.11} parent=11 // pred_check_branch
        %351 = sbr.rel (%p349) target = $region16
      $region15: #{_lambda_.11} parent=11 // pred_region
        _
      $region16: #{_lambda_.11} parent=11 // pred_fallthru
        _
      // Predicated region
      $region17: #{_lambda_.11} parent=11 // pred_check
        %p352 = pneg %p114
      $region18: #{_lambda_.11} parent=11 // pred_check_branch
        %354 = sbr.rel (%p352) target = $region20
      $region19: #{_lambda_.11} parent=11 // pred_region
        _
      $region20: #{_lambda_.11} parent=11 // pred_fallthru
        _
      // Predicated region
      $region21: #{_lambda_.11} parent=11 // pred_check
        %p355 = pneg %p135
      $region22: #{_lambda_.11} parent=11 // pred_check_branch
        %357 = sbr.rel (%p355) target = $region24
      $region23: #{_lambda_.11} parent=11 // pred_region
        _
      $region24: #{_lambda_.11} parent=11 // pred_fallthru
        _
      // Predicated region
      $region25: #{_lambda_.11} parent=11 // pred_check
        %p358 = pneg %p156
      $region26: #{_lambda_.11} parent=11 // pred_check_branch
        %360 = sbr.rel (%p358) target = $region28
      $region27: #{_lambda_.11} parent=11 // pred_region
        _
      $region28: #{_lambda_.11} parent=11 // pred_fallthru
        _
      // Predicated region
      $region29: #{_lambda_.11} parent=11 // pred_check
        %p361 = pneg %p177
      $region30: #{_lambda_.11} parent=11 // pred_check_branch
        %363 = sbr.rel (%p361) target = $region32
      $region31: #{_lambda_.11} parent=11 // pred_region
        _
      $region32: #{_lambda_.11} parent=11 // pred_fallthru
        _
      // Predicated region
      $region33: #{_lambda_.11} parent=11 // pred_check
        %p364 = pneg %p198
      $region34: #{_lambda_.11} parent=11 // pred_check_branch
        %366 = sbr.rel (%p364) target = $region36
      $region35: #{_lambda_.11} parent=11 // pred_region
        _
      $region36: #{_lambda_.11} parent=11 // pred_fallthru
        _
      // Predicated region
      $region37: #{_lambda_.11} parent=11 // pred_check
        %p367 = pneg %p219
      $region38: #{_lambda_.11} parent=11 // pred_check_branch
        %369 = sbr.rel (%p367) target = $region40
      $region39: #{_lambda_.11} parent=11 // pred_region
        _
      $region40: #{_lambda_.11} parent=11 // pred_fallthru
        _
      // Predicated region
      $region41: #{_lambda_.11} parent=11 // pred_check
        %p370 = pneg %p240
      $region42: #{_lambda_.11} parent=11 // pred_check_branch
        %372 = sbr.rel (%p370) target = $region44
      $region43: #{_lambda_.11} parent=11 // pred_region
        _
      $region44: #{_lambda_.11} parent=11 // pred_fallthru
        _
      // Predicated region
      $region45: #{_lambda_.11} parent=11 // pred_check
        %p373 = pneg %p261
      $region46: #{_lambda_.11} parent=11 // pred_check_branch
        %375 = sbr.rel (%p373) target = $region48
      $region47: #{_lambda_.11} parent=11 // pred_region
        _
      $region48: #{_lambda_.11} parent=11 // pred_fallthru
        _
      // Predicated region
      $region49: #{_lambda_.11} parent=11 // pred_check
        %p376 = pneg %p282
      $region50: #{_lambda_.11} parent=11 // pred_check_branch
        %378 = sbr.rel (%p376) target = $region52
      $region51: #{_lambda_.11} parent=11 // pred_region
        _
      $region52: #{_lambda_.11} parent=11 // pred_fallthru
        _
    $region12: #{_lambda_.11} parent=5 // pred_fallthru
      _
    %p379 = scmp.lt.s32.totalorder %s20, 2
    // Predicated region
    $region53: #{_lambda_.11} parent=5 // pred_check
      %p380 = pneg %p379
    $region54: #{_lambda_.11} parent=5 // pred_check_branch
      %382 = sbr.rel (%p380) target = $region56
    $region55: #{_lambda_.11} parent=5 // pred_region
      // Predicated region
      $region57: #{_lambda_.11} parent=55 // pred_check
        %p383 = pneg %p40
      $region58: #{_lambda_.11} parent=55 // pred_check_branch
        %385 = sbr.rel (%p383) target = $region60
      $region59: #{_lambda_.11} parent=55 // pred_region
        %p386 = scmp.lt.s32.totalorder %s20, 1
        %s387 = scalar_select %p386, %s20, 1
        %s388 = smul.addr %s387, 4
        %s389 = scalar_lea.vmem %s0, %s388
      $region60: #{_lambda_.11} parent=55 // pred_fallthru
        _
      // Predicated region
      $region61: #{_lambda_.11} parent=55 // pred_check
        %p390 = pneg %p66
      $region62: #{_lambda_.11} parent=55 // pred_check_branch
        %392 = sbr.rel (%p390) target = $region64
      $region63: #{_lambda_.11} parent=55 // pred_region
        %p393 = scmp.lt.s32.totalorder %s20, 1
        %s394 = scalar_select %p393, %s20, 1
        %s395 = smul.addr %s394, 4
        %s396 = scalar_lea.vmem %s1, %s395
      $region64: #{_lambda_.11} parent=55 // pred_fallthru
        _
    $region56: #{_lambda_.11} parent=5 // pred_fallthru
      _
    %p397 = scmp.le.s32.totalorder 1, %s20
    %p398 = scmp.lt.s32.totalorder %s20, 3
    %p399 = pnand %p397, %p398
    %p400 = pneg %p399
    // Predicated region
    $region65: #{_lambda_.11} parent=5 // pred_check
      _
    $region66: #{_lambda_.11} parent=5 // pred_check_branch
      %402 = sbr.rel (%p399) target = $region68
    $region67: #{_lambda_.11} parent=5 // pred_region
      %s403 = ssub.s32 %s20, 1
      %p404 = scmp.lt.s32.totalorder %s25, 1
      %s405 = scalar_select %p404, %s25, 1
      %s406 = smul.addr %s405, 4
      %s407 = scalar_lea.vmem %s0, %s406
      %p408 = pneg %p46
      %p409 = pneg %p43
      %p410 = scmp.lt.s32.totalorder %s25, 1
      %s411 = scalar_select %p410, %s25, 1
      %s412 = smul.addr %s411, 4
      %s413 = scalar_lea.vmem %s1, %s412
      %p414 = pneg %p72
      %p415 = pneg %p69
      %p416 = pneg %p93
      %p417 = pneg %p90
      %p418 = pneg %p114
      %p419 = pneg %p111
      %p420 = pneg %p135
      %p421 = pneg %p132
      %p422 = pneg %p156
      %p423 = pneg %p153
      %p424 = pneg %p177
      %p425 = pneg %p174
      %p426 = pneg %p198
      %p427 = pneg %p195
      %p428 = pneg %p219
      %p429 = pneg %p216
      %p430 = pneg %p240
      %p431 = pneg %p237
      %p432 = pneg %p261
      %p433 = pneg %p258
      %p434 = pneg %p282
      %p435 = pneg %p279
      %p436 = pneg %p308
      %p437 = pneg %p305
      %p438 = scmp.lt.s32.totalorder %s25, 1
      %s439 = scalar_select %p438, %s25, 1
      %s440 = smul.addr %s439, 4
      %s441 = scalar_lea.vmem %s12, %s440
      %p442 = pneg %p334
      %p443 = pneg %p331
      %p444 = scmp.lt.s32.totalorder %s25, 1
      %s445 = scalar_select %p444, %s25, 1
      %s446 = smul.addr %s445, 4
      %s447 = smul.addr %s446, 4
      %s448 = scalar_lea.vmem %s13, %s447
      %p449 = scmp.lt.s32.totalorder %s25, 1
      %s450 = scalar_select %p449, %s25, 1
      %s451 = smul.addr %s450, 4
      %s452 = scalar_lea.vmem %s0, %s451
      %p453 = scmp.lt.s32.totalorder %s25, 1
      %s454 = scalar_select %p453, %s25, 1
      %s455 = smul.addr %s454, 4
      %s456 = scalar_lea.vmem %s1, %s455
      %p457 = scmp.lt.s32.totalorder %s25, 1
      %s458 = scalar_select %p457, %s25, 1
      %s459 = smul.addr %s458, 4
      %s460 = scalar_lea.vmem %s12, %s459
      %p461 = scmp.lt.s32.totalorder %s25, 1
      %s462 = scalar_select %p461, %s25, 1
      %s463 = smul.addr %s462, 4
      %s464 = smul.addr %s463, 4
      %s465 = scalar_lea.vmem %s13, %s464
      %v469 = vld [vmem:[%s452] sm:$0xf]
      %v470 = vunpack.c.l.bf16 %v469
      %vm471 = vcmask 261120
      %v472 = vsel %vm471, %v470, 0.0
      %473 = vadd.xlane.f32.xlu0 %v472
      %v474 = vpop.xlane.xlu0 %473
      %v475 = vrcp.pop 32.0
      %v476 = vmul.f32 %v474, %v475
      %v477 = vsub.f32 %v470, %v476
      %v478 = vmul.f32 %v477, %v477
      %v479 = vsel %vm471, %v478, 0.0
      %480 = vadd.xlane.f32.xlu0 %v479
      %v481 = vpop.xlane.xlu0 %480
      %v482 = vmul.f32 %v481, %v475
      %v483 = vadd.f32 %v482, 1e-05
      %v484 = vrsqrt.pop %v483
      %v485 = vmul.f32 %v477, %v484
      %v486 = vld [vmem:[%s2] sm:$0x1]
      %v488 = vlaneseq
      %v489 = vshrl.u32 %v488, 7
      %v490 = vsub.s32 0, %v489
      %v491 = vrot.slane %v486, %v490
      %v493 = vmul.f32 %v485, %v491
      %v494 = vld [vmem:[%s3] sm:$0x1]
      %v496 = vlaneseq
      %v497 = vshrl.u32 %v496, 7
      %v498 = vsub.s32 0, %v497
      %v499 = vrot.slane %v494, %v498
      %v501 = vadd.f32 %v493, %v499
      %v502 = vpack.c.bf16 %v501, %v501
      %v503 = vld [vmem:[%s456] sm:$0xf]
      %vm504 = vcmp.ne.bf16.partialorder %v503, 0
      %v505 = vld [vmem:[%s4] sm:$0xf]
      %v506 = vld [vmem:[%s4 + $0x4] sm:$0xf]
      %v507 = vld [vmem:[%s4 + $0x8] sm:$0xf]
      %v508 = vld [vmem:[%s4 + $0xc] sm:$0xf]
      %v509 = vld [vmem:[%s5] sm:$0x1]
      %v511 = vlaneseq
      %v512 = vshrl.u32 %v511, 7
      %v513 = vsub.s32 0, %v512
      %v514 = vrot.slane %v509, %v513
      %v520 = vunpack.c.l.b16 %v505
      %v521 = vunpack.c.l.b16 %v506
      %v522 = vunpack.c.l.b16 %v507
      %v523 = vunpack.c.l.b16 %v508
      %v524 = vpack.c.b16 %v521, %v520
      %v525 = vpack.c.b16 %v523, %v522
      %v529 = vsel %vm471, %v502, 0
      %531 = vmatprep.subr.bf16.mxu0 0
      %532 = vmatpush1.bf16.msra.mxu0 0
      %533 = vmatprep.subr.bf16.mxu0 0
      %534 = vmatpush1.bf16.msra.mxu0 0
      %535 = vmatprep.subr.bf16.mxu0 0
      %536 = vmatpush1.bf16.msra.mxu0 0
      %537 = vmatprep.subr.bf16.mxu0 0
      %538 = vmatpush1.bf16.msra.mxu0 0
      %539 = vmatprep.subr.bf16.mxu0 0
      %540 = vmatpush1.bf16.msra.mxu0 0
      %541 = vmatprep.subr.bf16.mxu0 0
      %542 = vmatpush1.bf16.msra.mxu0 0
      %543 = vmatprep.subr.bf16.mxu0 0
      %544 = vmatpush1.bf16.msra.mxu0 %v525
      %545 = vmatprep.subr.bf16.mxu0 0
      %546 = vmatpush1.bf16.msra.mxu0 %v524
      %547 = vmatprep.subr.bf16.mxu0 0
      %548 = vmatpush2.bf16.msra.mxu0 0
      %549 = vmatprep.subr.bf16.mxu0 0
      %550 = vmatpush2.bf16.msra.mxu0 0
      %551 = vmatprep.subr.bf16.mxu0 0
      %552 = vmatpush2.bf16.msra.mxu0 0
      %553 = vmatprep.subr.bf16.mxu0 0
      %554 = vmatpush2.bf16.msra.mxu0 0
      %555 = vmatprep.subr.bf16.mxu0 0
      %556 = vmatpush2.bf16.msra.mxu0 0
      %557 = vmatprep.subr.bf16.mxu0 0
      %558 = vmatpush2.bf16.msra.mxu0 0
      %559 = vmatprep.subr.bf16.mxu0 0
      %560 = vmatpush2.bf16.msra.mxu0 0
      %561 = vmatprep.subr.bf16.mxu0 0
      %562 = vmatpush2.bf16.msra.mxu0 0
      %563 = vmatprep.mubr.bf16.mxu0 0
      %564 = vmatmul.mubr.bf16.gmra.mxu0 %v529
      %v565 = vpop.f32.mrf.mxu0
      %v566 = vadd.f32 %v514, %v565
      %v567 = vpop.f32.mrf.mxu0
      %v568 = vpop.f32.mrf.mxu0
      %v569 = vpop.f32.mrf.mxu0
      %570 = vdwg.mxu0
      %v571 = vld [vmem:[%s6] sm:$0xf]
      %v572 = vld [vmem:[%s6 + $0x4] sm:$0xf]
      %v573 = vld [vmem:[%s6 + $0x8] sm:$0xf]
      %v574 = vld [vmem:[%s6 + $0xc] sm:$0xf]
      %v575 = vld [vmem:[%s7] sm:$0x1]
      %v577 = vlaneseq
      %v578 = vshrl.u32 %v577, 7
      %v579 = vsub.s32 0, %v578
      %v580 = vrot.slane %v575, %v579
      %v586 = vunpack.c.l.b16 %v571
      %v587 = vunpack.c.l.b16 %v572
      %v588 = vunpack.c.l.b16 %v573
      %v589 = vunpack.c.l.b16 %v574
      %v590 = vpack.c.b16 %v587, %v586
      %v591 = vpack.c.b16 %v589, %v588
      %594 = vmatprep.subr.bf16.mxu0 0
      %595 = vmatpush1.bf16.msra.mxu0 0
      %596 = vmatprep.subr.bf16.mxu0 0
      %597 = vmatpush1.bf16.msra.mxu0 0
      %598 = vmatprep.subr.bf16.mxu0 0
      %599 = vmatpush1.bf16.msra.mxu0 0
      %600 = vmatprep.subr.bf16.mxu0 0
      %601 = vmatpush1.bf16.msra.mxu0 0
      %602 = vmatprep.subr.bf16.mxu0 0
      %603 = vmatpush1.bf16.msra.mxu0 0
      %604 = vmatprep.subr.bf16.mxu0 0
      %605 = vmatpush1.bf16.msra.mxu0 0
      %606 = vmatprep.subr.bf16.mxu0 0
      %607 = vmatpush1.bf16.msra.mxu0 %v591
      %608 = vmatprep.subr.bf16.mxu0 0
      %609 = vmatpush1.bf16.msra.mxu0 %v590
      %610 = vmatprep.subr.bf16.mxu0 0
      %611 = vmatpush2.bf16.msra.mxu0 0
      %612 = vmatprep.subr.bf16.mxu0 0
      %613 = vmatpush2.bf16.msra.mxu0 0
      %614 = vmatprep.subr.bf16.mxu0 0
      %615 = vmatpush2.bf16.msra.mxu0 0
      %616 = vmatprep.subr.bf16.mxu0 0
      %617 = vmatpush2.bf16.msra.mxu0 0
      %618 = vmatprep.subr.bf16.mxu0 0
      %619 = vmatpush2.bf16.msra.mxu0 0
      %620 = vmatprep.subr.bf16.mxu0 0
      %621 = vmatpush2.bf16.msra.mxu0 0
      %622 = vmatprep.subr.bf16.mxu0 0
      %623 = vmatpush2.bf16.msra.mxu0 0
      %624 = vmatprep.subr.bf16.mxu0 0
      %625 = vmatpush2.bf16.msra.mxu0 0
      %626 = vmatprep.mubr.bf16.mxu0 0
      %627 = vmatmul.mubr.bf16.gmra.mxu0 %v529
      %v628 = vpop.f32.mrf.mxu0
      %v629 = vadd.f32 %v580, %v628
      %v630 = vpop.f32.mrf.mxu0
      %v631 = vpop.f32.mrf.mxu0
      %v632 = vpop.f32.mrf.mxu0
      %633 = vdwg.mxu0
      %v634 = vld [vmem:[%s8] sm:$0xf]
      %v635 = vld [vmem:[%s8 + $0x4] sm:$0xf]
      %v636 = vld [vmem:[%s8 + $0x8] sm:$0xf]
      %v637 = vld [vmem:[%s8 + $0xc] sm:$0xf]
      %v638 = vld [vmem:[%s9] sm:$0x1]
      %v640 = vlaneseq
      %v641 = vshrl.u32 %v640, 7
      %v642 = vsub.s32 0, %v641
      %v643 = vrot.slane %v638, %v642
      %v649 = vunpack.c.l.b16 %v634
      %v650 = vunpack.c.l.b16 %v635
      %v651 = vunpack.c.l.b16 %v636
      %v652 = vunpack.c.l.b16 %v637
      %v653 = vpack.c.b16 %v650, %v649
      %v654 = vpack.c.b16 %v652, %v651
      %657 = vmatprep.subr.bf16.mxu0 0
      %658 = vmatpush1.bf16.msra.mxu0 0
      %659 = vmatprep.subr.bf16.mxu0 0
      %660 = vmatpush1.bf16.msra.mxu0 0
      %661 = vmatprep.subr.bf16.mxu0 0
      %662 = vmatpush1.bf16.msra.mxu0 0
      %663 = vmatprep.subr.bf16.mxu0 0
      %664 = vmatpush1.bf16.msra.mxu0 0
      %665 = vmatprep.subr.bf16.mxu0 0
      %666 = vmatpush1.bf16.msra.mxu0 0
      %667 = vmatprep.subr.bf16.mxu0 0
      %668 = vmatpush1.bf16.msra.mxu0 0
      %669 = vmatprep.subr.bf16.mxu0 0
      %670 = vmatpush1.bf16.msra.mxu0 %v654
      %671 = vmatprep.subr.bf16.mxu0 0
      %672 = vmatpush1.bf16.msra.mxu0 %v653
      %673 = vmatprep.subr.bf16.mxu0 0
      %674 = vmatpush2.bf16.msra.mxu0 0
      %675 = vmatprep.subr.bf16.mxu0 0
      %676 = vmatpush2.bf16.msra.mxu0 0
      %677 = vmatprep.subr.bf16.mxu0 0
      %678 = vmatpush2.bf16.msra.mxu0 0
      %679 = vmatprep.subr.bf16.mxu0 0
      %680 = vmatpush2.bf16.msra.mxu0 0
      %681 = vmatprep.subr.bf16.mxu0 0
      %682 = vmatpush2.bf16.msra.mxu0 0
      %683 = vmatprep.subr.bf16.mxu0 0
      %684 = vmatpush2.bf16.msra.mxu0 0
      %685 = vmatprep.subr.bf16.mxu0 0
      %686 = vmatpush2.bf16.msra.mxu0 0
      %687 = vmatprep.subr.bf16.mxu0 0
      %688 = vmatpush2.bf16.msra.mxu0 0
      %689 = vmatprep.mubr.bf16.mxu0 0
      %690 = vmatmul.mubr.bf16.gmra.mxu0 %v529
      %v691 = vpop.f32.mrf.mxu0
      %v692 = vadd.f32 %v643, %v691
      %v693 = vpop.f32.mrf.mxu0
      %v694 = vpop.f32.mrf.mxu0
      %v695 = vpop.f32.mrf.mxu0
      %696 = vdwg.mxu0
      %v697 = vpack.c.bf16 %v566, %v566
      %v698 = vpack.c.bf16 %v629, %v629
      %vm699 = vcmask 64512
      %v701 = vsel %vm699, %v697, 0
      %v704 = vsel %vm699, %v698, 0
      %706 = vmatprep.subr.bf16.mxu0 0
      %707 = vmatpush1.bf16.xpose.msra.mxu0 0
      %708 = vmatprep.subr.bf16.mxu0 0
      %709 = vmatpush1.bf16.xpose.msra.mxu0 0
      %710 = vmatprep.subr.bf16.mxu0 0
      %711 = vmatpush1.bf16.xpose.msra.mxu0 0
      %712 = vmatprep.subr.bf16.mxu0 0
      %713 = vmatpush1.bf16.xpose.msra.mxu0 0
      %714 = vmatprep.subr.bf16.mxu0 0
      %715 = vmatpush1.bf16.xpose.msra.mxu0 0
      %716 = vmatprep.subr.bf16.mxu0 0
      %717 = vmatpush1.bf16.xpose.msra.mxu0 0
      %718 = vmatprep.subr.bf16.mxu0 0
      %719 = vmatpush1.bf16.xpose.msra.mxu0 0
      %720 = vmatprep.subr.bf16.mxu0 0
      %721 = vmatpush1.bf16.xpose.msra.mxu0 %v704
      %722 = vmatprep.subr.bf16.mxu0 0
      %723 = vmatpush2.bf16.xpose.msra.mxu0 0
      %724 = vmatprep.subr.bf16.mxu0 0
      %725 = vmatpush2.bf16.xpose.msra.mxu0 0
      %726 = vmatprep.subr.bf16.mxu0 0
      %727 = vmatpush2.bf16.xpose.msra.mxu0 0
      %728 = vmatprep.subr.bf16.mxu0 0
      %729 = vmatpush2.bf16.xpose.msra.mxu0 0
      %730 = vmatprep.subr.bf16.mxu0 0
      %731 = vmatpush2.bf16.xpose.msra.mxu0 0
      %732 = vmatprep.subr.bf16.mxu0 0
      %733 = vmatpush2.bf16.xpose.msra.mxu0 0
      %734 = vmatprep.subr.bf16.mxu0 0
      %735 = vmatpush2.bf16.xpose.msra.mxu0 0
      %736 = vmatprep.subr.bf16.mxu0 0
      %737 = vmatpush2.bf16.xpose.msra.mxu0 0
      %738 = vmatprep.mubr.bf16.mxu0 0
      %739 = vmatmul.mubr.bf16.gmra.mxu0 %v701
      %v740 = vpop.f32.mrf.mxu0
      %v741 = vadd.f32 0.0, %v740
      %v742 = vpop.f32.mrf.mxu0
      %v743 = vpop.f32.mrf.mxu0
      %v744 = vpop.f32.mrf.mxu0
      %745 = vdwg.mxu0
      %v746 = vmul.f32 %v741, 0.35355338
      %v747 = vsel %vm504, 65537, 0
      %v748 = vunpack.c.l.b16 %v747
      %vm749 = vcmp.ne.s32.totalorder %v748, 0
      %v750 = vsel %vm749, %v746, -1e+09
      %v751 = vsel %vm699, %v750, -inf
      %752 = vmax.xlane.f32.xlu0 %v751
      %v753 = vpop.xlane.xlu0 %752
      %v754 = vsub.f32 %v750, %v753
      %v755 = vmul.f32 %v754, 1.442695
      %v756 = vpow.pop %v755
      %v757 = vsel %vm699, %v756, 0.0
      %758 = vadd.xlane.f32.xlu0 %v757
      %v759 = vpop.xlane.xlu0 %758
      %v760 = vrcp.pop %v759
      %v761 = vmul.f32 %v756, %v760
      %v762 = vpack.c.bf16 %v761, %v761
      %vm763 = vcmask 60416
      %764 = vst.msk [vmem:[%s465] sm:$0xf] %vm763, %v762
      %v765 = vpack.c.bf16 %v692, %v692
      %v767 = vsel %vm699, %v762, 0
      %vm769 = vcmask 1043456
      %v771 = vsel %vm769, %v765, 0
      %773 = vmatprep.subr.bf16.mxu0 0
      %774 = vmatpush1.bf16.msra.mxu0 0
      %775 = vmatprep.subr.bf16.mxu0 0
      %776 = vmatpush1.bf16.msra.mxu0 0
      %777 = vmatprep.subr.bf16.mxu0 0
      %778 = vmatpush1.bf16.msra.mxu0 0
      %779 = vmatprep.subr.bf16.mxu0 0
      %780 = vmatpush1.bf16.msra.mxu0 0
      %781 = vmatprep.subr.bf16.mxu0 0
      %782 = vmatpush1.bf16.msra.mxu0 0
      %783 = vmatprep.subr.bf16.mxu0 0
      %784 = vmatpush1.bf16.msra.mxu0 0
      %785 = vmatprep.subr.bf16.mxu0 0
      %786 = vmatpush1.bf16.msra.mxu0 0
      %787 = vmatprep.subr.bf16.mxu0 0
      %788 = vmatpush1.bf16.msra.mxu0 %v771
      %789 = vmatprep.subr.bf16.mxu0 0
      %790 = vmatpush2.bf16.msra.mxu0 0
      %791 = vmatprep.subr.bf16.mxu0 0
      %792 = vmatpush2.bf16.msra.mxu0 0
      %793 = vmatprep.subr.bf16.mxu0 0
      %794 = vmatpush2.bf16.msra.mxu0 0
      %795 = vmatprep.subr.bf16.mxu0 0
      %796 = vmatpush2.bf16.msra.mxu0 0
      %797 = vmatprep.subr.bf16.mxu0 0
      %798 = vmatpush2.bf16.msra.mxu0 0
      %799 = vmatprep.subr.bf16.mxu0 0
      %800 = vmatpush2.bf16.msra.mxu0 0
      %801 = vmatprep.subr.bf16.mxu0 0
      %802 = vmatpush2.bf16.msra.mxu0 0
      %803 = vmatprep.subr.bf16.mxu0 0
      %804 = vmatpush2.bf16.msra.mxu0 0
      %805 = vmatprep.mubr.bf16.mxu0 0
      %806 = vmatmul.mubr.bf16.gmra.mxu0 %v767
      %v807 = vpop.f32.mrf.mxu0
      %v808 = vadd.f32 0.0, %v807
      %v809 = vpop.f32.mrf.mxu0
      %v810 = vpop.f32.mrf.mxu0
      %v811 = vpop.f32.mrf.mxu0
      %812 = vdwg.mxu0
      %v813 = vpack.c.bf16 %v808, %v808
      %v814 = vld [vmem:[%s10] sm:$0xf]
      %s815 = scalar_lea.vmem %s4, 16
      %v816 = vld [vmem:[%s815] sm:$0xf]
      %v817 = vld [vmem:[%s815 + $0x4] sm:$0xf]
      %v818 = vld [vmem:[%s815 + $0x8] sm:$0xf]
      %v819 = vld [vmem:[%s815 + $0xc] sm:$0xf]
      %s820 = scalar_lea.vmem %s5, 1
      %v821 = vld [vmem:[%s820] sm:$0x1]
      %v823 = vlaneseq
      %v824 = vshrl.u32 %v823, 7
      %v825 = vsub.s32 0, %v824
      %v826 = vrot.slane %v821, %v825
      %v832 = vunpack.c.l.b16 %v816
      %v833 = vunpack.c.l.b16 %v817
      %v834 = vunpack.c.l.b16 %v818
      %v835 = vunpack.c.l.b16 %v819
      %v836 = vpack.c.b16 %v833, %v832
      %v837 = vpack.c.b16 %v835, %v834
      %840 = vmatprep.subr.bf16.mxu0 0
      %841 = vmatpush1.bf16.msra.mxu0 0
      %842 = vmatprep.subr.bf16.mxu0 0
      %843 = vmatpush1.bf16.msra.mxu0 0
      %844 = vmatprep.subr.bf16.mxu0 0
      %845 = vmatpush1.bf16.msra.mxu0 0
      %846 = vmatprep.subr.bf16.mxu0 0
      %847 = vmatpush1.bf16.msra.mxu0 0
      %848 = vmatprep.subr.bf16.mxu0 0
      %849 = vmatpush1.bf16.msra.mxu0 0
      %850 = vmatprep.subr.bf16.mxu0 0
      %851 = vmatpush1.bf16.msra.mxu0 0
      %852 = vmatprep.subr.bf16.mxu0 0
      %853 = vmatpush1.bf16.msra.mxu0 %v837
      %854 = vmatprep.subr.bf16.mxu0 0
      %855 = vmatpush1.bf16.msra.mxu0 %v836
      %856 = vmatprep.subr.bf16.mxu0 0
      %857 = vmatpush2.bf16.msra.mxu0 0
      %858 = vmatprep.subr.bf16.mxu0 0
      %859 = vmatpush2.bf16.msra.mxu0 0
      %860 = vmatprep.subr.bf16.mxu0 0
      %861 = vmatpush2.bf16.msra.mxu0 0
      %862 = vmatprep.subr.bf16.mxu0 0
      %863 = vmatpush2.bf16.msra.mxu0 0
      %864 = vmatprep.subr.bf16.mxu0 0
      %865 = vmatpush2.bf16.msra.mxu0 0
      %866 = vmatprep.subr.bf16.mxu0 0
      %867 = vmatpush2.bf16.msra.mxu0 0
      %868 = vmatprep.subr.bf16.mxu0 0
      %869 = vmatpush2.bf16.msra.mxu0 0
      %870 = vmatprep.subr.bf16.mxu0 0
      %871 = vmatpush2.bf16.msra.mxu0 0
      %872 = vmatprep.mubr.bf16.mxu0 0
      %873 = vmatmul.mubr.bf16.gmra.mxu0 %v529
      %v874 = vpop.f32.mrf.mxu0
      %v875 = vadd.f32 %v826, %v874
      %v876 = vpop.f32.mrf.mxu0
      %v877 = vpop.f32.mrf.mxu0
      %v878 = vpop.f32.mrf.mxu0
      %879 = vdwg.mxu0
      %s880 = scalar_lea.vmem %s6, 16
      %v881 = vld [vmem:[%s880] sm:$0xf]
      %v882 = vld [vmem:[%s880 + $0x4] sm:$0xf]
      %v883 = vld [vmem:[%s880 + $0x8] sm:$0xf]
      %v884 = vld [vmem:[%s880 + $0xc] sm:$0xf]
      %s885 = scalar_lea.vmem %s7, 1
      %v886 = vld [vmem:[%s885] sm:$0x1]
      %v888 = vlaneseq
      %v889 = vshrl.u32 %v888, 7
      %v890 = vsub.s32 0, %v889
      %v891 = vrot.slane %v886, %v890
      %v897 = vunpack.c.l.b16 %v881
      %v898 = vunpack.c.l.b16 %v882
      %v899 = vunpack.c.l.b16 %v883
      %v900 = vunpack.c.l.b16 %v884
      %v901 = vpack.c.b16 %v898, %v897
      %v902 = vpack.c.b16 %v900, %v899
      %905 = vmatprep.subr.bf16.mxu0 0
      %906 = vmatpush1.bf16.msra.mxu0 0
      %907 = vmatprep.subr.bf16.mxu0 0
      %908 = vmatpush1.bf16.msra.mxu0 0
      %909 = vmatprep.subr.bf16.mxu0 0
      %910 = vmatpush1.bf16.msra.mxu0 0
      %911 = vmatprep.subr.bf16.mxu0 0
      %912 = vmatpush1.bf16.msra.mxu0 0
      %913 = vmatprep.subr.bf16.mxu0 0
      %914 = vmatpush1.bf16.msra.mxu0 0
      %915 = vmatprep.subr.bf16.mxu0 0
      %916 = vmatpush1.bf16.msra.mxu0 0
      %917 = vmatprep.subr.bf16.mxu0 0
      %918 = vmatpush1.bf16.msra.mxu0 %v902
      %919 = vmatprep.subr.bf16.mxu0 0
      %920 = vmatpush1.bf16.msra.mxu0 %v901
      %921 = vmatprep.subr.bf16.mxu0 0
      %922 = vmatpush2.bf16.msra.mxu0 0
      %923 = vmatprep.subr.bf16.mxu0 0
      %924 = vmatpush2.bf16.msra.mxu0 0
      %925 = vmatprep.subr.bf16.mxu0 0
      %926 = vmatpush2.bf16.msra.mxu0 0
      %927 = vmatprep.subr.bf16.mxu0 0
      %928 = vmatpush2.bf16.msra.mxu0 0
      %929 = vmatprep.subr.bf16.mxu0 0
      %930 = vmatpush2.bf16.msra.mxu0 0
      %931 = vmatprep.subr.bf16.mxu0 0
      %932 = vmatpush2.bf16.msra.mxu0 0
      %933 = vmatprep.subr.bf16.mxu0 0
      %934 = vmatpush2.bf16.msra.mxu0 0
      %935 = vmatprep.subr.bf16.mxu0 0
      %936 = vmatpush2.bf16.msra.mxu0 0
      %937 = vmatprep.mubr.bf16.mxu0 0
      %938 = vmatmul.mubr.bf16.gmra.mxu0 %v529
      %v939 = vpop.f32.mrf.mxu0
      %v940 = vadd.f32 %v891, %v939
      %v941 = vpop.f32.mrf.mxu0
      %v942 = vpop.f32.mrf.mxu0
      %v943 = vpop.f32.mrf.mxu0
      %944 = vdwg.mxu0
      %s945 = scalar_lea.vmem %s8, 16
      %v946 = vld [vmem:[%s945] sm:$0xf]
      %v947 = vld [vmem:[%s945 + $0x4] sm:$0xf]
      %v948 = vld [vmem:[%s945 + $0x8] sm:$0xf]
      %v949 = vld [vmem:[%s945 + $0xc] sm:$0xf]
      %s950 = scalar_lea.vmem %s9, 1
      %v951 = vld [vmem:[%s950] sm:$0x1]
      %v953 = vlaneseq
      %v954 = vshrl.u32 %v953, 7
      %v955 = vsub.s32 0, %v954
      %v956 = vrot.slane %v951, %v955
      %v962 = vunpack.c.l.b16 %v946
      %v963 = vunpack.c.l.b16 %v947
      %v964 = vunpack.c.l.b16 %v948
      %v965 = vunpack.c.l.b16 %v949
      %v966 = vpack.c.b16 %v963, %v962
      %v967 = vpack.c.b16 %v965, %v964
      %970 = vmatprep.subr.bf16.mxu0 0
      %971 = vmatpush1.bf16.msra.mxu0 0
      %972 = vmatprep.subr.bf16.mxu0 0
      %973 = vmatpush1.bf16.msra.mxu0 0
      %974 = vmatprep.subr.bf16.mxu0 0
      %975 = vmatpush1.bf16.msra.mxu0 0
      %976 = vmatprep.subr.bf16.mxu0 0
      %977 = vmatpush1.bf16.msra.mxu0 0
      %978 = vmatprep.subr.bf16.mxu0 0
      %979 = vmatpush1.bf16.msra.mxu0 0
      %980 = vmatprep.subr.bf16.mxu0 0
      %981 = vmatpush1.bf16.msra.mxu0 0
      %982 = vmatprep.subr.bf16.mxu0 0
      %983 = vmatpush1.bf16.msra.mxu0 %v967
      %984 = vmatprep.subr.bf16.mxu0 0
      %985 = vmatpush1.bf16.msra.mxu0 %v966
      %986 = vmatprep.subr.bf16.mxu0 0
      %987 = vmatpush2.bf16.msra.mxu0 0
      %988 = vmatprep.subr.bf16.mxu0 0
      %989 = vmatpush2.bf16.msra.mxu0 0
      %990 = vmatprep.subr.bf16.mxu0 0
      %991 = vmatpush2.bf16.msra.mxu0 0
      %992 = vmatprep.subr.bf16.mxu0 0
      %993 = vmatpush2.bf16.msra.mxu0 0
      %994 = vmatprep.subr.bf16.mxu0 0
      %995 = vmatpush2.bf16.msra.mxu0 0
      %996 = vmatprep.subr.bf16.mxu0 0
      %997 = vmatpush2.bf16.msra.mxu0 0
      %998 = vmatprep.subr.bf16.mxu0 0
      %999 = vmatpush2.bf16.msra.mxu0 0
      %1000 = vmatprep.subr.bf16.mxu0 0
      %1001 = vmatpush2.bf16.msra.mxu0 0
      %1002 = vmatprep.mubr.bf16.mxu0 0
      %1003 = vmatmul.mubr.bf16.gmra.mxu0 %v529
      %v1004 = vpop.f32.mrf.mxu0
      %v1005 = vadd.f32 %v956, %v1004
      %v1006 = vpop.f32.mrf.mxu0
      %v1007 = vpop.f32.mrf.mxu0
      %v1008 = vpop.f32.mrf.mxu0
      %1009 = vdwg.mxu0
      %v1010 = vpack.c.bf16 %v875, %v875
      %v1011 = vpack.c.bf16 %v940, %v940
      %v1013 = vsel %vm699, %v1010, 0
      %v1016 = vsel %vm699, %v1011, 0
      %1018 = vmatprep.subr.bf16.mxu0 0
      %1019 = vmatpush1.bf16.xpose.msra.mxu0 0
      %1020 = vmatprep.subr.bf16.mxu0 0
      %1021 = vmatpush1.bf16.xpose.msra.mxu0 0
      %1022 = vmatprep.subr.bf16.mxu0 0
      %1023 = vmatpush1.bf16.xpose.msra.mxu0 0
      %1024 = vmatprep.subr.bf16.mxu0 0
      %1025 = vmatpush1.bf16.xpose.msra.mxu0 0
      %1026 = vmatprep.subr.bf16.mxu0 0
      %1027 = vmatpush1.bf16.xpose.msra.mxu0 0
      %1028 = vmatprep.subr.bf16.mxu0 0
      %1029 = vmatpush1.bf16.xpose.msra.mxu0 0
      %1030 = vmatprep.subr.bf16.mxu0 0
      %1031 = vmatpush1.bf16.xpose.msra.mxu0 0
      %1032 = vmatprep.subr.bf16.mxu0 0
      %1033 = vmatpush1.bf16.xpose.msra.mxu0 %v1016
      %1034 = vmatprep.subr.bf16.mxu0 0
      %1035 = vmatpush2.bf16.xpose.msra.mxu0 0
      %1036 = vmatprep.subr.bf16.mxu0 0
      %1037 = vmatpush2.bf16.xpose.msra.mxu0 0
      %1038 = vmatprep.subr.bf16.mxu0 0
      %1039 = vmatpush2.bf16.xpose.msra.mxu0 0
      %1040 = vmatprep.subr.bf16.mxu0 0
      %1041 = vmatpush2.bf16.xpose.msra.mxu0 0
      %1042 = vmatprep.subr.bf16.mxu0 0
      %1043 = vmatpush2.bf16.xpose.msra.mxu0 0
      %1044 = vmatprep.subr.bf16.mxu0 0
      %1045 = vmatpush2.bf16.xpose.msra.mxu0 0
      %1046 = vmatprep.subr.bf16.mxu0 0
      %1047 = vmatpush2.bf16.xpose.msra.mxu0 0
      %1048 = vmatprep.subr.bf16.mxu0 0
      %1049 = vmatpush2.bf16.xpose.msra.mxu0 0
      %1050 = vmatprep.mubr.bf16.mxu0 0
      %1051 = vmatmul.mubr.bf16.gmra.mxu0 %v1013
      %v1052 = vpop.f32.mrf.mxu0
      %v1053 = vadd.f32 0.0, %v1052
      %v1054 = vpop.f32.mrf.mxu0
      %v1055 = vpop.f32.mrf.mxu0
      %v1056 = vpop.f32.mrf.mxu0
      %1057 = vdwg.mxu0
      %v1058 = vmul.f32 %v1053, 0.35355338
      %v1059 = vsel %vm749, %v1058, -1e+09
      %v1060 = vsel %vm699, %v1059, -inf
      %1061 = vmax.xlane.f32.xlu0 %v1060
      %v1062 = vpop.xlane.xlu0 %1061
      %v1063 = vsub.f32 %v1059, %v1062
      %v1064 = vmul.f32 %v1063, 1.442695
      %v1065 = vpow.pop %v1064
      %v1066 = vsel %vm699, %v1065, 0.0
      %1067 = vadd.xlane.f32.xlu0 %v1066
      %v1068 = vpop.xlane.xlu0 %1067
      %v1069 = vrcp.pop %v1068
      %v1070 = vmul.f32 %v1065, %v1069
      %v1071 = vpack.c.bf16 %v1070, %v1070
      %s1072 = scalar_lea.vmem %s465, 4
      %1073 = vst.msk [vmem:[%s1072] sm:$0xf] %vm763, %v1071
      %v1074 = vpack.c.bf16 %v1005, %v1005
      %v1076 = vsel %vm699, %v1071, 0
      %v1079 = vsel %vm769, %v1074, 0
      %1081 = vmatprep.subr.bf16.mxu0 0
      %1082 = vmatpush1.bf16.msra.mxu0 0
      %1083 = vmatprep.subr.bf16.mxu0 0
      %1084 = vmatpush1.bf16.msra.mxu0 0
      %1085 = vmatprep.subr.bf16.mxu0 0
      %1086 = vmatpush1.bf16.msra.mxu0 0
      %1087 = vmatprep.subr.bf16.mxu0 0
      %1088 = vmatpush1.bf16.msra.mxu0 0
      %1089 = vmatprep.subr.bf16.mxu0 0
      %1090 = vmatpush1.bf16.msra.mxu0 0
      %1091 = vmatprep.subr.bf16.mxu0 0
      %1092 = vmatpush1.bf16.msra.mxu0 0
      %1093 = vmatprep.subr.bf16.mxu0 0
      %1094 = vmatpush1.bf16.msra.mxu0 0
      %1095 = vmatprep.subr.bf16.mxu0 0
      %1096 = vmatpush1.bf16.msra.mxu0 %v1079
      %1097 = vmatprep.subr.bf16.mxu0 0
      %1098 = vmatpush2.bf16.msra.mxu0 0
      %1099 = vmatprep.subr.bf16.mxu0 0
      %1100 = vmatpush2.bf16.msra.mxu0 0
      %1101 = vmatprep.subr.bf16.mxu0 0
      %1102 = vmatpush2.bf16.msra.mxu0 0
      %1103 = vmatprep.subr.bf16.mxu0 0
      %1104 = vmatpush2.bf16.msra.mxu0 0
      %1105 = vmatprep.subr.bf16.mxu0 0
      %1106 = vmatpush2.bf16.msra.mxu0 0
      %1107 = vmatprep.subr.bf16.mxu0 0
      %1108 = vmatpush2.bf16.msra.mxu0 0
      %1109 = vmatprep.subr.bf16.mxu0 0
      %1110 = vmatpush2.bf16.msra.mxu0 0
      %1111 = vmatprep.subr.bf16.mxu0 0
      %1112 = vmatpush2.bf16.msra.mxu0 0
      %1113 = vmatprep.mubr.bf16.mxu0 0
      %1114 = vmatmul.mubr.bf16.gmra.mxu0 %v1076
      %v1115 = vpop.f32.mrf.mxu0
      %v1116 = vadd.f32 0.0, %v1115
      %v1117 = vpop.f32.mrf.mxu0
      %v1118 = vpop.f32.mrf.mxu0
      %v1119 = vpop.f32.mrf.mxu0
      %1120 = vdwg.mxu0
      %v1121 = vpack.c.bf16 %v1116, %v1116
      %s1122 = scalar_lea.vmem %s10, 4
      %v1123 = vld [vmem:[%s1122] sm:$0xf]
      %v1125 = vsel %vm699, %v1121, 0
      %v1128 = vsel %vm769, %v1123, 0
      %1130 = vmatprep.subr.bf16.mxu0 0
      %1131 = vmatpush1.bf16.msra.mxu0 0
      %1132 = vmatprep.subr.bf16.mxu0 0
      %1133 = vmatpush1.bf16.msra.mxu0 0
      %1134 = vmatprep.subr.bf16.mxu0 0
      %1135 = vmatpush1.bf16.msra.mxu0 0
      %1136 = vmatprep.subr.bf16.mxu0 0
      %1137 = vmatpush1.bf16.msra.mxu0 0
      %1138 = vmatprep.subr.bf16.mxu0 0
      %1139 = vmatpush1.bf16.msra.mxu0 0
      %1140 = vmatprep.subr.bf16.mxu0 0
      %1141 = vmatpush1.bf16.msra.mxu0 0
      %1142 = vmatprep.subr.bf16.mxu0 0
      %1143 = vmatpush1.bf16.msra.mxu0 0
      %1144 = vmatprep.subr.bf16.mxu0 0
      %1145 = vmatpush1.bf16.msra.mxu0 %v1128
      %1146 = vmatprep.subr.bf16.mxu0 0
      %1147 = vmatpush2.bf16.msra.mxu0 0
      %1148 = vmatprep.subr.bf16.mxu0 0
      %1149 = vmatpush2.bf16.msra.mxu0 0
      %1150 = vmatprep.subr.bf16.mxu0 0
      %1151 = vmatpush2.bf16.msra.mxu0 0
      %1152 = vmatprep.subr.bf16.mxu0 0
      %1153 = vmatpush2.bf16.msra.mxu0 0
      %1154 = vmatprep.subr.bf16.mxu0 0
      %1155 = vmatpush2.bf16.msra.mxu0 0
      %1156 = vmatprep.subr.bf16.mxu0 0
      %1157 = vmatpush2.bf16.msra.mxu0 0
      %1158 = vmatprep.subr.bf16.mxu0 0
      %1159 = vmatpush2.bf16.msra.mxu0 0
      %1160 = vmatprep.subr.bf16.mxu0 0
      %1161 = vmatpush2.bf16.msra.mxu0 0
      %1162 = vmatprep.mubr.bf16.mxu0 0
      %1163 = vmatmul.mubr.bf16.gmra.mxu0 %v1125
      %v1164 = vpop.f32.mrf.mxu0
      %v1165 = vadd.f32 0.0, %v1164
      %v1166 = vpop.f32.mrf.mxu0
      %v1167 = vpop.f32.mrf.mxu0
      %v1168 = vpop.f32.mrf.mxu0
      %1169 = vdwg.mxu0
      %v1171 = vsel %vm699, %v813, 0
      %v1174 = vsel %vm769, %v814, 0
      %1176 = vmatprep.subr.bf16.mxu0 0
      %1177 = vmatpush1.bf16.msra.mxu0 0
      %1178 = vmatprep.subr.bf16.mxu0 0
      %1179 = vmatpush1.bf16.msra.mxu0 0
      %1180 = vmatprep.subr.bf16.mxu0 0
      %1181 = vmatpush1.bf16.msra.mxu0 0
      %1182 = vmatprep.subr.bf16.mxu0 0
      %1183 = vmatpush1.bf16.msra.mxu0 0
      %1184 = vmatprep.subr.bf16.mxu0 0
      %1185 = vmatpush1.bf16.msra.mxu0 0
      %1186 = vmatprep.subr.bf16.mxu0 0
      %1187 = vmatpush1.bf16.msra.mxu0 0
      %1188 = vmatprep.subr.bf16.mxu0 0
      %1189 = vmatpush1.bf16.msra.mxu0 0
      %1190 = vmatprep.subr.bf16.mxu0 0
      %1191 = vmatpush1.bf16.msra.mxu0 %v1174
      %1192 = vmatprep.subr.bf16.mxu0 0
      %1193 = vmatpush2.bf16.msra.mxu0 0
      %1194 = vmatprep.subr.bf16.mxu0 0
      %1195 = vmatpush2.bf16.msra.mxu0 0
      %1196 = vmatprep.subr.bf16.mxu0 0
      %1197 = vmatpush2.bf16.msra.mxu0 0
      %1198 = vmatprep.subr.bf16.mxu0 0
      %1199 = vmatpush2.bf16.msra.mxu0 0
      %1200 = vmatprep.subr.bf16.mxu0 0
      %1201 = vmatpush2.bf16.msra.mxu0 0
      %1202 = vmatprep.subr.bf16.mxu0 0
      %1203 = vmatpush2.bf16.msra.mxu0 0
      %1204 = vmatprep.subr.bf16.mxu0 0
      %1205 = vmatpush2.bf16.msra.mxu0 0
      %1206 = vmatprep.subr.bf16.mxu0 0
      %1207 = vmatpush2.bf16.msra.mxu0 0
      %1208 = vmatprep.mubr.bf16.mxu0 0
      %1209 = vmatmul.mubr.bf16.gmra.mxu0 %v1171
      %v1210 = vpop.f32.mrf.mxu0
      %v1211 = vadd.f32 %v1165, %v1210
      %v1212 = vpop.f32.mrf.mxu0
      %v1213 = vpop.f32.mrf.mxu0
      %v1214 = vpop.f32.mrf.mxu0
      %1215 = vdwg.mxu0
      %s1216 = scalar_lea.vmem %s4, 32
      %v1217 = vld [vmem:[%s1216] sm:$0xf]
      %v1218 = vld [vmem:[%s1216 + $0x4] sm:$0xf]
      %v1219 = vld [vmem:[%s1216 + $0x8] sm:$0xf]
      %v1220 = vld [vmem:[%s1216 + $0xc] sm:$0xf]
      %s1221 = scalar_lea.vmem %s5, 2
      %v1222 = vld [vmem:[%s1221] sm:$0x1]
      %v1224 = vlaneseq
      %v1225 = vshrl.u32 %v1224, 7
      %v1226 = vsub.s32 0, %v1225
      %v1227 = vrot.slane %v1222, %v1226
      %v1233 = vunpack.c.l.b16 %v1217
      %v1234 = vunpack.c.l.b16 %v1218
      %v1235 = vunpack.c.l.b16 %v1219
      %v1236 = vunpack.c.l.b16 %v1220
      %v1237 = vpack.c.b16 %v1234, %v1233
      %v1238 = vpack.c.b16 %v1236, %v1235
      %1241 = vmatprep.subr.bf16.mxu0 0
      %1242 = vmatpush1.bf16.msra.mxu0 0
      %1243 = vmatprep.subr.bf16.mxu0 0
      %1244 = vmatpush1.bf16.msra.mxu0 0
      %1245 = vmatprep.subr.bf16.mxu0 0
      %1246 = vmatpush1.bf16.msra.mxu0 0
      %1247 = vmatprep.subr.bf16.mxu0 0
      %1248 = vmatpush1.bf16.msra.mxu0 0
      %1249 = vmatprep.subr.bf16.mxu0 0
      %1250 = vmatpush1.bf16.msra.mxu0 0
      %1251 = vmatprep.subr.bf16.mxu0 0
      %1252 = vmatpush1.bf16.msra.mxu0 0
      %1253 = vmatprep.subr.bf16.mxu0 0
      %1254 = vmatpush1.bf16.msra.mxu0 %v1238
      %1255 = vmatprep.subr.bf16.mxu0 0
      %1256 = vmatpush1.bf16.msra.mxu0 %v1237
      %1257 = vmatprep.subr.bf16.mxu0 0
      %1258 = vmatpush2.bf16.msra.mxu0 0
      %1259 = vmatprep.subr.bf16.mxu0 0
      %1260 = vmatpush2.bf16.msra.mxu0 0
      %1261 = vmatprep.subr.bf16.mxu0 0
      %1262 = vmatpush2.bf16.msra.mxu0 0
      %1263 = vmatprep.subr.bf16.mxu0 0
      %1264 = vmatpush2.bf16.msra.mxu0 0
      %1265 = vmatprep.subr.bf16.mxu0 0
      %1266 = vmatpush2.bf16.msra.mxu0 0
      %1267 = vmatprep.subr.bf16.mxu0 0
      %1268 = vmatpush2.bf16.msra.mxu0 0
      %1269 = vmatprep.subr.bf16.mxu0 0
      %1270 = vmatpush2.bf16.msra.mxu0 0
      %1271 = vmatprep.subr.bf16.mxu0 0
      %1272 = vmatpush2.bf16.msra.mxu0 0
      %1273 = vmatprep.mubr.bf16.mxu0 0
      %1274 = vmatmul.mubr.bf16.gmra.mxu0 %v529
      %v1275 = vpop.f32.mrf.mxu0
      %v1276 = vadd.f32 %v1227, %v1275
      %v1277 = vpop.f32.mrf.mxu0
      %v1278 = vpop.f32.mrf.mxu0
      %v1279 = vpop.f32.mrf.mxu0
      %1280 = vdwg.mxu0
      %s1281 = scalar_lea.vmem %s6, 32
      %v1282 = vld [vmem:[%s1281] sm:$0xf]
      %v1283 = vld [vmem:[%s1281 + $0x4] sm:$0xf]
      %v1284 = vld [vmem:[%s1281 + $0x8] sm:$0xf]
      %v1285 = vld [vmem:[%s1281 + $0xc] sm:$0xf]
      %s1286 = scalar_lea.vmem %s7, 2
      %v1287 = vld [vmem:[%s1286] sm:$0x1]
      %v1289 = vlaneseq
      %v1290 = vshrl.u32 %v1289, 7
      %v1291 = vsub.s32 0, %v1290
      %v1292 = vrot.slane %v1287, %v1291
      %v1298 = vunpack.c.l.b16 %v1282
      %v1299 = vunpack.c.l.b16 %v1283
      %v1300 = vunpack.c.l.b16 %v1284
      %v1301 = vunpack.c.l.b16 %v1285
      %v1302 = vpack.c.b16 %v1299, %v1298
      %v1303 = vpack.c.b16 %v1301, %v1300
      %1306 = vmatprep.subr.bf16.mxu0 0
      %1307 = vmatpush1.bf16.msra.mxu0 0
      %1308 = vmatprep.subr.bf16.mxu0 0
      %1309 = vmatpush1.bf16.msra.mxu0 0
      %1310 = vmatprep.subr.bf16.mxu0 0
      %1311 = vmatpush1.bf16.msra.mxu0 0
      %1312 = vmatprep.subr.bf16.mxu0 0
      %1313 = vmatpush1.bf16.msra.mxu0 0
      %1314 = vmatprep.subr.bf16.mxu0 0
      %1315 = vmatpush1.bf16.msra.mxu0 0
      %1316 = vmatprep.subr.bf16.mxu0 0
      %1317 = vmatpush1.bf16.msra.mxu0 0
      %1318 = vmatprep.subr.bf16.mxu0 0
      %1319 = vmatpush1.bf16.msra.mxu0 %v1303
      %1320 = vmatprep.subr.bf16.mxu0 0
      %1321 = vmatpush1.bf16.msra.mxu0 %v1302
      %1322 = vmatprep.subr.bf16.mxu0 0
      %1323 = vmatpush2.bf16.msra.mxu0 0
      %1324 = vmatprep.subr.bf16.mxu0 0
      %1325 = vmatpush2.bf16.msra.mxu0 0
      %1326 = vmatprep.subr.bf16.mxu0 0
      %1327 = vmatpush2.bf16.msra.mxu0 0
      %1328 = vmatprep.subr.bf16.mxu0 0
      %1329 = vmatpush2.bf16.msra.mxu0 0
      %1330 = vmatprep.subr.bf16.mxu0 0
      %1331 = vmatpush2.bf16.msra.mxu0 0
      %1332 = vmatprep.subr.bf16.mxu0 0
      %1333 = vmatpush2.bf16.msra.mxu0 0
      %1334 = vmatprep.subr.bf16.mxu0 0
      %1335 = vmatpush2.bf16.msra.mxu0 0
      %1336 = vmatprep.subr.bf16.mxu0 0
      %1337 = vmatpush2.bf16.msra.mxu0 0
      %1338 = vmatprep.mubr.bf16.mxu0 0
      %1339 = vmatmul.mubr.bf16.gmra.mxu0 %v529
      %v1340 = vpop.f32.mrf.mxu0
      %v1341 = vadd.f32 %v1292, %v1340
      %v1342 = vpop.f32.mrf.mxu0
      %v1343 = vpop.f32.mrf.mxu0
      %v1344 = vpop.f32.mrf.mxu0
      %1345 = vdwg.mxu0
      %s1346 = scalar_lea.vmem %s8, 32
      %v1347 = vld [vmem:[%s1346] sm:$0xf]
      %v1348 = vld [vmem:[%s1346 + $0x4] sm:$0xf]
      %v1349 = vld [vmem:[%s1346 + $0x8] sm:$0xf]
      %v1350 = vld [vmem:[%s1346 + $0xc] sm:$0xf]
      %s1351 = scalar_lea.vmem %s9, 2
      %v1352 = vld [vmem:[%s1351] sm:$0x1]
      %v1354 = vlaneseq
      %v1355 = vshrl.u32 %v1354, 7
      %v1356 = vsub.s32 0, %v1355
      %v1357 = vrot.slane %v1352, %v1356
      %v1363 = vunpack.c.l.b16 %v1347
      %v1364 = vunpack.c.l.b16 %v1348
      %v1365 = vunpack.c.l.b16 %v1349
      %v1366 = vunpack.c.l.b16 %v1350
      %v1367 = vpack.c.b16 %v1364, %v1363
      %v1368 = vpack.c.b16 %v1366, %v1365
      %1371 = vmatprep.subr.bf16.mxu0 0
      %1372 = vmatpush1.bf16.msra.mxu0 0
      %1373 = vmatprep.subr.bf16.mxu0 0
      %1374 = vmatpush1.bf16.msra.mxu0 0
      %1375 = vmatprep.subr.bf16.mxu0 0
      %1376 = vmatpush1.bf16.msra.mxu0 0
      %1377 = vmatprep.subr.bf16.mxu0 0
      %1378 = vmatpush1.bf16.msra.mxu0 0
      %1379 = vmatprep.subr.bf16.mxu0 0
      %1380 = vmatpush1.bf16.msra.mxu0 0
      %1381 = vmatprep.subr.bf16.mxu0 0
      %1382 = vmatpush1.bf16.msra.mxu0 0
      %1383 = vmatprep.subr.bf16.mxu0 0
      %1384 = vmatpush1.bf16.msra.mxu0 %v1368
      %1385 = vmatprep.subr.bf16.mxu0 0
      %1386 = vmatpush1.bf16.msra.mxu0 %v1367
      %1387 = vmatprep.subr.bf16.mxu0 0
      %1388 = vmatpush2.bf16.msra.mxu0 0
      %1389 = vmatprep.subr.bf16.mxu0 0
      %1390 = vmatpush2.bf16.msra.mxu0 0
      %1391 = vmatprep.subr.bf16.mxu0 0
      %1392 = vmatpush2.bf16.msra.mxu0 0
      %1393 = vmatprep.subr.bf16.mxu0 0
      %1394 = vmatpush2.bf16.msra.mxu0 0
      %1395 = vmatprep.subr.bf16.mxu0 0
      %1396 = vmatpush2.bf16.msra.mxu0 0
      %1397 = vmatprep.subr.bf16.mxu0 0
      %1398 = vmatpush2.bf16.msra.mxu0 0
      %1399 = vmatprep.subr.bf16.mxu0 0
      %1400 = vmatpush2.bf16.msra.mxu0 0
      %1401 = vmatprep.subr.bf16.mxu0 0
      %1402 = vmatpush2.bf16.msra.mxu0 0
      %1403 = vmatprep.mubr.bf16.mxu0 0
      %1404 = vmatmul.mubr.bf16.gmra.mxu0 %v529
      %v1405 = vpop.f32.mrf.mxu0
      %v1406 = vadd.f32 %v1357, %v1405
      %v1407 = vpop.f32.mrf.mxu0
      %v1408 = vpop.f32.mrf.mxu0
      %v1409 = vpop.f32.mrf.mxu0
      %1410 = vdwg.mxu0
      %v1411 = vpack.c.bf16 %v1276, %v1276
      %v1412 = vpack.c.bf16 %v1341, %v1341
      %v1414 = vsel %vm699, %v1411, 0
      %v1417 = vsel %vm699, %v1412, 0
      %1419 = vmatprep.subr.bf16.mxu0 0
      %1420 = vmatpush1.bf16.xpose.msra.mxu0 0
      %1421 = vmatprep.subr.bf16.mxu0 0
      %1422 = vmatpush1.bf16.xpose.msra.mxu0 0
      %1423 = vmatprep.subr.bf16.mxu0 0
      %1424 = vmatpush1.bf16.xpose.msra.mxu0 0
      %1425 = vmatprep.subr.bf16.mxu0 0
      %1426 = vmatpush1.bf16.xpose.msra.mxu0 0
      %1427 = vmatprep.subr.bf16.mxu0 0
      %1428 = vmatpush1.bf16.xpose.msra.mxu0 0
      %1429 = vmatprep.subr.bf16.mxu0 0
      %1430 = vmatpush1.bf16.xpose.msra.mxu0 0
      %1431 = vmatprep.subr.bf16.mxu0 0
      %1432 = vmatpush1.bf16.xpose.msra.mxu0 0
      %1433 = vmatprep.subr.bf16.mxu0 0
      %1434 = vmatpush1.bf16.xpose.msra.mxu0 %v1417
      %1435 = vmatprep.subr.bf16.mxu0 0
      %1436 = vmatpush2.bf16.xpose.msra.mxu0 0
      %1437 = vmatprep.subr.bf16.mxu0 0
      %1438 = vmatpush2.bf16.xpose.msra.mxu0 0
      %1439 = vmatprep.subr.bf16.mxu0 0
      %1440 = vmatpush2.bf16.xpose.msra.mxu0 0
      %1441 = vmatprep.subr.bf16.mxu0 0
      %1442 = vmatpush2.bf16.xpose.msra.mxu0 0
      %1443 = vmatprep.subr.bf16.mxu0 0
      %1444 = vmatpush2.bf16.xpose.msra.mxu0 0
      %1445 = vmatprep.subr.bf16.mxu0 0
      %1446 = vmatpush2.bf16.xpose.msra.mxu0 0
      %1447 = vmatprep.subr.bf16.mxu0 0
      %1448 = vmatpush2.bf16.xpose.msra.mxu0 0
      %1449 = vmatprep.subr.bf16.mxu0 0
      %1450 = vmatpush2.bf16.xpose.msra.mxu0 0
      %1451 = vmatprep.mubr.bf16.mxu0 0
      %1452 = vmatmul.mubr.bf16.gmra.mxu0 %v1414
      %v1453 = vpop.f32.mrf.mxu0
      %v1454 = vadd.f32 0.0, %v1453
      %v1455 = vpop.f32.mrf.mxu0
      %v1456 = vpop.f32.mrf.mxu0
      %v1457 = vpop.f32.mrf.mxu0
      %1458 = vdwg.mxu0
      %v1459 = vmul.f32 %v1454, 0.35355338
      %v1460 = vsel %vm749, %v1459, -1e+09
      %v1461 = vsel %vm699, %v1460, -inf
      %1462 = vmax.xlane.f32.xlu0 %v1461
      %v1463 = vpop.xlane.xlu0 %1462
      %v1464 = vsub.f32 %v1460, %v1463
      %v1465 = vmul.f32 %v1464, 1.442695
      %v1466 = vpow.pop %v1465
      %v1467 = vsel %vm699, %v1466, 0.0
      %1468 = vadd.xlane.f32.xlu0 %v1467
      %v1469 = vpop.xlane.xlu0 %1468
      %v1470 = vrcp.pop %v1469
      %v1471 = vmul.f32 %v1466, %v1470
      %v1472 = vpack.c.bf16 %v1471, %v1471
      %s1473 = scalar_lea.vmem %s465, 8
      %1474 = vst.msk [vmem:[%s1473] sm:$0xf] %vm763, %v1472
      %v1475 = vpack.c.bf16 %v1406, %v1406
      %v1477 = vsel %vm699, %v1472, 0
      %v1480 = vsel %vm769, %v1475, 0
      %1482 = vmatprep.subr.bf16.mxu0 0
      %1483 = vmatpush1.bf16.msra.mxu0 0
      %1484 = vmatprep.subr.bf16.mxu0 0
      %1485 = vmatpush1.bf16.msra.mxu0 0
      %1486 = vmatprep.subr.bf16.mxu0 0
      %1487 = vmatpush1.bf16.msra.mxu0 0
      %1488 = vmatprep.subr.bf16.mxu0 0
      %1489 = vmatpush1.bf16.msra.mxu0 0
      %1490 = vmatprep.subr.bf16.mxu0 0
      %1491 = vmatpush1.bf16.msra.mxu0 0
      %1492 = vmatprep.subr.bf16.mxu0 0
      %1493 = vmatpush1.bf16.msra.mxu0 0
      %1494 = vmatprep.subr.bf16.mxu0 0
      %1495 = vmatpush1.bf16.msra.mxu0 0
      %1496 = vmatprep.subr.bf16.mxu0 0
      %1497 = vmatpush1.bf16.msra.mxu0 %v1480
      %1498 = vmatprep.subr.bf16.mxu0 0
      %1499 = vmatpush2.bf16.msra.mxu0 0
      %1500 = vmatprep.subr.bf16.mxu0 0
      %1501 = vmatpush2.bf16.msra.mxu0 0
      %1502 = vmatprep.subr.bf16.mxu0 0
      %1503 = vmatpush2.bf16.msra.mxu0 0
      %1504 = vmatprep.subr.bf16.mxu0 0
      %1505 = vmatpush2.bf16.msra.mxu0 0
      %1506 = vmatprep.subr.bf16.mxu0 0
      %1507 = vmatpush2.bf16.msra.mxu0 0
      %1508 = vmatprep.subr.bf16.mxu0 0
      %1509 = vmatpush2.bf16.msra.mxu0 0
      %1510 = vmatprep.subr.bf16.mxu0 0
      %1511 = vmatpush2.bf16.msra.mxu0 0
      %1512 = vmatprep.subr.bf16.mxu0 0
      %1513 = vmatpush2.bf16.msra.mxu0 0
      %1514 = vmatprep.mubr.bf16.mxu0 0
      %1515 = vmatmul.mubr.bf16.gmra.mxu0 %v1477
      %v1516 = vpop.f32.mrf.mxu0
      %v1517 = vadd.f32 0.0, %v1516
      %v1518 = vpop.f32.mrf.mxu0
      %v1519 = vpop.f32.mrf.mxu0
      %v1520 = vpop.f32.mrf.mxu0
      %1521 = vdwg.mxu0
      %v1522 = vpack.c.bf16 %v1517, %v1517
      %s1523 = scalar_lea.vmem %s10, 8
      %v1524 = vld [vmem:[%s1523] sm:$0xf]
      %v1526 = vsel %vm699, %v1522, 0
      %v1529 = vsel %vm769, %v1524, 0
      %1531 = vmatprep.subr.bf16.mxu0 0
      %1532 = vmatpush1.bf16.msra.mxu0 0
      %1533 = vmatprep.subr.bf16.mxu0 0
      %1534 = vmatpush1.bf16.msra.mxu0 0
      %1535 = vmatprep.subr.bf16.mxu0 0
      %1536 = vmatpush1.bf16.msra.mxu0 0
      %1537 = vmatprep.subr.bf16.mxu0 0
      %1538 = vmatpush1.bf16.msra.mxu0 0
      %1539 = vmatprep.subr.bf16.mxu0 0
      %1540 = vmatpush1.bf16.msra.mxu0 0
      %1541 = vmatprep.subr.bf16.mxu0 0
      %1542 = vmatpush1.bf16.msra.mxu0 0
      %1543 = vmatprep.subr.bf16.mxu0 0
      %1544 = vmatpush1.bf16.msra.mxu0 0
      %1545 = vmatprep.subr.bf16.mxu0 0
      %1546 = vmatpush1.bf16.msra.mxu0 %v1529
      %1547 = vmatprep.subr.bf16.mxu0 0
      %1548 = vmatpush2.bf16.msra.mxu0 0
      %1549 = vmatprep.subr.bf16.mxu0 0
      %1550 = vmatpush2.bf16.msra.mxu0 0
      %1551 = vmatprep.subr.bf16.mxu0 0
      %1552 = vmatpush2.bf16.msra.mxu0 0
      %1553 = vmatprep.subr.bf16.mxu0 0
      %1554 = vmatpush2.bf16.msra.mxu0 0
      %1555 = vmatprep.subr.bf16.mxu0 0
      %1556 = vmatpush2.bf16.msra.mxu0 0
      %1557 = vmatprep.subr.bf16.mxu0 0
      %1558 = vmatpush2.bf16.msra.mxu0 0
      %1559 = vmatprep.subr.bf16.mxu0 0
      %1560 = vmatpush2.bf16.msra.mxu0 0
      %1561 = vmatprep.subr.bf16.mxu0 0
      %1562 = vmatpush2.bf16.msra.mxu0 0
      %1563 = vmatprep.mubr.bf16.mxu0 0
      %1564 = vmatmul.mubr.bf16.gmra.mxu0 %v1526
      %v1565 = vpop.f32.mrf.mxu0
      %v1566 = vadd.f32 0.0, %v1565
      %v1567 = vpop.f32.mrf.mxu0
      %v1568 = vpop.f32.mrf.mxu0
      %v1569 = vpop.f32.mrf.mxu0
      %1570 = vdwg.mxu0
      %v1571 = vadd.f32 %v1211, %v1566
      %s1572 = scalar_lea.vmem %s4, 48
      %v1573 = vld [vmem:[%s1572] sm:$0xf]
      %v1574 = vld [vmem:[%s1572 + $0x4] sm:$0xf]
      %v1575 = vld [vmem:[%s1572 + $0x8] sm:$0xf]
      %v1576 = vld [vmem:[%s1572 + $0xc] sm:$0xf]
      %s1577 = scalar_lea.vmem %s5, 3
      %v1578 = vld [vmem:[%s1577] sm:$0x1]
      %v1580 = vlaneseq
      %v1581 = vshrl.u32 %v1580, 7
      %v1582 = vsub.s32 0, %v1581
      %v1583 = vrot.slane %v1578, %v1582
      %v1589 = vunpack.c.l.b16 %v1573
      %v1590 = vunpack.c.l.b16 %v1574
      %v1591 = vunpack.c.l.b16 %v1575
      %v1592 = vunpack.c.l.b16 %v1576
      %v1593 = vpack.c.b16 %v1590, %v1589
      %v1594 = vpack.c.b16 %v1592, %v1591
      %1597 = vmatprep.subr.bf16.mxu0 0
      %1598 = vmatpush1.bf16.msra.mxu0 0
      %1599 = vmatprep.subr.bf16.mxu0 0
      %1600 = vmatpush1.bf16.msra.mxu0 0
      %1601 = vmatprep.subr.bf16.mxu0 0
      %1602 = vmatpush1.bf16.msra.mxu0 0
      %1603 = vmatprep.subr.bf16.mxu0 0
      %1604 = vmatpush1.bf16.msra.mxu0 0
      %1605 = vmatprep.subr.bf16.mxu0 0
      %1606 = vmatpush1.bf16.msra.mxu0 0
      %1607 = vmatprep.subr.bf16.mxu0 0
      %1608 = vmatpush1.bf16.msra.mxu0 0
      %1609 = vmatprep.subr.bf16.mxu0 0
      %1610 = vmatpush1.bf16.msra.mxu0 %v1594
      %1611 = vmatprep.subr.bf16.mxu0 0
      %1612 = vmatpush1.bf16.msra.mxu0 %v1593
      %1613 = vmatprep.subr.bf16.mxu0 0
      %1614 = vmatpush2.bf16.msra.mxu0 0
      %1615 = vmatprep.subr.bf16.mxu0 0
      %1616 = vmatpush2.bf16.msra.mxu0 0
      %1617 = vmatprep.subr.bf16.mxu0 0
      %1618 = vmatpush2.bf16.msra.mxu0 0
      %1619 = vmatprep.subr.bf16.mxu0 0
      %1620 = vmatpush2.bf16.msra.mxu0 0
      %1621 = vmatprep.subr.bf16.mxu0 0
      %1622 = vmatpush2.bf16.msra.mxu0 0
      %1623 = vmatprep.subr.bf16.mxu0 0
      %1624 = vmatpush2.bf16.msra.mxu0 0
      %1625 = vmatprep.subr.bf16.mxu0 0
      %1626 = vmatpush2.bf16.msra.mxu0 0
      %1627 = vmatprep.subr.bf16.mxu0 0
      %1628 = vmatpush2.bf16.msra.mxu0 0
      %1629 = vmatprep.mubr.bf16.mxu0 0
      %1630 = vmatmul.mubr.bf16.gmra.mxu0 %v529
      %v1631 = vpop.f32.mrf.mxu0
      %v1632 = vadd.f32 %v1583, %v1631
      %v1633 = vpop.f32.mrf.mxu0
      %v1634 = vpop.f32.mrf.mxu0
      %v1635 = vpop.f32.mrf.mxu0
      %1636 = vdwg.mxu0
      %s1637 = scalar_lea.vmem %s6, 48
      %v1638 = vld [vmem:[%s1637] sm:$0xf]
      %v1639 = vld [vmem:[%s1637 + $0x4] sm:$0xf]
      %v1640 = vld [vmem:[%s1637 + $0x8] sm:$0xf]
      %v1641 = vld [vmem:[%s1637 + $0xc] sm:$0xf]
      %s1642 = scalar_lea.vmem %s7, 3
      %v1643 = vld [vmem:[%s1642] sm:$0x1]
      %v1645 = vlaneseq
      %v1646 = vshrl.u32 %v1645, 7
      %v1647 = vsub.s32 0, %v1646
      %v1648 = vrot.slane %v1643, %v1647
      %v1654 = vunpack.c.l.b16 %v1638
      %v1655 = vunpack.c.l.b16 %v1639
      %v1656 = vunpack.c.l.b16 %v1640
      %v1657 = vunpack.c.l.b16 %v1641
      %v1658 = vpack.c.b16 %v1655, %v1654
      %v1659 = vpack.c.b16 %v1657, %v1656
      %1662 = vmatprep.subr.bf16.mxu0 0
      %1663 = vmatpush1.bf16.msra.mxu0 0
      %1664 = vmatprep.subr.bf16.mxu0 0
      %1665 = vmatpush1.bf16.msra.mxu0 0
      %1666 = vmatprep.subr.bf16.mxu0 0
      %1667 = vmatpush1.bf16.msra.mxu0 0
      %1668 = vmatprep.subr.bf16.mxu0 0
      %1669 = vmatpush1.bf16.msra.mxu0 0
      %1670 = vmatprep.subr.bf16.mxu0 0
      %1671 = vmatpush1.bf16.msra.mxu0 0
      %1672 = vmatprep.subr.bf16.mxu0 0
      %1673 = vmatpush1.bf16.msra.mxu0 0
      %1674 = vmatprep.subr.bf16.mxu0 0
      %1675 = vmatpush1.bf16.msra.mxu0 %v1659
      %1676 = vmatprep.subr.bf16.mxu0 0
      %1677 = vmatpush1.bf16.msra.mxu0 %v1658
      %1678 = vmatprep.subr.bf16.mxu0 0
      %1679 = vmatpush2.bf16.msra.mxu0 0
      %1680 = vmatprep.subr.bf16.mxu0 0
      %1681 = vmatpush2.bf16.msra.mxu0 0
      %1682 = vmatprep.subr.bf16.mxu0 0
      %1683 = vmatpush2.bf16.msra.mxu0 0
      %1684 = vmatprep.subr.bf16.mxu0 0
      %1685 = vmatpush2.bf16.msra.mxu0 0
      %1686 = vmatprep.subr.bf16.mxu0 0
      %1687 = vmatpush2.bf16.msra.mxu0 0
      %1688 = vmatprep.subr.bf16.mxu0 0
      %1689 = vmatpush2.bf16.msra.mxu0 0
      %1690 = vmatprep.subr.bf16.mxu0 0
      %1691 = vmatpush2.bf16.msra.mxu0 0
      %1692 = vmatprep.subr.bf16.mxu0 0
      %1693 = vmatpush2.bf16.msra.mxu0 0
      %1694 = vmatprep.mubr.bf16.mxu0 0
      %1695 = vmatmul.mubr.bf16.gmra.mxu0 %v529
      %v1696 = vpop.f32.mrf.mxu0
      %v1697 = vadd.f32 %v1648, %v1696
      %v1698 = vpop.f32.mrf.mxu0
      %v1699 = vpop.f32.mrf.mxu0
      %v1700 = vpop.f32.mrf.mxu0
      %1701 = vdwg.mxu0
      %s1702 = scalar_lea.vmem %s8, 48
      %v1703 = vld [vmem:[%s1702] sm:$0xf]
      %v1704 = vld [vmem:[%s1702 + $0x4] sm:$0xf]
      %v1705 = vld [vmem:[%s1702 + $0x8] sm:$0xf]
      %v1706 = vld [vmem:[%s1702 + $0xc] sm:$0xf]
      %s1707 = scalar_lea.vmem %s9, 3
      %v1708 = vld [vmem:[%s1707] sm:$0x1]
      %v1710 = vlaneseq
      %v1711 = vshrl.u32 %v1710, 7
      %v1712 = vsub.s32 0, %v1711
      %v1713 = vrot.slane %v1708, %v1712
      %v1719 = vunpack.c.l.b16 %v1703
      %v1720 = vunpack.c.l.b16 %v1704
      %v1721 = vunpack.c.l.b16 %v1705
      %v1722 = vunpack.c.l.b16 %v1706
      %v1723 = vpack.c.b16 %v1720, %v1719
      %v1724 = vpack.c.b16 %v1722, %v1721
      %1727 = vmatprep.subr.bf16.mxu0 0
      %1728 = vmatpush1.bf16.msra.mxu0 0
      %1729 = vmatprep.subr.bf16.mxu0 0
      %1730 = vmatpush1.bf16.msra.mxu0 0
      %1731 = vmatprep.subr.bf16.mxu0 0
      %1732 = vmatpush1.bf16.msra.mxu0 0
      %1733 = vmatprep.subr.bf16.mxu0 0
      %1734 = vmatpush1.bf16.msra.mxu0 0
      %1735 = vmatprep.subr.bf16.mxu0 0
      %1736 = vmatpush1.bf16.msra.mxu0 0
      %1737 = vmatprep.subr.bf16.mxu0 0
      %1738 = vmatpush1.bf16.msra.mxu0 0
      %1739 = vmatprep.subr.bf16.mxu0 0
      %1740 = vmatpush1.bf16.msra.mxu0 %v1724
      %1741 = vmatprep.subr.bf16.mxu0 0
      %1742 = vmatpush1.bf16.msra.mxu0 %v1723
      %1743 = vmatprep.subr.bf16.mxu0 0
      %1744 = vmatpush2.bf16.msra.mxu0 0
      %1745 = vmatprep.subr.bf16.mxu0 0
      %1746 = vmatpush2.bf16.msra.mxu0 0
      %1747 = vmatprep.subr.bf16.mxu0 0
      %1748 = vmatpush2.bf16.msra.mxu0 0
      %1749 = vmatprep.subr.bf16.mxu0 0
      %1750 = vmatpush2.bf16.msra.mxu0 0
      %1751 = vmatprep.subr.bf16.mxu0 0
      %1752 = vmatpush2.bf16.msra.mxu0 0
      %1753 = vmatprep.subr.bf16.mxu0 0
      %1754 = vmatpush2.bf16.msra.mxu0 0
      %1755 = vmatprep.subr.bf16.mxu0 0
      %1756 = vmatpush2.bf16.msra.mxu0 0
      %1757 = vmatprep.subr.bf16.mxu0 0
      %1758 = vmatpush2.bf16.msra.mxu0 0
      %1759 = vmatprep.mubr.bf16.mxu0 0
      %1760 = vmatmul.mubr.bf16.gmra.mxu0 %v529
      %v1761 = vpop.f32.mrf.mxu0
      %v1762 = vadd.f32 %v1713, %v1761
      %v1763 = vpop.f32.mrf.mxu0
      %v1764 = vpop.f32.mrf.mxu0
      %v1765 = vpop.f32.mrf.mxu0
      %1766 = vdwg.mxu0
      %v1767 = vpack.c.bf16 %v1632, %v1632
      %v1768 = vpack.c.bf16 %v1697, %v1697
      %v1770 = vsel %vm699, %v1767, 0
      %v1773 = vsel %vm699, %v1768, 0
      %1775 = vmatprep.subr.bf16.mxu0 0
      %1776 = vmatpush1.bf16.xpose.msra.mxu0 0
      %1777 = vmatprep.subr.bf16.mxu0 0
      %1778 = vmatpush1.bf16.xpose.msra.mxu0 0
      %1779 = vmatprep.subr.bf16.mxu0 0
      %1780 = vmatpush1.bf16.xpose.msra.mxu0 0
      %1781 = vmatprep.subr.bf16.mxu0 0
      %1782 = vmatpush1.bf16.xpose.msra.mxu0 0
      %1783 = vmatprep.subr.bf16.mxu0 0
      %1784 = vmatpush1.bf16.xpose.msra.mxu0 0
      %1785 = vmatprep.subr.bf16.mxu0 0
      %1786 = vmatpush1.bf16.xpose.msra.mxu0 0
      %1787 = vmatprep.subr.bf16.mxu0 0
      %1788 = vmatpush1.bf16.xpose.msra.mxu0 0
      %1789 = vmatprep.subr.bf16.mxu0 0
      %1790 = vmatpush1.bf16.xpose.msra.mxu0 %v1773
      %1791 = vmatprep.subr.bf16.mxu0 0
      %1792 = vmatpush2.bf16.xpose.msra.mxu0 0
      %1793 = vmatprep.subr.bf16.mxu0 0
      %1794 = vmatpush2.bf16.xpose.msra.mxu0 0
      %1795 = vmatprep.subr.bf16.mxu0 0
      %1796 = vmatpush2.bf16.xpose.msra.mxu0 0
      %1797 = vmatprep.subr.bf16.mxu0 0
      %1798 = vmatpush2.bf16.xpose.msra.mxu0 0
      %1799 = vmatprep.subr.bf16.mxu0 0
      %1800 = vmatpush2.bf16.xpose.msra.mxu0 0
      %1801 = vmatprep.subr.bf16.mxu0 0
      %1802 = vmatpush2.bf16.xpose.msra.mxu0 0
      %1803 = vmatprep.subr.bf16.mxu0 0
      %1804 = vmatpush2.bf16.xpose.msra.mxu0 0
      %1805 = vmatprep.subr.bf16.mxu0 0
      %1806 = vmatpush2.bf16.xpose.msra.mxu0 0
      %1807 = vmatprep.mubr.bf16.mxu0 0
      %1808 = vmatmul.mubr.bf16.gmra.mxu0 %v1770
      %v1809 = vpop.f32.mrf.mxu0
      %v1810 = vadd.f32 0.0, %v1809
      %v1811 = vpop.f32.mrf.mxu0
      %v1812 = vpop.f32.mrf.mxu0
      %v1813 = vpop.f32.mrf.mxu0
      %1814 = vdwg.mxu0
      %v1815 = vmul.f32 %v1810, 0.35355338
      %v1816 = vsel %vm749, %v1815, -1e+09
      %v1817 = vsel %vm699, %v1816, -inf
      %1818 = vmax.xlane.f32.xlu0 %v1817
      %v1819 = vpop.xlane.xlu0 %1818
      %v1820 = vsub.f32 %v1816, %v1819
      %v1821 = vmul.f32 %v1820, 1.442695
      %v1822 = vpow.pop %v1821
      %v1823 = vsel %vm699, %v1822, 0.0
      %1824 = vadd.xlane.f32.xlu0 %v1823
      %v1825 = vpop.xlane.xlu0 %1824
      %v1826 = vrcp.pop %v1825
      %v1827 = vmul.f32 %v1822, %v1826
      %v1828 = vpack.c.bf16 %v1827, %v1827
      %s1829 = scalar_lea.vmem %s465, 12
      %1830 = vst.msk [vmem:[%s1829] sm:$0xf] %vm763, %v1828
      %v1831 = vpack.c.bf16 %v1762, %v1762
      %v1833 = vsel %vm699, %v1828, 0
      %v1836 = vsel %vm769, %v1831, 0
      %1838 = vmatprep.subr.bf16.mxu0 0
      %1839 = vmatpush1.bf16.msra.mxu0 0
      %1840 = vmatprep.subr.bf16.mxu0 0
      %1841 = vmatpush1.bf16.msra.mxu0 0
      %1842 = vmatprep.subr.bf16.mxu0 0
      %1843 = vmatpush1.bf16.msra.mxu0 0
      %1844 = vmatprep.subr.bf16.mxu0 0
      %1845 = vmatpush1.bf16.msra.mxu0 0
      %1846 = vmatprep.subr.bf16.mxu0 0
      %1847 = vmatpush1.bf16.msra.mxu0 0
      %1848 = vmatprep.subr.bf16.mxu0 0
      %1849 = vmatpush1.bf16.msra.mxu0 0
      %1850 = vmatprep.subr.bf16.mxu0 0
      %1851 = vmatpush1.bf16.msra.mxu0 0
      %1852 = vmatprep.subr.bf16.mxu0 0
      %1853 = vmatpush1.bf16.msra.mxu0 %v1836
      %1854 = vmatprep.subr.bf16.mxu0 0
      %1855 = vmatpush2.bf16.msra.mxu0 0
      %1856 = vmatprep.subr.bf16.mxu0 0
      %1857 = vmatpush2.bf16.msra.mxu0 0
      %1858 = vmatprep.subr.bf16.mxu0 0
      %1859 = vmatpush2.bf16.msra.mxu0 0
      %1860 = vmatprep.subr.bf16.mxu0 0
      %1861 = vmatpush2.bf16.msra.mxu0 0
      %1862 = vmatprep.subr.bf16.mxu0 0
      %1863 = vmatpush2.bf16.msra.mxu0 0
      %1864 = vmatprep.subr.bf16.mxu0 0
      %1865 = vmatpush2.bf16.msra.mxu0 0
      %1866 = vmatprep.subr.bf16.mxu0 0
      %1867 = vmatpush2.bf16.msra.mxu0 0
      %1868 = vmatprep.subr.bf16.mxu0 0
      %1869 = vmatpush2.bf16.msra.mxu0 0
      %1870 = vmatprep.mubr.bf16.mxu0 0
      %1871 = vmatmul.mubr.bf16.gmra.mxu0 %v1833
      %v1872 = vpop.f32.mrf.mxu0
      %v1873 = vadd.f32 0.0, %v1872
      %v1874 = vpop.f32.mrf.mxu0
      %v1875 = vpop.f32.mrf.mxu0
      %v1876 = vpop.f32.mrf.mxu0
      %1877 = vdwg.mxu0
      %v1878 = vpack.c.bf16 %v1873, %v1873
      %s1879 = scalar_lea.vmem %s10, 12
      %v1880 = vld [vmem:[%s1879] sm:$0xf]
      %v1882 = vsel %vm699, %v1878, 0
      %v1885 = vsel %vm769, %v1880, 0
      %1887 = vmatprep.subr.bf16.mxu0 0
      %1888 = vmatpush1.bf16.msra.mxu0 0
      %1889 = vmatprep.subr.bf16.mxu0 0
      %1890 = vmatpush1.bf16.msra.mxu0 0
      %1891 = vmatprep.subr.bf16.mxu0 0
      %1892 = vmatpush1.bf16.msra.mxu0 0
      %1893 = vmatprep.subr.bf16.mxu0 0
      %1894 = vmatpush1.bf16.msra.mxu0 0
      %1895 = vmatprep.subr.bf16.mxu0 0
      %1896 = vmatpush1.bf16.msra.mxu0 0
      %1897 = vmatprep.subr.bf16.mxu0 0
      %1898 = vmatpush1.bf16.msra.mxu0 0
      %1899 = vmatprep.subr.bf16.mxu0 0
      %1900 = vmatpush1.bf16.msra.mxu0 0
      %1901 = vmatprep.subr.bf16.mxu0 0
      %1902 = vmatpush1.bf16.msra.mxu0 %v1885
      %1903 = vmatprep.subr.bf16.mxu0 0
      %1904 = vmatpush2.bf16.msra.mxu0 0
      %1905 = vmatprep.subr.bf16.mxu0 0
      %1906 = vmatpush2.bf16.msra.mxu0 0
      %1907 = vmatprep.subr.bf16.mxu0 0
      %1908 = vmatpush2.bf16.msra.mxu0 0
      %1909 = vmatprep.subr.bf16.mxu0 0
      %1910 = vmatpush2.bf16.msra.mxu0 0
      %1911 = vmatprep.subr.bf16.mxu0 0
      %1912 = vmatpush2.bf16.msra.mxu0 0
      %1913 = vmatprep.subr.bf16.mxu0 0
      %1914 = vmatpush2.bf16.msra.mxu0 0
      %1915 = vmatprep.subr.bf16.mxu0 0
      %1916 = vmatpush2.bf16.msra.mxu0 0
      %1917 = vmatprep.subr.bf16.mxu0 0
      %1918 = vmatpush2.bf16.msra.mxu0 0
      %1919 = vmatprep.mubr.bf16.mxu0 0
      %1920 = vmatmul.mubr.bf16.gmra.mxu0 %v1882
      %v1921 = vpop.f32.mrf.mxu0
      %v1922 = vadd.f32 0.0, %v1921
      %v1923 = vpop.f32.mrf.mxu0
      %v1924 = vpop.f32.mrf.mxu0
      %v1925 = vpop.f32.mrf.mxu0
      %1926 = vdwg.mxu0
      %v1927 = vadd.f32 %v1571, %v1922
      %v1928 = vld [vmem:[%s11] sm:$0x1]
      %v1930 = vlaneseq
      %v1931 = vshrl.u32 %v1930, 7
      %v1932 = vsub.s32 0, %v1931
      %v1933 = vrot.slane %v1928, %v1932
      %v1935 = vadd.f32 %v1927, %v1933
      %v1936 = vadd.f32 %v470, %v1935
      %v1937 = vpack.c.bf16 %v1936, %v1936
      %vm1938 = vcmask 257024
      %1939 = vst.msk [vmem:[%s460] sm:$0xf] %vm1938, %v1937
      %p1940 = scmp.lt.s32.totalorder %s25, 1
      %s1941 = scalar_select %p1940, %s25, 1
      %s1942 = smul.addr %s1941, 4
      %s1943 = scalar_lea.vmem %s12, %s1942
      %p1944 = scmp.lt.s32.totalorder %s25, 1
      %s1945 = scalar_select %p1944, %s25, 1
      %s1946 = smul.addr %s1945, 4
      %s1947 = smul.addr %s1946, 4
      %s1948 = scalar_lea.vmem %s13, %s1947
      // Predicated region
      $region69: #{_lambda_.11} parent=67 // pred_check
        %p1949 = pneg %p305
      $region70: #{_lambda_.11} parent=67 // pred_check_branch
        %1951 = sbr.rel (%p1949) target = $region72
      $region71: #{_lambda_.11} parent=67 // pred_region
        _
      $region72: #{_lambda_.11} parent=67 // pred_fallthru
        _
      // Predicated region
      $region73: #{_lambda_.11} parent=67 // pred_check
        %p1952 = pneg %p331
      $region74: #{_lambda_.11} parent=67 // pred_check_branch
        %1954 = sbr.rel (%p1952) target = $region76
      $region75: #{_lambda_.11} parent=67 // pred_region
        _
      $region76: #{_lambda_.11} parent=67 // pred_fallthru
        _
    $region68: #{_lambda_.11} parent=5 // pred_fallthru
      _
    %p1955 = scmp.le.s32.totalorder 2, %s20
    // Predicated region
    $region77: #{_lambda_.11} parent=5 // pred_check
      %p1956 = pneg %p1955
    $region78: #{_lambda_.11} parent=5 // pred_check_branch
      %1958 = sbr.rel (%p1956) target = $region80
    $region79: #{_lambda_.11} parent=5 // pred_region
      %s1959 = ssub.s32 %s20, 2
      // Predicated region
      $region81: #{_lambda_.11} parent=79 // pred_check
        %p1960 = pneg %p311
      $region82: #{_lambda_.11} parent=79 // pred_check_branch
        %1962 = sbr.rel (%p1960) target = $region84
      $region83: #{_lambda_.11} parent=79 // pred_region
        %p1963 = scmp.lt.s32.totalorder %s26, 1
        %s1964 = scalar_select %p1963, %s26, 1
        %s1965 = smul.addr %s1964, 4
        %s1966 = scalar_lea.vmem %s12, %s1965
      $region84: #{_lambda_.11} parent=79 // pred_fallthru
        _
      // Predicated region
      $region85: #{_lambda_.11} parent=79 // pred_check
        %p1967 = pneg %p337
      $region86: #{_lambda_.11} parent=79 // pred_check_branch
        %1969 = sbr.rel (%p1967) target = $region88
      $region87: #{_lambda_.11} parent=79 // pred_region
        %p1970 = scmp.lt.s32.totalorder %s26, 1
        %s1971 = scalar_select %p1970, %s26, 1
        %s1972 = smul.addr %s1971, 4
        %s1973 = smul.addr %s1972, 4
        %s1974 = scalar_lea.vmem %s13, %s1973
      $region88: #{_lambda_.11} parent=79 // pred_fallthru
        _
    $region80: #{_lambda_.11} parent=5 // pred_fallthru
      _
  $region6: #{_lambda_.11} parent=0 // loop_footer
    %s24 = sadd.s32 1, %s20
  $region7: #{_lambda_.11} parent=0 // loop_footer_branch
    %19 = sbr.rel target = $region3
  $region8: #{_lambda_.11} parent=0 // loop_exit
    _

</llo_original>
